<compile_context>
chip_gen: v7x
topology: tpu7x:2x2x1
jax: 0.10.0
libtpu: 0.0.40
codegen_flags: <defaults>
</compile_context>

<pallas_src>
import math
from functools import partial

import jax
import jax.numpy as jnp
from jax.experimental import pallas as pl
from jax.experimental.pallas import tpu as pltpu

PAD_TOKEN = 0
LN_EPS = 1e-5
NEG_INF = -1e9


def _tile_m(m):
    """Largest power-of-two row tile (<=512, multiple of 8) that divides M."""
    for t in (512, 256, 128, 64, 32, 16, 8):
        if m % t == 0:
            return t
    return m


# ----------------------------------------------------------------------------
# Pallas kernels
# ----------------------------------------------------------------------------

def _linear_kernel(x_ref, w_ref, b_ref, o_ref):
    # bf16 MXU matmul, f32 accumulation, f32 bias/output.
    o_ref[...] = (
        jnp.dot(x_ref[...].astype(jnp.bfloat16), w_ref[...],
                preferred_element_type=jnp.float32)
        + b_ref[...]
    )


def linear(x2d, w, b):
    """x2d: (M, K) f32, w: (K, N) bf16, b: (N,) f32 -> (M, N) f32."""
    M, K = x2d.shape
    N = w.shape[1]
    tm = _tile_m(M)
    return pl.pallas_call(
        _linear_kernel,
        out_shape=jax.ShapeDtypeStruct((M, N), jnp.float32),
        grid=(M // tm,),
        in_specs=[
            pl.BlockSpec((tm, K), lambda i: (i, 0)),
            pl.BlockSpec((K, N), lambda i: (0, 0)),
            pl.BlockSpec((1, N), lambda i: (0, 0)),
        ],
        out_specs=pl.BlockSpec((tm, N), lambda i: (i, 0)),
        compiler_params=pltpu.CompilerParams(dimension_semantics=("parallel",)),
    )(x2d, w, b.reshape(1, N))


def _ffn_add_norm_kernel(x_ref, w1_ref, b1_ref, w2_ref, b2_ref, g_ref, b_ref, o_ref):
    x = x_ref[...]                                             # (tm, D) f32
    h = jnp.dot(x.astype(jnp.bfloat16), w1_ref[...],
                preferred_element_type=jnp.float32) + b1_ref[...]
    h = jnp.maximum(h, 0.0)                                    # ReLU
    f = jnp.dot(h.astype(jnp.bfloat16), w2_ref[...],
                preferred_element_type=jnp.float32) + b2_ref[...]
    y = x + f                                                  # residual
    mu = jnp.mean(y, axis=-1, keepdims=True)
    var = jnp.mean((y - mu) ** 2, axis=-1, keepdims=True)
    o_ref[...] = ((y - mu) * jax.lax.rsqrt(var + LN_EPS)) * g_ref[...] + b_ref[...]


def ffn_add_norm(x2d, w1, b1, w2, b2, gamma, beta):
    """LayerNorm(x + relu(x@w1+b1)@w2 + b2), fully fused, M-tiled."""
    M, D = x2d.shape
    F = w1.shape[1]
    tm = _tile_m(M)
    return pl.pallas_call(
        _ffn_add_norm_kernel,
        out_shape=jax.ShapeDtypeStruct((M, D), jnp.float32),
        grid=(M // tm,),
        in_specs=[
            pl.BlockSpec((tm, D), lambda i: (i, 0)),
            pl.BlockSpec((D, F), lambda i: (0, 0)),
            pl.BlockSpec((1, F), lambda i: (0, 0)),
            pl.BlockSpec((F, D), lambda i: (0, 0)),
            pl.BlockSpec((1, D), lambda i: (0, 0)),
            pl.BlockSpec((1, D), lambda i: (0, 0)),
            pl.BlockSpec((1, D), lambda i: (0, 0)),
        ],
        out_specs=pl.BlockSpec((tm, D), lambda i: (i, 0)),
        compiler_params=pltpu.CompilerParams(dimension_semantics=("parallel",)),
    )(x2d, w1, b1.reshape(1, F), w2, b2.reshape(1, D),
      gamma.reshape(1, D), beta.reshape(1, D))


def _mha_kernel(q_ref, k_ref, v_ref, bias_ref, x_ref, wo_ref, bo_ref,
                g_ref, b_ref, o_ref, *, num_heads, d_head):
    """Per-batch-element fused attention: all heads, masked softmax,
    output projection, residual add and LayerNorm in one kernel."""
    q = q_ref[0]          # (Sq, D) f32, already scaled by 1/sqrt(d_head)
    k = k_ref[0]          # (Sk, D)
    v = v_ref[0]          # (Sk, D)
    bias = bias_ref[0]    # (Sq, Sk) additive mask: 0 or -1e9

    sq, d_model = q.shape
    proj = jnp.zeros((sq, d_model), jnp.float32)

    for h in range(num_heads):                      # static unroll (num_heads small)
        lo = h * d_head
        qh = q[:, lo:lo + d_head].astype(jnp.bfloat16)
        kh = k[:, lo:lo + d_head].astype(jnp.bfloat16)
        vh = v[:, lo:lo + d_head].astype(jnp.bfloat16)
        # scores = q_h @ k_h^T  (contract head dims, no explicit transpose)
        s = jax.lax.dot_general(qh, kh, (((1,), (1,)), ((), ())),
                                preferred_element_type=jnp.float32)
        s = s + bias
        m = jnp.max(s, axis=-1, keepdims=True)
        e = jnp.exp(s - m)
        p = e * pl.reciprocal(jnp.sum(e, axis=-1, keepdims=True), approx=True)
        head = jnp.dot(p.astype(jnp.bfloat16), vh,
                       preferred_element_type=jnp.float32)          # (Sq, Dh)
        # Fold this head straight into the output projection:
        # concat(heads) @ wo == sum_h head_h @ wo[h*Dh:(h+1)*Dh, :]
        proj = proj + jnp.dot(head.astype(jnp.bfloat16),
                              wo_ref[lo:lo + d_head, :],
                              preferred_element_type=jnp.float32)

    y = x_ref[0] + proj + bo_ref[...]               # residual + proj bias
    mu = jnp.mean(y, axis=-1, keepdims=True)
    var = jnp.mean((y - mu) ** 2, axis=-1, keepdims=True)
    o_ref[0] = ((y - mu) * jax.lax.rsqrt(var + LN_EPS)) * g_ref[...] + b_ref[...]


def mha_attend(q, k, v, bias, x_res, wo, bo, gamma, beta, num_heads):
    """q/x_res: (B, Sq, D), k/v: (B, Sk, D), bias: (B, Sq, Sk) additive mask."""
    B, Sq, D = q.shape
    Sk = k.shape[1]
    d_head = D // num_heads
    kernel = partial(_mha_kernel, num_heads=num_heads, d_head=d_head)
    return pl.pallas_call(
        kernel,
        out_shape=jax.ShapeDtypeStruct((B, Sq, D), jnp.float32),
        grid=(B,),
        in_specs=[
            pl.BlockSpec((1, Sq, D), lambda i: (i, 0, 0)),
            pl.BlockSpec((1, Sk, D), lambda i: (i, 0, 0)),
            pl.BlockSpec((1, Sk, D), lambda i: (i, 0, 0)),
            pl.BlockSpec((1, Sq, Sk), lambda i: (i, 0, 0)),   # mask fetched once/batch
            pl.BlockSpec((1, Sq, D), lambda i: (i, 0, 0)),    # residual
            pl.BlockSpec((D, D), lambda i: (0, 0)),           # wo
            pl.BlockSpec((1, D), lambda i: (0, 0)),           # bo
            pl.BlockSpec((1, D), lambda i: (0, 0)),           # ln gamma
            pl.BlockSpec((1, D), lambda i: (0, 0)),           # ln beta
        ],
        out_specs=pl.BlockSpec((1, Sq, D), lambda i: (i, 0, 0)),
        compiler_params=pltpu.CompilerParams(dimension_semantics=("parallel",)),
    )(q, k, v, bias, x_res, wo, bo.reshape(1, D),
      gamma.reshape(1, D), beta.reshape(1, D))


# ----------------------------------------------------------------------------
# Model glue (plain JAX around the Pallas kernels)
# ----------------------------------------------------------------------------

def encoder_layer(x, self_bias, p, num_heads):
    B, S, D = x.shape
    sa = p["self_attn"]
    qkv = linear(x.reshape(B * S, D), sa["wqkv"], sa["bqkv"])    # fused QKV matmul
    q = qkv[:, :D].reshape(B, S, D)
    k = qkv[:, D:2 * D].reshape(B, S, D)
    v = qkv[:, 2 * D:].reshape(B, S, D)
    x = mha_attend(q, k, v, self_bias, x, sa["wo"], sa["bo"],
                   p["ln1_g"], p["ln1_b"], num_heads)
    x = ffn_add_norm(x.reshape(B * S, D), p["w1"], p["b1"], p["w2"], p["b2"],
                     p["ln2_g"], p["ln2_b"]).reshape(B, S, D)
    return x


def decoder_layer(y, memory, mem_bias, self_bias, p, num_heads):
    B, St, D = y.shape
    Ss = memory.shape[1]

    sa = p["self_attn"]
    qkv = linear(y.reshape(B * St, D), sa["wqkv"], sa["bqkv"])
    q = qkv[:, :D].reshape(B, St, D)
    k = qkv[:, D:2 * D].reshape(B, St, D)
    v = qkv[:, 2 * D:].reshape(B, St, D)
    y = mha_attend(q, k, v, self_bias, y, sa["wo"], sa["bo"],
                   p["ln1_g"], p["ln1_b"], num_heads)

    ca = p["cross_attn"]
    q = linear(y.reshape(B * St, D), ca["wq"], ca["bq"]).reshape(B, St, D)
    kv = linear(memory.reshape(B * Ss, D), ca["wkv"], ca["bkv"])  # fused K|V matmul
    k = kv[:, :D].reshape(B, Ss, D)
    v = kv[:, D:].reshape(B, Ss, D)
    y = mha_attend(q, k, v, mem_bias, y, ca["wo"], ca["bo"],
                   p["ln2_g"], p["ln2_b"], num_heads)

    y = ffn_add_norm(y.reshape(B * St, D), p["w1"], p["b1"], p["w2"], p["b2"],
                     p["ln3_g"], p["ln3_b"]).reshape(B, St, D)
    return y


def embed(tokens, table, pe, d_model):
    S = tokens.shape[1]
    return table[tokens] * math.sqrt(d_model) + pe[:S][None, :, :]


def pad_masking(x, target_len):
    B, S = x.shape
    pad = (x == PAD_TOKEN)                       # (B, S), True at PAD keys
    return jnp.broadcast_to(pad[:, None, :], (B, target_len, S))


def subsequent_masking(x):
    B, T = x.shape
    m = jnp.triu(jnp.ones((T, T), dtype=bool), k=1)
    return jnp.broadcast_to(m[None, :, :], (B, T, T))


def mask_to_bias(mask_bool):
    # Additive bias: -1e9 at masked positions (applied before the row max,
    # so softmax stays numerically stable).
    return jnp.where(mask_bool, NEG_INF, 0.0).astype(jnp.float32)


def transformer_forward(params, sources, inputs, *, num_heads, num_layers, d_model):
    B, Ss = sources.shape
    _, St = inputs.shape

    src_bias = mask_to_bias(pad_masking(sources, Ss))
    mem_bias = mask_to_bias(pad_masking(sources, St))
    tgt_bias = mask_to_bias(subsequent_masking(inputs) | pad_masking(inputs, St))

    # Encoder
    x = embed(sources, params["src_emb"], params["pe"], d_model)
    for l in range(num_layers):
        x = encoder_layer(x, src_bias, params["enc"][l], num_heads)
    memory = x

    # Decoder
    y = embed(inputs, params["tgt_emb"], params["pe"], d_model)
    for l in range(num_layers):
        y = decoder_layer(y, memory, mem_bias, tgt_bias, params["dec"][l], num_heads)

    # Generator (final projection to vocab logits)
    vocab = params["gen_w"].shape[1]
    logits = linear(y.reshape(B * St, d_model), params["gen_w"], params["gen_b"])
    return logits.reshape(B, St, vocab)


# ----------------------------------------------------------------------------
# Deterministic parameter init (matmul weights stored in bf16; attention scale
# pre-folded into the Q projection; Q|K|V / K|V concatenated for fused matmuls)
# ----------------------------------------------------------------------------

def positional_encoding(max_len, d_model):
    pos = jnp.arange(max_len, dtype=jnp.float32)[:, None]
    i = jnp.arange(d_model // 2, dtype=jnp.float32)[None, :]
    angle = pos / jnp.power(10000.0, 2.0 * i / d_model)
    pe = jnp.zeros((max_len, d_model), jnp.float32)
    pe = pe.at[:, 0::2].set(jnp.sin(angle))
    pe = pe.at[:, 1::2].set(jnp.cos(angle))
    return pe


def init_params(key, vocab, d_model, d_ff, num_layers, num_heads, max_len=64):
    keys = iter(jax.random.split(key, 1024))
    scale_q = 1.0 / math.sqrt(d_model // num_heads)

    def w(shape, scale=0.05):
        return jax.random.normal(next(keys), shape, jnp.float32) * scale

    def zeros(n):
        return jnp.zeros((n,), jnp.float32)

    def ones(n):
        return jnp.ones((n,), jnp.float32)

    def self_attn():
        wq, wk, wv, wo = (w((d_model, d_model)) for _ in range(4))
        return dict(
            wqkv=jnp.concatenate([wq * scale_q, wk, wv], axis=1).astype(jnp.bfloat16),
            bqkv=zeros(3 * d_model),
            wo=wo.astype(jnp.bfloat16), bo=zeros(d_model),
        )

    def cross_attn():
        wq, wk, wv, wo = (w((d_model, d_model)) for _ in range(4))
        return dict(
            wq=(wq * scale_q).astype(jnp.bfloat16), bq=zeros(d_model),
            wkv=jnp.concatenate([wk, wv], axis=1).astype(jnp.bfloat16),
            bkv=zeros(2 * d_model),
            wo=wo.astype(jnp.bfloat16), bo=zeros(d_model),
        )

    def enc_layer():
        return dict(
            self_attn=self_attn(),
            ln1_g=ones(d_model), ln1_b=zeros(d_model),
            w1=w((d_model, d_ff)).astype(jnp.bfloat16), b1=zeros(d_ff),
            w2=w((d_ff, d_model)).astype(jnp.bfloat16), b2=zeros(d_model),
            ln2_g=ones(d_model), ln2_b=zeros(d_model),
        )

    def dec_layer():
        p = enc_layer()
        p["cross_attn"] = cross_attn()
        p["ln3_g"] = ones(d_model)
        p["ln3_b"] = zeros(d_model)
        return p

    return dict(
        src_emb=w((vocab, d_model), 0.1),
        tgt_emb=w((vocab, d_model), 0.1),
        pe=positional_encoding(max_len, d_model),
        enc=[enc_layer() for _ in range(num_layers)],
        dec=[dec_layer() for _ in range(num_layers)],
        gen_w=w((d_model, vocab)).astype(jnp.bfloat16),
        gen_b=zeros(vocab),
    )


# ----------------------------------------------------------------------------
# Main
# ----------------------------------------------------------------------------

if __name__ == "__main__":
    vocab = 64
    d_model = 32
    num_heads = 4
    d_ff = 64
    num_layers = 2
    batch = 2
    src_len = 12
    tgt_len = 8

    root = jax.random.PRNGKey(0)
    k_param, k_src, k_tgt = jax.random.split(root, 3)

    params = init_params(k_param, vocab, d_model, d_ff, num_layers, num_heads)

    sources = jax.random.randint(k_src, (batch, src_len), 1, vocab, dtype=jnp.int32)
    inputs = jax.random.randint(k_tgt, (batch, tgt_len), 1, vocab, dtype=jnp.int32)
    # Introduce a few PAD tokens so pad masking is exercised.
    sources = sources.at[1, -3:].set(PAD_TOKEN)
    inputs = inputs.at[1, -2:].set(PAD_TOKEN)

    fwd = jax.jit(partial(transformer_forward, num_heads=num_heads,
                          num_layers=num_layers, d_model=d_model))
    out = fwd(params, sources, inputs)
    out = jax.block_until_ready(out)

    assert out.shape == (batch, tgt_len, vocab), out.shape
    assert bool(jnp.all(jnp.isfinite(out)))
    # TODO(synk): the reference decoder also returns a `state` (layer cache); the
    # Transformer.forward discards it, so it is not materialized here.
    print("KERNEL_OK")
</pallas_src>

<mosaic_0001>
module attributes {stable_mosaic.version = 11 : i64} {
  func.func @_linear_kernel(%arg0: i32, %arg1: memref<8x32xf32, #tpu.memory_space<vmem>>, %arg2: memref<32x96xbf16, #tpu.memory_space<vmem>>, %arg3: memref<1x96xf32, #tpu.memory_space<vmem>>, %arg4: memref<8x96xf32, #tpu.memory_space<vmem>>) attributes {dimension_semantics = [#tpu.dimension_semantics<parallel>], iteration_bounds = array<i64: 3>, scalar_prefetch = 0 : i64, scratch_operands = 0 : i64, tpu.core_type = #tpu.core_type<tc>, window_params = [{transform_indices = @transform_0, window_bounds = array<i64: 8, 32>}, {pipeline_mode = #tpu.pipeline_mode<synchronous>, transform_indices = @transform_1, window_bounds = array<i64: 32, 96>}, {pipeline_mode = #tpu.pipeline_mode<synchronous>, transform_indices = @transform_2, window_bounds = array<i64: 1, 96>}, {transform_indices = @transform_3, window_bounds = array<i64: 8, 96>}]} {
    %c0 = arith.constant 0 : index
    %c0_0 = arith.constant 0 : index
    %0 = vector.load %arg1[%c0, %c0_0] : memref<8x32xf32, #tpu.memory_space<vmem>>, vector<8x32xf32>
    %1 = arith.truncf %0 : vector<8x32xf32> to vector<8x32xbf16>
    %c0_1 = arith.constant 0 : index
    %c0_2 = arith.constant 0 : index
    %2 = vector.load %arg2[%c0_1, %c0_2] : memref<32x96xbf16, #tpu.memory_space<vmem>>, vector<32x96xbf16>
    %cst = arith.constant dense<0.000000e+00> : vector<8x96xf32>
    %3 = tpu.matmul %1, %2, %cst {dimension_numbers = #tpu.dot_dimension_numbers<[1], [0], [0], [1], [0, 0, 1, 1], [], []>} : vector<8x32xbf16>, vector<32x96xbf16>, vector<8x96xf32> -> vector<8x96xf32>
    %c0_3 = arith.constant 0 : index
    %c0_4 = arith.constant 0 : index
    %4 = vector.load %arg3[%c0_3, %c0_4] : memref<1x96xf32, #tpu.memory_space<vmem>>, vector<1x96xf32>
    %5 = vector.broadcast %4 : vector<1x96xf32> to vector<8x96xf32>
    %6 = arith.addf %3, %5 : vector<8x96xf32>
    %c0_5 = arith.constant 0 : index
    %c0_6 = arith.constant 0 : index
    %7 = vector.load %arg4[%c0_5, %c0_6] : memref<8x96xf32, #tpu.memory_space<vmem>>, vector<8x96xf32>
    tpu.vector_store %arg4[%c0_5, %c0_6], %6 {strides = array<i32>} : memref<8x96xf32, #tpu.memory_space<vmem>>, vector<8x96xf32>,
    return
  }
  func.func @transform_0(%arg0: i32) -> (i32, i32) {
    %c0_i32 = arith.constant 0 : i32
    %c0_i32_0 = arith.constant 0 : i32
    return %arg0, %c0_i32 : i32, i32
  }
  func.func @transform_1(%arg0: i32) -> (i32, i32) {
    %c0_i32 = arith.constant 0 : i32
    %c0_i32_0 = arith.constant 0 : i32
    %c0_i32_1 = arith.constant 0 : i32
    return %c0_i32, %c0_i32_0 : i32, i32
  }
  func.func @transform_2(%arg0: i32) -> (i32, i32) {
    %c0_i32 = arith.constant 0 : i32
    %c0_i32_0 = arith.constant 0 : i32
    %c0_i32_1 = arith.constant 0 : i32
    return %c0_i32, %c0_i32_0 : i32, i32
  }
  func.func @transform_3(%arg0: i32) -> (i32, i32) {
    %c0_i32 = arith.constant 0 : i32
    %c0_i32_0 = arith.constant 0 : i32
    return %arg0, %c0_i32 : i32, i32
  }
}

module attributes {stable_mosaic.version = 11 : i64} {
  func.func @_ffn_add_norm_kernel(%arg0: i32, %arg1: memref<8x32xf32, #tpu.memory_space<vmem>>, %arg2: memref<32x64xbf16, #tpu.memory_space<vmem>>, %arg3: memref<1x64xf32, #tpu.memory_space<vmem>>, %arg4: memref<64x32xbf16, #tpu.memory_space<vmem>>, %arg5: memref<1x32xf32, #tpu.memory_space<vmem>>, %arg6: memref<1x32xf32, #tpu.memory_space<vmem>>, %arg7: memref<1x32xf32, #tpu.memory_space<vmem>>, %arg8: memref<8x32xf32, #tpu.memory_space<vmem>>) attributes {dimension_semantics = [#tpu.dimension_semantics<parallel>], iteration_bounds = array<i64: 3>, scalar_prefetch = 0 : i64, scratch_operands = 0 : i64, tpu.core_type = #tpu.core_type<tc>, window_params = [{transform_indices = @transform_0, window_bounds = array<i64: 8, 32>}, {pipeline_mode = #tpu.pipeline_mode<synchronous>, transform_indices = @transform_1, window_bounds = array<i64: 32, 64>}, {pipeline_mode = #tpu.pipeline_mode<synchronous>, transform_indices = @transform_2, window_bounds = array<i64: 1, 64>}, {pipeline_mode = #tpu.pipeline_mode<synchronous>, transform_indices = @transform_3, window_bounds = array<i64: 64, 32>}, {pipeline_mode = #tpu.pipeline_mode<synchronous>, transform_indices = @transform_4, window_bounds = array<i64: 1, 32>}, {pipeline_mode = #tpu.pipeline_mode<synchronous>, transform_indices = @transform_5, window_bounds = array<i64: 1, 32>}, {pipeline_mode = #tpu.pipeline_mode<synchronous>, transform_indices = @transform_6, window_bounds = array<i64: 1, 32>}, {transform_indices = @transform_7, window_bounds = array<i64: 8, 32>}]} {
    %c0 = arith.constant 0 : index
    %c0_0 = arith.constant 0 : index
    %0 = vector.load %arg1[%c0, %c0_0] : memref<8x32xf32, #tpu.memory_space<vmem>>, vector<8x32xf32>
    %1 = arith.truncf %0 : vector<8x32xf32> to vector<8x32xbf16>
    %c0_1 = arith.constant 0 : index
    %c0_2 = arith.constant 0 : index
    %2 = vector.load %arg2[%c0_1, %c0_2] : memref<32x64xbf16, #tpu.memory_space<vmem>>, vector<32x64xbf16>
    %cst = arith.constant dense<0.000000e+00> : vector<8x64xf32>
    %3 = tpu.matmul %1, %2, %cst {dimension_numbers = #tpu.dot_dimension_numbers<[1], [0], [0], [1], [0, 0, 1, 1], [], []>} : vector<8x32xbf16>, vector<32x64xbf16>, vector<8x64xf32> -> vector<8x64xf32>
    %c0_3 = arith.constant 0 : index
    %c0_4 = arith.constant 0 : index
    %4 = vector.load %arg3[%c0_3, %c0_4] : memref<1x64xf32, #tpu.memory_space<vmem>>, vector<1x64xf32>
    %5 = vector.broadcast %4 : vector<1x64xf32> to vector<8x64xf32>
    %6 = arith.addf %3, %5 : vector<8x64xf32>
    %cst_5 = arith.constant 0.000000e+00 : f32
    %7 = vector.broadcast %cst_5 : f32 to vector<8x64xf32>
    %8 = arith.maximumf %6, %7 : vector<8x64xf32>
    %9 = arith.truncf %8 : vector<8x64xf32> to vector<8x64xbf16>
    %c0_6 = arith.constant 0 : index
    %c0_7 = arith.constant 0 : index
    %10 = vector.load %arg4[%c0_6, %c0_7] : memref<64x32xbf16, #tpu.memory_space<vmem>>, vector<64x32xbf16>
    %cst_8 = arith.constant dense<0.000000e+00> : vector<8x32xf32>
    %11 = tpu.matmul %9, %10, %cst_8 {dimension_numbers = #tpu.dot_dimension_numbers<[1], [0], [0], [1], [0, 0, 1, 1], [], []>} : vector<8x64xbf16>, vector<64x32xbf16>, vector<8x32xf32> -> vector<8x32xf32>
    %c0_9 = arith.constant 0 : index
    %c0_10 = arith.constant 0 : index
    %12 = vector.load %arg5[%c0_9, %c0_10] : memref<1x32xf32, #tpu.memory_space<vmem>>, vector<1x32xf32>
    %13 = vector.broadcast %12 : vector<1x32xf32> to vector<8x32xf32>
    %14 = arith.addf %11, %13 : vector<8x32xf32>
    %15 = arith.addf %0, %14 : vector<8x32xf32>
    %cst_11 = arith.constant dense<0.000000e+00> : vector<8xf32>
    %16 = vector.multi_reduction <add>, %15, %cst_11 [1] : vector<8x32xf32> to vector<8xf32>
    %17 = vector.shape_cast %16 : vector<8xf32> to vector<8x1xf32>
    %cst_12 = arith.constant 3.200000e+01 : f32
    %18 = vector.broadcast %cst_12 : f32 to vector<8x1xf32>
    %19 = arith.divf %17, %18 : vector<8x1xf32>
    %20 = vector.broadcast %19 : vector<8x1xf32> to vector<8x32xf32>
    %21 = arith.subf %15, %20 : vector<8x32xf32>
    %22 = arith.mulf %21, %21 : vector<8x32xf32>
    %cst_13 = arith.constant dense<0.000000e+00> : vector<8xf32>
    %23 = vector.multi_reduction <add>, %22, %cst_13 [1] : vector<8x32xf32> to vector<8xf32>
    %24 = vector.shape_cast %23 : vector<8xf32> to vector<8x1xf32>
    %cst_14 = arith.constant 3.200000e+01 : f32
    %25 = vector.broadcast %cst_14 : f32 to vector<8x1xf32>
    %26 = arith.divf %24, %25 : vector<8x1xf32>
    %27 = vector.broadcast %19 : vector<8x1xf32> to vector<8x32xf32>
    %28 = arith.subf %15, %27 : vector<8x32xf32>
    %cst_15 = arith.constant 9.99999974E-6 : f32
    %29 = vector.broadcast %cst_15 : f32 to vector<8x1xf32>
    %30 = arith.addf %26, %29 : vector<8x1xf32>
    %31 = math.rsqrt %30 : vector<8x1xf32>
    %32 = vector.broadcast %31 : vector<8x1xf32> to vector<8x32xf32>
    %33 = arith.mulf %28, %32 : vector<8x32xf32>
    %c0_16 = arith.constant 0 : index
    %c0_17 = arith.constant 0 : index
    %34 = vector.load %arg6[%c0_16, %c0_17] : memref<1x32xf32, #tpu.memory_space<vmem>>, vector<1x32xf32>
    %35 = vector.broadcast %34 : vector<1x32xf32> to vector<8x32xf32>
    %36 = arith.mulf %33, %35 : vector<8x32xf32>
    %c0_18 = arith.constant 0 : index
    %c0_19 = arith.constant 0 : index
    %37 = vector.load %arg7[%c0_18, %c0_19] : memref<1x32xf32, #tpu.memory_space<vmem>>, vector<1x32xf32>
    %38 = vector.broadcast %37 : vector<1x32xf32> to vector<8x32xf32>
    %39 = arith.addf %36, %38 : vector<8x32xf32>
    %c0_20 = arith.constant 0 : index
    %c0_21 = arith.constant 0 : index
    %40 = vector.load %arg8[%c0_20, %c0_21] : memref<8x32xf32, #tpu.memory_space<vmem>>, vector<8x32xf32>
    tpu.vector_store %arg8[%c0_20, %c0_21], %39 {strides = array<i32>} : memref<8x32xf32, #tpu.memory_space<vmem>>, vector<8x32xf32>,
    return
  }
  func.func @transform_0(%arg0: i32) -> (i32, i32) {
    %c0_i32 = arith.constant 0 : i32
    %c0_i32_0 = arith.constant 0 : i32
    return %arg0, %c0_i32 : i32, i32
  }
  func.func @transform_1(%arg0: i32) -> (i32, i32) {
    %c0_i32 = arith.constant 0 : i32
    %c0_i32_0 = arith.constant 0 : i32
    %c0_i32_1 = arith.constant 0 : i32
    return %c0_i32, %c0_i32_0 : i32, i32
  }
  func.func @transform_2(%arg0: i32) -> (i32, i32) {
    %c0_i32 = arith.constant 0 : i32
    %c0_i32_0 = arith.constant 0 : i32
    %c0_i32_1 = arith.constant 0 : i32
    return %c0_i32, %c0_i32_0 : i32, i32
  }
  func.func @transform_3(%arg0: i32) -> (i32, i32) {
    %c0_i32 = arith.constant 0 : i32
    %c0_i32_0 = arith.constant 0 : i32
    %c0_i32_1 = arith.constant 0 : i32
    return %c0_i32, %c0_i32_0 : i32, i32
  }
  func.func @transform_4(%arg0: i32) -> (i32, i32) {
    %c0_i32 = arith.constant 0 : i32
    %c0_i32_0 = arith.constant 0 : i32
    %c0_i32_1 = arith.constant 0 : i32
    return %c0_i32, %c0_i32_0 : i32, i32
  }
  func.func @transform_5(%arg0: i32) -> (i32, i32) {
    %c0_i32 = arith.constant 0 : i32
    %c0_i32_0 = arith.constant 0 : i32
    %c0_i32_1 = arith.constant 0 : i32
    return %c0_i32, %c0_i32_0 : i32, i32
  }
  func.func @transform_6(%arg0: i32) -> (i32, i32) {
    %c0_i32 = arith.constant 0 : i32
    %c0_i32_0 = arith.constant 0 : i32
    %c0_i32_1 = arith.constant 0 : i32
    return %c0_i32, %c0_i32_0 : i32, i32
  }
  func.func @transform_7(%arg0: i32) -> (i32, i32) {
    %c0_i32 = arith.constant 0 : i32
    %c0_i32_0 = arith.constant 0 : i32
    return %arg0, %c0_i32 : i32, i32
  }
}

module attributes {stable_mosaic.version = 11 : i64} {
  func.func @_mha_kernel(%arg0: i32, %arg1: memref<1x12x32xf32, #tpu.memory_space<vmem>>, %arg2: memref<1x12x32xf32, #tpu.memory_space<vmem>>, %arg3: memref<1x12x32xf32, #tpu.memory_space<vmem>>, %arg4: memref<1x12x12xf32, #tpu.memory_space<vmem>>, %arg5: memref<1x12x32xf32, #tpu.memory_space<vmem>>, %arg6: memref<32x32xbf16, #tpu.memory_space<vmem>>, %arg7: memref<1x32xf32, #tpu.memory_space<vmem>>, %arg8: memref<1x32xf32, #tpu.memory_space<vmem>>, %arg9: memref<1x32xf32, #tpu.memory_space<vmem>>, %arg10: memref<1x12x32xf32, #tpu.memory_space<vmem>>) attributes {dimension_semantics = [#tpu.dimension_semantics<parallel>], iteration_bounds = array<i64: 2>, scalar_prefetch = 0 : i64, scratch_operands = 0 : i64, tpu.core_type = #tpu.core_type<tc>, window_params = [{transform_indices = @transform_0, window_bounds = array<i64: 1, 12, 32>}, {transform_indices = @transform_1, window_bounds = array<i64: 1, 12, 32>}, {transform_indices = @transform_2, window_bounds = array<i64: 1, 12, 32>}, {transform_indices = @transform_3, window_bounds = array<i64: 1, 12, 12>}, {transform_indices = @transform_4, window_bounds = array<i64: 1, 12, 32>}, {pipeline_mode = #tpu.pipeline_mode<synchronous>, transform_indices = @transform_5, window_bounds = array<i64: 32, 32>}, {pipeline_mode = #tpu.pipeline_mode<synchronous>, transform_indices = @transform_6, window_bounds = array<i64: 1, 32>}, {pipeline_mode = #tpu.pipeline_mode<synchronous>, transform_indices = @transform_7, window_bounds = array<i64: 1, 32>}, {pipeline_mode = #tpu.pipeline_mode<synchronous>, transform_indices = @transform_8, window_bounds = array<i64: 1, 32>}, {transform_indices = @transform_9, window_bounds = array<i64: 1, 12, 32>}]} {
    %c0 = arith.constant 0 : index
    %c0_0 = arith.constant 0 : index
    %c0_1 = arith.constant 0 : index
    %0 = vector.load %arg1[%c0, %c0_0, %c0_1] : memref<1x12x32xf32, #tpu.memory_space<vmem>>, vector<1x12x32xf32>
    %1 = vector.shape_cast %0 : vector<1x12x32xf32> to vector<12x32xf32>
    %c0_2 = arith.constant 0 : index
    %c0_3 = arith.constant 0 : index
    %c0_4 = arith.constant 0 : index
    %2 = vector.load %arg2[%c0_2, %c0_3, %c0_4] : memref<1x12x32xf32, #tpu.memory_space<vmem>>, vector<1x12x32xf32>
    %3 = vector.shape_cast %2 : vector<1x12x32xf32> to vector<12x32xf32>
    %c0_5 = arith.constant 0 : index
    %c0_6 = arith.constant 0 : index
    %c0_7 = arith.constant 0 : index
    %4 = vector.load %arg3[%c0_5, %c0_6, %c0_7] : memref<1x12x32xf32, #tpu.memory_space<vmem>>, vector<1x12x32xf32>
    %5 = vector.shape_cast %4 : vector<1x12x32xf32> to vector<12x32xf32>
    %c0_8 = arith.constant 0 : index
    %c0_9 = arith.constant 0 : index
    %c0_10 = arith.constant 0 : index
    %6 = vector.load %arg4[%c0_8, %c0_9, %c0_10] : memref<1x12x12xf32, #tpu.memory_space<vmem>>, vector<1x12x12xf32>
    %7 = vector.shape_cast %6 : vector<1x12x12xf32> to vector<12x12xf32>
    %cst = arith.constant 0.000000e+00 : f32
    %8 = vector.broadcast %cst : f32 to vector<12x32xf32>
    %9 = vector.extract_strided_slice %1 {offsets = [0, 0], sizes = [12, 8], strides = [1, 1]} : vector<12x32xf32> to vector<12x8xf32>
    %10 = arith.truncf %9 : vector<12x8xf32> to vector<12x8xbf16>
    %11 = vector.extract_strided_slice %3 {offsets = [0, 0], sizes = [12, 8], strides = [1, 1]} : vector<12x32xf32> to vector<12x8xf32>
    %12 = arith.truncf %11 : vector<12x8xf32> to vector<12x8xbf16>
    %13 = vector.extract_strided_slice %5 {offsets = [0, 0], sizes = [12, 8], strides = [1, 1]} : vector<12x32xf32> to vector<12x8xf32>
    %14 = arith.truncf %13 : vector<12x8xf32> to vector<12x8xbf16>
    %cst_11 = arith.constant dense<0.000000e+00> : vector<12x12xf32>
    %15 = tpu.matmul %10, %12, %cst_11 {dimension_numbers = #tpu.dot_dimension_numbers<[1], [1], [0], [0], [0, 0, 1, 0], [], []>} : vector<12x8xbf16>, vector<12x8xbf16>, vector<12x12xf32> -> vector<12x12xf32>
    %16 = arith.addf %15, %7 : vector<12x12xf32>
    %cst_12 = arith.constant dense<0xFF800000> : vector<12xf32>
    %17 = vector.multi_reduction <maximumf>, %16, %cst_12 [1] : vector<12x12xf32> to vector<12xf32>
    %18 = vector.shape_cast %17 : vector<12xf32> to vector<12x1xf32>
    %19 = vector.broadcast %18 : vector<12x1xf32> to vector<12x12xf32>
    %20 = arith.subf %16, %19 : vector<12x12xf32>
    %21 = math.exp %20 : vector<12x12xf32>
    %cst_13 = arith.constant dense<0.000000e+00> : vector<12xf32>
    %22 = vector.multi_reduction <add>, %21, %cst_13 [1] : vector<12x12xf32> to vector<12xf32>
    %23 = vector.shape_cast %22 : vector<12xf32> to vector<12x1xf32>
    %24 = tpu.reciprocal %23 {approx = true} : vector<12x1xf32> -> vector<12x1xf32>
    %25 = vector.broadcast %24 : vector<12x1xf32> to vector<12x12xf32>
    %26 = arith.mulf %21, %25 : vector<12x12xf32>
    %27 = arith.truncf %26 : vector<12x12xf32> to vector<12x12xbf16>
    %cst_14 = arith.constant dense<0.000000e+00> : vector<12x8xf32>
    %28 = tpu.matmul %27, %14, %cst_14 {dimension_numbers = #tpu.dot_dimension_numbers<[1], [0], [0], [1], [0, 0, 1, 1], [], []>} : vector<12x12xbf16>, vector<12x8xbf16>, vector<12x8xf32> -> vector<12x8xf32>
    %29 = arith.truncf %28 : vector<12x8xf32> to vector<12x8xbf16>
    %c0_15 = arith.constant 0 : index
    %c0_16 = arith.constant 0 : index
    %30 = vector.load %arg6[%c0_15, %c0_16] : memref<32x32xbf16, #tpu.memory_space<vmem>>, vector<8x32xbf16>
    %cst_17 = arith.constant dense<0.000000e+00> : vector<12x32xf32>
    %31 = tpu.matmul %29, %30, %cst_17 {dimension_numbers = #tpu.dot_dimension_numbers<[1], [0], [0], [1], [0, 0, 1, 1], [], []>} : vector<12x8xbf16>, vector<8x32xbf16>, vector<12x32xf32> -> vector<12x32xf32>
    %32 = arith.addf %8, %31 : vector<12x32xf32>
    %33 = vector.extract_strided_slice %1 {offsets = [0, 8], sizes = [12, 8], strides = [1, 1]} : vector<12x32xf32> to vector<12x8xf32>
    %34 = arith.truncf %33 : vector<12x8xf32> to vector<12x8xbf16>
    %35 = vector.extract_strided_slice %3 {offsets = [0, 8], sizes = [12, 8], strides = [1, 1]} : vector<12x32xf32> to vector<12x8xf32>
    %36 = arith.truncf %35 : vector<12x8xf32> to vector<12x8xbf16>
    %37 = vector.extract_strided_slice %5 {offsets = [0, 8], sizes = [12, 8], strides = [1, 1]} : vector<12x32xf32> to vector<12x8xf32>
    %38 = arith.truncf %37 : vector<12x8xf32> to vector<12x8xbf16>
    %cst_18 = arith.constant dense<0.000000e+00> : vector<12x12xf32>
    %39 = tpu.matmul %34, %36, %cst_18 {dimension_numbers = #tpu.dot_dimension_numbers<[1], [1], [0], [0], [0, 0, 1, 0], [], []>} : vector<12x8xbf16>, vector<12x8xbf16>, vector<12x12xf32> -> vector<12x12xf32>
    %40 = arith.addf %39, %7 : vector<12x12xf32>
    %cst_19 = arith.constant dense<0xFF800000> : vector<12xf32>
    %41 = vector.multi_reduction <maximumf>, %40, %cst_19 [1] : vector<12x12xf32> to vector<12xf32>
    %42 = vector.shape_cast %41 : vector<12xf32> to vector<12x1xf32>
    %43 = vector.broadcast %42 : vector<12x1xf32> to vector<12x12xf32>
    %44 = arith.subf %40, %43 : vector<12x12xf32>
    %45 = math.exp %44 : vector<12x12xf32>
    %cst_20 = arith.constant dense<0.000000e+00> : vector<12xf32>
    %46 = vector.multi_reduction <add>, %45, %cst_20 [1] : vector<12x12xf32> to vector<12xf32>
    %47 = vector.shape_cast %46 : vector<12xf32> to vector<12x1xf32>
    %48 = tpu.reciprocal %47 {approx = true} : vector<12x1xf32> -> vector<12x1xf32>
    %49 = vector.broadcast %48 : vector<12x1xf32> to vector<12x12xf32>
    %50 = arith.mulf %45, %49 : vector<12x12xf32>
    %51 = arith.truncf %50 : vector<12x12xf32> to vector<12x12xbf16>
    %cst_21 = arith.constant dense<0.000000e+00> : vector<12x8xf32>
    %52 = tpu.matmul %51, %38, %cst_21 {dimension_numbers = #tpu.dot_dimension_numbers<[1], [0], [0], [1], [0, 0, 1, 1], [], []>} : vector<12x12xbf16>, vector<12x8xbf16>, vector<12x8xf32> -> vector<12x8xf32>
    %53 = arith.truncf %52 : vector<12x8xf32> to vector<12x8xbf16>
    %c8 = arith.constant 8 : index
    %c0_22 = arith.constant 0 : index
    %54 = vector.load %arg6[%c8, %c0_22] : memref<32x32xbf16, #tpu.memory_space<vmem>>, vector<8x32xbf16>
    %cst_23 = arith.constant dense<0.000000e+00> : vector<12x32xf32>
    %55 = tpu.matmul %53, %54, %cst_23 {dimension_numbers = #tpu.dot_dimension_numbers<[1], [0], [0], [1], [0, 0, 1, 1], [], []>} : vector<12x8xbf16>, vector<8x32xbf16>, vector<12x32xf32> -> vector<12x32xf32>
    %56 = arith.addf %32, %55 : vector<12x32xf32>
    %57 = vector.extract_strided_slice %1 {offsets = [0, 16], sizes = [12, 8], strides = [1, 1]} : vector<12x32xf32> to vector<12x8xf32>
    %58 = arith.truncf %57 : vector<12x8xf32> to vector<12x8xbf16>
    %59 = vector.extract_strided_slice %3 {offsets = [0, 16], sizes = [12, 8], strides = [1, 1]} : vector<12x32xf32> to vector<12x8xf32>
    %60 = arith.truncf %59 : vector<12x8xf32> to vector<12x8xbf16>
    %61 = vector.extract_strided_slice %5 {offsets = [0, 16], sizes = [12, 8], strides = [1, 1]} : vector<12x32xf32> to vector<12x8xf32>
    %62 = arith.truncf %61 : vector<12x8xf32> to vector<12x8xbf16>
    %cst_24 = arith.constant dense<0.000000e+00> : vector<12x12xf32>
    %63 = tpu.matmul %58, %60, %cst_24 {dimension_numbers = #tpu.dot_dimension_numbers<[1], [1], [0], [0], [0, 0, 1, 0], [], []>} : vector<12x8xbf16>, vector<12x8xbf16>, vector<12x12xf32> -> vector<12x12xf32>
    %64 = arith.addf %63, %7 : vector<12x12xf32>
    %cst_25 = arith.constant dense<0xFF800000> : vector<12xf32>
    %65 = vector.multi_reduction <maximumf>, %64, %cst_25 [1] : vector<12x12xf32> to vector<12xf32>
    %66 = vector.shape_cast %65 : vector<12xf32> to vector<12x1xf32>
    %67 = vector.broadcast %66 : vector<12x1xf32> to vector<12x12xf32>
    %68 = arith.subf %64, %67 : vector<12x12xf32>
    %69 = math.exp %68 : vector<12x12xf32>
    %cst_26 = arith.constant dense<0.000000e+00> : vector<12xf32>
    %70 = vector.multi_reduction <add>, %69, %cst_26 [1] : vector<12x12xf32> to vector<12xf32>
    %71 = vector.shape_cast %70 : vector<12xf32> to vector<12x1xf32>
    %72 = tpu.reciprocal %71 {approx = true} : vector<12x1xf32> -> vector<12x1xf32>
    %73 = vector.broadcast %72 : vector<12x1xf32> to vector<12x12xf32>
    %74 = arith.mulf %69, %73 : vector<12x12xf32>
    %75 = arith.truncf %74 : vector<12x12xf32> to vector<12x12xbf16>
    %cst_27 = arith.constant dense<0.000000e+00> : vector<12x8xf32>
    %76 = tpu.matmul %75, %62, %cst_27 {dimension_numbers = #tpu.dot_dimension_numbers<[1], [0], [0], [1], [0, 0, 1, 1], [], []>} : vector<12x12xbf16>, vector<12x8xbf16>, vector<12x8xf32> -> vector<12x8xf32>
    %77 = arith.truncf %76 : vector<12x8xf32> to vector<12x8xbf16>
    %c16 = arith.constant 16 : index
    %c0_28 = arith.constant 0 : index
    %78 = vector.load %arg6[%c16, %c0_28] : memref<32x32xbf16, #tpu.memory_space<vmem>>, vector<8x32xbf16>
    %cst_29 = arith.constant dense<0.000000e+00> : vector<12x32xf32>
    %79 = tpu.matmul %77, %78, %cst_29 {dimension_numbers = #tpu.dot_dimension_numbers<[1], [0], [0], [1], [0, 0, 1, 1], [], []>} : vector<12x8xbf16>, vector<8x32xbf16>, vector<12x32xf32> -> vector<12x32xf32>
    %80 = arith.addf %56, %79 : vector<12x32xf32>
    %81 = vector.extract_strided_slice %1 {offsets = [0, 24], sizes = [12, 8], strides = [1, 1]} : vector<12x32xf32> to vector<12x8xf32>
    %82 = arith.truncf %81 : vector<12x8xf32> to vector<12x8xbf16>
    %83 = vector.extract_strided_slice %3 {offsets = [0, 24], sizes = [12, 8], strides = [1, 1]} : vector<12x32xf32> to vector<12x8xf32>
    %84 = arith.truncf %83 : vector<12x8xf32> to vector<12x8xbf16>
    %85 = vector.extract_strided_slice %5 {offsets = [0, 24], sizes = [12, 8], strides = [1, 1]} : vector<12x32xf32> to vector<12x8xf32>
    %86 = arith.truncf %85 : vector<12x8xf32> to vector<12x8xbf16>
    %cst_30 = arith.constant dense<0.000000e+00> : vector<12x12xf32>
    %87 = tpu.matmul %82, %84, %cst_30 {dimension_numbers = #tpu.dot_dimension_numbers<[1], [1], [0], [0], [0, 0, 1, 0], [], []>} : vector<12x8xbf16>, vector<12x8xbf16>, vector<12x12xf32> -> vector<12x12xf32>
    %88 = arith.addf %87, %7 : vector<12x12xf32>
    %cst_31 = arith.constant dense<0xFF800000> : vector<12xf32>
    %89 = vector.multi_reduction <maximumf>, %88, %cst_31 [1] : vector<12x12xf32> to vector<12xf32>
    %90 = vector.shape_cast %89 : vector<12xf32> to vector<12x1xf32>
    %91 = vector.broadcast %90 : vector<12x1xf32> to vector<12x12xf32>
    %92 = arith.subf %88, %91 : vector<12x12xf32>
    %93 = math.exp %92 : vector<12x12xf32>
    %cst_32 = arith.constant dense<0.000000e+00> : vector<12xf32>
    %94 = vector.multi_reduction <add>, %93, %cst_32 [1] : vector<12x12xf32> to vector<12xf32>
    %95 = vector.shape_cast %94 : vector<12xf32> to vector<12x1xf32>
    %96 = tpu.reciprocal %95 {approx = true} : vector<12x1xf32> -> vector<12x1xf32>
    %97 = vector.broadcast %96 : vector<12x1xf32> to vector<12x12xf32>
    %98 = arith.mulf %93, %97 : vector<12x12xf32>
    %99 = arith.truncf %98 : vector<12x12xf32> to vector<12x12xbf16>
    %cst_33 = arith.constant dense<0.000000e+00> : vector<12x8xf32>
    %100 = tpu.matmul %99, %86, %cst_33 {dimension_numbers = #tpu.dot_dimension_numbers<[1], [0], [0], [1], [0, 0, 1, 1], [], []>} : vector<12x12xbf16>, vector<12x8xbf16>, vector<12x8xf32> -> vector<12x8xf32>
    %101 = arith.truncf %100 : vector<12x8xf32> to vector<12x8xbf16>
    %c24 = arith.constant 24 : index
    %c0_34 = arith.constant 0 : index
    %102 = vector.load %arg6[%c24, %c0_34] : memref<32x32xbf16, #tpu.memory_space<vmem>>, vector<8x32xbf16>
    %cst_35 = arith.constant dense<0.000000e+00> : vector<12x32xf32>
    %103 = tpu.matmul %101, %102, %cst_35 {dimension_numbers = #tpu.dot_dimension_numbers<[1], [0], [0], [1], [0, 0, 1, 1], [], []>} : vector<12x8xbf16>, vector<8x32xbf16>, vector<12x32xf32> -> vector<12x32xf32>
    %104 = arith.addf %80, %103 : vector<12x32xf32>
    %c0_36 = arith.constant 0 : index
    %c0_37 = arith.constant 0 : index
    %c0_38 = arith.constant 0 : index
    %105 = vector.load %arg5[%c0_36, %c0_37, %c0_38] : memref<1x12x32xf32, #tpu.memory_space<vmem>>, vector<1x12x32xf32>
    %106 = vector.shape_cast %105 : vector<1x12x32xf32> to vector<12x32xf32>
    %107 = arith.addf %106, %104 : vector<12x32xf32>
    %c0_39 = arith.constant 0 : index
    %c0_40 = arith.constant 0 : index
    %108 = vector.load %arg7[%c0_39, %c0_40] : memref<1x32xf32, #tpu.memory_space<vmem>>, vector<1x32xf32>
    %109 = vector.broadcast %108 : vector<1x32xf32> to vector<12x32xf32>
    %110 = arith.addf %107, %109 : vector<12x32xf32>
    %cst_41 = arith.constant dense<0.000000e+00> : vector<12xf32>
    %111 = vector.multi_reduction <add>, %110, %cst_41 [1] : vector<12x32xf32> to vector<12xf32>
    %112 = vector.shape_cast %111 : vector<12xf32> to vector<12x1xf32>
    %cst_42 = arith.constant 3.200000e+01 : f32
    %113 = vector.broadcast %cst_42 : f32 to vector<12x1xf32>
    %114 = arith.divf %112, %113 : vector<12x1xf32>
    %115 = vector.broadcast %114 : vector<12x1xf32> to vector<12x32xf32>
    %116 = arith.subf %110, %115 : vector<12x32xf32>
    %117 = arith.mulf %116, %116 : vector<12x32xf32>
    %cst_43 = arith.constant dense<0.000000e+00> : vector<12xf32>
    %118 = vector.multi_reduction <add>, %117, %cst_43 [1] : vector<12x32xf32> to vector<12xf32>
    %119 = vector.shape_cast %118 : vector<12xf32> to vector<12x1xf32>
    %cst_44 = arith.constant 3.200000e+01 : f32
    %120 = vector.broadcast %cst_44 : f32 to vector<12x1xf32>
    %121 = arith.divf %119, %120 : vector<12x1xf32>
    %122 = vector.broadcast %114 : vector<12x1xf32> to vector<12x32xf32>
    %123 = arith.subf %110, %122 : vector<12x32xf32>
    %cst_45 = arith.constant 9.99999974E-6 : f32
    %124 = vector.broadcast %cst_45 : f32 to vector<12x1xf32>
    %125 = arith.addf %121, %124 : vector<12x1xf32>
    %126 = math.rsqrt %125 : vector<12x1xf32>
    %127 = vector.broadcast %126 : vector<12x1xf32> to vector<12x32xf32>
    %128 = arith.mulf %123, %127 : vector<12x32xf32>
    %c0_46 = arith.constant 0 : index
    %c0_47 = arith.constant 0 : index
    %129 = vector.load %arg8[%c0_46, %c0_47] : memref<1x32xf32, #tpu.memory_space<vmem>>, vector<1x32xf32>
    %130 = vector.broadcast %129 : vector<1x32xf32> to vector<12x32xf32>
    %131 = arith.mulf %128, %130 : vector<12x32xf32>
    %c0_48 = arith.constant 0 : index
    %c0_49 = arith.constant 0 : index
    %132 = vector.load %arg9[%c0_48, %c0_49] : memref<1x32xf32, #tpu.memory_space<vmem>>, vector<1x32xf32>
    %133 = vector.broadcast %132 : vector<1x32xf32> to vector<12x32xf32>
    %134 = arith.addf %131, %133 : vector<12x32xf32>
    %c0_50 = arith.constant 0 : index
    %c0_51 = arith.constant 0 : index
    %c0_52 = arith.constant 0 : index
    %135 = vector.load %arg10[%c0_50, %c0_51, %c0_52] : memref<1x12x32xf32, #tpu.memory_space<vmem>>, vector<1x12x32xf32>
    %136 = vector.shape_cast %135 : vector<1x12x32xf32> to vector<12x32xf32>
    %137 = vector.shape_cast %134 : vector<12x32xf32> to vector<1x12x32xf32>
    tpu.vector_store %arg10[%c0_50, %c0_51, %c0_52], %137 {strides = array<i32>} : memref<1x12x32xf32, #tpu.memory_space<vmem>>, vector<1x12x32xf32>,
    return
  }
  func.func @transform_0(%arg0: i32) -> (i32, i32, i32) {
    %c0_i32 = arith.constant 0 : i32
    %c0_i32_0 = arith.constant 0 : i32
    %c0_i32_1 = arith.constant 0 : i32
    return %arg0, %c0_i32, %c0_i32_0 : i32, i32, i32
  }
  func.func @transform_1(%arg0: i32) -> (i32, i32, i32) {
    %c0_i32 = arith.constant 0 : i32
    %c0_i32_0 = arith.constant 0 : i32
    %c0_i32_1 = arith.constant 0 : i32
    return %arg0, %c0_i32, %c0_i32_0 : i32, i32, i32
  }
  func.func @transform_2(%arg0: i32) -> (i32, i32, i32) {
    %c0_i32 = arith.constant 0 : i32
    %c0_i32_0 = arith.constant 0 : i32
    %c0_i32_1 = arith.constant 0 : i32
    return %arg0, %c0_i32, %c0_i32_0 : i32, i32, i32
  }
  func.func @transform_3(%arg0: i32) -> (i32, i32, i32) {
    %c0_i32 = arith.constant 0 : i32
    %c0_i32_0 = arith.constant 0 : i32
    %c0_i32_1 = arith.constant 0 : i32
    return %arg0, %c0_i32, %c0_i32_0 : i32, i32, i32
  }
  func.func @transform_4(%arg0: i32) -> (i32, i32, i32) {
    %c0_i32 = arith.constant 0 : i32
    %c0_i32_0 = arith.constant 0 : i32
    %c0_i32_1 = arith.constant 0 : i32
    return %arg0, %c0_i32, %c0_i32_0 : i32, i32, i32
  }
  func.func @transform_5(%arg0: i32) -> (i32, i32) {
    %c0_i32 = arith.constant 0 : i32
    %c0_i32_0 = arith.constant 0 : i32
    %c0_i32_1 = arith.constant 0 : i32
    return %c0_i32, %c0_i32_0 : i32, i32
  }
  func.func @transform_6(%arg0: i32) -> (i32, i32) {
    %c0_i32 = arith.constant 0 : i32
    %c0_i32_0 = arith.constant 0 : i32
    %c0_i32_1 = arith.constant 0 : i32
    return %c0_i32, %c0_i32_0 : i32, i32
  }
  func.func @transform_7(%arg0: i32) -> (i32, i32) {
    %c0_i32 = arith.constant 0 : i32
    %c0_i32_0 = arith.constant 0 : i32
    %c0_i32_1 = arith.constant 0 : i32
    return %c0_i32, %c0_i32_0 : i32, i32
  }
  func.func @transform_8(%arg0: i32) -> (i32, i32) {
    %c0_i32 = arith.constant 0 : i32
    %c0_i32_0 = arith.constant 0 : i32
    %c0_i32_1 = arith.constant 0 : i32
    return %c0_i32, %c0_i32_0 : i32, i32
  }
  func.func @transform_9(%arg0: i32) -> (i32, i32, i32) {
    %c0_i32 = arith.constant 0 : i32
    %c0_i32_0 = arith.constant 0 : i32
    %c0_i32_1 = arith.constant 0 : i32
    return %arg0, %c0_i32, %c0_i32_0 : i32, i32, i32
  }
}

module attributes {stable_mosaic.version = 11 : i64} {
  func.func @_linear_kernel(%arg0: i32, %arg1: memref<8x32xf32, #tpu.memory_space<vmem>>, %arg2: memref<32x64xbf16, #tpu.memory_space<vmem>>, %arg3: memref<1x64xf32, #tpu.memory_space<vmem>>, %arg4: memref<8x64xf32, #tpu.memory_space<vmem>>) attributes {dimension_semantics = [#tpu.dimension_semantics<parallel>], iteration_bounds = array<i64: 3>, scalar_prefetch = 0 : i64, scratch_operands = 0 : i64, tpu.core_type = #tpu.core_type<tc>, window_params = [{transform_indices = @transform_0, window_bounds = array<i64: 8, 32>}, {pipeline_mode = #tpu.pipeline_mode<synchronous>, transform_indices = @transform_1, window_bounds = array<i64: 32, 64>}, {pipeline_mode = #tpu.pipeline_mode<synchronous>, transform_indices = @transform_2, window_bounds = array<i64: 1, 64>}, {transform_indices = @transform_3, window_bounds = array<i64: 8, 64>}]} {
    %c0 = arith.constant 0 : index
    %c0_0 = arith.constant 0 : index
    %0 = vector.load %arg1[%c0, %c0_0] : memref<8x32xf32, #tpu.memory_space<vmem>>, vector<8x32xf32>
    %1 = arith.truncf %0 : vector<8x32xf32> to vector<8x32xbf16>
    %c0_1 = arith.constant 0 : index
    %c0_2 = arith.constant 0 : index
    %2 = vector.load %arg2[%c0_1, %c0_2] : memref<32x64xbf16, #tpu.memory_space<vmem>>, vector<32x64xbf16>
    %cst = arith.constant dense<0.000000e+00> : vector<8x64xf32>
    %3 = tpu.matmul %1, %2, %cst {dimension_numbers = #tpu.dot_dimension_numbers<[1], [0], [0], [1], [0, 0, 1, 1], [], []>} : vector<8x32xbf16>, vector<32x64xbf16>, vector<8x64xf32> -> vector<8x64xf32>
    %c0_3 = arith.constant 0 : index
    %c0_4 = arith.constant 0 : index
    %4 = vector.load %arg3[%c0_3, %c0_4] : memref<1x64xf32, #tpu.memory_space<vmem>>, vector<1x64xf32>
    %5 = vector.broadcast %4 : vector<1x64xf32> to vector<8x64xf32>
    %6 = arith.addf %3, %5 : vector<8x64xf32>
    %c0_5 = arith.constant 0 : index
    %c0_6 = arith.constant 0 : index
    %7 = vector.load %arg4[%c0_5, %c0_6] : memref<8x64xf32, #tpu.memory_space<vmem>>, vector<8x64xf32>
    tpu.vector_store %arg4[%c0_5, %c0_6], %6 {strides = array<i32>} : memref<8x64xf32, #tpu.memory_space<vmem>>, vector<8x64xf32>,
    return
  }
  func.func @transform_0(%arg0: i32) -> (i32, i32) {
    %c0_i32 = arith.constant 0 : i32
    %c0_i32_0 = arith.constant 0 : i32
    return %arg0, %c0_i32 : i32, i32
  }
  func.func @transform_1(%arg0: i32) -> (i32, i32) {
    %c0_i32 = arith.constant 0 : i32
    %c0_i32_0 = arith.constant 0 : i32
    %c0_i32_1 = arith.constant 0 : i32
    return %c0_i32, %c0_i32_0 : i32, i32
  }
  func.func @transform_2(%arg0: i32) -> (i32, i32) {
    %c0_i32 = arith.constant 0 : i32
    %c0_i32_0 = arith.constant 0 : i32
    %c0_i32_1 = arith.constant 0 : i32
    return %c0_i32, %c0_i32_0 : i32, i32
  }
  func.func @transform_3(%arg0: i32) -> (i32, i32) {
    %c0_i32 = arith.constant 0 : i32
    %c0_i32_0 = arith.constant 0 : i32
    return %arg0, %c0_i32 : i32, i32
  }
}

module attributes {stable_mosaic.version = 11 : i64} {
  func.func @_linear_kernel(%arg0: i32, %arg1: memref<16x32xf32, #tpu.memory_space<vmem>>, %arg2: memref<32x96xbf16, #tpu.memory_space<vmem>>, %arg3: memref<1x96xf32, #tpu.memory_space<vmem>>, %arg4: memref<16x96xf32, #tpu.memory_space<vmem>>) attributes {dimension_semantics = [#tpu.dimension_semantics<parallel>], iteration_bounds = array<i64: 1>, scalar_prefetch = 0 : i64, scratch_operands = 0 : i64, tpu.core_type = #tpu.core_type<tc>, window_params = [{transform_indices = @transform_0, window_bounds = array<i64: 16, 32>}, {pipeline_mode = #tpu.pipeline_mode<synchronous>, transform_indices = @transform_1, window_bounds = array<i64: 32, 96>}, {pipeline_mode = #tpu.pipeline_mode<synchronous>, transform_indices = @transform_2, window_bounds = array<i64: 1, 96>}, {transform_indices = @transform_3, window_bounds = array<i64: 16, 96>}]} {
    %c0 = arith.constant 0 : index
    %c0_0 = arith.constant 0 : index
    %0 = vector.load %arg1[%c0, %c0_0] : memref<16x32xf32, #tpu.memory_space<vmem>>, vector<16x32xf32>
    %1 = arith.truncf %0 : vector<16x32xf32> to vector<16x32xbf16>
    %c0_1 = arith.constant 0 : index
    %c0_2 = arith.constant 0 : index
    %2 = vector.load %arg2[%c0_1, %c0_2] : memref<32x96xbf16, #tpu.memory_space<vmem>>, vector<32x96xbf16>
    %cst = arith.constant dense<0.000000e+00> : vector<16x96xf32>
    %3 = tpu.matmul %1, %2, %cst {dimension_numbers = #tpu.dot_dimension_numbers<[1], [0], [0], [1], [0, 0, 1, 1], [], []>} : vector<16x32xbf16>, vector<32x96xbf16>, vector<16x96xf32> -> vector<16x96xf32>
    %c0_3 = arith.constant 0 : index
    %c0_4 = arith.constant 0 : index
    %4 = vector.load %arg3[%c0_3, %c0_4] : memref<1x96xf32, #tpu.memory_space<vmem>>, vector<1x96xf32>
    %5 = vector.broadcast %4 : vector<1x96xf32> to vector<16x96xf32>
    %6 = arith.addf %3, %5 : vector<16x96xf32>
    %c0_5 = arith.constant 0 : index
    %c0_6 = arith.constant 0 : index
    %7 = vector.load %arg4[%c0_5, %c0_6] : memref<16x96xf32, #tpu.memory_space<vmem>>, vector<16x96xf32>
    tpu.vector_store %arg4[%c0_5, %c0_6], %6 {strides = array<i32>} : memref<16x96xf32, #tpu.memory_space<vmem>>, vector<16x96xf32>,
    return
  }
  func.func @transform_0(%arg0: i32) -> (i32, i32) {
    %c0_i32 = arith.constant 0 : i32
    %c0_i32_0 = arith.constant 0 : i32
    return %arg0, %c0_i32 : i32, i32
  }
  func.func @transform_1(%arg0: i32) -> (i32, i32) {
    %c0_i32 = arith.constant 0 : i32
    %c0_i32_0 = arith.constant 0 : i32
    %c0_i32_1 = arith.constant 0 : i32
    return %c0_i32, %c0_i32_0 : i32, i32
  }
  func.func @transform_2(%arg0: i32) -> (i32, i32) {
    %c0_i32 = arith.constant 0 : i32
    %c0_i32_0 = arith.constant 0 : i32
    %c0_i32_1 = arith.constant 0 : i32
    return %c0_i32, %c0_i32_0 : i32, i32
  }
  func.func @transform_3(%arg0: i32) -> (i32, i32) {
    %c0_i32 = arith.constant 0 : i32
    %c0_i32_0 = arith.constant 0 : i32
    return %arg0, %c0_i32 : i32, i32
  }
}

module attributes {stable_mosaic.version = 11 : i64} {
  func.func @_linear_kernel(%arg0: i32, %arg1: memref<16x32xf32, #tpu.memory_space<vmem>>, %arg2: memref<32x32xbf16, #tpu.memory_space<vmem>>, %arg3: memref<1x32xf32, #tpu.memory_space<vmem>>, %arg4: memref<16x32xf32, #tpu.memory_space<vmem>>) attributes {dimension_semantics = [#tpu.dimension_semantics<parallel>], iteration_bounds = array<i64: 1>, scalar_prefetch = 0 : i64, scratch_operands = 0 : i64, tpu.core_type = #tpu.core_type<tc>, window_params = [{transform_indices = @transform_0, window_bounds = array<i64: 16, 32>}, {pipeline_mode = #tpu.pipeline_mode<synchronous>, transform_indices = @transform_1, window_bounds = array<i64: 32, 32>}, {pipeline_mode = #tpu.pipeline_mode<synchronous>, transform_indices = @transform_2, window_bounds = array<i64: 1, 32>}, {transform_indices = @transform_3, window_bounds = array<i64: 16, 32>}]} {
    %c0 = arith.constant 0 : index
    %c0_0 = arith.constant 0 : index
    %0 = vector.load %arg1[%c0, %c0_0] : memref<16x32xf32, #tpu.memory_space<vmem>>, vector<16x32xf32>
    %1 = arith.truncf %0 : vector<16x32xf32> to vector<16x32xbf16>
    %c0_1 = arith.constant 0 : index
    %c0_2 = arith.constant 0 : index
    %2 = vector.load %arg2[%c0_1, %c0_2] : memref<32x32xbf16, #tpu.memory_space<vmem>>, vector<32x32xbf16>
    %cst = arith.constant dense<0.000000e+00> : vector<16x32xf32>
    %3 = tpu.matmul %1, %2, %cst {dimension_numbers = #tpu.dot_dimension_numbers<[1], [0], [0], [1], [0, 0, 1, 1], [], []>} : vector<16x32xbf16>, vector<32x32xbf16>, vector<16x32xf32> -> vector<16x32xf32>
    %c0_3 = arith.constant 0 : index
    %c0_4 = arith.constant 0 : index
    %4 = vector.load %arg3[%c0_3, %c0_4] : memref<1x32xf32, #tpu.memory_space<vmem>>, vector<1x32xf32>
    %5 = vector.broadcast %4 : vector<1x32xf32> to vector<16x32xf32>
    %6 = arith.addf %3, %5 : vector<16x32xf32>
    %c0_5 = arith.constant 0 : index
    %c0_6 = arith.constant 0 : index
    %7 = vector.load %arg4[%c0_5, %c0_6] : memref<16x32xf32, #tpu.memory_space<vmem>>, vector<16x32xf32>
    tpu.vector_store %arg4[%c0_5, %c0_6], %6 {strides = array<i32>} : memref<16x32xf32, #tpu.memory_space<vmem>>, vector<16x32xf32>,
    return
  }
  func.func @transform_0(%arg0: i32) -> (i32, i32) {
    %c0_i32 = arith.constant 0 : i32
    %c0_i32_0 = arith.constant 0 : i32
    return %arg0, %c0_i32 : i32, i32
  }
  func.func @transform_1(%arg0: i32) -> (i32, i32) {
    %c0_i32 = arith.constant 0 : i32
    %c0_i32_0 = arith.constant 0 : i32
    %c0_i32_1 = arith.constant 0 : i32
    return %c0_i32, %c0_i32_0 : i32, i32
  }
  func.func @transform_2(%arg0: i32) -> (i32, i32) {
    %c0_i32 = arith.constant 0 : i32
    %c0_i32_0 = arith.constant 0 : i32
    %c0_i32_1 = arith.constant 0 : i32
    return %c0_i32, %c0_i32_0 : i32, i32
  }
  func.func @transform_3(%arg0: i32) -> (i32, i32) {
    %c0_i32 = arith.constant 0 : i32
    %c0_i32_0 = arith.constant 0 : i32
    return %arg0, %c0_i32 : i32, i32
  }
}

module attributes {stable_mosaic.version = 11 : i64} {
  func.func @_mha_kernel(%arg0: i32, %arg1: memref<1x8x32xf32, #tpu.memory_space<vmem>>, %arg2: memref<1x8x32xf32, #tpu.memory_space<vmem>>, %arg3: memref<1x8x32xf32, #tpu.memory_space<vmem>>, %arg4: memref<1x8x8xf32, #tpu.memory_space<vmem>>, %arg5: memref<1x8x32xf32, #tpu.memory_space<vmem>>, %arg6: memref<32x32xbf16, #tpu.memory_space<vmem>>, %arg7: memref<1x32xf32, #tpu.memory_space<vmem>>, %arg8: memref<1x32xf32, #tpu.memory_space<vmem>>, %arg9: memref<1x32xf32, #tpu.memory_space<vmem>>, %arg10: memref<1x8x32xf32, #tpu.memory_space<vmem>>) attributes {dimension_semantics = [#tpu.dimension_semantics<parallel>], iteration_bounds = array<i64: 2>, scalar_prefetch = 0 : i64, scratch_operands = 0 : i64, tpu.core_type = #tpu.core_type<tc>, window_params = [{transform_indices = @transform_0, window_bounds = array<i64: 1, 8, 32>}, {transform_indices = @transform_1, window_bounds = array<i64: 1, 8, 32>}, {transform_indices = @transform_2, window_bounds = array<i64: 1, 8, 32>}, {transform_indices = @transform_3, window_bounds = array<i64: 1, 8, 8>}, {transform_indices = @transform_4, window_bounds = array<i64: 1, 8, 32>}, {pipeline_mode = #tpu.pipeline_mode<synchronous>, transform_indices = @transform_5, window_bounds = array<i64: 32, 32>}, {pipeline_mode = #tpu.pipeline_mode<synchronous>, transform_indices = @transform_6, window_bounds = array<i64: 1, 32>}, {pipeline_mode = #tpu.pipeline_mode<synchronous>, transform_indices = @transform_7, window_bounds = array<i64: 1, 32>}, {pipeline_mode = #tpu.pipeline_mode<synchronous>, transform_indices = @transform_8, window_bounds = array<i64: 1, 32>}, {transform_indices = @transform_9, window_bounds = array<i64: 1, 8, 32>}]} {
    %c0 = arith.constant 0 : index
    %c0_0 = arith.constant 0 : index
    %c0_1 = arith.constant 0 : index
    %0 = vector.load %arg1[%c0, %c0_0, %c0_1] : memref<1x8x32xf32, #tpu.memory_space<vmem>>, vector<1x8x32xf32>
    %1 = vector.shape_cast %0 : vector<1x8x32xf32> to vector<8x32xf32>
    %c0_2 = arith.constant 0 : index
    %c0_3 = arith.constant 0 : index
    %c0_4 = arith.constant 0 : index
    %2 = vector.load %arg2[%c0_2, %c0_3, %c0_4] : memref<1x8x32xf32, #tpu.memory_space<vmem>>, vector<1x8x32xf32>
    %3 = vector.shape_cast %2 : vector<1x8x32xf32> to vector<8x32xf32>
    %c0_5 = arith.constant 0 : index
    %c0_6 = arith.constant 0 : index
    %c0_7 = arith.constant 0 : index
    %4 = vector.load %arg3[%c0_5, %c0_6, %c0_7] : memref<1x8x32xf32, #tpu.memory_space<vmem>>, vector<1x8x32xf32>
    %5 = vector.shape_cast %4 : vector<1x8x32xf32> to vector<8x32xf32>
    %c0_8 = arith.constant 0 : index
    %c0_9 = arith.constant 0 : index
    %c0_10 = arith.constant 0 : index
    %6 = vector.load %arg4[%c0_8, %c0_9, %c0_10] : memref<1x8x8xf32, #tpu.memory_space<vmem>>, vector<1x8x8xf32>
    %7 = vector.shape_cast %6 : vector<1x8x8xf32> to vector<8x8xf32>
    %cst = arith.constant 0.000000e+00 : f32
    %8 = vector.broadcast %cst : f32 to vector<8x32xf32>
    %9 = vector.extract_strided_slice %1 {offsets = [0, 0], sizes = [8, 8], strides = [1, 1]} : vector<8x32xf32> to vector<8x8xf32>
    %10 = arith.truncf %9 : vector<8x8xf32> to vector<8x8xbf16>
    %11 = vector.extract_strided_slice %3 {offsets = [0, 0], sizes = [8, 8], strides = [1, 1]} : vector<8x32xf32> to vector<8x8xf32>
    %12 = arith.truncf %11 : vector<8x8xf32> to vector<8x8xbf16>
    %13 = vector.extract_strided_slice %5 {offsets = [0, 0], sizes = [8, 8], strides = [1, 1]} : vector<8x32xf32> to vector<8x8xf32>
    %14 = arith.truncf %13 : vector<8x8xf32> to vector<8x8xbf16>
    %cst_11 = arith.constant dense<0.000000e+00> : vector<8x8xf32>
    %15 = tpu.matmul %10, %12, %cst_11 {dimension_numbers = #tpu.dot_dimension_numbers<[1], [1], [0], [0], [0, 0, 1, 0], [], []>} : vector<8x8xbf16>, vector<8x8xbf16>, vector<8x8xf32> -> vector<8x8xf32>
    %16 = arith.addf %15, %7 : vector<8x8xf32>
    %cst_12 = arith.constant dense<0xFF800000> : vector<8xf32>
    %17 = vector.multi_reduction <maximumf>, %16, %cst_12 [1] : vector<8x8xf32> to vector<8xf32>
    %18 = vector.shape_cast %17 : vector<8xf32> to vector<8x1xf32>
    %19 = vector.broadcast %18 : vector<8x1xf32> to vector<8x8xf32>
    %20 = arith.subf %16, %19 : vector<8x8xf32>
    %21 = math.exp %20 : vector<8x8xf32>
    %cst_13 = arith.constant dense<0.000000e+00> : vector<8xf32>
    %22 = vector.multi_reduction <add>, %21, %cst_13 [1] : vector<8x8xf32> to vector<8xf32>
    %23 = vector.shape_cast %22 : vector<8xf32> to vector<8x1xf32>
    %24 = tpu.reciprocal %23 {approx = true} : vector<8x1xf32> -> vector<8x1xf32>
    %25 = vector.broadcast %24 : vector<8x1xf32> to vector<8x8xf32>
    %26 = arith.mulf %21, %25 : vector<8x8xf32>
    %27 = arith.truncf %26 : vector<8x8xf32> to vector<8x8xbf16>
    %cst_14 = arith.constant dense<0.000000e+00> : vector<8x8xf32>
    %28 = tpu.matmul %27, %14, %cst_14 {dimension_numbers = #tpu.dot_dimension_numbers<[1], [0], [0], [1], [0, 0, 1, 1], [], []>} : vector<8x8xbf16>, vector<8x8xbf16>, vector<8x8xf32> -> vector<8x8xf32>
    %29 = arith.truncf %28 : vector<8x8xf32> to vector<8x8xbf16>
    %c0_15 = arith.constant 0 : index
    %c0_16 = arith.constant 0 : index
    %30 = vector.load %arg6[%c0_15, %c0_16] : memref<32x32xbf16, #tpu.memory_space<vmem>>, vector<8x32xbf16>
    %cst_17 = arith.constant dense<0.000000e+00> : vector<8x32xf32>
    %31 = tpu.matmul %29, %30, %cst_17 {dimension_numbers = #tpu.dot_dimension_numbers<[1], [0], [0], [1], [0, 0, 1, 1], [], []>} : vector<8x8xbf16>, vector<8x32xbf16>, vector<8x32xf32> -> vector<8x32xf32>
    %32 = arith.addf %8, %31 : vector<8x32xf32>
    %33 = vector.extract_strided_slice %1 {offsets = [0, 8], sizes = [8, 8], strides = [1, 1]} : vector<8x32xf32> to vector<8x8xf32>
    %34 = arith.truncf %33 : vector<8x8xf32> to vector<8x8xbf16>
    %35 = vector.extract_strided_slice %3 {offsets = [0, 8], sizes = [8, 8], strides = [1, 1]} : vector<8x32xf32> to vector<8x8xf32>
    %36 = arith.truncf %35 : vector<8x8xf32> to vector<8x8xbf16>
    %37 = vector.extract_strided_slice %5 {offsets = [0, 8], sizes = [8, 8], strides = [1, 1]} : vector<8x32xf32> to vector<8x8xf32>
    %38 = arith.truncf %37 : vector<8x8xf32> to vector<8x8xbf16>
    %cst_18 = arith.constant dense<0.000000e+00> : vector<8x8xf32>
    %39 = tpu.matmul %34, %36, %cst_18 {dimension_numbers = #tpu.dot_dimension_numbers<[1], [1], [0], [0], [0, 0, 1, 0], [], []>} : vector<8x8xbf16>, vector<8x8xbf16>, vector<8x8xf32> -> vector<8x8xf32>
    %40 = arith.addf %39, %7 : vector<8x8xf32>
    %cst_19 = arith.constant dense<0xFF800000> : vector<8xf32>
    %41 = vector.multi_reduction <maximumf>, %40, %cst_19 [1] : vector<8x8xf32> to vector<8xf32>
    %42 = vector.shape_cast %41 : vector<8xf32> to vector<8x1xf32>
    %43 = vector.broadcast %42 : vector<8x1xf32> to vector<8x8xf32>
    %44 = arith.subf %40, %43 : vector<8x8xf32>
    %45 = math.exp %44 : vector<8x8xf32>
    %cst_20 = arith.constant dense<0.000000e+00> : vector<8xf32>
    %46 = vector.multi_reduction <add>, %45, %cst_20 [1] : vector<8x8xf32> to vector<8xf32>
    %47 = vector.shape_cast %46 : vector<8xf32> to vector<8x1xf32>
    %48 = tpu.reciprocal %47 {approx = true} : vector<8x1xf32> -> vector<8x1xf32>
    %49 = vector.broadcast %48 : vector<8x1xf32> to vector<8x8xf32>
    %50 = arith.mulf %45, %49 : vector<8x8xf32>
    %51 = arith.truncf %50 : vector<8x8xf32> to vector<8x8xbf16>
    %cst_21 = arith.constant dense<0.000000e+00> : vector<8x8xf32>
    %52 = tpu.matmul %51, %38, %cst_21 {dimension_numbers = #tpu.dot_dimension_numbers<[1], [0], [0], [1], [0, 0, 1, 1], [], []>} : vector<8x8xbf16>, vector<8x8xbf16>, vector<8x8xf32> -> vector<8x8xf32>
    %53 = arith.truncf %52 : vector<8x8xf32> to vector<8x8xbf16>
    %c8 = arith.constant 8 : index
    %c0_22 = arith.constant 0 : index
    %54 = vector.load %arg6[%c8, %c0_22] : memref<32x32xbf16, #tpu.memory_space<vmem>>, vector<8x32xbf16>
    %cst_23 = arith.constant dense<0.000000e+00> : vector<8x32xf32>
    %55 = tpu.matmul %53, %54, %cst_23 {dimension_numbers = #tpu.dot_dimension_numbers<[1], [0], [0], [1], [0, 0, 1, 1], [], []>} : vector<8x8xbf16>, vector<8x32xbf16>, vector<8x32xf32> -> vector<8x32xf32>
    %56 = arith.addf %32, %55 : vector<8x32xf32>
    %57 = vector.extract_strided_slice %1 {offsets = [0, 16], sizes = [8, 8], strides = [1, 1]} : vector<8x32xf32> to vector<8x8xf32>
    %58 = arith.truncf %57 : vector<8x8xf32> to vector<8x8xbf16>
    %59 = vector.extract_strided_slice %3 {offsets = [0, 16], sizes = [8, 8], strides = [1, 1]} : vector<8x32xf32> to vector<8x8xf32>
    %60 = arith.truncf %59 : vector<8x8xf32> to vector<8x8xbf16>
    %61 = vector.extract_strided_slice %5 {offsets = [0, 16], sizes = [8, 8], strides = [1, 1]} : vector<8x32xf32> to vector<8x8xf32>
    %62 = arith.truncf %61 : vector<8x8xf32> to vector<8x8xbf16>
    %cst_24 = arith.constant dense<0.000000e+00> : vector<8x8xf32>
    %63 = tpu.matmul %58, %60, %cst_24 {dimension_numbers = #tpu.dot_dimension_numbers<[1], [1], [0], [0], [0, 0, 1, 0], [], []>} : vector<8x8xbf16>, vector<8x8xbf16>, vector<8x8xf32> -> vector<8x8xf32>
    %64 = arith.addf %63, %7 : vector<8x8xf32>
    %cst_25 = arith.constant dense<0xFF800000> : vector<8xf32>
    %65 = vector.multi_reduction <maximumf>, %64, %cst_25 [1] : vector<8x8xf32> to vector<8xf32>
    %66 = vector.shape_cast %65 : vector<8xf32> to vector<8x1xf32>
    %67 = vector.broadcast %66 : vector<8x1xf32> to vector<8x8xf32>
    %68 = arith.subf %64, %67 : vector<8x8xf32>
    %69 = math.exp %68 : vector<8x8xf32>
    %cst_26 = arith.constant dense<0.000000e+00> : vector<8xf32>
    %70 = vector.multi_reduction <add>, %69, %cst_26 [1] : vector<8x8xf32> to vector<8xf32>
    %71 = vector.shape_cast %70 : vector<8xf32> to vector<8x1xf32>
    %72 = tpu.reciprocal %71 {approx = true} : vector<8x1xf32> -> vector<8x1xf32>
    %73 = vector.broadcast %72 : vector<8x1xf32> to vector<8x8xf32>
    %74 = arith.mulf %69, %73 : vector<8x8xf32>
    %75 = arith.truncf %74 : vector<8x8xf32> to vector<8x8xbf16>
    %cst_27 = arith.constant dense<0.000000e+00> : vector<8x8xf32>
    %76 = tpu.matmul %75, %62, %cst_27 {dimension_numbers = #tpu.dot_dimension_numbers<[1], [0], [0], [1], [0, 0, 1, 1], [], []>} : vector<8x8xbf16>, vector<8x8xbf16>, vector<8x8xf32> -> vector<8x8xf32>
    %77 = arith.truncf %76 : vector<8x8xf32> to vector<8x8xbf16>
    %c16 = arith.constant 16 : index
    %c0_28 = arith.constant 0 : index
    %78 = vector.load %arg6[%c16, %c0_28] : memref<32x32xbf16, #tpu.memory_space<vmem>>, vector<8x32xbf16>
    %cst_29 = arith.constant dense<0.000000e+00> : vector<8x32xf32>
    %79 = tpu.matmul %77, %78, %cst_29 {dimension_numbers = #tpu.dot_dimension_numbers<[1], [0], [0], [1], [0, 0, 1, 1], [], []>} : vector<8x8xbf16>, vector<8x32xbf16>, vector<8x32xf32> -> vector<8x32xf32>
    %80 = arith.addf %56, %79 : vector<8x32xf32>
    %81 = vector.extract_strided_slice %1 {offsets = [0, 24], sizes = [8, 8], strides = [1, 1]} : vector<8x32xf32> to vector<8x8xf32>
    %82 = arith.truncf %81 : vector<8x8xf32> to vector<8x8xbf16>
    %83 = vector.extract_strided_slice %3 {offsets = [0, 24], sizes = [8, 8], strides = [1, 1]} : vector<8x32xf32> to vector<8x8xf32>
    %84 = arith.truncf %83 : vector<8x8xf32> to vector<8x8xbf16>
    %85 = vector.extract_strided_slice %5 {offsets = [0, 24], sizes = [8, 8], strides = [1, 1]} : vector<8x32xf32> to vector<8x8xf32>
    %86 = arith.truncf %85 : vector<8x8xf32> to vector<8x8xbf16>
    %cst_30 = arith.constant dense<0.000000e+00> : vector<8x8xf32>
    %87 = tpu.matmul %82, %84, %cst_30 {dimension_numbers = #tpu.dot_dimension_numbers<[1], [1], [0], [0], [0, 0, 1, 0], [], []>} : vector<8x8xbf16>, vector<8x8xbf16>, vector<8x8xf32> -> vector<8x8xf32>
    %88 = arith.addf %87, %7 : vector<8x8xf32>
    %cst_31 = arith.constant dense<0xFF800000> : vector<8xf32>
    %89 = vector.multi_reduction <maximumf>, %88, %cst_31 [1] : vector<8x8xf32> to vector<8xf32>
    %90 = vector.shape_cast %89 : vector<8xf32> to vector<8x1xf32>
    %91 = vector.broadcast %90 : vector<8x1xf32> to vector<8x8xf32>
    %92 = arith.subf %88, %91 : vector<8x8xf32>
    %93 = math.exp %92 : vector<8x8xf32>
    %cst_32 = arith.constant dense<0.000000e+00> : vector<8xf32>
    %94 = vector.multi_reduction <add>, %93, %cst_32 [1] : vector<8x8xf32> to vector<8xf32>
    %95 = vector.shape_cast %94 : vector<8xf32> to vector<8x1xf32>
    %96 = tpu.reciprocal %95 {approx = true} : vector<8x1xf32> -> vector<8x1xf32>
    %97 = vector.broadcast %96 : vector<8x1xf32> to vector<8x8xf32>
    %98 = arith.mulf %93, %97 : vector<8x8xf32>
    %99 = arith.truncf %98 : vector<8x8xf32> to vector<8x8xbf16>
    %cst_33 = arith.constant dense<0.000000e+00> : vector<8x8xf32>
    %100 = tpu.matmul %99, %86, %cst_33 {dimension_numbers = #tpu.dot_dimension_numbers<[1], [0], [0], [1], [0, 0, 1, 1], [], []>} : vector<8x8xbf16>, vector<8x8xbf16>, vector<8x8xf32> -> vector<8x8xf32>
    %101 = arith.truncf %100 : vector<8x8xf32> to vector<8x8xbf16>
    %c24 = arith.constant 24 : index
    %c0_34 = arith.constant 0 : index
    %102 = vector.load %arg6[%c24, %c0_34] : memref<32x32xbf16, #tpu.memory_space<vmem>>, vector<8x32xbf16>
    %cst_35 = arith.constant dense<0.000000e+00> : vector<8x32xf32>
    %103 = tpu.matmul %101, %102, %cst_35 {dimension_numbers = #tpu.dot_dimension_numbers<[1], [0], [0], [1], [0, 0, 1, 1], [], []>} : vector<8x8xbf16>, vector<8x32xbf16>, vector<8x32xf32> -> vector<8x32xf32>
    %104 = arith.addf %80, %103 : vector<8x32xf32>
    %c0_36 = arith.constant 0 : index
    %c0_37 = arith.constant 0 : index
    %c0_38 = arith.constant 0 : index
    %105 = vector.load %arg5[%c0_36, %c0_37, %c0_38] : memref<1x8x32xf32, #tpu.memory_space<vmem>>, vector<1x8x32xf32>
    %106 = vector.shape_cast %105 : vector<1x8x32xf32> to vector<8x32xf32>
    %107 = arith.addf %106, %104 : vector<8x32xf32>
    %c0_39 = arith.constant 0 : index
    %c0_40 = arith.constant 0 : index
    %108 = vector.load %arg7[%c0_39, %c0_40] : memref<1x32xf32, #tpu.memory_space<vmem>>, vector<1x32xf32>
    %109 = vector.broadcast %108 : vector<1x32xf32> to vector<8x32xf32>
    %110 = arith.addf %107, %109 : vector<8x32xf32>
    %cst_41 = arith.constant dense<0.000000e+00> : vector<8xf32>
    %111 = vector.multi_reduction <add>, %110, %cst_41 [1] : vector<8x32xf32> to vector<8xf32>
    %112 = vector.shape_cast %111 : vector<8xf32> to vector<8x1xf32>
    %cst_42 = arith.constant 3.200000e+01 : f32
    %113 = vector.broadcast %cst_42 : f32 to vector<8x1xf32>
    %114 = arith.divf %112, %113 : vector<8x1xf32>
    %115 = vector.broadcast %114 : vector<8x1xf32> to vector<8x32xf32>
    %116 = arith.subf %110, %115 : vector<8x32xf32>
    %117 = arith.mulf %116, %116 : vector<8x32xf32>
    %cst_43 = arith.constant dense<0.000000e+00> : vector<8xf32>
    %118 = vector.multi_reduction <add>, %117, %cst_43 [1] : vector<8x32xf32> to vector<8xf32>
    %119 = vector.shape_cast %118 : vector<8xf32> to vector<8x1xf32>
    %cst_44 = arith.constant 3.200000e+01 : f32
    %120 = vector.broadcast %cst_44 : f32 to vector<8x1xf32>
    %121 = arith.divf %119, %120 : vector<8x1xf32>
    %122 = vector.broadcast %114 : vector<8x1xf32> to vector<8x32xf32>
    %123 = arith.subf %110, %122 : vector<8x32xf32>
    %cst_45 = arith.constant 9.99999974E-6 : f32
    %124 = vector.broadcast %cst_45 : f32 to vector<8x1xf32>
    %125 = arith.addf %121, %124 : vector<8x1xf32>
    %126 = math.rsqrt %125 : vector<8x1xf32>
    %127 = vector.broadcast %126 : vector<8x1xf32> to vector<8x32xf32>
    %128 = arith.mulf %123, %127 : vector<8x32xf32>
    %c0_46 = arith.constant 0 : index
    %c0_47 = arith.constant 0 : index
    %129 = vector.load %arg8[%c0_46, %c0_47] : memref<1x32xf32, #tpu.memory_space<vmem>>, vector<1x32xf32>
    %130 = vector.broadcast %129 : vector<1x32xf32> to vector<8x32xf32>
    %131 = arith.mulf %128, %130 : vector<8x32xf32>
    %c0_48 = arith.constant 0 : index
    %c0_49 = arith.constant 0 : index
    %132 = vector.load %arg9[%c0_48, %c0_49] : memref<1x32xf32, #tpu.memory_space<vmem>>, vector<1x32xf32>
    %133 = vector.broadcast %132 : vector<1x32xf32> to vector<8x32xf32>
    %134 = arith.addf %131, %133 : vector<8x32xf32>
    %c0_50 = arith.constant 0 : index
    %c0_51 = arith.constant 0 : index
    %c0_52 = arith.constant 0 : index
    %135 = vector.load %arg10[%c0_50, %c0_51, %c0_52] : memref<1x8x32xf32, #tpu.memory_space<vmem>>, vector<1x8x32xf32>
    %136 = vector.shape_cast %135 : vector<1x8x32xf32> to vector<8x32xf32>
    %137 = vector.shape_cast %134 : vector<8x32xf32> to vector<1x8x32xf32>
    tpu.vector_store %arg10[%c0_50, %c0_51, %c0_52], %137 {strides = array<i32>} : memref<1x8x32xf32, #tpu.memory_space<vmem>>, vector<1x8x32xf32>,
    return
  }
  func.func @transform_0(%arg0: i32) -> (i32, i32, i32) {
    %c0_i32 = arith.constant 0 : i32
    %c0_i32_0 = arith.constant 0 : i32
    %c0_i32_1 = arith.constant 0 : i32
    return %arg0, %c0_i32, %c0_i32_0 : i32, i32, i32
  }
  func.func @transform_1(%arg0: i32) -> (i32, i32, i32) {
    %c0_i32 = arith.constant 0 : i32
    %c0_i32_0 = arith.constant 0 : i32
    %c0_i32_1 = arith.constant 0 : i32
    return %arg0, %c0_i32, %c0_i32_0 : i32, i32, i32
  }
  func.func @transform_2(%arg0: i32) -> (i32, i32, i32) {
    %c0_i32 = arith.constant 0 : i32
    %c0_i32_0 = arith.constant 0 : i32
    %c0_i32_1 = arith.constant 0 : i32
    return %arg0, %c0_i32, %c0_i32_0 : i32, i32, i32
  }
  func.func @transform_3(%arg0: i32) -> (i32, i32, i32) {
    %c0_i32 = arith.constant 0 : i32
    %c0_i32_0 = arith.constant 0 : i32
    %c0_i32_1 = arith.constant 0 : i32
    return %arg0, %c0_i32, %c0_i32_0 : i32, i32, i32
  }
  func.func @transform_4(%arg0: i32) -> (i32, i32, i32) {
    %c0_i32 = arith.constant 0 : i32
    %c0_i32_0 = arith.constant 0 : i32
    %c0_i32_1 = arith.constant 0 : i32
    return %arg0, %c0_i32, %c0_i32_0 : i32, i32, i32
  }
  func.func @transform_5(%arg0: i32) -> (i32, i32) {
    %c0_i32 = arith.constant 0 : i32
    %c0_i32_0 = arith.constant 0 : i32
    %c0_i32_1 = arith.constant 0 : i32
    return %c0_i32, %c0_i32_0 : i32, i32
  }
  func.func @transform_6(%arg0: i32) -> (i32, i32) {
    %c0_i32 = arith.constant 0 : i32
    %c0_i32_0 = arith.constant 0 : i32
    %c0_i32_1 = arith.constant 0 : i32
    return %c0_i32, %c0_i32_0 : i32, i32
  }
  func.func @transform_7(%arg0: i32) -> (i32, i32) {
    %c0_i32 = arith.constant 0 : i32
    %c0_i32_0 = arith.constant 0 : i32
    %c0_i32_1 = arith.constant 0 : i32
    return %c0_i32, %c0_i32_0 : i32, i32
  }
  func.func @transform_8(%arg0: i32) -> (i32, i32) {
    %c0_i32 = arith.constant 0 : i32
    %c0_i32_0 = arith.constant 0 : i32
    %c0_i32_1 = arith.constant 0 : i32
    return %c0_i32, %c0_i32_0 : i32, i32
  }
  func.func @transform_9(%arg0: i32) -> (i32, i32, i32) {
    %c0_i32 = arith.constant 0 : i32
    %c0_i32_0 = arith.constant 0 : i32
    %c0_i32_1 = arith.constant 0 : i32
    return %arg0, %c0_i32, %c0_i32_0 : i32, i32, i32
  }
}

module attributes {stable_mosaic.version = 11 : i64} {
  func.func @_mha_kernel(%arg0: i32, %arg1: memref<1x8x32xf32, #tpu.memory_space<vmem>>, %arg2: memref<1x12x32xf32, #tpu.memory_space<vmem>>, %arg3: memref<1x12x32xf32, #tpu.memory_space<vmem>>, %arg4: memref<1x8x12xf32, #tpu.memory_space<vmem>>, %arg5: memref<1x8x32xf32, #tpu.memory_space<vmem>>, %arg6: memref<32x32xbf16, #tpu.memory_space<vmem>>, %arg7: memref<1x32xf32, #tpu.memory_space<vmem>>, %arg8: memref<1x32xf32, #tpu.memory_space<vmem>>, %arg9: memref<1x32xf32, #tpu.memory_space<vmem>>, %arg10: memref<1x8x32xf32, #tpu.memory_space<vmem>>) attributes {dimension_semantics = [#tpu.dimension_semantics<parallel>], iteration_bounds = array<i64: 2>, scalar_prefetch = 0 : i64, scratch_operands = 0 : i64, tpu.core_type = #tpu.core_type<tc>, window_params = [{transform_indices = @transform_0, window_bounds = array<i64: 1, 8, 32>}, {transform_indices = @transform_1, window_bounds = array<i64: 1, 12, 32>}, {transform_indices = @transform_2, window_bounds = array<i64: 1, 12, 32>}, {transform_indices = @transform_3, window_bounds = array<i64: 1, 8, 12>}, {transform_indices = @transform_4, window_bounds = array<i64: 1, 8, 32>}, {pipeline_mode = #tpu.pipeline_mode<synchronous>, transform_indices = @transform_5, window_bounds = array<i64: 32, 32>}, {pipeline_mode = #tpu.pipeline_mode<synchronous>, transform_indices = @transform_6, window_bounds = array<i64: 1, 32>}, {pipeline_mode = #tpu.pipeline_mode<synchronous>, transform_indices = @transform_7, window_bounds = array<i64: 1, 32>}, {pipeline_mode = #tpu.pipeline_mode<synchronous>, transform_indices = @transform_8, window_bounds = array<i64: 1, 32>}, {transform_indices = @transform_9, window_bounds = array<i64: 1, 8, 32>}]} {
    %c0 = arith.constant 0 : index
    %c0_0 = arith.constant 0 : index
    %c0_1 = arith.constant 0 : index
    %0 = vector.load %arg1[%c0, %c0_0, %c0_1] : memref<1x8x32xf32, #tpu.memory_space<vmem>>, vector<1x8x32xf32>
    %1 = vector.shape_cast %0 : vector<1x8x32xf32> to vector<8x32xf32>
    %c0_2 = arith.constant 0 : index
    %c0_3 = arith.constant 0 : index
    %c0_4 = arith.constant 0 : index
    %2 = vector.load %arg2[%c0_2, %c0_3, %c0_4] : memref<1x12x32xf32, #tpu.memory_space<vmem>>, vector<1x12x32xf32>
    %3 = vector.shape_cast %2 : vector<1x12x32xf32> to vector<12x32xf32>
    %c0_5 = arith.constant 0 : index
    %c0_6 = arith.constant 0 : index
    %c0_7 = arith.constant 0 : index
    %4 = vector.load %arg3[%c0_5, %c0_6, %c0_7] : memref<1x12x32xf32, #tpu.memory_space<vmem>>, vector<1x12x32xf32>
    %5 = vector.shape_cast %4 : vector<1x12x32xf32> to vector<12x32xf32>
    %c0_8 = arith.constant 0 : index
    %c0_9 = arith.constant 0 : index
    %c0_10 = arith.constant 0 : index
    %6 = vector.load %arg4[%c0_8, %c0_9, %c0_10] : memref<1x8x12xf32, #tpu.memory_space<vmem>>, vector<1x8x12xf32>
    %7 = vector.shape_cast %6 : vector<1x8x12xf32> to vector<8x12xf32>
    %cst = arith.constant 0.000000e+00 : f32
    %8 = vector.broadcast %cst : f32 to vector<8x32xf32>
    %9 = vector.extract_strided_slice %1 {offsets = [0, 0], sizes = [8, 8], strides = [1, 1]} : vector<8x32xf32> to vector<8x8xf32>
    %10 = arith.truncf %9 : vector<8x8xf32> to vector<8x8xbf16>
    %11 = vector.extract_strided_slice %3 {offsets = [0, 0], sizes = [12, 8], strides = [1, 1]} : vector<12x32xf32> to vector<12x8xf32>
    %12 = arith.truncf %11 : vector<12x8xf32> to vector<12x8xbf16>
    %13 = vector.extract_strided_slice %5 {offsets = [0, 0], sizes = [12, 8], strides = [1, 1]} : vector<12x32xf32> to vector<12x8xf32>
    %14 = arith.truncf %13 : vector<12x8xf32> to vector<12x8xbf16>
    %cst_11 = arith.constant dense<0.000000e+00> : vector<8x12xf32>
    %15 = tpu.matmul %10, %12, %cst_11 {dimension_numbers = #tpu.dot_dimension_numbers<[1], [1], [0], [0], [0, 0, 1, 0], [], []>} : vector<8x8xbf16>, vector<12x8xbf16>, vector<8x12xf32> -> vector<8x12xf32>
    %16 = arith.addf %15, %7 : vector<8x12xf32>
    %cst_12 = arith.constant dense<0xFF800000> : vector<8xf32>
    %17 = vector.multi_reduction <maximumf>, %16, %cst_12 [1] : vector<8x12xf32> to vector<8xf32>
    %18 = vector.shape_cast %17 : vector<8xf32> to vector<8x1xf32>
    %19 = vector.broadcast %18 : vector<8x1xf32> to vector<8x12xf32>
    %20 = arith.subf %16, %19 : vector<8x12xf32>
    %21 = math.exp %20 : vector<8x12xf32>
    %cst_13 = arith.constant dense<0.000000e+00> : vector<8xf32>
    %22 = vector.multi_reduction <add>, %21, %cst_13 [1] : vector<8x12xf32> to vector<8xf32>
    %23 = vector.shape_cast %22 : vector<8xf32> to vector<8x1xf32>
    %24 = tpu.reciprocal %23 {approx = true} : vector<8x1xf32> -> vector<8x1xf32>
    %25 = vector.broadcast %24 : vector<8x1xf32> to vector<8x12xf32>
    %26 = arith.mulf %21, %25 : vector<8x12xf32>
    %27 = arith.truncf %26 : vector<8x12xf32> to vector<8x12xbf16>
    %cst_14 = arith.constant dense<0.000000e+00> : vector<8x8xf32>
    %28 = tpu.matmul %27, %14, %cst_14 {dimension_numbers = #tpu.dot_dimension_numbers<[1], [0], [0], [1], [0, 0, 1, 1], [], []>} : vector<8x12xbf16>, vector<12x8xbf16>, vector<8x8xf32> -> vector<8x8xf32>
    %29 = arith.truncf %28 : vector<8x8xf32> to vector<8x8xbf16>
    %c0_15 = arith.constant 0 : index
    %c0_16 = arith.constant 0 : index
    %30 = vector.load %arg6[%c0_15, %c0_16] : memref<32x32xbf16, #tpu.memory_space<vmem>>, vector<8x32xbf16>
    %cst_17 = arith.constant dense<0.000000e+00> : vector<8x32xf32>
    %31 = tpu.matmul %29, %30, %cst_17 {dimension_numbers = #tpu.dot_dimension_numbers<[1], [0], [0], [1], [0, 0, 1, 1], [], []>} : vector<8x8xbf16>, vector<8x32xbf16>, vector<8x32xf32> -> vector<8x32xf32>
    %32 = arith.addf %8, %31 : vector<8x32xf32>
    %33 = vector.extract_strided_slice %1 {offsets = [0, 8], sizes = [8, 8], strides = [1, 1]} : vector<8x32xf32> to vector<8x8xf32>
    %34 = arith.truncf %33 : vector<8x8xf32> to vector<8x8xbf16>
    %35 = vector.extract_strided_slice %3 {offsets = [0, 8], sizes = [12, 8], strides = [1, 1]} : vector<12x32xf32> to vector<12x8xf32>
    %36 = arith.truncf %35 : vector<12x8xf32> to vector<12x8xbf16>
    %37 = vector.extract_strided_slice %5 {offsets = [0, 8], sizes = [12, 8], strides = [1, 1]} : vector<12x32xf32> to vector<12x8xf32>
    %38 = arith.truncf %37 : vector<12x8xf32> to vector<12x8xbf16>
    %cst_18 = arith.constant dense<0.000000e+00> : vector<8x12xf32>
    %39 = tpu.matmul %34, %36, %cst_18 {dimension_numbers = #tpu.dot_dimension_numbers<[1], [1], [0], [0], [0, 0, 1, 0], [], []>} : vector<8x8xbf16>, vector<12x8xbf16>, vector<8x12xf32> -> vector<8x12xf32>
    %40 = arith.addf %39, %7 : vector<8x12xf32>
    %cst_19 = arith.constant dense<0xFF800000> : vector<8xf32>
    %41 = vector.multi_reduction <maximumf>, %40, %cst_19 [1] : vector<8x12xf32> to vector<8xf32>
    %42 = vector.shape_cast %41 : vector<8xf32> to vector<8x1xf32>
    %43 = vector.broadcast %42 : vector<8x1xf32> to vector<8x12xf32>
    %44 = arith.subf %40, %43 : vector<8x12xf32>
    %45 = math.exp %44 : vector<8x12xf32>
    %cst_20 = arith.constant dense<0.000000e+00> : vector<8xf32>
    %46 = vector.multi_reduction <add>, %45, %cst_20 [1] : vector<8x12xf32> to vector<8xf32>
    %47 = vector.shape_cast %46 : vector<8xf32> to vector<8x1xf32>
    %48 = tpu.reciprocal %47 {approx = true} : vector<8x1xf32> -> vector<8x1xf32>
    %49 = vector.broadcast %48 : vector<8x1xf32> to vector<8x12xf32>
    %50 = arith.mulf %45, %49 : vector<8x12xf32>
    %51 = arith.truncf %50 : vector<8x12xf32> to vector<8x12xbf16>
    %cst_21 = arith.constant dense<0.000000e+00> : vector<8x8xf32>
    %52 = tpu.matmul %51, %38, %cst_21 {dimension_numbers = #tpu.dot_dimension_numbers<[1], [0], [0], [1], [0, 0, 1, 1], [], []>} : vector<8x12xbf16>, vector<12x8xbf16>, vector<8x8xf32> -> vector<8x8xf32>
    %53 = arith.truncf %52 : vector<8x8xf32> to vector<8x8xbf16>
    %c8 = arith.constant 8 : index
    %c0_22 = arith.constant 0 : index
    %54 = vector.load %arg6[%c8, %c0_22] : memref<32x32xbf16, #tpu.memory_space<vmem>>, vector<8x32xbf16>
    %cst_23 = arith.constant dense<0.000000e+00> : vector<8x32xf32>
    %55 = tpu.matmul %53, %54, %cst_23 {dimension_numbers = #tpu.dot_dimension_numbers<[1], [0], [0], [1], [0, 0, 1, 1], [], []>} : vector<8x8xbf16>, vector<8x32xbf16>, vector<8x32xf32> -> vector<8x32xf32>
    %56 = arith.addf %32, %55 : vector<8x32xf32>
    %57 = vector.extract_strided_slice %1 {offsets = [0, 16], sizes = [8, 8], strides = [1, 1]} : vector<8x32xf32> to vector<8x8xf32>
    %58 = arith.truncf %57 : vector<8x8xf32> to vector<8x8xbf16>
    %59 = vector.extract_strided_slice %3 {offsets = [0, 16], sizes = [12, 8], strides = [1, 1]} : vector<12x32xf32> to vector<12x8xf32>
    %60 = arith.truncf %59 : vector<12x8xf32> to vector<12x8xbf16>
    %61 = vector.extract_strided_slice %5 {offsets = [0, 16], sizes = [12, 8], strides = [1, 1]} : vector<12x32xf32> to vector<12x8xf32>
    %62 = arith.truncf %61 : vector<12x8xf32> to vector<12x8xbf16>
    %cst_24 = arith.constant dense<0.000000e+00> : vector<8x12xf32>
    %63 = tpu.matmul %58, %60, %cst_24 {dimension_numbers = #tpu.dot_dimension_numbers<[1], [1], [0], [0], [0, 0, 1, 0], [], []>} : vector<8x8xbf16>, vector<12x8xbf16>, vector<8x12xf32> -> vector<8x12xf32>
    %64 = arith.addf %63, %7 : vector<8x12xf32>
    %cst_25 = arith.constant dense<0xFF800000> : vector<8xf32>
    %65 = vector.multi_reduction <maximumf>, %64, %cst_25 [1] : vector<8x12xf32> to vector<8xf32>
    %66 = vector.shape_cast %65 : vector<8xf32> to vector<8x1xf32>
    %67 = vector.broadcast %66 : vector<8x1xf32> to vector<8x12xf32>
    %68 = arith.subf %64, %67 : vector<8x12xf32>
    %69 = math.exp %68 : vector<8x12xf32>
    %cst_26 = arith.constant dense<0.000000e+00> : vector<8xf32>
    %70 = vector.multi_reduction <add>, %69, %cst_26 [1] : vector<8x12xf32> to vector<8xf32>
    %71 = vector.shape_cast %70 : vector<8xf32> to vector<8x1xf32>
    %72 = tpu.reciprocal %71 {approx = true} : vector<8x1xf32> -> vector<8x1xf32>
    %73 = vector.broadcast %72 : vector<8x1xf32> to vector<8x12xf32>
    %74 = arith.mulf %69, %73 : vector<8x12xf32>
    %75 = arith.truncf %74 : vector<8x12xf32> to vector<8x12xbf16>
    %cst_27 = arith.constant dense<0.000000e+00> : vector<8x8xf32>
    %76 = tpu.matmul %75, %62, %cst_27 {dimension_numbers = #tpu.dot_dimension_numbers<[1], [0], [0], [1], [0, 0, 1, 1], [], []>} : vector<8x12xbf16>, vector<12x8xbf16>, vector<8x8xf32> -> vector<8x8xf32>
    %77 = arith.truncf %76 : vector<8x8xf32> to vector<8x8xbf16>
    %c16 = arith.constant 16 : index
    %c0_28 = arith.constant 0 : index
    %78 = vector.load %arg6[%c16, %c0_28] : memref<32x32xbf16, #tpu.memory_space<vmem>>, vector<8x32xbf16>
    %cst_29 = arith.constant dense<0.000000e+00> : vector<8x32xf32>
    %79 = tpu.matmul %77, %78, %cst_29 {dimension_numbers = #tpu.dot_dimension_numbers<[1], [0], [0], [1], [0, 0, 1, 1], [], []>} : vector<8x8xbf16>, vector<8x32xbf16>, vector<8x32xf32> -> vector<8x32xf32>
    %80 = arith.addf %56, %79 : vector<8x32xf32>
    %81 = vector.extract_strided_slice %1 {offsets = [0, 24], sizes = [8, 8], strides = [1, 1]} : vector<8x32xf32> to vector<8x8xf32>
    %82 = arith.truncf %81 : vector<8x8xf32> to vector<8x8xbf16>
    %83 = vector.extract_strided_slice %3 {offsets = [0, 24], sizes = [12, 8], strides = [1, 1]} : vector<12x32xf32> to vector<12x8xf32>
    %84 = arith.truncf %83 : vector<12x8xf32> to vector<12x8xbf16>
    %85 = vector.extract_strided_slice %5 {offsets = [0, 24], sizes = [12, 8], strides = [1, 1]} : vector<12x32xf32> to vector<12x8xf32>
    %86 = arith.truncf %85 : vector<12x8xf32> to vector<12x8xbf16>
    %cst_30 = arith.constant dense<0.000000e+00> : vector<8x12xf32>
    %87 = tpu.matmul %82, %84, %cst_30 {dimension_numbers = #tpu.dot_dimension_numbers<[1], [1], [0], [0], [0, 0, 1, 0], [], []>} : vector<8x8xbf16>, vector<12x8xbf16>, vector<8x12xf32> -> vector<8x12xf32>
    %88 = arith.addf %87, %7 : vector<8x12xf32>
    %cst_31 = arith.constant dense<0xFF800000> : vector<8xf32>
    %89 = vector.multi_reduction <maximumf>, %88, %cst_31 [1] : vector<8x12xf32> to vector<8xf32>
    %90 = vector.shape_cast %89 : vector<8xf32> to vector<8x1xf32>
    %91 = vector.broadcast %90 : vector<8x1xf32> to vector<8x12xf32>
    %92 = arith.subf %88, %91 : vector<8x12xf32>
    %93 = math.exp %92 : vector<8x12xf32>
    %cst_32 = arith.constant dense<0.000000e+00> : vector<8xf32>
    %94 = vector.multi_reduction <add>, %93, %cst_32 [1] : vector<8x12xf32> to vector<8xf32>
    %95 = vector.shape_cast %94 : vector<8xf32> to vector<8x1xf32>
    %96 = tpu.reciprocal %95 {approx = true} : vector<8x1xf32> -> vector<8x1xf32>
    %97 = vector.broadcast %96 : vector<8x1xf32> to vector<8x12xf32>
    %98 = arith.mulf %93, %97 : vector<8x12xf32>
    %99 = arith.truncf %98 : vector<8x12xf32> to vector<8x12xbf16>
    %cst_33 = arith.constant dense<0.000000e+00> : vector<8x8xf32>
    %100 = tpu.matmul %99, %86, %cst_33 {dimension_numbers = #tpu.dot_dimension_numbers<[1], [0], [0], [1], [0, 0, 1, 1], [], []>} : vector<8x12xbf16>, vector<12x8xbf16>, vector<8x8xf32> -> vector<8x8xf32>
    %101 = arith.truncf %100 : vector<8x8xf32> to vector<8x8xbf16>
    %c24 = arith.constant 24 : index
    %c0_34 = arith.constant 0 : index
    %102 = vector.load %arg6[%c24, %c0_34] : memref<32x32xbf16, #tpu.memory_space<vmem>>, vector<8x32xbf16>
    %cst_35 = arith.constant dense<0.000000e+00> : vector<8x32xf32>
    %103 = tpu.matmul %101, %102, %cst_35 {dimension_numbers = #tpu.dot_dimension_numbers<[1], [0], [0], [1], [0, 0, 1, 1], [], []>} : vector<8x8xbf16>, vector<8x32xbf16>, vector<8x32xf32> -> vector<8x32xf32>
    %104 = arith.addf %80, %103 : vector<8x32xf32>
    %c0_36 = arith.constant 0 : index
    %c0_37 = arith.constant 0 : index
    %c0_38 = arith.constant 0 : index
    %105 = vector.load %arg5[%c0_36, %c0_37, %c0_38] : memref<1x8x32xf32, #tpu.memory_space<vmem>>, vector<1x8x32xf32>
    %106 = vector.shape_cast %105 : vector<1x8x32xf32> to vector<8x32xf32>
    %107 = arith.addf %106, %104 : vector<8x32xf32>
    %c0_39 = arith.constant 0 : index
    %c0_40 = arith.constant 0 : index
    %108 = vector.load %arg7[%c0_39, %c0_40] : memref<1x32xf32, #tpu.memory_space<vmem>>, vector<1x32xf32>
    %109 = vector.broadcast %108 : vector<1x32xf32> to vector<8x32xf32>
    %110 = arith.addf %107, %109 : vector<8x32xf32>
    %cst_41 = arith.constant dense<0.000000e+00> : vector<8xf32>
    %111 = vector.multi_reduction <add>, %110, %cst_41 [1] : vector<8x32xf32> to vector<8xf32>
    %112 = vector.shape_cast %111 : vector<8xf32> to vector<8x1xf32>
    %cst_42 = arith.constant 3.200000e+01 : f32
    %113 = vector.broadcast %cst_42 : f32 to vector<8x1xf32>
    %114 = arith.divf %112, %113 : vector<8x1xf32>
    %115 = vector.broadcast %114 : vector<8x1xf32> to vector<8x32xf32>
    %116 = arith.subf %110, %115 : vector<8x32xf32>
    %117 = arith.mulf %116, %116 : vector<8x32xf32>
    %cst_43 = arith.constant dense<0.000000e+00> : vector<8xf32>
    %118 = vector.multi_reduction <add>, %117, %cst_43 [1] : vector<8x32xf32> to vector<8xf32>
    %119 = vector.shape_cast %118 : vector<8xf32> to vector<8x1xf32>
    %cst_44 = arith.constant 3.200000e+01 : f32
    %120 = vector.broadcast %cst_44 : f32 to vector<8x1xf32>
    %121 = arith.divf %119, %120 : vector<8x1xf32>
    %122 = vector.broadcast %114 : vector<8x1xf32> to vector<8x32xf32>
    %123 = arith.subf %110, %122 : vector<8x32xf32>
    %cst_45 = arith.constant 9.99999974E-6 : f32
    %124 = vector.broadcast %cst_45 : f32 to vector<8x1xf32>
    %125 = arith.addf %121, %124 : vector<8x1xf32>
    %126 = math.rsqrt %125 : vector<8x1xf32>
    %127 = vector.broadcast %126 : vector<8x1xf32> to vector<8x32xf32>
    %128 = arith.mulf %123, %127 : vector<8x32xf32>
    %c0_46 = arith.constant 0 : index
    %c0_47 = arith.constant 0 : index
    %129 = vector.load %arg8[%c0_46, %c0_47] : memref<1x32xf32, #tpu.memory_space<vmem>>, vector<1x32xf32>
    %130 = vector.broadcast %129 : vector<1x32xf32> to vector<8x32xf32>
    %131 = arith.mulf %128, %130 : vector<8x32xf32>
    %c0_48 = arith.constant 0 : index
    %c0_49 = arith.constant 0 : index
    %132 = vector.load %arg9[%c0_48, %c0_49] : memref<1x32xf32, #tpu.memory_space<vmem>>, vector<1x32xf32>
    %133 = vector.broadcast %132 : vector<1x32xf32> to vector<8x32xf32>
    %134 = arith.addf %131, %133 : vector<8x32xf32>
    %c0_50 = arith.constant 0 : index
    %c0_51 = arith.constant 0 : index
    %c0_52 = arith.constant 0 : index
    %135 = vector.load %arg10[%c0_50, %c0_51, %c0_52] : memref<1x8x32xf32, #tpu.memory_space<vmem>>, vector<1x8x32xf32>
    %136 = vector.shape_cast %135 : vector<1x8x32xf32> to vector<8x32xf32>
    %137 = vector.shape_cast %134 : vector<8x32xf32> to vector<1x8x32xf32>
    tpu.vector_store %arg10[%c0_50, %c0_51, %c0_52], %137 {strides = array<i32>} : memref<1x8x32xf32, #tpu.memory_space<vmem>>, vector<1x8x32xf32>,
    return
  }
  func.func @transform_0(%arg0: i32) -> (i32, i32, i32) {
    %c0_i32 = arith.constant 0 : i32
    %c0_i32_0 = arith.constant 0 : i32
    %c0_i32_1 = arith.constant 0 : i32
    return %arg0, %c0_i32, %c0_i32_0 : i32, i32, i32
  }
  func.func @transform_1(%arg0: i32) -> (i32, i32, i32) {
    %c0_i32 = arith.constant 0 : i32
    %c0_i32_0 = arith.constant 0 : i32
    %c0_i32_1 = arith.constant 0 : i32
    return %arg0, %c0_i32, %c0_i32_0 : i32, i32, i32
  }
  func.func @transform_2(%arg0: i32) -> (i32, i32, i32) {
    %c0_i32 = arith.constant 0 : i32
    %c0_i32_0 = arith.constant 0 : i32
    %c0_i32_1 = arith.constant 0 : i32
    return %arg0, %c0_i32, %c0_i32_0 : i32, i32, i32
  }
  func.func @transform_3(%arg0: i32) -> (i32, i32, i32) {
    %c0_i32 = arith.constant 0 : i32
    %c0_i32_0 = arith.constant 0 : i32
    %c0_i32_1 = arith.constant 0 : i32
    return %arg0, %c0_i32, %c0_i32_0 : i32, i32, i32
  }
  func.func @transform_4(%arg0: i32) -> (i32, i32, i32) {
    %c0_i32 = arith.constant 0 : i32
    %c0_i32_0 = arith.constant 0 : i32
    %c0_i32_1 = arith.constant 0 : i32
    return %arg0, %c0_i32, %c0_i32_0 : i32, i32, i32
  }
  func.func @transform_5(%arg0: i32) -> (i32, i32) {
    %c0_i32 = arith.constant 0 : i32
    %c0_i32_0 = arith.constant 0 : i32
    %c0_i32_1 = arith.constant 0 : i32
    return %c0_i32, %c0_i32_0 : i32, i32
  }
  func.func @transform_6(%arg0: i32) -> (i32, i32) {
    %c0_i32 = arith.constant 0 : i32
    %c0_i32_0 = arith.constant 0 : i32
    %c0_i32_1 = arith.constant 0 : i32
    return %c0_i32, %c0_i32_0 : i32, i32
  }
  func.func @transform_7(%arg0: i32) -> (i32, i32) {
    %c0_i32 = arith.constant 0 : i32
    %c0_i32_0 = arith.constant 0 : i32
    %c0_i32_1 = arith.constant 0 : i32
    return %c0_i32, %c0_i32_0 : i32, i32
  }
  func.func @transform_8(%arg0: i32) -> (i32, i32) {
    %c0_i32 = arith.constant 0 : i32
    %c0_i32_0 = arith.constant 0 : i32
    %c0_i32_1 = arith.constant 0 : i32
    return %c0_i32, %c0_i32_0 : i32, i32
  }
  func.func @transform_9(%arg0: i32) -> (i32, i32, i32) {
    %c0_i32 = arith.constant 0 : i32
    %c0_i32_0 = arith.constant 0 : i32
    %c0_i32_1 = arith.constant 0 : i32
    return %arg0, %c0_i32, %c0_i32_0 : i32, i32, i32
  }
}

module attributes {stable_mosaic.version = 11 : i64} {
  func.func @_linear_kernel(%arg0: i32, %arg1: memref<16x32xf32, #tpu.memory_space<vmem>>, %arg2: memref<32x64xbf16, #tpu.memory_space<vmem>>, %arg3: memref<1x64xf32, #tpu.memory_space<vmem>>, %arg4: memref<16x64xf32, #tpu.memory_space<vmem>>) attributes {dimension_semantics = [#tpu.dimension_semantics<parallel>], iteration_bounds = array<i64: 1>, scalar_prefetch = 0 : i64, scratch_operands = 0 : i64, tpu.core_type = #tpu.core_type<tc>, window_params = [{transform_indices = @transform_0, window_bounds = array<i64: 16, 32>}, {pipeline_mode = #tpu.pipeline_mode<synchronous>, transform_indices = @transform_1, window_bounds = array<i64: 32, 64>}, {pipeline_mode = #tpu.pipeline_mode<synchronous>, transform_indices = @transform_2, window_bounds = array<i64: 1, 64>}, {transform_indices = @transform_3, window_bounds = array<i64: 16, 64>}]} {
    %c0 = arith.constant 0 : index
    %c0_0 = arith.constant 0 : index
    %0 = vector.load %arg1[%c0, %c0_0] : memref<16x32xf32, #tpu.memory_space<vmem>>, vector<16x32xf32>
    %1 = arith.truncf %0 : vector<16x32xf32> to vector<16x32xbf16>
    %c0_1 = arith.constant 0 : index
    %c0_2 = arith.constant 0 : index
    %2 = vector.load %arg2[%c0_1, %c0_2] : memref<32x64xbf16, #tpu.memory_space<vmem>>, vector<32x64xbf16>
    %cst = arith.constant dense<0.000000e+00> : vector<16x64xf32>
    %3 = tpu.matmul %1, %2, %cst {dimension_numbers = #tpu.dot_dimension_numbers<[1], [0], [0], [1], [0, 0, 1, 1], [], []>} : vector<16x32xbf16>, vector<32x64xbf16>, vector<16x64xf32> -> vector<16x64xf32>
    %c0_3 = arith.constant 0 : index
    %c0_4 = arith.constant 0 : index
    %4 = vector.load %arg3[%c0_3, %c0_4] : memref<1x64xf32, #tpu.memory_space<vmem>>, vector<1x64xf32>
    %5 = vector.broadcast %4 : vector<1x64xf32> to vector<16x64xf32>
    %6 = arith.addf %3, %5 : vector<16x64xf32>
    %c0_5 = arith.constant 0 : index
    %c0_6 = arith.constant 0 : index
    %7 = vector.load %arg4[%c0_5, %c0_6] : memref<16x64xf32, #tpu.memory_space<vmem>>, vector<16x64xf32>
    tpu.vector_store %arg4[%c0_5, %c0_6], %6 {strides = array<i32>} : memref<16x64xf32, #tpu.memory_space<vmem>>, vector<16x64xf32>,
    return
  }
  func.func @transform_0(%arg0: i32) -> (i32, i32) {
    %c0_i32 = arith.constant 0 : i32
    %c0_i32_0 = arith.constant 0 : i32
    return %arg0, %c0_i32 : i32, i32
  }
  func.func @transform_1(%arg0: i32) -> (i32, i32) {
    %c0_i32 = arith.constant 0 : i32
    %c0_i32_0 = arith.constant 0 : i32
    %c0_i32_1 = arith.constant 0 : i32
    return %c0_i32, %c0_i32_0 : i32, i32
  }
  func.func @transform_2(%arg0: i32) -> (i32, i32) {
    %c0_i32 = arith.constant 0 : i32
    %c0_i32_0 = arith.constant 0 : i32
    %c0_i32_1 = arith.constant 0 : i32
    return %c0_i32, %c0_i32_0 : i32, i32
  }
  func.func @transform_3(%arg0: i32) -> (i32, i32) {
    %c0_i32 = arith.constant 0 : i32
    %c0_i32_0 = arith.constant 0 : i32
    return %arg0, %c0_i32 : i32, i32
  }
}

module attributes {stable_mosaic.version = 11 : i64} {
  func.func @_ffn_add_norm_kernel(%arg0: i32, %arg1: memref<16x32xf32, #tpu.memory_space<vmem>>, %arg2: memref<32x64xbf16, #tpu.memory_space<vmem>>, %arg3: memref<1x64xf32, #tpu.memory_space<vmem>>, %arg4: memref<64x32xbf16, #tpu.memory_space<vmem>>, %arg5: memref<1x32xf32, #tpu.memory_space<vmem>>, %arg6: memref<1x32xf32, #tpu.memory_space<vmem>>, %arg7: memref<1x32xf32, #tpu.memory_space<vmem>>, %arg8: memref<16x32xf32, #tpu.memory_space<vmem>>) attributes {dimension_semantics = [#tpu.dimension_semantics<parallel>], iteration_bounds = array<i64: 1>, scalar_prefetch = 0 : i64, scratch_operands = 0 : i64, tpu.core_type = #tpu.core_type<tc>, window_params = [{transform_indices = @transform_0, window_bounds = array<i64: 16, 32>}, {pipeline_mode = #tpu.pipeline_mode<synchronous>, transform_indices = @transform_1, window_bounds = array<i64: 32, 64>}, {pipeline_mode = #tpu.pipeline_mode<synchronous>, transform_indices = @transform_2, window_bounds = array<i64: 1, 64>}, {pipeline_mode = #tpu.pipeline_mode<synchronous>, transform_indices = @transform_3, window_bounds = array<i64: 64, 32>}, {pipeline_mode = #tpu.pipeline_mode<synchronous>, transform_indices = @transform_4, window_bounds = array<i64: 1, 32>}, {pipeline_mode = #tpu.pipeline_mode<synchronous>, transform_indices = @transform_5, window_bounds = array<i64: 1, 32>}, {pipeline_mode = #tpu.pipeline_mode<synchronous>, transform_indices = @transform_6, window_bounds = array<i64: 1, 32>}, {transform_indices = @transform_7, window_bounds = array<i64: 16, 32>}]} {
    %c0 = arith.constant 0 : index
    %c0_0 = arith.constant 0 : index
    %0 = vector.load %arg1[%c0, %c0_0] : memref<16x32xf32, #tpu.memory_space<vmem>>, vector<16x32xf32>
    %1 = arith.truncf %0 : vector<16x32xf32> to vector<16x32xbf16>
    %c0_1 = arith.constant 0 : index
    %c0_2 = arith.constant 0 : index
    %2 = vector.load %arg2[%c0_1, %c0_2] : memref<32x64xbf16, #tpu.memory_space<vmem>>, vector<32x64xbf16>
    %cst = arith.constant dense<0.000000e+00> : vector<16x64xf32>
    %3 = tpu.matmul %1, %2, %cst {dimension_numbers = #tpu.dot_dimension_numbers<[1], [0], [0], [1], [0, 0, 1, 1], [], []>} : vector<16x32xbf16>, vector<32x64xbf16>, vector<16x64xf32> -> vector<16x64xf32>
    %c0_3 = arith.constant 0 : index
    %c0_4 = arith.constant 0 : index
    %4 = vector.load %arg3[%c0_3, %c0_4] : memref<1x64xf32, #tpu.memory_space<vmem>>, vector<1x64xf32>
    %5 = vector.broadcast %4 : vector<1x64xf32> to vector<16x64xf32>
    %6 = arith.addf %3, %5 : vector<16x64xf32>
    %cst_5 = arith.constant 0.000000e+00 : f32
    %7 = vector.broadcast %cst_5 : f32 to vector<16x64xf32>
    %8 = arith.maximumf %6, %7 : vector<16x64xf32>
    %9 = arith.truncf %8 : vector<16x64xf32> to vector<16x64xbf16>
    %c0_6 = arith.constant 0 : index
    %c0_7 = arith.constant 0 : index
    %10 = vector.load %arg4[%c0_6, %c0_7] : memref<64x32xbf16, #tpu.memory_space<vmem>>, vector<64x32xbf16>
    %cst_8 = arith.constant dense<0.000000e+00> : vector<16x32xf32>
    %11 = tpu.matmul %9, %10, %cst_8 {dimension_numbers = #tpu.dot_dimension_numbers<[1], [0], [0], [1], [0, 0, 1, 1], [], []>} : vector<16x64xbf16>, vector<64x32xbf16>, vector<16x32xf32> -> vector<16x32xf32>
    %c0_9 = arith.constant 0 : index
    %c0_10 = arith.constant 0 : index
    %12 = vector.load %arg5[%c0_9, %c0_10] : memref<1x32xf32, #tpu.memory_space<vmem>>, vector<1x32xf32>
    %13 = vector.broadcast %12 : vector<1x32xf32> to vector<16x32xf32>
    %14 = arith.addf %11, %13 : vector<16x32xf32>
    %15 = arith.addf %0, %14 : vector<16x32xf32>
    %cst_11 = arith.constant dense<0.000000e+00> : vector<16xf32>
    %16 = vector.multi_reduction <add>, %15, %cst_11 [1] : vector<16x32xf32> to vector<16xf32>
    %17 = vector.shape_cast %16 : vector<16xf32> to vector<16x1xf32>
    %cst_12 = arith.constant 3.200000e+01 : f32
    %18 = vector.broadcast %cst_12 : f32 to vector<16x1xf32>
    %19 = arith.divf %17, %18 : vector<16x1xf32>
    %20 = vector.broadcast %19 : vector<16x1xf32> to vector<16x32xf32>
    %21 = arith.subf %15, %20 : vector<16x32xf32>
    %22 = arith.mulf %21, %21 : vector<16x32xf32>
    %cst_13 = arith.constant dense<0.000000e+00> : vector<16xf32>
    %23 = vector.multi_reduction <add>, %22, %cst_13 [1] : vector<16x32xf32> to vector<16xf32>
    %24 = vector.shape_cast %23 : vector<16xf32> to vector<16x1xf32>
    %cst_14 = arith.constant 3.200000e+01 : f32
    %25 = vector.broadcast %cst_14 : f32 to vector<16x1xf32>
    %26 = arith.divf %24, %25 : vector<16x1xf32>
    %27 = vector.broadcast %19 : vector<16x1xf32> to vector<16x32xf32>
    %28 = arith.subf %15, %27 : vector<16x32xf32>
    %cst_15 = arith.constant 9.99999974E-6 : f32
    %29 = vector.broadcast %cst_15 : f32 to vector<16x1xf32>
    %30 = arith.addf %26, %29 : vector<16x1xf32>
    %31 = math.rsqrt %30 : vector<16x1xf32>
    %32 = vector.broadcast %31 : vector<16x1xf32> to vector<16x32xf32>
    %33 = arith.mulf %28, %32 : vector<16x32xf32>
    %c0_16 = arith.constant 0 : index
    %c0_17 = arith.constant 0 : index
    %34 = vector.load %arg6[%c0_16, %c0_17] : memref<1x32xf32, #tpu.memory_space<vmem>>, vector<1x32xf32>
    %35 = vector.broadcast %34 : vector<1x32xf32> to vector<16x32xf32>
    %36 = arith.mulf %33, %35 : vector<16x32xf32>
    %c0_18 = arith.constant 0 : index
    %c0_19 = arith.constant 0 : index
    %37 = vector.load %arg7[%c0_18, %c0_19] : memref<1x32xf32, #tpu.memory_space<vmem>>, vector<1x32xf32>
    %38 = vector.broadcast %37 : vector<1x32xf32> to vector<16x32xf32>
    %39 = arith.addf %36, %38 : vector<16x32xf32>
    %c0_20 = arith.constant 0 : index
    %c0_21 = arith.constant 0 : index
    %40 = vector.load %arg8[%c0_20, %c0_21] : memref<16x32xf32, #tpu.memory_space<vmem>>, vector<16x32xf32>
    tpu.vector_store %arg8[%c0_20, %c0_21], %39 {strides = array<i32>} : memref<16x32xf32, #tpu.memory_space<vmem>>, vector<16x32xf32>,
    return
  }
  func.func @transform_0(%arg0: i32) -> (i32, i32) {
    %c0_i32 = arith.constant 0 : i32
    %c0_i32_0 = arith.constant 0 : i32
    return %arg0, %c0_i32 : i32, i32
  }
  func.func @transform_1(%arg0: i32) -> (i32, i32) {
    %c0_i32 = arith.constant 0 : i32
    %c0_i32_0 = arith.constant 0 : i32
    %c0_i32_1 = arith.constant 0 : i32
    return %c0_i32, %c0_i32_0 : i32, i32
  }
  func.func @transform_2(%arg0: i32) -> (i32, i32) {
    %c0_i32 = arith.constant 0 : i32
    %c0_i32_0 = arith.constant 0 : i32
    %c0_i32_1 = arith.constant 0 : i32
    return %c0_i32, %c0_i32_0 : i32, i32
  }
  func.func @transform_3(%arg0: i32) -> (i32, i32) {
    %c0_i32 = arith.constant 0 : i32
    %c0_i32_0 = arith.constant 0 : i32
    %c0_i32_1 = arith.constant 0 : i32
    return %c0_i32, %c0_i32_0 : i32, i32
  }
  func.func @transform_4(%arg0: i32) -> (i32, i32) {
    %c0_i32 = arith.constant 0 : i32
    %c0_i32_0 = arith.constant 0 : i32
    %c0_i32_1 = arith.constant 0 : i32
    return %c0_i32, %c0_i32_0 : i32, i32
  }
  func.func @transform_5(%arg0: i32) -> (i32, i32) {
    %c0_i32 = arith.constant 0 : i32
    %c0_i32_0 = arith.constant 0 : i32
    %c0_i32_1 = arith.constant 0 : i32
    return %c0_i32, %c0_i32_0 : i32, i32
  }
  func.func @transform_6(%arg0: i32) -> (i32, i32) {
    %c0_i32 = arith.constant 0 : i32
    %c0_i32_0 = arith.constant 0 : i32
    %c0_i32_1 = arith.constant 0 : i32
    return %c0_i32, %c0_i32_0 : i32, i32
  }
  func.func @transform_7(%arg0: i32) -> (i32, i32) {
    %c0_i32 = arith.constant 0 : i32
    %c0_i32_0 = arith.constant 0 : i32
    return %arg0, %c0_i32 : i32, i32
  }
}

</mosaic_0001>

<llo_original>
// kernel: transformer_forward.19
$region0: #{transformer_forward.19}
  #allocation0 [shape = 'u32[]', space=smem, size = 0x4, offset = 0x4, fixed_abs, tag = 'smem constant byte address 0x4 - core index']
  #allocation1 [shape = 'u32[144,128]{1,0:T(1,128)}', space=vmem, size = 0x12000, scoped, tag = 'internal scratch']
  %s0 = inlined_call_operand.vmem [shape: f32[24,32], index: 0, kind: input, shape index: {}]
  %s1 = inlined_call_operand.vmem [shape: bf16[32,96], index: 1, kind: input, shape index: {}]
  %s2 = inlined_call_operand.vmem [shape: f32[1,96], index: 2, kind: input, shape index: {}]
  %s3 = inlined_call_operand.vmem [shape: f32[24,96], index: 3, kind: output, shape index: {}]
  %s4 = sld [smem:[#allocation0]]
  $region45: #{transformer_forward.19} parent=0
    _
  %s6 = ssub.s32 1, %s4
  %s7 = scalar_select 0, %s6, %s4
  loop: start=0, step=1, limit=5
  $region2: #{transformer_forward.19} parent=0 // loop_pre_header
    _
  $region3: #{transformer_forward.19} parent=0 // loop_header
    %s9 = sphi 0, %s13
    %p10 = scmp.ge.s32.totalorder %s9, 5
    %s19 = sphi 0, %s21
    %s22 = sphi 0, %s19
    %s23 = sphi 0, %s22
    %s39 = sphi 0, %s23
    %s43 = sphi 0, %s43
    %s45 = sphi 0, %s43
    %s46 = sphi 0, %s45
    %s60 = sphi 0, %s46
    %s64 = sphi 0, %s64
    %s66 = sphi 0, %s64
    %s67 = sphi 0, %s66
    %s81 = sphi 0, %s67
    %s87 = sphi 0, %s89
    %s90 = sphi 0, %s87
    %s91 = sphi 0, %s90
    %s107 = sphi 0, %s91
  $region4: #{transformer_forward.19} parent=0 // loop_header_branch
    %12 = sbr.rel (%p10) target = $region8
  $region5: #{transformer_forward.19} parent=0 // loop_body
    %s14 = ssub.s32 %s9, 1
    %s15 = ssub.s32 %s9, 2
    %s16 = sadd.s32 %s9, 1
    %s17 = ssub.s32 %s9, %s16
    %p18 = scmp.eq.s32.totalorder %s17, 0
    %s20 = sadd.s32 %s19, 1
    %s21 = scalar_select %p18, %s19, %s20
    %p24 = pneg %p18
    %p25 = scmp.eq.s32.totalorder %s9, 2
    %p26 = por %p24, %p25
    %p27 = scmp.ne.s32.totalorder %s19, %s22
    %p28 = scmp.eq.s32.totalorder %s9, 0
    %p29 = por %p27, %p28
    %p30 = scmp.ne.s32.totalorder %s19, %s22
    %p31 = scmp.eq.s32.totalorder %s14, 2
    %p32 = por %p30, %p31
    %p33 = scmp.ne.s32.totalorder %s22, %s23
    %p34 = scmp.eq.s32.totalorder %s14, 0
    %p35 = por %p33, %p34
    %p36 = scmp.ne.s32.totalorder %s22, %s23
    %p37 = scmp.eq.s32.totalorder %s15, 2
    %p38 = por %p36, %p37
    %p40 = scmp.ne.s32.totalorder %s23, %s39
    %p41 = scmp.eq.s32.totalorder %s15, 0
    %p42 = por %p40, %p41
    %s44 = sadd.s32 %s43, 1
    %p47 = scmp.eq.s32.totalorder %s9, 2
    %p48 = scmp.ne.s32.totalorder %s43, %s45
    %p49 = scmp.eq.s32.totalorder %s9, 0
    %p50 = por %p48, %p49
    %p51 = scmp.ne.s32.totalorder %s43, %s45
    %p52 = scmp.eq.s32.totalorder %s14, 2
    %p53 = por %p51, %p52
    %p54 = scmp.ne.s32.totalorder %s45, %s46
    %p55 = scmp.eq.s32.totalorder %s14, 0
    %p56 = por %p54, %p55
    %p57 = scmp.ne.s32.totalorder %s45, %s46
    %p58 = scmp.eq.s32.totalorder %s15, 2
    %p59 = por %p57, %p58
    %p61 = scmp.ne.s32.totalorder %s46, %s60
    %p62 = scmp.eq.s32.totalorder %s15, 0
    %p63 = por %p61, %p62
    %s65 = sadd.s32 %s64, 1
    %p68 = scmp.eq.s32.totalorder %s9, 2
    %p69 = scmp.ne.s32.totalorder %s64, %s66
    %p70 = scmp.eq.s32.totalorder %s9, 0
    %p71 = por %p69, %p70
    %p72 = scmp.ne.s32.totalorder %s64, %s66
    %p73 = scmp.eq.s32.totalorder %s14, 2
    %p74 = por %p72, %p73
    %p75 = scmp.ne.s32.totalorder %s66, %s67
    %p76 = scmp.eq.s32.totalorder %s14, 0
    %p77 = por %p75, %p76
    %p78 = scmp.ne.s32.totalorder %s66, %s67
    %p79 = scmp.eq.s32.totalorder %s15, 2
    %p80 = por %p78, %p79
    %p82 = scmp.ne.s32.totalorder %s67, %s81
    %p83 = scmp.eq.s32.totalorder %s15, 0
    %p84 = por %p82, %p83
    %s85 = ssub.s32 %s9, %s16
    %p86 = scmp.eq.s32.totalorder %s85, 0
    %s88 = sadd.s32 %s87, 1
    %s89 = scalar_select %p86, %s87, %s88
    %p92 = pneg %p86
    %p93 = scmp.eq.s32.totalorder %s9, 2
    %p94 = por %p92, %p93
    %p95 = scmp.ne.s32.totalorder %s87, %s90
    %p96 = scmp.eq.s32.totalorder %s9, 0
    %p97 = por %p95, %p96
    %p98 = scmp.ne.s32.totalorder %s87, %s90
    %p99 = scmp.eq.s32.totalorder %s14, 2
    %p100 = por %p98, %p99
    %p101 = scmp.ne.s32.totalorder %s90, %s91
    %p102 = scmp.eq.s32.totalorder %s14, 0
    %p103 = por %p101, %p102
    %p104 = scmp.ne.s32.totalorder %s90, %s91
    %p105 = scmp.eq.s32.totalorder %s15, 2
    %p106 = por %p104, %p105
    %p108 = scmp.ne.s32.totalorder %s91, %s107
    %p109 = scmp.eq.s32.totalorder %s15, 0
    %p110 = por %p108, %p109
    %p111 = scmp.le.s32.totalorder 1, %s9
    %p112 = scmp.lt.s32.totalorder %s9, 4
    %p113 = pnand %p111, %p112
    %p114 = pneg %p113
    // Predicated region
    $region9: #{transformer_forward.19} parent=5 // pred_check
      _
    $region10: #{transformer_forward.19} parent=5 // pred_check_branch
      %116 = sbr.rel (%p113) target = $region12
    $region11: #{transformer_forward.19} parent=5 // pred_region
      %s117 = ssub.s32 %s9, 1
      // Predicated region
      $region13: #{transformer_forward.19} parent=11 // pred_check
        %p118 = pneg %p56
      $region14: #{transformer_forward.19} parent=11 // pred_check_branch
        %120 = sbr.rel (%p118) target = $region16
      $region15: #{transformer_forward.19} parent=11 // pred_region
        _
      $region16: #{transformer_forward.19} parent=11 // pred_fallthru
        _
      // Predicated region
      $region17: #{transformer_forward.19} parent=11 // pred_check
        %p121 = pneg %p77
      $region18: #{transformer_forward.19} parent=11 // pred_check_branch
        %123 = sbr.rel (%p121) target = $region20
      $region19: #{transformer_forward.19} parent=11 // pred_region
        _
      $region20: #{transformer_forward.19} parent=11 // pred_fallthru
        _
    $region12: #{transformer_forward.19} parent=5 // pred_fallthru
      _
    %p124 = scmp.lt.s32.totalorder %s9, 3
    // Predicated region
    $region21: #{transformer_forward.19} parent=5 // pred_check
      %p125 = pneg %p124
    $region22: #{transformer_forward.19} parent=5 // pred_check_branch
      %127 = sbr.rel (%p125) target = $region24
    $region23: #{transformer_forward.19} parent=5 // pred_region
      // Predicated region
      $region25: #{transformer_forward.19} parent=23 // pred_check
        %p128 = pneg %p29
      $region26: #{transformer_forward.19} parent=23 // pred_check_branch
        %130 = sbr.rel (%p128) target = $region28
      $region27: #{transformer_forward.19} parent=23 // pred_region
        %p131 = scmp.lt.s32.totalorder %s9, 2
        %s132 = scalar_select %p131, %s9, 2
        %s133 = smul.addr %s132, 8
        %s134 = scalar_lea.vmem %s0, %s133
      $region28: #{transformer_forward.19} parent=23 // pred_fallthru
        _
    $region24: #{transformer_forward.19} parent=5 // pred_fallthru
      _
    %p135 = scmp.le.s32.totalorder 1, %s9
    %p136 = scmp.lt.s32.totalorder %s9, 4
    %p137 = pnand %p135, %p136
    %p138 = pneg %p137
    // Predicated region
    $region29: #{transformer_forward.19} parent=5 // pred_check
      _
    $region30: #{transformer_forward.19} parent=5 // pred_check_branch
      %140 = sbr.rel (%p137) target = $region32
    $region31: #{transformer_forward.19} parent=5 // pred_region
      %s141 = ssub.s32 %s9, 1
      %p142 = scmp.lt.s32.totalorder %s14, 2
      %s143 = scalar_select %p142, %s14, 2
      %s144 = smul.addr %s143, 8
      %s145 = scalar_lea.vmem %s0, %s144
      %p146 = pneg %p35
      %p147 = pneg %p32
      %p148 = pneg %p56
      %p149 = pneg %p53
      %p150 = pneg %p77
      %p151 = pneg %p74
      %p152 = pneg %p103
      %p153 = pneg %p100
      %p154 = scmp.lt.s32.totalorder %s14, 2
      %s155 = scalar_select %p154, %s14, 2
      %s156 = smul.addr %s155, 8
      %s157 = scalar_lea.vmem %s3, %s156
      %p158 = scmp.lt.s32.totalorder %s14, 2
      %s159 = scalar_select %p158, %s14, 2
      %s160 = smul.addr %s159, 8
      %s161 = scalar_lea.vmem %s0, %s160
      %p162 = scmp.lt.s32.totalorder %s14, 2
      %s163 = scalar_select %p162, %s14, 2
      %s164 = smul.addr %s163, 8
      %s165 = scalar_lea.vmem %s3, %s164
      %v167 = vld [vmem:[%s161] sm:$0xff]
      %v168 = vpack.c.bf16 %v167, %v167
      %v169 = vld [vmem:[%s1] sm:$0xf]
      %v170 = vld [vmem:[%s1 + $0x4] sm:$0xf]
      %v171 = vld [vmem:[%s1 + $0x8] sm:$0xf]
      %v172 = vld [vmem:[%s1 + $0xc] sm:$0xf]
      %v173 = vld [vmem:[%s2] sm:$0x1]
      %v175 = vlaneseq
      %v176 = vshrl.u32 %v175, 7
      %v177 = vsub.s32 0, %v176
      %v178 = vrot.slane %v173, %v177
      %v184 = vunpack.c.l.b16 %v169
      %v185 = vunpack.c.l.b16 %v170
      %v186 = vunpack.c.l.b16 %v171
      %v187 = vunpack.c.l.b16 %v172
      %v188 = vpack.c.b16 %v185, %v184
      %v189 = vpack.c.b16 %v187, %v186
      %vm192 = vcmask 261120
      %v194 = vsel %vm192, %v168, 0
      %196 = vmatprep.subr.bf16.mxu0 0
      %197 = vmatpush1.bf16.msra.mxu0 %v188
      %198 = vmatprep.subr.bf16.mxu0 0
      %199 = vmatpush1.bf16.msra.mxu0 %v189
      %200 = vmatprep.subr.bf16.mxu0 0
      %201 = vmatpush1.bf16.msra.mxu0 0
      %202 = vmatprep.subr.bf16.mxu0 0
      %203 = vmatpush1.bf16.msra.mxu0 0
      %204 = vmatprep.subr.bf16.mxu0 0
      %205 = vmatpush1.bf16.msra.mxu0 0
      %206 = vmatprep.subr.bf16.mxu0 0
      %207 = vmatpush1.bf16.msra.mxu0 0
      %208 = vmatprep.subr.bf16.mxu0 0
      %209 = vmatpush1.bf16.msra.mxu0 0
      %210 = vmatprep.subr.bf16.mxu0 0
      %211 = vmatpush1.bf16.msra.mxu0 0
      %212 = vmatprep.subr.bf16.mxu0 0
      %213 = vmatpush1.bf16.msra.mxu0 0
      %214 = vmatprep.subr.bf16.mxu0 0
      %215 = vmatpush1.bf16.msra.mxu0 0
      %216 = vmatprep.subr.bf16.mxu0 0
      %217 = vmatpush1.bf16.msra.mxu0 0
      %218 = vmatprep.subr.bf16.mxu0 0
      %219 = vmatpush1.bf16.msra.mxu0 0
      %220 = vmatprep.subr.bf16.mxu0 0
      %221 = vmatpush1.bf16.msra.mxu0 0
      %222 = vmatprep.subr.bf16.mxu0 0
      %223 = vmatpush1.bf16.msra.mxu0 0
      %224 = vmatprep.subr.bf16.mxu0 0
      %225 = vmatpush1.bf16.msra.mxu0 0
      %226 = vmatprep.subr.bf16.mxu0 0
      %227 = vmatpush1.bf16.msra.mxu0 0
      %228 = vmatprep.mubr.bf16.mxu0 0
      %229 = vmatmul.mubr.bf16.gmra.mrb[0].mxu0 %v194
      %v230 = vpop.f32.mrb[0].mxu0
      %v231 = vadd.f32 %v178, %v230
      %v232 = vpop.f32.mrb[0].mxu0
      %v233 = vpop.f32.mrb[0].mxu0
      %v234 = vpop.f32.mrb[0].mxu0
      %235 = vdwg.mxu0
      %vm236 = vcmask 785408
      %237 = vst.msk [vmem:[%s165] sm:$0xff] %vm236, %v231
      %p238 = scmp.lt.s32.totalorder %s14, 2
      %s239 = scalar_select %p238, %s14, 2
      %s240 = smul.addr %s239, 8
      %s241 = scalar_lea.vmem %s3, %s240
      // Predicated region
      $region33: #{transformer_forward.19} parent=31 // pred_check
        %p242 = pneg %p100
      $region34: #{transformer_forward.19} parent=31 // pred_check_branch
        %244 = sbr.rel (%p242) target = $region36
      $region35: #{transformer_forward.19} parent=31 // pred_region
        _
      $region36: #{transformer_forward.19} parent=31 // pred_fallthru
        _
    $region32: #{transformer_forward.19} parent=5 // pred_fallthru
      _
    %p245 = scmp.le.s32.totalorder 2, %s9
    // Predicated region
    $region37: #{transformer_forward.19} parent=5 // pred_check
      %p246 = pneg %p245
    $region38: #{transformer_forward.19} parent=5 // pred_check_branch
      %248 = sbr.rel (%p246) target = $region40
    $region39: #{transformer_forward.19} parent=5 // pred_region
      %s249 = ssub.s32 %s9, 2
      // Predicated region
      $region41: #{transformer_forward.19} parent=39 // pred_check
        %p250 = pneg %p106
      $region42: #{transformer_forward.19} parent=39 // pred_check_branch
        %252 = sbr.rel (%p250) target = $region44
      $region43: #{transformer_forward.19} parent=39 // pred_region
        %p253 = scmp.lt.s32.totalorder %s15, 2
        %s254 = scalar_select %p253, %s15, 2
        %s255 = smul.addr %s254, 8
        %s256 = scalar_lea.vmem %s3, %s255
      $region44: #{transformer_forward.19} parent=39 // pred_fallthru
        _
    $region40: #{transformer_forward.19} parent=5 // pred_fallthru
      _
  $region6: #{transformer_forward.19} parent=0 // loop_footer
    %s13 = sadd.s32 1, %s9
  $region7: #{transformer_forward.19} parent=0 // loop_footer_branch
    %8 = sbr.rel target = $region3
  $region8: #{transformer_forward.19} parent=0 // loop_exit
    _

// kernel: transformer_forward.28
$region0: #{transformer_forward.28}
  #allocation0 [shape = 'u32[]', space=smem, size = 0x4, offset = 0x4, fixed_abs, tag = 'smem constant byte address 0x4 - core index']
  #allocation1 [shape = 'u32[144,128]{1,0:T(1,128)}', space=vmem, size = 0x12000, scoped, tag = 'internal scratch']
  %s0 = inlined_call_operand.vmem [shape: f32[24,32], index: 0, kind: input, shape index: {}]
  %s1 = inlined_call_operand.vmem [shape: bf16[32,64], index: 1, kind: input, shape index: {}]
  %s2 = inlined_call_operand.vmem [shape: f32[1,64], index: 2, kind: input, shape index: {}]
  %s3 = inlined_call_operand.vmem [shape: f32[24,64], index: 3, kind: output, shape index: {}]
  %s4 = sld [smem:[#allocation0]]
  $region45: #{transformer_forward.28} parent=0
    _
  %s6 = ssub.s32 1, %s4
  %s7 = scalar_select 0, %s6, %s4
  loop: start=0, step=1, limit=5
  $region2: #{transformer_forward.28} parent=0 // loop_pre_header
    _
  $region3: #{transformer_forward.28} parent=0 // loop_header
    %s9 = sphi 0, %s13
    %p10 = scmp.ge.s32.totalorder %s9, 5
    %s19 = sphi 0, %s21
    %s22 = sphi 0, %s19
    %s23 = sphi 0, %s22
    %s39 = sphi 0, %s23
    %s43 = sphi 0, %s43
    %s45 = sphi 0, %s43
    %s46 = sphi 0, %s45
    %s60 = sphi 0, %s46
    %s64 = sphi 0, %s64
    %s66 = sphi 0, %s64
    %s67 = sphi 0, %s66
    %s81 = sphi 0, %s67
    %s87 = sphi 0, %s89
    %s90 = sphi 0, %s87
    %s91 = sphi 0, %s90
    %s107 = sphi 0, %s91
  $region4: #{transformer_forward.28} parent=0 // loop_header_branch
    %12 = sbr.rel (%p10) target = $region8
  $region5: #{transformer_forward.28} parent=0 // loop_body
    %s14 = ssub.s32 %s9, 1
    %s15 = ssub.s32 %s9, 2
    %s16 = sadd.s32 %s9, 1
    %s17 = ssub.s32 %s9, %s16
    %p18 = scmp.eq.s32.totalorder %s17, 0
    %s20 = sadd.s32 %s19, 1
    %s21 = scalar_select %p18, %s19, %s20
    %p24 = pneg %p18
    %p25 = scmp.eq.s32.totalorder %s9, 2
    %p26 = por %p24, %p25
    %p27 = scmp.ne.s32.totalorder %s19, %s22
    %p28 = scmp.eq.s32.totalorder %s9, 0
    %p29 = por %p27, %p28
    %p30 = scmp.ne.s32.totalorder %s19, %s22
    %p31 = scmp.eq.s32.totalorder %s14, 2
    %p32 = por %p30, %p31
    %p33 = scmp.ne.s32.totalorder %s22, %s23
    %p34 = scmp.eq.s32.totalorder %s14, 0
    %p35 = por %p33, %p34
    %p36 = scmp.ne.s32.totalorder %s22, %s23
    %p37 = scmp.eq.s32.totalorder %s15, 2
    %p38 = por %p36, %p37
    %p40 = scmp.ne.s32.totalorder %s23, %s39
    %p41 = scmp.eq.s32.totalorder %s15, 0
    %p42 = por %p40, %p41
    %s44 = sadd.s32 %s43, 1
    %p47 = scmp.eq.s32.totalorder %s9, 2
    %p48 = scmp.ne.s32.totalorder %s43, %s45
    %p49 = scmp.eq.s32.totalorder %s9, 0
    %p50 = por %p48, %p49
    %p51 = scmp.ne.s32.totalorder %s43, %s45
    %p52 = scmp.eq.s32.totalorder %s14, 2
    %p53 = por %p51, %p52
    %p54 = scmp.ne.s32.totalorder %s45, %s46
    %p55 = scmp.eq.s32.totalorder %s14, 0
    %p56 = por %p54, %p55
    %p57 = scmp.ne.s32.totalorder %s45, %s46
    %p58 = scmp.eq.s32.totalorder %s15, 2
    %p59 = por %p57, %p58
    %p61 = scmp.ne.s32.totalorder %s46, %s60
    %p62 = scmp.eq.s32.totalorder %s15, 0
    %p63 = por %p61, %p62
    %s65 = sadd.s32 %s64, 1
    %p68 = scmp.eq.s32.totalorder %s9, 2
    %p69 = scmp.ne.s32.totalorder %s64, %s66
    %p70 = scmp.eq.s32.totalorder %s9, 0
    %p71 = por %p69, %p70
    %p72 = scmp.ne.s32.totalorder %s64, %s66
    %p73 = scmp.eq.s32.totalorder %s14, 2
    %p74 = por %p72, %p73
    %p75 = scmp.ne.s32.totalorder %s66, %s67
    %p76 = scmp.eq.s32.totalorder %s14, 0
    %p77 = por %p75, %p76
    %p78 = scmp.ne.s32.totalorder %s66, %s67
    %p79 = scmp.eq.s32.totalorder %s15, 2
    %p80 = por %p78, %p79
    %p82 = scmp.ne.s32.totalorder %s67, %s81
    %p83 = scmp.eq.s32.totalorder %s15, 0
    %p84 = por %p82, %p83
    %s85 = ssub.s32 %s9, %s16
    %p86 = scmp.eq.s32.totalorder %s85, 0
    %s88 = sadd.s32 %s87, 1
    %s89 = scalar_select %p86, %s87, %s88
    %p92 = pneg %p86
    %p93 = scmp.eq.s32.totalorder %s9, 2
    %p94 = por %p92, %p93
    %p95 = scmp.ne.s32.totalorder %s87, %s90
    %p96 = scmp.eq.s32.totalorder %s9, 0
    %p97 = por %p95, %p96
    %p98 = scmp.ne.s32.totalorder %s87, %s90
    %p99 = scmp.eq.s32.totalorder %s14, 2
    %p100 = por %p98, %p99
    %p101 = scmp.ne.s32.totalorder %s90, %s91
    %p102 = scmp.eq.s32.totalorder %s14, 0
    %p103 = por %p101, %p102
    %p104 = scmp.ne.s32.totalorder %s90, %s91
    %p105 = scmp.eq.s32.totalorder %s15, 2
    %p106 = por %p104, %p105
    %p108 = scmp.ne.s32.totalorder %s91, %s107
    %p109 = scmp.eq.s32.totalorder %s15, 0
    %p110 = por %p108, %p109
    %p111 = scmp.le.s32.totalorder 1, %s9
    %p112 = scmp.lt.s32.totalorder %s9, 4
    %p113 = pnand %p111, %p112
    %p114 = pneg %p113
    // Predicated region
    $region9: #{transformer_forward.28} parent=5 // pred_check
      _
    $region10: #{transformer_forward.28} parent=5 // pred_check_branch
      %116 = sbr.rel (%p113) target = $region12
    $region11: #{transformer_forward.28} parent=5 // pred_region
      %s117 = ssub.s32 %s9, 1
      // Predicated region
      $region13: #{transformer_forward.28} parent=11 // pred_check
        %p118 = pneg %p56
      $region14: #{transformer_forward.28} parent=11 // pred_check_branch
        %120 = sbr.rel (%p118) target = $region16
      $region15: #{transformer_forward.28} parent=11 // pred_region
        _
      $region16: #{transformer_forward.28} parent=11 // pred_fallthru
        _
      // Predicated region
      $region17: #{transformer_forward.28} parent=11 // pred_check
        %p121 = pneg %p77
      $region18: #{transformer_forward.28} parent=11 // pred_check_branch
        %123 = sbr.rel (%p121) target = $region20
      $region19: #{transformer_forward.28} parent=11 // pred_region
        _
      $region20: #{transformer_forward.28} parent=11 // pred_fallthru
        _
    $region12: #{transformer_forward.28} parent=5 // pred_fallthru
      _
    %p124 = scmp.lt.s32.totalorder %s9, 3
    // Predicated region
    $region21: #{transformer_forward.28} parent=5 // pred_check
      %p125 = pneg %p124
    $region22: #{transformer_forward.28} parent=5 // pred_check_branch
      %127 = sbr.rel (%p125) target = $region24
    $region23: #{transformer_forward.28} parent=5 // pred_region
      // Predicated region
      $region25: #{transformer_forward.28} parent=23 // pred_check
        %p128 = pneg %p29
      $region26: #{transformer_forward.28} parent=23 // pred_check_branch
        %130 = sbr.rel (%p128) target = $region28
      $region27: #{transformer_forward.28} parent=23 // pred_region
        %p131 = scmp.lt.s32.totalorder %s9, 2
        %s132 = scalar_select %p131, %s9, 2
        %s133 = smul.addr %s132, 8
        %s134 = scalar_lea.vmem %s0, %s133
      $region28: #{transformer_forward.28} parent=23 // pred_fallthru
        _
    $region24: #{transformer_forward.28} parent=5 // pred_fallthru
      _
    %p135 = scmp.le.s32.totalorder 1, %s9
    %p136 = scmp.lt.s32.totalorder %s9, 4
    %p137 = pnand %p135, %p136
    %p138 = pneg %p137
    // Predicated region
    $region29: #{transformer_forward.28} parent=5 // pred_check
      _
    $region30: #{transformer_forward.28} parent=5 // pred_check_branch
      %140 = sbr.rel (%p137) target = $region32
    $region31: #{transformer_forward.28} parent=5 // pred_region
      %s141 = ssub.s32 %s9, 1
      %p142 = scmp.lt.s32.totalorder %s14, 2
      %s143 = scalar_select %p142, %s14, 2
      %s144 = smul.addr %s143, 8
      %s145 = scalar_lea.vmem %s0, %s144
      %p146 = pneg %p35
      %p147 = pneg %p32
      %p148 = pneg %p56
      %p149 = pneg %p53
      %p150 = pneg %p77
      %p151 = pneg %p74
      %p152 = pneg %p103
      %p153 = pneg %p100
      %p154 = scmp.lt.s32.totalorder %s14, 2
      %s155 = scalar_select %p154, %s14, 2
      %s156 = smul.addr %s155, 8
      %s157 = scalar_lea.vmem %s3, %s156
      %p158 = scmp.lt.s32.totalorder %s14, 2
      %s159 = scalar_select %p158, %s14, 2
      %s160 = smul.addr %s159, 8
      %s161 = scalar_lea.vmem %s0, %s160
      %p162 = scmp.lt.s32.totalorder %s14, 2
      %s163 = scalar_select %p162, %s14, 2
      %s164 = smul.addr %s163, 8
      %s165 = scalar_lea.vmem %s3, %s164
      %v167 = vld [vmem:[%s161] sm:$0xff]
      %v168 = vpack.c.bf16 %v167, %v167
      %v169 = vld [vmem:[%s1] sm:$0xf]
      %v170 = vld [vmem:[%s1 + $0x4] sm:$0xf]
      %v171 = vld [vmem:[%s1 + $0x8] sm:$0xf]
      %v172 = vld [vmem:[%s1 + $0xc] sm:$0xf]
      %v173 = vld [vmem:[%s2] sm:$0x1]
      %v175 = vlaneseq
      %v176 = vshrl.u32 %v175, 7
      %v177 = vsub.s32 0, %v176
      %v178 = vrot.slane %v173, %v177
      %v184 = vunpack.c.l.b16 %v169
      %v185 = vunpack.c.l.b16 %v170
      %v186 = vunpack.c.l.b16 %v171
      %v187 = vunpack.c.l.b16 %v172
      %v188 = vpack.c.b16 %v185, %v184
      %v189 = vpack.c.b16 %v187, %v186
      %vm192 = vcmask 261120
      %v194 = vsel %vm192, %v168, 0
      %196 = vmatprep.subr.bf16.mxu0 0
      %197 = vmatpush1.bf16.msra.mxu0 %v188
      %198 = vmatprep.subr.bf16.mxu0 0
      %199 = vmatpush1.bf16.msra.mxu0 %v189
      %200 = vmatprep.subr.bf16.mxu0 0
      %201 = vmatpush1.bf16.msra.mxu0 0
      %202 = vmatprep.subr.bf16.mxu0 0
      %203 = vmatpush1.bf16.msra.mxu0 0
      %204 = vmatprep.subr.bf16.mxu0 0
      %205 = vmatpush1.bf16.msra.mxu0 0
      %206 = vmatprep.subr.bf16.mxu0 0
      %207 = vmatpush1.bf16.msra.mxu0 0
      %208 = vmatprep.subr.bf16.mxu0 0
      %209 = vmatpush1.bf16.msra.mxu0 0
      %210 = vmatprep.subr.bf16.mxu0 0
      %211 = vmatpush1.bf16.msra.mxu0 0
      %212 = vmatprep.subr.bf16.mxu0 0
      %213 = vmatpush1.bf16.msra.mxu0 0
      %214 = vmatprep.subr.bf16.mxu0 0
      %215 = vmatpush1.bf16.msra.mxu0 0
      %216 = vmatprep.subr.bf16.mxu0 0
      %217 = vmatpush1.bf16.msra.mxu0 0
      %218 = vmatprep.subr.bf16.mxu0 0
      %219 = vmatpush1.bf16.msra.mxu0 0
      %220 = vmatprep.subr.bf16.mxu0 0
      %221 = vmatpush1.bf16.msra.mxu0 0
      %222 = vmatprep.subr.bf16.mxu0 0
      %223 = vmatpush1.bf16.msra.mxu0 0
      %224 = vmatprep.subr.bf16.mxu0 0
      %225 = vmatpush1.bf16.msra.mxu0 0
      %226 = vmatprep.subr.bf16.mxu0 0
      %227 = vmatpush1.bf16.msra.mxu0 0
      %228 = vmatprep.mubr.bf16.mxu0 0
      %229 = vmatmul.mubr.bf16.gmra.mrb[0].mxu0 %v194
      %v230 = vpop.f32.mrb[0].mxu0
      %v231 = vadd.f32 %v178, %v230
      %v232 = vpop.f32.mrb[0].mxu0
      %v233 = vpop.f32.mrb[0].mxu0
      %v234 = vpop.f32.mrb[0].mxu0
      %235 = vdwg.mxu0
      %vm236 = vcmask 523264
      %237 = vst.msk [vmem:[%s165] sm:$0xff] %vm236, %v231
      %p238 = scmp.lt.s32.totalorder %s14, 2
      %s239 = scalar_select %p238, %s14, 2
      %s240 = smul.addr %s239, 8
      %s241 = scalar_lea.vmem %s3, %s240
      // Predicated region
      $region33: #{transformer_forward.28} parent=31 // pred_check
        %p242 = pneg %p100
      $region34: #{transformer_forward.28} parent=31 // pred_check_branch
        %244 = sbr.rel (%p242) target = $region36
      $region35: #{transformer_forward.28} parent=31 // pred_region
        _
      $region36: #{transformer_forward.28} parent=31 // pred_fallthru
        _
    $region32: #{transformer_forward.28} parent=5 // pred_fallthru
      _
    %p245 = scmp.le.s32.totalorder 2, %s9
    // Predicated region
    $region37: #{transformer_forward.28} parent=5 // pred_check
      %p246 = pneg %p245
    $region38: #{transformer_forward.28} parent=5 // pred_check_branch
      %248 = sbr.rel (%p246) target = $region40
    $region39: #{transformer_forward.28} parent=5 // pred_region
      %s249 = ssub.s32 %s9, 2
      // Predicated region
      $region41: #{transformer_forward.28} parent=39 // pred_check
        %p250 = pneg %p106
      $region42: #{transformer_forward.28} parent=39 // pred_check_branch
        %252 = sbr.rel (%p250) target = $region44
      $region43: #{transformer_forward.28} parent=39 // pred_region
        %p253 = scmp.lt.s32.totalorder %s15, 2
        %s254 = scalar_select %p253, %s15, 2
        %s255 = smul.addr %s254, 8
        %s256 = scalar_lea.vmem %s3, %s255
      $region44: #{transformer_forward.28} parent=39 // pred_fallthru
        _
    $region40: #{transformer_forward.28} parent=5 // pred_fallthru
      _
  $region6: #{transformer_forward.28} parent=0 // loop_footer
    %s13 = sadd.s32 1, %s9
  $region7: #{transformer_forward.28} parent=0 // loop_footer_branch
    %8 = sbr.rel target = $region3
  $region8: #{transformer_forward.28} parent=0 // loop_exit
    _

// kernel: transformer_forward.21
$region0: #{transformer_forward.21}
  #allocation0 [shape = 'u32[]', space=smem, size = 0x4, offset = 0x4, fixed_abs, tag = 'smem constant byte address 0x4 - core index']
  #allocation1 [shape = 'u32[144,128]{1,0:T(1,128)}', space=vmem, size = 0x12000, scoped, tag = 'internal scratch']
  %s0 = inlined_call_operand.vmem [shape: f32[24,32], index: 0, kind: input, shape index: {}]
  %s1 = inlined_call_operand.vmem [shape: bf16[32,64], index: 1, kind: input, shape index: {}]
  %s2 = inlined_call_operand.vmem [shape: f32[1,64], index: 2, kind: input, shape index: {}]
  %s3 = inlined_call_operand.vmem [shape: bf16[64,32], index: 3, kind: input, shape index: {}]
  %s4 = inlined_call_operand.vmem [shape: f32[1,32], index: 4, kind: input, shape index: {}]
  %s5 = inlined_call_operand.vmem [shape: f32[1,32], index: 5, kind: input, shape index: {}]
  %s6 = inlined_call_operand.vmem [shape: f32[1,32], index: 6, kind: input, shape index: {}]
  %s7 = inlined_call_operand.vmem [shape: f32[24,32], index: 7, kind: output, shape index: {}]
  %s8 = sld [smem:[#allocation0]]
  $region61: #{transformer_forward.21} parent=0
    _
  %s10 = ssub.s32 1, %s8
  %s11 = scalar_select 0, %s10, %s8
  loop: start=0, step=1, limit=5
  $region2: #{transformer_forward.21} parent=0 // loop_pre_header
    _
  $region3: #{transformer_forward.21} parent=0 // loop_header
    %s13 = sphi 0, %s17
    %p14 = scmp.ge.s32.totalorder %s13, 5
    %s23 = sphi 0, %s25
    %s26 = sphi 0, %s23
    %s27 = sphi 0, %s26
    %s43 = sphi 0, %s27
    %s47 = sphi 0, %s47
    %s49 = sphi 0, %s47
    %s50 = sphi 0, %s49
    %s64 = sphi 0, %s50
    %s68 = sphi 0, %s68
    %s70 = sphi 0, %s68
    %s71 = sphi 0, %s70
    %s85 = sphi 0, %s71
    %s89 = sphi 0, %s89
    %s91 = sphi 0, %s89
    %s92 = sphi 0, %s91
    %s106 = sphi 0, %s92
    %s110 = sphi 0, %s110
    %s112 = sphi 0, %s110
    %s113 = sphi 0, %s112
    %s127 = sphi 0, %s113
    %s131 = sphi 0, %s131
    %s133 = sphi 0, %s131
    %s134 = sphi 0, %s133
    %s148 = sphi 0, %s134
    %s152 = sphi 0, %s152
    %s154 = sphi 0, %s152
    %s155 = sphi 0, %s154
    %s169 = sphi 0, %s155
    %s175 = sphi 0, %s177
    %s178 = sphi 0, %s175
    %s179 = sphi 0, %s178
    %s195 = sphi 0, %s179
  $region4: #{transformer_forward.21} parent=0 // loop_header_branch
    %16 = sbr.rel (%p14) target = $region8
  $region5: #{transformer_forward.21} parent=0 // loop_body
    %s18 = ssub.s32 %s13, 1
    %s19 = ssub.s32 %s13, 2
    %s20 = sadd.s32 %s13, 1
    %s21 = ssub.s32 %s13, %s20
    %p22 = scmp.eq.s32.totalorder %s21, 0
    %s24 = sadd.s32 %s23, 1
    %s25 = scalar_select %p22, %s23, %s24
    %p28 = pneg %p22
    %p29 = scmp.eq.s32.totalorder %s13, 2
    %p30 = por %p28, %p29
    %p31 = scmp.ne.s32.totalorder %s23, %s26
    %p32 = scmp.eq.s32.totalorder %s13, 0
    %p33 = por %p31, %p32
    %p34 = scmp.ne.s32.totalorder %s23, %s26
    %p35 = scmp.eq.s32.totalorder %s18, 2
    %p36 = por %p34, %p35
    %p37 = scmp.ne.s32.totalorder %s26, %s27
    %p38 = scmp.eq.s32.totalorder %s18, 0
    %p39 = por %p37, %p38
    %p40 = scmp.ne.s32.totalorder %s26, %s27
    %p41 = scmp.eq.s32.totalorder %s19, 2
    %p42 = por %p40, %p41
    %p44 = scmp.ne.s32.totalorder %s27, %s43
    %p45 = scmp.eq.s32.totalorder %s19, 0
    %p46 = por %p44, %p45
    %s48 = sadd.s32 %s47, 1
    %p51 = scmp.eq.s32.totalorder %s13, 2
    %p52 = scmp.ne.s32.totalorder %s47, %s49
    %p53 = scmp.eq.s32.totalorder %s13, 0
    %p54 = por %p52, %p53
    %p55 = scmp.ne.s32.totalorder %s47, %s49
    %p56 = scmp.eq.s32.totalorder %s18, 2
    %p57 = por %p55, %p56
    %p58 = scmp.ne.s32.totalorder %s49, %s50
    %p59 = scmp.eq.s32.totalorder %s18, 0
    %p60 = por %p58, %p59
    %p61 = scmp.ne.s32.totalorder %s49, %s50
    %p62 = scmp.eq.s32.totalorder %s19, 2
    %p63 = por %p61, %p62
    %p65 = scmp.ne.s32.totalorder %s50, %s64
    %p66 = scmp.eq.s32.totalorder %s19, 0
    %p67 = por %p65, %p66
    %s69 = sadd.s32 %s68, 1
    %p72 = scmp.eq.s32.totalorder %s13, 2
    %p73 = scmp.ne.s32.totalorder %s68, %s70
    %p74 = scmp.eq.s32.totalorder %s13, 0
    %p75 = por %p73, %p74
    %p76 = scmp.ne.s32.totalorder %s68, %s70
    %p77 = scmp.eq.s32.totalorder %s18, 2
    %p78 = por %p76, %p77
    %p79 = scmp.ne.s32.totalorder %s70, %s71
    %p80 = scmp.eq.s32.totalorder %s18, 0
    %p81 = por %p79, %p80
    %p82 = scmp.ne.s32.totalorder %s70, %s71
    %p83 = scmp.eq.s32.totalorder %s19, 2
    %p84 = por %p82, %p83
    %p86 = scmp.ne.s32.totalorder %s71, %s85
    %p87 = scmp.eq.s32.totalorder %s19, 0
    %p88 = por %p86, %p87
    %s90 = sadd.s32 %s89, 1
    %p93 = scmp.eq.s32.totalorder %s13, 2
    %p94 = scmp.ne.s32.totalorder %s89, %s91
    %p95 = scmp.eq.s32.totalorder %s13, 0
    %p96 = por %p94, %p95
    %p97 = scmp.ne.s32.totalorder %s89, %s91
    %p98 = scmp.eq.s32.totalorder %s18, 2
    %p99 = por %p97, %p98
    %p100 = scmp.ne.s32.totalorder %s91, %s92
    %p101 = scmp.eq.s32.totalorder %s18, 0
    %p102 = por %p100, %p101
    %p103 = scmp.ne.s32.totalorder %s91, %s92
    %p104 = scmp.eq.s32.totalorder %s19, 2
    %p105 = por %p103, %p104
    %p107 = scmp.ne.s32.totalorder %s92, %s106
    %p108 = scmp.eq.s32.totalorder %s19, 0
    %p109 = por %p107, %p108
    %s111 = sadd.s32 %s110, 1
    %p114 = scmp.eq.s32.totalorder %s13, 2
    %p115 = scmp.ne.s32.totalorder %s110, %s112
    %p116 = scmp.eq.s32.totalorder %s13, 0
    %p117 = por %p115, %p116
    %p118 = scmp.ne.s32.totalorder %s110, %s112
    %p119 = scmp.eq.s32.totalorder %s18, 2
    %p120 = por %p118, %p119
    %p121 = scmp.ne.s32.totalorder %s112, %s113
    %p122 = scmp.eq.s32.totalorder %s18, 0
    %p123 = por %p121, %p122
    %p124 = scmp.ne.s32.totalorder %s112, %s113
    %p125 = scmp.eq.s32.totalorder %s19, 2
    %p126 = por %p124, %p125
    %p128 = scmp.ne.s32.totalorder %s113, %s127
    %p129 = scmp.eq.s32.totalorder %s19, 0
    %p130 = por %p128, %p129
    %s132 = sadd.s32 %s131, 1
    %p135 = scmp.eq.s32.totalorder %s13, 2
    %p136 = scmp.ne.s32.totalorder %s131, %s133
    %p137 = scmp.eq.s32.totalorder %s13, 0
    %p138 = por %p136, %p137
    %p139 = scmp.ne.s32.totalorder %s131, %s133
    %p140 = scmp.eq.s32.totalorder %s18, 2
    %p141 = por %p139, %p140
    %p142 = scmp.ne.s32.totalorder %s133, %s134
    %p143 = scmp.eq.s32.totalorder %s18, 0
    %p144 = por %p142, %p143
    %p145 = scmp.ne.s32.totalorder %s133, %s134
    %p146 = scmp.eq.s32.totalorder %s19, 2
    %p147 = por %p145, %p146
    %p149 = scmp.ne.s32.totalorder %s134, %s148
    %p150 = scmp.eq.s32.totalorder %s19, 0
    %p151 = por %p149, %p150
    %s153 = sadd.s32 %s152, 1
    %p156 = scmp.eq.s32.totalorder %s13, 2
    %p157 = scmp.ne.s32.totalorder %s152, %s154
    %p158 = scmp.eq.s32.totalorder %s13, 0
    %p159 = por %p157, %p158
    %p160 = scmp.ne.s32.totalorder %s152, %s154
    %p161 = scmp.eq.s32.totalorder %s18, 2
    %p162 = por %p160, %p161
    %p163 = scmp.ne.s32.totalorder %s154, %s155
    %p164 = scmp.eq.s32.totalorder %s18, 0
    %p165 = por %p163, %p164
    %p166 = scmp.ne.s32.totalorder %s154, %s155
    %p167 = scmp.eq.s32.totalorder %s19, 2
    %p168 = por %p166, %p167
    %p170 = scmp.ne.s32.totalorder %s155, %s169
    %p171 = scmp.eq.s32.totalorder %s19, 0
    %p172 = por %p170, %p171
    %s173 = ssub.s32 %s13, %s20
    %p174 = scmp.eq.s32.totalorder %s173, 0
    %s176 = sadd.s32 %s175, 1
    %s177 = scalar_select %p174, %s175, %s176
    %p180 = pneg %p174
    %p181 = scmp.eq.s32.totalorder %s13, 2
    %p182 = por %p180, %p181
    %p183 = scmp.ne.s32.totalorder %s175, %s178
    %p184 = scmp.eq.s32.totalorder %s13, 0
    %p185 = por %p183, %p184
    %p186 = scmp.ne.s32.totalorder %s175, %s178
    %p187 = scmp.eq.s32.totalorder %s18, 2
    %p188 = por %p186, %p187
    %p189 = scmp.ne.s32.totalorder %s178, %s179
    %p190 = scmp.eq.s32.totalorder %s18, 0
    %p191 = por %p189, %p190
    %p192 = scmp.ne.s32.totalorder %s178, %s179
    %p193 = scmp.eq.s32.totalorder %s19, 2
    %p194 = por %p192, %p193
    %p196 = scmp.ne.s32.totalorder %s179, %s195
    %p197 = scmp.eq.s32.totalorder %s19, 0
    %p198 = por %p196, %p197
    %p199 = scmp.le.s32.totalorder 1, %s13
    %p200 = scmp.lt.s32.totalorder %s13, 4
    %p201 = pnand %p199, %p200
    %p202 = pneg %p201
    // Predicated region
    $region9: #{transformer_forward.21} parent=5 // pred_check
      _
    $region10: #{transformer_forward.21} parent=5 // pred_check_branch
      %204 = sbr.rel (%p201) target = $region12
    $region11: #{transformer_forward.21} parent=5 // pred_region
      %s205 = ssub.s32 %s13, 1
      // Predicated region
      $region13: #{transformer_forward.21} parent=11 // pred_check
        %p206 = pneg %p60
      $region14: #{transformer_forward.21} parent=11 // pred_check_branch
        %208 = sbr.rel (%p206) target = $region16
      $region15: #{transformer_forward.21} parent=11 // pred_region
        _
      $region16: #{transformer_forward.21} parent=11 // pred_fallthru
        _
      // Predicated region
      $region17: #{transformer_forward.21} parent=11 // pred_check
        %p209 = pneg %p81
      $region18: #{transformer_forward.21} parent=11 // pred_check_branch
        %211 = sbr.rel (%p209) target = $region20
      $region19: #{transformer_forward.21} parent=11 // pred_region
        _
      $region20: #{transformer_forward.21} parent=11 // pred_fallthru
        _
      // Predicated region
      $region21: #{transformer_forward.21} parent=11 // pred_check
        %p212 = pneg %p102
      $region22: #{transformer_forward.21} parent=11 // pred_check_branch
        %214 = sbr.rel (%p212) target = $region24
      $region23: #{transformer_forward.21} parent=11 // pred_region
        _
      $region24: #{transformer_forward.21} parent=11 // pred_fallthru
        _
      // Predicated region
      $region25: #{transformer_forward.21} parent=11 // pred_check
        %p215 = pneg %p123
      $region26: #{transformer_forward.21} parent=11 // pred_check_branch
        %217 = sbr.rel (%p215) target = $region28
      $region27: #{transformer_forward.21} parent=11 // pred_region
        _
      $region28: #{transformer_forward.21} parent=11 // pred_fallthru
        _
      // Predicated region
      $region29: #{transformer_forward.21} parent=11 // pred_check
        %p218 = pneg %p144
      $region30: #{transformer_forward.21} parent=11 // pred_check_branch
        %220 = sbr.rel (%p218) target = $region32
      $region31: #{transformer_forward.21} parent=11 // pred_region
        _
      $region32: #{transformer_forward.21} parent=11 // pred_fallthru
        _
      // Predicated region
      $region33: #{transformer_forward.21} parent=11 // pred_check
        %p221 = pneg %p165
      $region34: #{transformer_forward.21} parent=11 // pred_check_branch
        %223 = sbr.rel (%p221) target = $region36
      $region35: #{transformer_forward.21} parent=11 // pred_region
        _
      $region36: #{transformer_forward.21} parent=11 // pred_fallthru
        _
    $region12: #{transformer_forward.21} parent=5 // pred_fallthru
      _
    %p224 = scmp.lt.s32.totalorder %s13, 3
    // Predicated region
    $region37: #{transformer_forward.21} parent=5 // pred_check
      %p225 = pneg %p224
    $region38: #{transformer_forward.21} parent=5 // pred_check_branch
      %227 = sbr.rel (%p225) target = $region40
    $region39: #{transformer_forward.21} parent=5 // pred_region
      // Predicated region
      $region41: #{transformer_forward.21} parent=39 // pred_check
        %p228 = pneg %p33
      $region42: #{transformer_forward.21} parent=39 // pred_check_branch
        %230 = sbr.rel (%p228) target = $region44
      $region43: #{transformer_forward.21} parent=39 // pred_region
        %p231 = scmp.lt.s32.totalorder %s13, 2
        %s232 = scalar_select %p231, %s13, 2
        %s233 = smul.addr %s232, 8
        %s234 = scalar_lea.vmem %s0, %s233
      $region44: #{transformer_forward.21} parent=39 // pred_fallthru
        _
    $region40: #{transformer_forward.21} parent=5 // pred_fallthru
      _
    %p235 = scmp.le.s32.totalorder 1, %s13
    %p236 = scmp.lt.s32.totalorder %s13, 4
    %p237 = pnand %p235, %p236
    %p238 = pneg %p237
    // Predicated region
    $region45: #{transformer_forward.21} parent=5 // pred_check
      _
    $region46: #{transformer_forward.21} parent=5 // pred_check_branch
      %240 = sbr.rel (%p237) target = $region48
    $region47: #{transformer_forward.21} parent=5 // pred_region
      %s241 = ssub.s32 %s13, 1
      %p242 = scmp.lt.s32.totalorder %s18, 2
      %s243 = scalar_select %p242, %s18, 2
      %s244 = smul.addr %s243, 8
      %s245 = scalar_lea.vmem %s0, %s244
      %p246 = pneg %p39
      %p247 = pneg %p36
      %p248 = pneg %p60
      %p249 = pneg %p57
      %p250 = pneg %p81
      %p251 = pneg %p78
      %p252 = pneg %p102
      %p253 = pneg %p99
      %p254 = pneg %p123
      %p255 = pneg %p120
      %p256 = pneg %p144
      %p257 = pneg %p141
      %p258 = pneg %p165
      %p259 = pneg %p162
      %p260 = pneg %p191
      %p261 = pneg %p188
      %p262 = scmp.lt.s32.totalorder %s18, 2
      %s263 = scalar_select %p262, %s18, 2
      %s264 = smul.addr %s263, 8
      %s265 = scalar_lea.vmem %s7, %s264
      %p266 = scmp.lt.s32.totalorder %s18, 2
      %s267 = scalar_select %p266, %s18, 2
      %s268 = smul.addr %s267, 8
      %s269 = scalar_lea.vmem %s0, %s268
      %p270 = scmp.lt.s32.totalorder %s18, 2
      %s271 = scalar_select %p270, %s18, 2
      %s272 = smul.addr %s271, 8
      %s273 = scalar_lea.vmem %s7, %s272
      %v275 = vld [vmem:[%s269] sm:$0xff]
      %v276 = vpack.c.bf16 %v275, %v275
      %v277 = vld [vmem:[%s1] sm:$0xf]
      %v278 = vld [vmem:[%s1 + $0x4] sm:$0xf]
      %v279 = vld [vmem:[%s1 + $0x8] sm:$0xf]
      %v280 = vld [vmem:[%s1 + $0xc] sm:$0xf]
      %v281 = vld [vmem:[%s2] sm:$0x1]
      %v283 = vlaneseq
      %v284 = vshrl.u32 %v283, 7
      %v285 = vsub.s32 0, %v284
      %v286 = vrot.slane %v281, %v285
      %v292 = vunpack.c.l.b16 %v277
      %v293 = vunpack.c.l.b16 %v278
      %v294 = vunpack.c.l.b16 %v279
      %v295 = vunpack.c.l.b16 %v280
      %v296 = vpack.c.b16 %v293, %v292
      %v297 = vpack.c.b16 %v295, %v294
      %vm300 = vcmask 261120
      %v302 = vsel %vm300, %v276, 0
      %304 = vmatprep.subr.bf16.mxu0 0
      %305 = vmatpush1.bf16.msra.mxu0 %v296
      %306 = vmatprep.subr.bf16.mxu0 0
      %307 = vmatpush1.bf16.msra.mxu0 %v297
      %308 = vmatprep.subr.bf16.mxu0 0
      %309 = vmatpush1.bf16.msra.mxu0 0
      %310 = vmatprep.subr.bf16.mxu0 0
      %311 = vmatpush1.bf16.msra.mxu0 0
      %312 = vmatprep.subr.bf16.mxu0 0
      %313 = vmatpush1.bf16.msra.mxu0 0
      %314 = vmatprep.subr.bf16.mxu0 0
      %315 = vmatpush1.bf16.msra.mxu0 0
      %316 = vmatprep.subr.bf16.mxu0 0
      %317 = vmatpush1.bf16.msra.mxu0 0
      %318 = vmatprep.subr.bf16.mxu0 0
      %319 = vmatpush1.bf16.msra.mxu0 0
      %320 = vmatprep.subr.bf16.mxu0 0
      %321 = vmatpush1.bf16.msra.mxu0 0
      %322 = vmatprep.subr.bf16.mxu0 0
      %323 = vmatpush1.bf16.msra.mxu0 0
      %324 = vmatprep.subr.bf16.mxu0 0
      %325 = vmatpush1.bf16.msra.mxu0 0
      %326 = vmatprep.subr.bf16.mxu0 0
      %327 = vmatpush1.bf16.msra.mxu0 0
      %328 = vmatprep.subr.bf16.mxu0 0
      %329 = vmatpush1.bf16.msra.mxu0 0
      %330 = vmatprep.subr.bf16.mxu0 0
      %331 = vmatpush1.bf16.msra.mxu0 0
      %332 = vmatprep.subr.bf16.mxu0 0
      %333 = vmatpush1.bf16.msra.mxu0 0
      %334 = vmatprep.subr.bf16.mxu0 0
      %335 = vmatpush1.bf16.msra.mxu0 0
      %336 = vmatprep.mubr.bf16.mxu0 0
      %337 = vmatmul.mubr.bf16.gmra.mrb[0].mxu0 %v302
      %v338 = vpop.f32.mrb[0].mxu0
      %v339 = vadd.f32 %v286, %v338
      %v340 = vpop.f32.mrb[0].mxu0
      %v341 = vpop.f32.mrb[0].mxu0
      %v342 = vpop.f32.mrb[0].mxu0
      %343 = vdwg.mxu0
      %v344 = vmax.f32 %v339, 0.0
      %v345 = vpack.c.bf16 %v344, %v344
      %v346 = vld [vmem:[%s3] sm:$0xf]
      %v347 = vld [vmem:[%s3 + $0x4] sm:$0xf]
      %v348 = vld [vmem:[%s3 + $0x8] sm:$0xf]
      %v349 = vld [vmem:[%s3 + $0xc] sm:$0xf]
      %v350 = vld [vmem:[%s3 + $0x10] sm:$0xf]
      %v351 = vld [vmem:[%s3 + $0x14] sm:$0xf]
      %v352 = vld [vmem:[%s3 + $0x18] sm:$0xf]
      %v353 = vld [vmem:[%s3 + $0x1c] sm:$0xf]
      %v354 = vld [vmem:[%s4] sm:$0x1]
      %v356 = vlaneseq
      %v357 = vshrl.u32 %v356, 7
      %v358 = vsub.s32 0, %v357
      %v359 = vrot.slane %v354, %v358
      %v369 = vunpack.c.l.b16 %v346
      %v370 = vunpack.c.l.b16 %v347
      %v371 = vunpack.c.l.b16 %v348
      %v372 = vunpack.c.l.b16 %v349
      %v373 = vunpack.c.l.b16 %v350
      %v374 = vunpack.c.l.b16 %v351
      %v375 = vunpack.c.l.b16 %v352
      %v376 = vunpack.c.l.b16 %v353
      %v377 = vpack.c.b16 %v370, %v369
      %v378 = vpack.c.b16 %v372, %v371
      %v379 = vpack.c.b16 %v374, %v373
      %v380 = vpack.c.b16 %v376, %v375
      %vm385 = vcmask 523264
      %v387 = vsel %vm385, %v345, 0
      %389 = vmatprep.subr.bf16.mxu0 0
      %390 = vmatpush1.bf16.msra.mxu0 %v377
      %391 = vmatprep.subr.bf16.mxu0 0
      %392 = vmatpush1.bf16.msra.mxu0 %v378
      %393 = vmatprep.subr.bf16.mxu0 0
      %394 = vmatpush1.bf16.msra.mxu0 %v379
      %395 = vmatprep.subr.bf16.mxu0 0
      %396 = vmatpush1.bf16.msra.mxu0 %v380
      %397 = vmatprep.subr.bf16.mxu0 0
      %398 = vmatpush1.bf16.msra.mxu0 0
      %399 = vmatprep.subr.bf16.mxu0 0
      %400 = vmatpush1.bf16.msra.mxu0 0
      %401 = vmatprep.subr.bf16.mxu0 0
      %402 = vmatpush1.bf16.msra.mxu0 0
      %403 = vmatprep.subr.bf16.mxu0 0
      %404 = vmatpush1.bf16.msra.mxu0 0
      %405 = vmatprep.subr.bf16.mxu0 0
      %406 = vmatpush1.bf16.msra.mxu0 0
      %407 = vmatprep.subr.bf16.mxu0 0
      %408 = vmatpush1.bf16.msra.mxu0 0
      %409 = vmatprep.subr.bf16.mxu0 0
      %410 = vmatpush1.bf16.msra.mxu0 0
      %411 = vmatprep.subr.bf16.mxu0 0
      %412 = vmatpush1.bf16.msra.mxu0 0
      %413 = vmatprep.subr.bf16.mxu0 0
      %414 = vmatpush1.bf16.msra.mxu0 0
      %415 = vmatprep.subr.bf16.mxu0 0
      %416 = vmatpush1.bf16.msra.mxu0 0
      %417 = vmatprep.subr.bf16.mxu0 0
      %418 = vmatpush1.bf16.msra.mxu0 0
      %419 = vmatprep.subr.bf16.mxu0 0
      %420 = vmatpush1.bf16.msra.mxu0 0
      %421 = vmatprep.mubr.bf16.mxu0 0
      %422 = vmatmul.mubr.bf16.gmra.mrb[0].mxu0 %v387
      %v423 = vpop.f32.mrb[0].mxu0
      %v424 = vadd.f32 %v359, %v423
      %v425 = vpop.f32.mrb[0].mxu0
      %v426 = vpop.f32.mrb[0].mxu0
      %v427 = vpop.f32.mrb[0].mxu0
      %428 = vdwg.mxu0
      %v429 = vadd.f32 %v275, %v424
      %v430 = vsel %vm300, %v429, 0.0
      %431 = vadd.xlane.f32.xlu0 %v430
      %v432 = vpop.xlane.xlu0 %431
      %v433 = vrcp.pop 32.0
      %v434 = vmul.f32 %v432, %v433
      %v435 = vsub.f32 %v429, %v434
      %v436 = vmul.f32 %v435, %v435
      %v437 = vsel %vm300, %v436, 0.0
      %438 = vadd.xlane.f32.xlu0 %v437
      %v439 = vpop.xlane.xlu0 %438
      %v440 = vmul.f32 %v439, %v433
      %v441 = vadd.f32 %v440, 1e-05
      %v442 = vrsqrt.pop %v441
      %v443 = vmul.f32 %v435, %v442
      %v444 = vld [vmem:[%s5] sm:$0x1]
      %v446 = vlaneseq
      %v447 = vshrl.u32 %v446, 7
      %v448 = vsub.s32 0, %v447
      %v449 = vrot.slane %v444, %v448
      %v451 = vmul.f32 %v443, %v449
      %v452 = vld [vmem:[%s6] sm:$0x1]
      %v454 = vlaneseq
      %v455 = vshrl.u32 %v454, 7
      %v456 = vsub.s32 0, %v455
      %v457 = vrot.slane %v452, %v456
      %v459 = vadd.f32 %v451, %v457
      %460 = vst.msk [vmem:[%s273] sm:$0xff] %vm300, %v459
      %p461 = scmp.lt.s32.totalorder %s18, 2
      %s462 = scalar_select %p461, %s18, 2
      %s463 = smul.addr %s462, 8
      %s464 = scalar_lea.vmem %s7, %s463
      // Predicated region
      $region49: #{transformer_forward.21} parent=47 // pred_check
        %p465 = pneg %p188
      $region50: #{transformer_forward.21} parent=47 // pred_check_branch
        %467 = sbr.rel (%p465) target = $region52
      $region51: #{transformer_forward.21} parent=47 // pred_region
        _
      $region52: #{transformer_forward.21} parent=47 // pred_fallthru
        _
    $region48: #{transformer_forward.21} parent=5 // pred_fallthru
      _
    %p468 = scmp.le.s32.totalorder 2, %s13
    // Predicated region
    $region53: #{transformer_forward.21} parent=5 // pred_check
      %p469 = pneg %p468
    $region54: #{transformer_forward.21} parent=5 // pred_check_branch
      %471 = sbr.rel (%p469) target = $region56
    $region55: #{transformer_forward.21} parent=5 // pred_region
      %s472 = ssub.s32 %s13, 2
      // Predicated region
      $region57: #{transformer_forward.21} parent=55 // pred_check
        %p473 = pneg %p194
      $region58: #{transformer_forward.21} parent=55 // pred_check_branch
        %475 = sbr.rel (%p473) target = $region60
      $region59: #{transformer_forward.21} parent=55 // pred_region
        %p476 = scmp.lt.s32.totalorder %s19, 2
        %s477 = scalar_select %p476, %s19, 2
        %s478 = smul.addr %s477, 8
        %s479 = scalar_lea.vmem %s7, %s478
      $region60: #{transformer_forward.21} parent=55 // pred_fallthru
        _
    $region56: #{transformer_forward.21} parent=5 // pred_fallthru
      _
  $region6: #{transformer_forward.21} parent=0 // loop_footer
    %s17 = sadd.s32 1, %s13
  $region7: #{transformer_forward.21} parent=0 // loop_footer_branch
    %12 = sbr.rel target = $region3
  $region8: #{transformer_forward.21} parent=0 // loop_exit
    _

// kernel: transformer_forward.20
$region0: #{transformer_forward.20}
  #allocation0 [shape = 'u32[]', space=smem, size = 0x4, offset = 0x4, fixed_abs, tag = 'smem constant byte address 0x4 - core index']
  #allocation1 [shape = 'u32[144,128]{1,0:T(1,128)}', space=vmem, size = 0x12000, scoped, tag = 'internal scratch']
  %s0 = inlined_call_operand.vmem [shape: f32[2,12,32], index: 0, kind: input, shape index: {}]
  %s1 = inlined_call_operand.vmem [shape: f32[2,12,32], index: 1, kind: input, shape index: {}]
  %s2 = inlined_call_operand.vmem [shape: f32[2,12,32], index: 2, kind: input, shape index: {}]
  %s3 = inlined_call_operand.vmem [shape: f32[2,12,12], index: 3, kind: input, shape index: {}]
  %s4 = inlined_call_operand.vmem [shape: f32[2,12,32], index: 4, kind: input, shape index: {}]
  %s5 = inlined_call_operand.vmem [shape: bf16[32,32], index: 5, kind: input, shape index: {}]
  %s6 = inlined_call_operand.vmem [shape: f32[1,32], index: 6, kind: input, shape index: {}]
  %s7 = inlined_call_operand.vmem [shape: f32[1,32], index: 7, kind: input, shape index: {}]
  %s8 = inlined_call_operand.vmem [shape: f32[1,32], index: 8, kind: input, shape index: {}]
  %s9 = inlined_call_operand.vmem [shape: f32[2,12,32], index: 9, kind: output, shape index: {}]
  %s10 = sld [smem:[#allocation0]]
  $region69: #{transformer_forward.20} parent=0
    _
  %s12 = ssub.s32 1, %s10
  %s13 = scalar_select 0, %s12, %s10
  loop: start=0, step=1, limit=4
  $region2: #{transformer_forward.20} parent=0 // loop_pre_header
    _
  $region3: #{transformer_forward.20} parent=0 // loop_header
    %s15 = sphi 0, %s19
    %p16 = scmp.ge.s32.totalorder %s15, 4
    %s25 = sphi 0, %s27
    %s28 = sphi 0, %s25
    %s29 = sphi 0, %s28
    %s45 = sphi 0, %s29
    %s51 = sphi 0, %s53
    %s54 = sphi 0, %s51
    %s55 = sphi 0, %s54
    %s71 = sphi 0, %s55
    %s77 = sphi 0, %s79
    %s80 = sphi 0, %s77
    %s81 = sphi 0, %s80
    %s97 = sphi 0, %s81
    %s103 = sphi 0, %s105
    %s106 = sphi 0, %s103
    %s107 = sphi 0, %s106
    %s123 = sphi 0, %s107
    %s129 = sphi 0, %s131
    %s132 = sphi 0, %s129
    %s133 = sphi 0, %s132
    %s149 = sphi 0, %s133
    %s153 = sphi 0, %s153
    %s155 = sphi 0, %s153
    %s156 = sphi 0, %s155
    %s170 = sphi 0, %s156
    %s174 = sphi 0, %s174
    %s176 = sphi 0, %s174
    %s177 = sphi 0, %s176
    %s191 = sphi 0, %s177
    %s195 = sphi 0, %s195
    %s197 = sphi 0, %s195
    %s198 = sphi 0, %s197
    %s212 = sphi 0, %s198
    %s216 = sphi 0, %s216
    %s218 = sphi 0, %s216
    %s219 = sphi 0, %s218
    %s233 = sphi 0, %s219
    %s239 = sphi 0, %s241
    %s242 = sphi 0, %s239
    %s243 = sphi 0, %s242
    %s259 = sphi 0, %s243
  $region4: #{transformer_forward.20} parent=0 // loop_header_branch
    %18 = sbr.rel (%p16) target = $region8
  $region5: #{transformer_forward.20} parent=0 // loop_body
    %s20 = ssub.s32 %s15, 1
    %s21 = ssub.s32 %s15, 2
    %s22 = sadd.s32 %s15, 1
    %s23 = ssub.s32 %s15, %s22
    %p24 = scmp.eq.s32.totalorder %s23, 0
    %s26 = sadd.s32 %s25, 1
    %s27 = scalar_select %p24, %s25, %s26
    %p30 = pneg %p24
    %p31 = scmp.eq.s32.totalorder %s15, 1
    %p32 = por %p30, %p31
    %p33 = scmp.ne.s32.totalorder %s25, %s28
    %p34 = scmp.eq.s32.totalorder %s15, 0
    %p35 = por %p33, %p34
    %p36 = scmp.ne.s32.totalorder %s25, %s28
    %p37 = scmp.eq.s32.totalorder %s20, 1
    %p38 = por %p36, %p37
    %p39 = scmp.ne.s32.totalorder %s28, %s29
    %p40 = scmp.eq.s32.totalorder %s20, 0
    %p41 = por %p39, %p40
    %p42 = scmp.ne.s32.totalorder %s28, %s29
    %p43 = scmp.eq.s32.totalorder %s21, 1
    %p44 = por %p42, %p43
    %p46 = scmp.ne.s32.totalorder %s29, %s45
    %p47 = scmp.eq.s32.totalorder %s21, 0
    %p48 = por %p46, %p47
    %s49 = ssub.s32 %s15, %s22
    %p50 = scmp.eq.s32.totalorder %s49, 0
    %s52 = sadd.s32 %s51, 1
    %s53 = scalar_select %p50, %s51, %s52
    %p56 = pneg %p50
    %p57 = scmp.eq.s32.totalorder %s15, 1
    %p58 = por %p56, %p57
    %p59 = scmp.ne.s32.totalorder %s51, %s54
    %p60 = scmp.eq.s32.totalorder %s15, 0
    %p61 = por %p59, %p60
    %p62 = scmp.ne.s32.totalorder %s51, %s54
    %p63 = scmp.eq.s32.totalorder %s20, 1
    %p64 = por %p62, %p63
    %p65 = scmp.ne.s32.totalorder %s54, %s55
    %p66 = scmp.eq.s32.totalorder %s20, 0
    %p67 = por %p65, %p66
    %p68 = scmp.ne.s32.totalorder %s54, %s55
    %p69 = scmp.eq.s32.totalorder %s21, 1
    %p70 = por %p68, %p69
    %p72 = scmp.ne.s32.totalorder %s55, %s71
    %p73 = scmp.eq.s32.totalorder %s21, 0
    %p74 = por %p72, %p73
    %s75 = ssub.s32 %s15, %s22
    %p76 = scmp.eq.s32.totalorder %s75, 0
    %s78 = sadd.s32 %s77, 1
    %s79 = scalar_select %p76, %s77, %s78
    %p82 = pneg %p76
    %p83 = scmp.eq.s32.totalorder %s15, 1
    %p84 = por %p82, %p83
    %p85 = scmp.ne.s32.totalorder %s77, %s80
    %p86 = scmp.eq.s32.totalorder %s15, 0
    %p87 = por %p85, %p86
    %p88 = scmp.ne.s32.totalorder %s77, %s80
    %p89 = scmp.eq.s32.totalorder %s20, 1
    %p90 = por %p88, %p89
    %p91 = scmp.ne.s32.totalorder %s80, %s81
    %p92 = scmp.eq.s32.totalorder %s20, 0
    %p93 = por %p91, %p92
    %p94 = scmp.ne.s32.totalorder %s80, %s81
    %p95 = scmp.eq.s32.totalorder %s21, 1
    %p96 = por %p94, %p95
    %p98 = scmp.ne.s32.totalorder %s81, %s97
    %p99 = scmp.eq.s32.totalorder %s21, 0
    %p100 = por %p98, %p99
    %s101 = ssub.s32 %s15, %s22
    %p102 = scmp.eq.s32.totalorder %s101, 0
    %s104 = sadd.s32 %s103, 1
    %s105 = scalar_select %p102, %s103, %s104
    %p108 = pneg %p102
    %p109 = scmp.eq.s32.totalorder %s15, 1
    %p110 = por %p108, %p109
    %p111 = scmp.ne.s32.totalorder %s103, %s106
    %p112 = scmp.eq.s32.totalorder %s15, 0
    %p113 = por %p111, %p112
    %p114 = scmp.ne.s32.totalorder %s103, %s106
    %p115 = scmp.eq.s32.totalorder %s20, 1
    %p116 = por %p114, %p115
    %p117 = scmp.ne.s32.totalorder %s106, %s107
    %p118 = scmp.eq.s32.totalorder %s20, 0
    %p119 = por %p117, %p118
    %p120 = scmp.ne.s32.totalorder %s106, %s107
    %p121 = scmp.eq.s32.totalorder %s21, 1
    %p122 = por %p120, %p121
    %p124 = scmp.ne.s32.totalorder %s107, %s123
    %p125 = scmp.eq.s32.totalorder %s21, 0
    %p126 = por %p124, %p125
    %s127 = ssub.s32 %s15, %s22
    %p128 = scmp.eq.s32.totalorder %s127, 0
    %s130 = sadd.s32 %s129, 1
    %s131 = scalar_select %p128, %s129, %s130
    %p134 = pneg %p128
    %p135 = scmp.eq.s32.totalorder %s15, 1
    %p136 = por %p134, %p135
    %p137 = scmp.ne.s32.totalorder %s129, %s132
    %p138 = scmp.eq.s32.totalorder %s15, 0
    %p139 = por %p137, %p138
    %p140 = scmp.ne.s32.totalorder %s129, %s132
    %p141 = scmp.eq.s32.totalorder %s20, 1
    %p142 = por %p140, %p141
    %p143 = scmp.ne.s32.totalorder %s132, %s133
    %p144 = scmp.eq.s32.totalorder %s20, 0
    %p145 = por %p143, %p144
    %p146 = scmp.ne.s32.totalorder %s132, %s133
    %p147 = scmp.eq.s32.totalorder %s21, 1
    %p148 = por %p146, %p147
    %p150 = scmp.ne.s32.totalorder %s133, %s149
    %p151 = scmp.eq.s32.totalorder %s21, 0
    %p152 = por %p150, %p151
    %s154 = sadd.s32 %s153, 1
    %p157 = scmp.eq.s32.totalorder %s15, 1
    %p158 = scmp.ne.s32.totalorder %s153, %s155
    %p159 = scmp.eq.s32.totalorder %s15, 0
    %p160 = por %p158, %p159
    %p161 = scmp.ne.s32.totalorder %s153, %s155
    %p162 = scmp.eq.s32.totalorder %s20, 1
    %p163 = por %p161, %p162
    %p164 = scmp.ne.s32.totalorder %s155, %s156
    %p165 = scmp.eq.s32.totalorder %s20, 0
    %p166 = por %p164, %p165
    %p167 = scmp.ne.s32.totalorder %s155, %s156
    %p168 = scmp.eq.s32.totalorder %s21, 1
    %p169 = por %p167, %p168
    %p171 = scmp.ne.s32.totalorder %s156, %s170
    %p172 = scmp.eq.s32.totalorder %s21, 0
    %p173 = por %p171, %p172
    %s175 = sadd.s32 %s174, 1
    %p178 = scmp.eq.s32.totalorder %s15, 1
    %p179 = scmp.ne.s32.totalorder %s174, %s176
    %p180 = scmp.eq.s32.totalorder %s15, 0
    %p181 = por %p179, %p180
    %p182 = scmp.ne.s32.totalorder %s174, %s176
    %p183 = scmp.eq.s32.totalorder %s20, 1
    %p184 = por %p182, %p183
    %p185 = scmp.ne.s32.totalorder %s176, %s177
    %p186 = scmp.eq.s32.totalorder %s20, 0
    %p187 = por %p185, %p186
    %p188 = scmp.ne.s32.totalorder %s176, %s177
    %p189 = scmp.eq.s32.totalorder %s21, 1
    %p190 = por %p188, %p189
    %p192 = scmp.ne.s32.totalorder %s177, %s191
    %p193 = scmp.eq.s32.totalorder %s21, 0
    %p194 = por %p192, %p193
    %s196 = sadd.s32 %s195, 1
    %p199 = scmp.eq.s32.totalorder %s15, 1
    %p200 = scmp.ne.s32.totalorder %s195, %s197
    %p201 = scmp.eq.s32.totalorder %s15, 0
    %p202 = por %p200, %p201
    %p203 = scmp.ne.s32.totalorder %s195, %s197
    %p204 = scmp.eq.s32.totalorder %s20, 1
    %p205 = por %p203, %p204
    %p206 = scmp.ne.s32.totalorder %s197, %s198
    %p207 = scmp.eq.s32.totalorder %s20, 0
    %p208 = por %p206, %p207
    %p209 = scmp.ne.s32.totalorder %s197, %s198
    %p210 = scmp.eq.s32.totalorder %s21, 1
    %p211 = por %p209, %p210
    %p213 = scmp.ne.s32.totalorder %s198, %s212
    %p214 = scmp.eq.s32.totalorder %s21, 0
    %p215 = por %p213, %p214
    %s217 = sadd.s32 %s216, 1
    %p220 = scmp.eq.s32.totalorder %s15, 1
    %p221 = scmp.ne.s32.totalorder %s216, %s218
    %p222 = scmp.eq.s32.totalorder %s15, 0
    %p223 = por %p221, %p222
    %p224 = scmp.ne.s32.totalorder %s216, %s218
    %p225 = scmp.eq.s32.totalorder %s20, 1
    %p226 = por %p224, %p225
    %p227 = scmp.ne.s32.totalorder %s218, %s219
    %p228 = scmp.eq.s32.totalorder %s20, 0
    %p229 = por %p227, %p228
    %p230 = scmp.ne.s32.totalorder %s218, %s219
    %p231 = scmp.eq.s32.totalorder %s21, 1
    %p232 = por %p230, %p231
    %p234 = scmp.ne.s32.totalorder %s219, %s233
    %p235 = scmp.eq.s32.totalorder %s21, 0
    %p236 = por %p234, %p235
    %s237 = ssub.s32 %s15, %s22
    %p238 = scmp.eq.s32.totalorder %s237, 0
    %s240 = sadd.s32 %s239, 1
    %s241 = scalar_select %p238, %s239, %s240
    %p244 = pneg %p238
    %p245 = scmp.eq.s32.totalorder %s15, 1
    %p246 = por %p244, %p245
    %p247 = scmp.ne.s32.totalorder %s239, %s242
    %p248 = scmp.eq.s32.totalorder %s15, 0
    %p249 = por %p247, %p248
    %p250 = scmp.ne.s32.totalorder %s239, %s242
    %p251 = scmp.eq.s32.totalorder %s20, 1
    %p252 = por %p250, %p251
    %p253 = scmp.ne.s32.totalorder %s242, %s243
    %p254 = scmp.eq.s32.totalorder %s20, 0
    %p255 = por %p253, %p254
    %p256 = scmp.ne.s32.totalorder %s242, %s243
    %p257 = scmp.eq.s32.totalorder %s21, 1
    %p258 = por %p256, %p257
    %p260 = scmp.ne.s32.totalorder %s243, %s259
    %p261 = scmp.eq.s32.totalorder %s21, 0
    %p262 = por %p260, %p261
    %p263 = scmp.le.s32.totalorder 1, %s15
    %p264 = scmp.lt.s32.totalorder %s15, 3
    %p265 = pnand %p263, %p264
    %p266 = pneg %p265
    // Predicated region
    $region9: #{transformer_forward.20} parent=5 // pred_check
      _
    $region10: #{transformer_forward.20} parent=5 // pred_check_branch
      %268 = sbr.rel (%p265) target = $region12
    $region11: #{transformer_forward.20} parent=5 // pred_region
      %s269 = ssub.s32 %s15, 1
      // Predicated region
      $region13: #{transformer_forward.20} parent=11 // pred_check
        %p270 = pneg %p166
      $region14: #{transformer_forward.20} parent=11 // pred_check_branch
        %272 = sbr.rel (%p270) target = $region16
      $region15: #{transformer_forward.20} parent=11 // pred_region
        _
      $region16: #{transformer_forward.20} parent=11 // pred_fallthru
        _
      // Predicated region
      $region17: #{transformer_forward.20} parent=11 // pred_check
        %p273 = pneg %p187
      $region18: #{transformer_forward.20} parent=11 // pred_check_branch
        %275 = sbr.rel (%p273) target = $region20
      $region19: #{transformer_forward.20} parent=11 // pred_region
        _
      $region20: #{transformer_forward.20} parent=11 // pred_fallthru
        _
      // Predicated region
      $region21: #{transformer_forward.20} parent=11 // pred_check
        %p276 = pneg %p208
      $region22: #{transformer_forward.20} parent=11 // pred_check_branch
        %278 = sbr.rel (%p276) target = $region24
      $region23: #{transformer_forward.20} parent=11 // pred_region
        _
      $region24: #{transformer_forward.20} parent=11 // pred_fallthru
        _
      // Predicated region
      $region25: #{transformer_forward.20} parent=11 // pred_check
        %p279 = pneg %p229
      $region26: #{transformer_forward.20} parent=11 // pred_check_branch
        %281 = sbr.rel (%p279) target = $region28
      $region27: #{transformer_forward.20} parent=11 // pred_region
        _
      $region28: #{transformer_forward.20} parent=11 // pred_fallthru
        _
    $region12: #{transformer_forward.20} parent=5 // pred_fallthru
      _
    %p282 = scmp.lt.s32.totalorder %s15, 2
    // Predicated region
    $region29: #{transformer_forward.20} parent=5 // pred_check
      %p283 = pneg %p282
    $region30: #{transformer_forward.20} parent=5 // pred_check_branch
      %285 = sbr.rel (%p283) target = $region32
    $region31: #{transformer_forward.20} parent=5 // pred_region
      // Predicated region
      $region33: #{transformer_forward.20} parent=31 // pred_check
        %p286 = pneg %p35
      $region34: #{transformer_forward.20} parent=31 // pred_check_branch
        %288 = sbr.rel (%p286) target = $region36
      $region35: #{transformer_forward.20} parent=31 // pred_region
        %p289 = scmp.lt.s32.totalorder %s15, 1
        %s290 = scalar_select %p289, %s15, 1
        %s291 = smul.addr %s290, 2
        %s292 = smul.addr %s291, 8
        %s293 = scalar_lea.vmem %s0, %s292
      $region36: #{transformer_forward.20} parent=31 // pred_fallthru
        _
      // Predicated region
      $region37: #{transformer_forward.20} parent=31 // pred_check
        %p294 = pneg %p61
      $region38: #{transformer_forward.20} parent=31 // pred_check_branch
        %296 = sbr.rel (%p294) target = $region40
      $region39: #{transformer_forward.20} parent=31 // pred_region
        %p297 = scmp.lt.s32.totalorder %s15, 1
        %s298 = scalar_select %p297, %s15, 1
        %s299 = smul.addr %s298, 2
        %s300 = smul.addr %s299, 8
        %s301 = scalar_lea.vmem %s1, %s300
      $region40: #{transformer_forward.20} parent=31 // pred_fallthru
        _
      // Predicated region
      $region41: #{transformer_forward.20} parent=31 // pred_check
        %p302 = pneg %p87
      $region42: #{transformer_forward.20} parent=31 // pred_check_branch
        %304 = sbr.rel (%p302) target = $region44
      $region43: #{transformer_forward.20} parent=31 // pred_region
        %p305 = scmp.lt.s32.totalorder %s15, 1
        %s306 = scalar_select %p305, %s15, 1
        %s307 = smul.addr %s306, 2
        %s308 = smul.addr %s307, 8
        %s309 = scalar_lea.vmem %s2, %s308
      $region44: #{transformer_forward.20} parent=31 // pred_fallthru
        _
      // Predicated region
      $region45: #{transformer_forward.20} parent=31 // pred_check
        %p310 = pneg %p113
      $region46: #{transformer_forward.20} parent=31 // pred_check_branch
        %312 = sbr.rel (%p310) target = $region48
      $region47: #{transformer_forward.20} parent=31 // pred_region
        %p313 = scmp.lt.s32.totalorder %s15, 1
        %s314 = scalar_select %p313, %s15, 1
        %s315 = smul.addr %s314, 2
        %s316 = smul.addr %s315, 8
        %s317 = scalar_lea.vmem %s3, %s316
      $region48: #{transformer_forward.20} parent=31 // pred_fallthru
        _
      // Predicated region
      $region49: #{transformer_forward.20} parent=31 // pred_check
        %p318 = pneg %p139
      $region50: #{transformer_forward.20} parent=31 // pred_check_branch
        %320 = sbr.rel (%p318) target = $region52
      $region51: #{transformer_forward.20} parent=31 // pred_region
        %p321 = scmp.lt.s32.totalorder %s15, 1
        %s322 = scalar_select %p321, %s15, 1
        %s323 = smul.addr %s322, 2
        %s324 = smul.addr %s323, 8
        %s325 = scalar_lea.vmem %s4, %s324
      $region52: #{transformer_forward.20} parent=31 // pred_fallthru
        _
    $region32: #{transformer_forward.20} parent=5 // pred_fallthru
      _
    %p326 = scmp.le.s32.totalorder 1, %s15
    %p327 = scmp.lt.s32.totalorder %s15, 3
    %p328 = pnand %p326, %p327
    %p329 = pneg %p328
    // Predicated region
    $region53: #{transformer_forward.20} parent=5 // pred_check
      _
    $region54: #{transformer_forward.20} parent=5 // pred_check_branch
      %331 = sbr.rel (%p328) target = $region56
    $region55: #{transformer_forward.20} parent=5 // pred_region
      %s332 = ssub.s32 %s15, 1
      %p333 = scmp.lt.s32.totalorder %s20, 1
      %s334 = scalar_select %p333, %s20, 1
      %s335 = smul.addr %s334, 2
      %s336 = smul.addr %s335, 8
      %s337 = scalar_lea.vmem %s0, %s336
      %p338 = pneg %p41
      %p339 = pneg %p38
      %p340 = scmp.lt.s32.totalorder %s20, 1
      %s341 = scalar_select %p340, %s20, 1
      %s342 = smul.addr %s341, 2
      %s343 = smul.addr %s342, 8
      %s344 = scalar_lea.vmem %s1, %s343
      %p345 = pneg %p67
      %p346 = pneg %p64
      %p347 = scmp.lt.s32.totalorder %s20, 1
      %s348 = scalar_select %p347, %s20, 1
      %s349 = smul.addr %s348, 2
      %s350 = smul.addr %s349, 8
      %s351 = scalar_lea.vmem %s2, %s350
      %p352 = pneg %p93
      %p353 = pneg %p90
      %p354 = scmp.lt.s32.totalorder %s20, 1
      %s355 = scalar_select %p354, %s20, 1
      %s356 = smul.addr %s355, 2
      %s357 = smul.addr %s356, 8
      %s358 = scalar_lea.vmem %s3, %s357
      %p359 = pneg %p119
      %p360 = pneg %p116
      %p361 = scmp.lt.s32.totalorder %s20, 1
      %s362 = scalar_select %p361, %s20, 1
      %s363 = smul.addr %s362, 2
      %s364 = smul.addr %s363, 8
      %s365 = scalar_lea.vmem %s4, %s364
      %p366 = pneg %p145
      %p367 = pneg %p142
      %p368 = pneg %p166
      %p369 = pneg %p163
      %p370 = pneg %p187
      %p371 = pneg %p184
      %p372 = pneg %p208
      %p373 = pneg %p205
      %p374 = pneg %p229
      %p375 = pneg %p226
      %p376 = pneg %p255
      %p377 = pneg %p252
      %p378 = scmp.lt.s32.totalorder %s20, 1
      %s379 = scalar_select %p378, %s20, 1
      %s380 = smul.addr %s379, 2
      %s381 = smul.addr %s380, 8
      %s382 = scalar_lea.vmem %s9, %s381
      %p383 = scmp.lt.s32.totalorder %s20, 1
      %s384 = scalar_select %p383, %s20, 1
      %s385 = smul.addr %s384, 2
      %s386 = smul.addr %s385, 8
      %s387 = scalar_lea.vmem %s0, %s386
      %p388 = scmp.lt.s32.totalorder %s20, 1
      %s389 = scalar_select %p388, %s20, 1
      %s390 = smul.addr %s389, 2
      %s391 = smul.addr %s390, 8
      %s392 = scalar_lea.vmem %s1, %s391
      %p393 = scmp.lt.s32.totalorder %s20, 1
      %s394 = scalar_select %p393, %s20, 1
      %s395 = smul.addr %s394, 2
      %s396 = smul.addr %s395, 8
      %s397 = scalar_lea.vmem %s2, %s396
      %p398 = scmp.lt.s32.totalorder %s20, 1
      %s399 = scalar_select %p398, %s20, 1
      %s400 = smul.addr %s399, 2
      %s401 = smul.addr %s400, 8
      %s402 = scalar_lea.vmem %s3, %s401
      %p403 = scmp.lt.s32.totalorder %s20, 1
      %s404 = scalar_select %p403, %s20, 1
      %s405 = smul.addr %s404, 2
      %s406 = smul.addr %s405, 8
      %s407 = scalar_lea.vmem %s4, %s406
      %p408 = scmp.lt.s32.totalorder %s20, 1
      %s409 = scalar_select %p408, %s20, 1
      %s410 = smul.addr %s409, 2
      %s411 = smul.addr %s410, 8
      %s412 = scalar_lea.vmem %s9, %s411
      %v414 = vld [vmem:[%s387] sm:$0xff]
      %v415 = vld [vmem:[%s387 + $0x8] sm:$0xf]
      %v416 = vld [vmem:[%s392] sm:$0xff]
      %v417 = vld [vmem:[%s392 + $0x8] sm:$0xf]
      %v418 = vld [vmem:[%s397] sm:$0xff]
      %v419 = vld [vmem:[%s397 + $0x8] sm:$0xf]
      %v420 = vld [vmem:[%s402] sm:$0xff]
      %v421 = vld [vmem:[%s402 + $0x8] sm:$0xf]
      %v422 = vpack.c.bf16 %v415, %v414
      %v423 = vpack.c.bf16 %v417, %v416
      %v424 = vpack.c.bf16 %v419, %v418
      %vm425 = vcmask 64512
      %v427 = vsel %vm425, %v422, 0
      %v430 = vsel %vm425, %v423, 0
      %432 = vmatprep.subr.bf16.mxu0 0
      %433 = vmatpush1.bf16.xpose.msra.mxu0 %v430
      %434 = vmatprep.subr.bf16.mxu0 0
      %435 = vmatpush1.bf16.xpose.msra.mxu0 0
      %436 = vmatprep.subr.bf16.mxu0 0
      %437 = vmatpush1.bf16.xpose.msra.mxu0 0
      %438 = vmatprep.subr.bf16.mxu0 0
      %439 = vmatpush1.bf16.xpose.msra.mxu0 0
      %440 = vmatprep.subr.bf16.mxu0 0
      %441 = vmatpush1.bf16.xpose.msra.mxu0 0
      %442 = vmatprep.subr.bf16.mxu0 0
      %443 = vmatpush1.bf16.xpose.msra.mxu0 0
      %444 = vmatprep.subr.bf16.mxu0 0
      %445 = vmatpush1.bf16.xpose.msra.mxu0 0
      %446 = vmatprep.subr.bf16.mxu0 0
      %447 = vmatpush1.bf16.xpose.msra.mxu0 0
      %448 = vmatprep.subr.bf16.mxu0 0
      %449 = vmatpush1.bf16.xpose.msra.mxu0 0
      %450 = vmatprep.subr.bf16.mxu0 0
      %451 = vmatpush1.bf16.xpose.msra.mxu0 0
      %452 = vmatprep.subr.bf16.mxu0 0
      %453 = vmatpush1.bf16.xpose.msra.mxu0 0
      %454 = vmatprep.subr.bf16.mxu0 0
      %455 = vmatpush1.bf16.xpose.msra.mxu0 0
      %456 = vmatprep.subr.bf16.mxu0 0
      %457 = vmatpush1.bf16.xpose.msra.mxu0 0
      %458 = vmatprep.subr.bf16.mxu0 0
      %459 = vmatpush1.bf16.xpose.msra.mxu0 0
      %460 = vmatprep.subr.bf16.mxu0 0
      %461 = vmatpush1.bf16.xpose.msra.mxu0 0
      %462 = vmatprep.subr.bf16.mxu0 0
      %463 = vmatpush1.bf16.xpose.msra.mxu0 0
      %464 = vmatprep.mubr.bf16.mxu0 0
      %465 = vmatmul.mubr.bf16.gmra.mrb[0].mxu0 %v427
      %v466 = vpop.f32.mrb[0].mxu0
      %v467 = vadd.f32 %v420, %v466
      %v468 = vpop.f32.mrb[0].mxu0
      %v469 = vpop.f32.mrb[0].mxu0
      %v470 = vadd.f32 %v421, %v469
      %v471 = vpop.f32.mrb[0].mxu0
      %472 = vdwg.mxu0
      %vm473 = vcmask 97280
      %v474 = vsel %vm473, %v467, -inf
      %475 = vmax.xlane.f32.xlu0 %v474
      %v476 = vpop.xlane.xlu0 %475
      %vm477 = vcmask 93184
      %v478 = vsel %vm477, %v470, -inf
      %479 = vmax.xlane.f32.xlu0 %v478
      %v480 = vpop.xlane.xlu0 %479
      %v481 = vsub.f32 %v467, %v476
      %v482 = vsub.f32 %v470, %v480
      %v483 = vmul.f32 %v481, 1.442695
      %v484 = vpow.pop %v483
      %v485 = vmul.f32 %v482, 1.442695
      %v486 = vpow.pop %v485
      %v487 = vsel %vm473, %v484, 0.0
      %488 = vadd.xlane.f32.xlu0 %v487
      %v489 = vpop.xlane.xlu0 %488
      %v490 = vsel %vm477, %v486, 0.0
      %491 = vadd.xlane.f32.xlu0 %v490
      %v492 = vpop.xlane.xlu0 %491
      %v493 = vrcp.pop %v489
      %v494 = vrcp.pop %v492
      %v495 = vmul.f32 %v484, %v493
      %v496 = vmul.f32 %v486, %v494
      %v497 = vpack.c.bf16 %v496, %v495
      %v499 = vsel %vm473, %v497, 0
      %vm501 = vcmask 1045504
      %v503 = vsel %vm501, %v424, 0
      %505 = vmatprep.subr.bf16.mxu0 0
      %506 = vmatpush1.bf16.msra.mxu0 %v503
      %507 = vmatprep.subr.bf16.mxu0 0
      %508 = vmatpush1.bf16.msra.mxu0 0
      %509 = vmatprep.subr.bf16.mxu0 0
      %510 = vmatpush1.bf16.msra.mxu0 0
      %511 = vmatprep.subr.bf16.mxu0 0
      %512 = vmatpush1.bf16.msra.mxu0 0
      %513 = vmatprep.subr.bf16.mxu0 0
      %514 = vmatpush1.bf16.msra.mxu0 0
      %515 = vmatprep.subr.bf16.mxu0 0
      %516 = vmatpush1.bf16.msra.mxu0 0
      %517 = vmatprep.subr.bf16.mxu0 0
      %518 = vmatpush1.bf16.msra.mxu0 0
      %519 = vmatprep.subr.bf16.mxu0 0
      %520 = vmatpush1.bf16.msra.mxu0 0
      %521 = vmatprep.subr.bf16.mxu0 0
      %522 = vmatpush1.bf16.msra.mxu0 0
      %523 = vmatprep.subr.bf16.mxu0 0
      %524 = vmatpush1.bf16.msra.mxu0 0
      %525 = vmatprep.subr.bf16.mxu0 0
      %526 = vmatpush1.bf16.msra.mxu0 0
      %527 = vmatprep.subr.bf16.mxu0 0
      %528 = vmatpush1.bf16.msra.mxu0 0
      %529 = vmatprep.subr.bf16.mxu0 0
      %530 = vmatpush1.bf16.msra.mxu0 0
      %531 = vmatprep.subr.bf16.mxu0 0
      %532 = vmatpush1.bf16.msra.mxu0 0
      %533 = vmatprep.subr.bf16.mxu0 0
      %534 = vmatpush1.bf16.msra.mxu0 0
      %535 = vmatprep.subr.bf16.mxu0 0
      %536 = vmatpush1.bf16.msra.mxu0 0
      %537 = vmatprep.mubr.bf16.mxu0 0
      %538 = vmatmul.mubr.bf16.gmra.mrb[0].mxu0 %v499
      %v539 = vpop.f32.mrb[0].mxu0
      %v540 = vadd.f32 0.0, %v539
      %v541 = vpop.f32.mrb[0].mxu0
      %v542 = vpop.f32.mrb[0].mxu0
      %v543 = vadd.f32 0.0, %v542
      %v544 = vpop.f32.mrb[0].mxu0
      %545 = vdwg.mxu0
      %v546 = vpack.c.bf16 %v543, %v540
      %v547 = vld [vmem:[%s5] sm:$0xf]
      %549 = vrot.lane.b32.xlu0 %v422, 120
      %v550 = vpop.permute.xlu0 %549
      %552 = vrot.lane.b32.xlu0 %v423, 120
      %v553 = vpop.permute.xlu0 %552
      %v555 = vsel %vm425, %v550, 0
      %v558 = vsel %vm425, %v553, 0
      %560 = vmatprep.subr.bf16.mxu0 0
      %561 = vmatpush1.bf16.xpose.msra.mxu0 %v558
      %562 = vmatprep.subr.bf16.mxu0 0
      %563 = vmatpush1.bf16.xpose.msra.mxu0 0
      %564 = vmatprep.subr.bf16.mxu0 0
      %565 = vmatpush1.bf16.xpose.msra.mxu0 0
      %566 = vmatprep.subr.bf16.mxu0 0
      %567 = vmatpush1.bf16.xpose.msra.mxu0 0
      %568 = vmatprep.subr.bf16.mxu0 0
      %569 = vmatpush1.bf16.xpose.msra.mxu0 0
      %570 = vmatprep.subr.bf16.mxu0 0
      %571 = vmatpush1.bf16.xpose.msra.mxu0 0
      %572 = vmatprep.subr.bf16.mxu0 0
      %573 = vmatpush1.bf16.xpose.msra.mxu0 0
      %574 = vmatprep.subr.bf16.mxu0 0
      %575 = vmatpush1.bf16.xpose.msra.mxu0 0
      %576 = vmatprep.subr.bf16.mxu0 0
      %577 = vmatpush1.bf16.xpose.msra.mxu0 0
      %578 = vmatprep.subr.bf16.mxu0 0
      %579 = vmatpush1.bf16.xpose.msra.mxu0 0
      %580 = vmatprep.subr.bf16.mxu0 0
      %581 = vmatpush1.bf16.xpose.msra.mxu0 0
      %582 = vmatprep.subr.bf16.mxu0 0
      %583 = vmatpush1.bf16.xpose.msra.mxu0 0
      %584 = vmatprep.subr.bf16.mxu0 0
      %585 = vmatpush1.bf16.xpose.msra.mxu0 0
      %586 = vmatprep.subr.bf16.mxu0 0
      %587 = vmatpush1.bf16.xpose.msra.mxu0 0
      %588 = vmatprep.subr.bf16.mxu0 0
      %589 = vmatpush1.bf16.xpose.msra.mxu0 0
      %590 = vmatprep.subr.bf16.mxu0 0
      %591 = vmatpush1.bf16.xpose.msra.mxu0 0
      %592 = vmatprep.mubr.bf16.mxu0 0
      %593 = vmatmul.mubr.bf16.gmra.mrb[0].mxu0 %v555
      %v594 = vpop.f32.mrb[0].mxu0
      %v595 = vadd.f32 %v420, %v594
      %v596 = vpop.f32.mrb[0].mxu0
      %v597 = vpop.f32.mrb[0].mxu0
      %v598 = vadd.f32 %v421, %v597
      %v599 = vpop.f32.mrb[0].mxu0
      %600 = vdwg.mxu0
      %v601 = vsel %vm473, %v595, -inf
      %602 = vmax.xlane.f32.xlu0 %v601
      %v603 = vpop.xlane.xlu0 %602
      %v604 = vsel %vm477, %v598, -inf
      %605 = vmax.xlane.f32.xlu0 %v604
      %v606 = vpop.xlane.xlu0 %605
      %v607 = vsub.f32 %v595, %v603
      %v608 = vsub.f32 %v598, %v606
      %v609 = vmul.f32 %v607, 1.442695
      %v610 = vpow.pop %v609
      %v611 = vmul.f32 %v608, 1.442695
      %v612 = vpow.pop %v611
      %v613 = vsel %vm473, %v610, 0.0
      %614 = vadd.xlane.f32.xlu0 %v613
      %v615 = vpop.xlane.xlu0 %614
      %v616 = vsel %vm477, %v612, 0.0
      %617 = vadd.xlane.f32.xlu0 %v616
      %v618 = vpop.xlane.xlu0 %617
      %v619 = vrcp.pop %v615
      %v620 = vrcp.pop %v618
      %v621 = vmul.f32 %v610, %v619
      %v622 = vmul.f32 %v612, %v620
      %v623 = vpack.c.bf16 %v622, %v621
      %625 = vrot.lane.b32.xlu0 %v424, 120
      %v626 = vpop.permute.xlu0 %625
      %v628 = vsel %vm473, %v623, 0
      %v631 = vsel %vm501, %v626, 0
      %633 = vmatprep.subr.bf16.mxu0 0
      %634 = vmatpush1.bf16.msra.mxu0 %v631
      %635 = vmatprep.subr.bf16.mxu0 0
      %636 = vmatpush1.bf16.msra.mxu0 0
      %637 = vmatprep.subr.bf16.mxu0 0
      %638 = vmatpush1.bf16.msra.mxu0 0
      %639 = vmatprep.subr.bf16.mxu0 0
      %640 = vmatpush1.bf16.msra.mxu0 0
      %641 = vmatprep.subr.bf16.mxu0 0
      %642 = vmatpush1.bf16.msra.mxu0 0
      %643 = vmatprep.subr.bf16.mxu0 0
      %644 = vmatpush1.bf16.msra.mxu0 0
      %645 = vmatprep.subr.bf16.mxu0 0
      %646 = vmatpush1.bf16.msra.mxu0 0
      %647 = vmatprep.subr.bf16.mxu0 0
      %648 = vmatpush1.bf16.msra.mxu0 0
      %649 = vmatprep.subr.bf16.mxu0 0
      %650 = vmatpush1.bf16.msra.mxu0 0
      %651 = vmatprep.subr.bf16.mxu0 0
      %652 = vmatpush1.bf16.msra.mxu0 0
      %653 = vmatprep.subr.bf16.mxu0 0
      %654 = vmatpush1.bf16.msra.mxu0 0
      %655 = vmatprep.subr.bf16.mxu0 0
      %656 = vmatpush1.bf16.msra.mxu0 0
      %657 = vmatprep.subr.bf16.mxu0 0
      %658 = vmatpush1.bf16.msra.mxu0 0
      %659 = vmatprep.subr.bf16.mxu0 0
      %660 = vmatpush1.bf16.msra.mxu0 0
      %661 = vmatprep.subr.bf16.mxu0 0
      %662 = vmatpush1.bf16.msra.mxu0 0
      %663 = vmatprep.subr.bf16.mxu0 0
      %664 = vmatpush1.bf16.msra.mxu0 0
      %665 = vmatprep.mubr.bf16.mxu0 0
      %666 = vmatmul.mubr.bf16.gmra.mrb[0].mxu0 %v628
      %v667 = vpop.f32.mrb[0].mxu0
      %v668 = vadd.f32 0.0, %v667
      %v669 = vpop.f32.mrb[0].mxu0
      %v670 = vpop.f32.mrb[0].mxu0
      %v671 = vadd.f32 0.0, %v670
      %v672 = vpop.f32.mrb[0].mxu0
      %673 = vdwg.mxu0
      %v674 = vpack.c.bf16 %v671, %v668
      %v675 = vld [vmem:[%s5 + $0x4] sm:$0xf]
      %v677 = vsel %vm425, %v674, 0
      %vm679 = vcmask 1043456
      %v681 = vsel %vm679, %v675, 0
      %683 = vmatprep.subr.bf16.mxu0 0
      %684 = vmatpush1.bf16.msra.mxu0 %v681
      %685 = vmatprep.subr.bf16.mxu0 0
      %686 = vmatpush1.bf16.msra.mxu0 0
      %687 = vmatprep.subr.bf16.mxu0 0
      %688 = vmatpush1.bf16.msra.mxu0 0
      %689 = vmatprep.subr.bf16.mxu0 0
      %690 = vmatpush1.bf16.msra.mxu0 0
      %691 = vmatprep.subr.bf16.mxu0 0
      %692 = vmatpush1.bf16.msra.mxu0 0
      %693 = vmatprep.subr.bf16.mxu0 0
      %694 = vmatpush1.bf16.msra.mxu0 0
      %695 = vmatprep.subr.bf16.mxu0 0
      %696 = vmatpush1.bf16.msra.mxu0 0
      %697 = vmatprep.subr.bf16.mxu0 0
      %698 = vmatpush1.bf16.msra.mxu0 0
      %699 = vmatprep.subr.bf16.mxu0 0
      %700 = vmatpush1.bf16.msra.mxu0 0
      %701 = vmatprep.subr.bf16.mxu0 0
      %702 = vmatpush1.bf16.msra.mxu0 0
      %703 = vmatprep.subr.bf16.mxu0 0
      %704 = vmatpush1.bf16.msra.mxu0 0
      %705 = vmatprep.subr.bf16.mxu0 0
      %706 = vmatpush1.bf16.msra.mxu0 0
      %707 = vmatprep.subr.bf16.mxu0 0
      %708 = vmatpush1.bf16.msra.mxu0 0
      %709 = vmatprep.subr.bf16.mxu0 0
      %710 = vmatpush1.bf16.msra.mxu0 0
      %711 = vmatprep.subr.bf16.mxu0 0
      %712 = vmatpush1.bf16.msra.mxu0 0
      %713 = vmatprep.subr.bf16.mxu0 0
      %714 = vmatpush1.bf16.msra.mxu0 0
      %715 = vmatprep.mubr.bf16.mxu0 0
      %716 = vmatmul.mubr.bf16.gmra.mrb[0].mxu0 %v677
      %v717 = vpop.f32.mrb[0].mxu0
      %v718 = vadd.f32 0.0, %v717
      %v719 = vpop.f32.mrb[0].mxu0
      %v720 = vpop.f32.mrb[0].mxu0
      %v721 = vadd.f32 0.0, %v720
      %v722 = vpop.f32.mrb[0].mxu0
      %723 = vdwg.mxu0
      %v725 = vsel %vm425, %v546, 0
      %v728 = vsel %vm679, %v547, 0
      %730 = vmatprep.subr.bf16.mxu0 0
      %731 = vmatpush1.bf16.msra.mxu0 %v728
      %732 = vmatprep.subr.bf16.mxu0 0
      %733 = vmatpush1.bf16.msra.mxu0 0
      %734 = vmatprep.subr.bf16.mxu0 0
      %735 = vmatpush1.bf16.msra.mxu0 0
      %736 = vmatprep.subr.bf16.mxu0 0
      %737 = vmatpush1.bf16.msra.mxu0 0
      %738 = vmatprep.subr.bf16.mxu0 0
      %739 = vmatpush1.bf16.msra.mxu0 0
      %740 = vmatprep.subr.bf16.mxu0 0
      %741 = vmatpush1.bf16.msra.mxu0 0
      %742 = vmatprep.subr.bf16.mxu0 0
      %743 = vmatpush1.bf16.msra.mxu0 0
      %744 = vmatprep.subr.bf16.mxu0 0
      %745 = vmatpush1.bf16.msra.mxu0 0
      %746 = vmatprep.subr.bf16.mxu0 0
      %747 = vmatpush1.bf16.msra.mxu0 0
      %748 = vmatprep.subr.bf16.mxu0 0
      %749 = vmatpush1.bf16.msra.mxu0 0
      %750 = vmatprep.subr.bf16.mxu0 0
      %751 = vmatpush1.bf16.msra.mxu0 0
      %752 = vmatprep.subr.bf16.mxu0 0
      %753 = vmatpush1.bf16.msra.mxu0 0
      %754 = vmatprep.subr.bf16.mxu0 0
      %755 = vmatpush1.bf16.msra.mxu0 0
      %756 = vmatprep.subr.bf16.mxu0 0
      %757 = vmatpush1.bf16.msra.mxu0 0
      %758 = vmatprep.subr.bf16.mxu0 0
      %759 = vmatpush1.bf16.msra.mxu0 0
      %760 = vmatprep.subr.bf16.mxu0 0
      %761 = vmatpush1.bf16.msra.mxu0 0
      %762 = vmatprep.mubr.bf16.mxu0 0
      %763 = vmatmul.mubr.bf16.gmra.mrb[0].mxu0 %v725
      %v764 = vpop.f32.mrb[0].mxu0
      %v765 = vadd.f32 %v718, %v764
      %v766 = vpop.f32.mrb[0].mxu0
      %v767 = vpop.f32.mrb[0].mxu0
      %v768 = vadd.f32 %v721, %v767
      %v769 = vpop.f32.mrb[0].mxu0
      %770 = vdwg.mxu0
      %771 = vrot.lane.b32.xlu0 %v422, 112
      %v772 = vpop.permute.xlu0 %771
      %773 = vrot.lane.b32.xlu0 %v423, 112
      %v774 = vpop.permute.xlu0 %773
      %v776 = vsel %vm425, %v772, 0
      %v779 = vsel %vm425, %v774, 0
      %781 = vmatprep.subr.bf16.mxu0 0
      %782 = vmatpush1.bf16.xpose.msra.mxu0 %v779
      %783 = vmatprep.subr.bf16.mxu0 0
      %784 = vmatpush1.bf16.xpose.msra.mxu0 0
      %785 = vmatprep.subr.bf16.mxu0 0
      %786 = vmatpush1.bf16.xpose.msra.mxu0 0
      %787 = vmatprep.subr.bf16.mxu0 0
      %788 = vmatpush1.bf16.xpose.msra.mxu0 0
      %789 = vmatprep.subr.bf16.mxu0 0
      %790 = vmatpush1.bf16.xpose.msra.mxu0 0
      %791 = vmatprep.subr.bf16.mxu0 0
      %792 = vmatpush1.bf16.xpose.msra.mxu0 0
      %793 = vmatprep.subr.bf16.mxu0 0
      %794 = vmatpush1.bf16.xpose.msra.mxu0 0
      %795 = vmatprep.subr.bf16.mxu0 0
      %796 = vmatpush1.bf16.xpose.msra.mxu0 0
      %797 = vmatprep.subr.bf16.mxu0 0
      %798 = vmatpush1.bf16.xpose.msra.mxu0 0
      %799 = vmatprep.subr.bf16.mxu0 0
      %800 = vmatpush1.bf16.xpose.msra.mxu0 0
      %801 = vmatprep.subr.bf16.mxu0 0
      %802 = vmatpush1.bf16.xpose.msra.mxu0 0
      %803 = vmatprep.subr.bf16.mxu0 0
      %804 = vmatpush1.bf16.xpose.msra.mxu0 0
      %805 = vmatprep.subr.bf16.mxu0 0
      %806 = vmatpush1.bf16.xpose.msra.mxu0 0
      %807 = vmatprep.subr.bf16.mxu0 0
      %808 = vmatpush1.bf16.xpose.msra.mxu0 0
      %809 = vmatprep.subr.bf16.mxu0 0
      %810 = vmatpush1.bf16.xpose.msra.mxu0 0
      %811 = vmatprep.subr.bf16.mxu0 0
      %812 = vmatpush1.bf16.xpose.msra.mxu0 0
      %813 = vmatprep.mubr.bf16.mxu0 0
      %814 = vmatmul.mubr.bf16.gmra.mrb[0].mxu0 %v776
      %v815 = vpop.f32.mrb[0].mxu0
      %v816 = vadd.f32 %v420, %v815
      %v817 = vpop.f32.mrb[0].mxu0
      %v818 = vpop.f32.mrb[0].mxu0
      %v819 = vadd.f32 %v421, %v818
      %v820 = vpop.f32.mrb[0].mxu0
      %821 = vdwg.mxu0
      %v822 = vsel %vm473, %v816, -inf
      %823 = vmax.xlane.f32.xlu0 %v822
      %v824 = vpop.xlane.xlu0 %823
      %v825 = vsel %vm477, %v819, -inf
      %826 = vmax.xlane.f32.xlu0 %v825
      %v827 = vpop.xlane.xlu0 %826
      %v828 = vsub.f32 %v816, %v824
      %v829 = vsub.f32 %v819, %v827
      %v830 = vmul.f32 %v828, 1.442695
      %v831 = vpow.pop %v830
      %v832 = vmul.f32 %v829, 1.442695
      %v833 = vpow.pop %v832
      %v834 = vsel %vm473, %v831, 0.0
      %835 = vadd.xlane.f32.xlu0 %v834
      %v836 = vpop.xlane.xlu0 %835
      %v837 = vsel %vm477, %v833, 0.0
      %838 = vadd.xlane.f32.xlu0 %v837
      %v839 = vpop.xlane.xlu0 %838
      %v840 = vrcp.pop %v836
      %v841 = vrcp.pop %v839
      %v842 = vmul.f32 %v831, %v840
      %v843 = vmul.f32 %v833, %v841
      %v844 = vpack.c.bf16 %v843, %v842
      %845 = vrot.lane.b32.xlu0 %v424, 112
      %v846 = vpop.permute.xlu0 %845
      %v848 = vsel %vm473, %v844, 0
      %v851 = vsel %vm501, %v846, 0
      %853 = vmatprep.subr.bf16.mxu0 0
      %854 = vmatpush1.bf16.msra.mxu0 %v851
      %855 = vmatprep.subr.bf16.mxu0 0
      %856 = vmatpush1.bf16.msra.mxu0 0
      %857 = vmatprep.subr.bf16.mxu0 0
      %858 = vmatpush1.bf16.msra.mxu0 0
      %859 = vmatprep.subr.bf16.mxu0 0
      %860 = vmatpush1.bf16.msra.mxu0 0
      %861 = vmatprep.subr.bf16.mxu0 0
      %862 = vmatpush1.bf16.msra.mxu0 0
      %863 = vmatprep.subr.bf16.mxu0 0
      %864 = vmatpush1.bf16.msra.mxu0 0
      %865 = vmatprep.subr.bf16.mxu0 0
      %866 = vmatpush1.bf16.msra.mxu0 0
      %867 = vmatprep.subr.bf16.mxu0 0
      %868 = vmatpush1.bf16.msra.mxu0 0
      %869 = vmatprep.subr.bf16.mxu0 0
      %870 = vmatpush1.bf16.msra.mxu0 0
      %871 = vmatprep.subr.bf16.mxu0 0
      %872 = vmatpush1.bf16.msra.mxu0 0
      %873 = vmatprep.subr.bf16.mxu0 0
      %874 = vmatpush1.bf16.msra.mxu0 0
      %875 = vmatprep.subr.bf16.mxu0 0
      %876 = vmatpush1.bf16.msra.mxu0 0
      %877 = vmatprep.subr.bf16.mxu0 0
      %878 = vmatpush1.bf16.msra.mxu0 0
      %879 = vmatprep.subr.bf16.mxu0 0
      %880 = vmatpush1.bf16.msra.mxu0 0
      %881 = vmatprep.subr.bf16.mxu0 0
      %882 = vmatpush1.bf16.msra.mxu0 0
      %883 = vmatprep.subr.bf16.mxu0 0
      %884 = vmatpush1.bf16.msra.mxu0 0
      %885 = vmatprep.mubr.bf16.mxu0 0
      %886 = vmatmul.mubr.bf16.gmra.mrb[0].mxu0 %v848
      %v887 = vpop.f32.mrb[0].mxu0
      %v888 = vadd.f32 0.0, %v887
      %v889 = vpop.f32.mrb[0].mxu0
      %v890 = vpop.f32.mrb[0].mxu0
      %v891 = vadd.f32 0.0, %v890
      %v892 = vpop.f32.mrb[0].mxu0
      %893 = vdwg.mxu0
      %v894 = vpack.c.bf16 %v891, %v888
      %v895 = vld [vmem:[%s5 + $0x8] sm:$0xf]
      %v897 = vsel %vm425, %v894, 0
      %v900 = vsel %vm679, %v895, 0
      %902 = vmatprep.subr.bf16.mxu0 0
      %903 = vmatpush1.bf16.msra.mxu0 %v900
      %904 = vmatprep.subr.bf16.mxu0 0
      %905 = vmatpush1.bf16.msra.mxu0 0
      %906 = vmatprep.subr.bf16.mxu0 0
      %907 = vmatpush1.bf16.msra.mxu0 0
      %908 = vmatprep.subr.bf16.mxu0 0
      %909 = vmatpush1.bf16.msra.mxu0 0
      %910 = vmatprep.subr.bf16.mxu0 0
      %911 = vmatpush1.bf16.msra.mxu0 0
      %912 = vmatprep.subr.bf16.mxu0 0
      %913 = vmatpush1.bf16.msra.mxu0 0
      %914 = vmatprep.subr.bf16.mxu0 0
      %915 = vmatpush1.bf16.msra.mxu0 0
      %916 = vmatprep.subr.bf16.mxu0 0
      %917 = vmatpush1.bf16.msra.mxu0 0
      %918 = vmatprep.subr.bf16.mxu0 0
      %919 = vmatpush1.bf16.msra.mxu0 0
      %920 = vmatprep.subr.bf16.mxu0 0
      %921 = vmatpush1.bf16.msra.mxu0 0
      %922 = vmatprep.subr.bf16.mxu0 0
      %923 = vmatpush1.bf16.msra.mxu0 0
      %924 = vmatprep.subr.bf16.mxu0 0
      %925 = vmatpush1.bf16.msra.mxu0 0
      %926 = vmatprep.subr.bf16.mxu0 0
      %927 = vmatpush1.bf16.msra.mxu0 0
      %928 = vmatprep.subr.bf16.mxu0 0
      %929 = vmatpush1.bf16.msra.mxu0 0
      %930 = vmatprep.subr.bf16.mxu0 0
      %931 = vmatpush1.bf16.msra.mxu0 0
      %932 = vmatprep.subr.bf16.mxu0 0
      %933 = vmatpush1.bf16.msra.mxu0 0
      %934 = vmatprep.mubr.bf16.mxu0 0
      %935 = vmatmul.mubr.bf16.gmra.mrb[0].mxu0 %v897
      %v936 = vpop.f32.mrb[0].mxu0
      %v937 = vadd.f32 0.0, %v936
      %v938 = vpop.f32.mrb[0].mxu0
      %v939 = vpop.f32.mrb[0].mxu0
      %v940 = vadd.f32 0.0, %v939
      %v941 = vpop.f32.mrb[0].mxu0
      %942 = vdwg.mxu0
      %v943 = vadd.f32 %v765, %v937
      %v944 = vadd.f32 %v768, %v940
      %945 = vrot.lane.b32.xlu0 %v422, 104
      %v946 = vpop.permute.xlu0 %945
      %947 = vrot.lane.b32.xlu0 %v423, 104
      %v948 = vpop.permute.xlu0 %947
      %v950 = vsel %vm425, %v946, 0
      %v953 = vsel %vm425, %v948, 0
      %955 = vmatprep.subr.bf16.mxu0 0
      %956 = vmatpush1.bf16.xpose.msra.mxu0 %v953
      %957 = vmatprep.subr.bf16.mxu0 0
      %958 = vmatpush1.bf16.xpose.msra.mxu0 0
      %959 = vmatprep.subr.bf16.mxu0 0
      %960 = vmatpush1.bf16.xpose.msra.mxu0 0
      %961 = vmatprep.subr.bf16.mxu0 0
      %962 = vmatpush1.bf16.xpose.msra.mxu0 0
      %963 = vmatprep.subr.bf16.mxu0 0
      %964 = vmatpush1.bf16.xpose.msra.mxu0 0
      %965 = vmatprep.subr.bf16.mxu0 0
      %966 = vmatpush1.bf16.xpose.msra.mxu0 0
      %967 = vmatprep.subr.bf16.mxu0 0
      %968 = vmatpush1.bf16.xpose.msra.mxu0 0
      %969 = vmatprep.subr.bf16.mxu0 0
      %970 = vmatpush1.bf16.xpose.msra.mxu0 0
      %971 = vmatprep.subr.bf16.mxu0 0
      %972 = vmatpush1.bf16.xpose.msra.mxu0 0
      %973 = vmatprep.subr.bf16.mxu0 0
      %974 = vmatpush1.bf16.xpose.msra.mxu0 0
      %975 = vmatprep.subr.bf16.mxu0 0
      %976 = vmatpush1.bf16.xpose.msra.mxu0 0
      %977 = vmatprep.subr.bf16.mxu0 0
      %978 = vmatpush1.bf16.xpose.msra.mxu0 0
      %979 = vmatprep.subr.bf16.mxu0 0
      %980 = vmatpush1.bf16.xpose.msra.mxu0 0
      %981 = vmatprep.subr.bf16.mxu0 0
      %982 = vmatpush1.bf16.xpose.msra.mxu0 0
      %983 = vmatprep.subr.bf16.mxu0 0
      %984 = vmatpush1.bf16.xpose.msra.mxu0 0
      %985 = vmatprep.subr.bf16.mxu0 0
      %986 = vmatpush1.bf16.xpose.msra.mxu0 0
      %987 = vmatprep.mubr.bf16.mxu0 0
      %988 = vmatmul.mubr.bf16.gmra.mrb[0].mxu0 %v950
      %v989 = vpop.f32.mrb[0].mxu0
      %v990 = vadd.f32 %v420, %v989
      %v991 = vpop.f32.mrb[0].mxu0
      %v992 = vpop.f32.mrb[0].mxu0
      %v993 = vadd.f32 %v421, %v992
      %v994 = vpop.f32.mrb[0].mxu0
      %995 = vdwg.mxu0
      %v996 = vsel %vm473, %v990, -inf
      %997 = vmax.xlane.f32.xlu0 %v996
      %v998 = vpop.xlane.xlu0 %997
      %v999 = vsel %vm477, %v993, -inf
      %1000 = vmax.xlane.f32.xlu0 %v999
      %v1001 = vpop.xlane.xlu0 %1000
      %v1002 = vsub.f32 %v990, %v998
      %v1003 = vsub.f32 %v993, %v1001
      %v1004 = vmul.f32 %v1002, 1.442695
      %v1005 = vpow.pop %v1004
      %v1006 = vmul.f32 %v1003, 1.442695
      %v1007 = vpow.pop %v1006
      %v1008 = vsel %vm473, %v1005, 0.0
      %1009 = vadd.xlane.f32.xlu0 %v1008
      %v1010 = vpop.xlane.xlu0 %1009
      %v1011 = vsel %vm477, %v1007, 0.0
      %1012 = vadd.xlane.f32.xlu0 %v1011
      %v1013 = vpop.xlane.xlu0 %1012
      %v1014 = vrcp.pop %v1010
      %v1015 = vrcp.pop %v1013
      %v1016 = vmul.f32 %v1005, %v1014
      %v1017 = vmul.f32 %v1007, %v1015
      %v1018 = vpack.c.bf16 %v1017, %v1016
      %1019 = vrot.lane.b32.xlu0 %v424, 104
      %v1020 = vpop.permute.xlu0 %1019
      %v1022 = vsel %vm473, %v1018, 0
      %v1025 = vsel %vm501, %v1020, 0
      %1027 = vmatprep.subr.bf16.mxu0 0
      %1028 = vmatpush1.bf16.msra.mxu0 %v1025
      %1029 = vmatprep.subr.bf16.mxu0 0
      %1030 = vmatpush1.bf16.msra.mxu0 0
      %1031 = vmatprep.subr.bf16.mxu0 0
      %1032 = vmatpush1.bf16.msra.mxu0 0
      %1033 = vmatprep.subr.bf16.mxu0 0
      %1034 = vmatpush1.bf16.msra.mxu0 0
      %1035 = vmatprep.subr.bf16.mxu0 0
      %1036 = vmatpush1.bf16.msra.mxu0 0
      %1037 = vmatprep.subr.bf16.mxu0 0
      %1038 = vmatpush1.bf16.msra.mxu0 0
      %1039 = vmatprep.subr.bf16.mxu0 0
      %1040 = vmatpush1.bf16.msra.mxu0 0
      %1041 = vmatprep.subr.bf16.mxu0 0
      %1042 = vmatpush1.bf16.msra.mxu0 0
      %1043 = vmatprep.subr.bf16.mxu0 0
      %1044 = vmatpush1.bf16.msra.mxu0 0
      %1045 = vmatprep.subr.bf16.mxu0 0
      %1046 = vmatpush1.bf16.msra.mxu0 0
      %1047 = vmatprep.subr.bf16.mxu0 0
      %1048 = vmatpush1.bf16.msra.mxu0 0
      %1049 = vmatprep.subr.bf16.mxu0 0
      %1050 = vmatpush1.bf16.msra.mxu0 0
      %1051 = vmatprep.subr.bf16.mxu0 0
      %1052 = vmatpush1.bf16.msra.mxu0 0
      %1053 = vmatprep.subr.bf16.mxu0 0
      %1054 = vmatpush1.bf16.msra.mxu0 0
      %1055 = vmatprep.subr.bf16.mxu0 0
      %1056 = vmatpush1.bf16.msra.mxu0 0
      %1057 = vmatprep.subr.bf16.mxu0 0
      %1058 = vmatpush1.bf16.msra.mxu0 0
      %1059 = vmatprep.mubr.bf16.mxu0 0
      %1060 = vmatmul.mubr.bf16.gmra.mrb[0].mxu0 %v1022
      %v1061 = vpop.f32.mrb[0].mxu0
      %v1062 = vadd.f32 0.0, %v1061
      %v1063 = vpop.f32.mrb[0].mxu0
      %v1064 = vpop.f32.mrb[0].mxu0
      %v1065 = vadd.f32 0.0, %v1064
      %v1066 = vpop.f32.mrb[0].mxu0
      %1067 = vdwg.mxu0
      %v1068 = vpack.c.bf16 %v1065, %v1062
      %v1069 = vld [vmem:[%s5 + $0xc] sm:$0xf]
      %v1071 = vsel %vm425, %v1068, 0
      %v1074 = vsel %vm679, %v1069, 0
      %1076 = vmatprep.subr.bf16.mxu0 0
      %1077 = vmatpush1.bf16.msra.mxu0 %v1074
      %1078 = vmatprep.subr.bf16.mxu0 0
      %1079 = vmatpush1.bf16.msra.mxu0 0
      %1080 = vmatprep.subr.bf16.mxu0 0
      %1081 = vmatpush1.bf16.msra.mxu0 0
      %1082 = vmatprep.subr.bf16.mxu0 0
      %1083 = vmatpush1.bf16.msra.mxu0 0
      %1084 = vmatprep.subr.bf16.mxu0 0
      %1085 = vmatpush1.bf16.msra.mxu0 0
      %1086 = vmatprep.subr.bf16.mxu0 0
      %1087 = vmatpush1.bf16.msra.mxu0 0
      %1088 = vmatprep.subr.bf16.mxu0 0
      %1089 = vmatpush1.bf16.msra.mxu0 0
      %1090 = vmatprep.subr.bf16.mxu0 0
      %1091 = vmatpush1.bf16.msra.mxu0 0
      %1092 = vmatprep.subr.bf16.mxu0 0
      %1093 = vmatpush1.bf16.msra.mxu0 0
      %1094 = vmatprep.subr.bf16.mxu0 0
      %1095 = vmatpush1.bf16.msra.mxu0 0
      %1096 = vmatprep.subr.bf16.mxu0 0
      %1097 = vmatpush1.bf16.msra.mxu0 0
      %1098 = vmatprep.subr.bf16.mxu0 0
      %1099 = vmatpush1.bf16.msra.mxu0 0
      %1100 = vmatprep.subr.bf16.mxu0 0
      %1101 = vmatpush1.bf16.msra.mxu0 0
      %1102 = vmatprep.subr.bf16.mxu0 0
      %1103 = vmatpush1.bf16.msra.mxu0 0
      %1104 = vmatprep.subr.bf16.mxu0 0
      %1105 = vmatpush1.bf16.msra.mxu0 0
      %1106 = vmatprep.subr.bf16.mxu0 0
      %1107 = vmatpush1.bf16.msra.mxu0 0
      %1108 = vmatprep.mubr.bf16.mxu0 0
      %1109 = vmatmul.mubr.bf16.gmra.mrb[0].mxu0 %v1071
      %v1110 = vpop.f32.mrb[0].mxu0
      %v1111 = vadd.f32 0.0, %v1110
      %v1112 = vpop.f32.mrb[0].mxu0
      %v1113 = vpop.f32.mrb[0].mxu0
      %v1114 = vadd.f32 0.0, %v1113
      %v1115 = vpop.f32.mrb[0].mxu0
      %1116 = vdwg.mxu0
      %v1117 = vadd.f32 %v943, %v1111
      %v1118 = vadd.f32 %v944, %v1114
      %v1119 = vld [vmem:[%s407] sm:$0xff]
      %v1120 = vld [vmem:[%s407 + $0x8] sm:$0xf]
      %v1121 = vadd.f32 %v1119, %v1117
      %v1122 = vadd.f32 %v1120, %v1118
      %v1123 = vld [vmem:[%s6] sm:$0x1]
      %v1125 = vlaneseq
      %v1126 = vshrl.u32 %v1125, 7
      %v1127 = vsub.s32 0, %v1126
      %v1128 = vrot.slane %v1123, %v1127
      %v1130 = vadd.f32 %v1121, %v1128
      %v1131 = vadd.f32 %v1122, %v1128
      %vm1132 = vcmask 261120
      %v1133 = vsel %vm1132, %v1130, 0.0
      %1134 = vadd.xlane.f32.xlu0 %v1133
      %v1135 = vpop.xlane.xlu0 %1134
      %vm1136 = vcmask 257024
      %v1137 = vsel %vm1136, %v1131, 0.0
      %1138 = vadd.xlane.f32.xlu0 %v1137
      %v1139 = vpop.xlane.xlu0 %1138
      %v1140 = vrcp.pop 32.0
      %v1141 = vmul.f32 %v1135, %v1140
      %v1142 = vmul.f32 %v1139, %v1140
      %v1143 = vsub.f32 %v1130, %v1141
      %v1144 = vsub.f32 %v1131, %v1142
      %v1145 = vmul.f32 %v1143, %v1143
      %v1146 = vmul.f32 %v1144, %v1144
      %v1147 = vsel %vm1132, %v1145, 0.0
      %1148 = vadd.xlane.f32.xlu0 %v1147
      %v1149 = vpop.xlane.xlu0 %1148
      %v1150 = vsel %vm1136, %v1146, 0.0
      %1151 = vadd.xlane.f32.xlu0 %v1150
      %v1152 = vpop.xlane.xlu0 %1151
      %v1153 = vmul.f32 %v1149, %v1140
      %v1154 = vmul.f32 %v1152, %v1140
      %v1155 = vadd.f32 %v1153, 1e-05
      %v1156 = vadd.f32 %v1154, 1e-05
      %v1157 = vrsqrt.pop %v1155
      %v1158 = vrsqrt.pop %v1156
      %v1159 = vmul.f32 %v1143, %v1157
      %v1160 = vmul.f32 %v1144, %v1158
      %v1161 = vld [vmem:[%s7] sm:$0x1]
      %v1163 = vlaneseq
      %v1164 = vshrl.u32 %v1163, 7
      %v1165 = vsub.s32 0, %v1164
      %v1166 = vrot.slane %v1161, %v1165
      %v1168 = vmul.f32 %v1159, %v1166
      %v1169 = vmul.f32 %v1160, %v1166
      %v1170 = vld [vmem:[%s8] sm:$0x1]
      %v1172 = vlaneseq
      %v1173 = vshrl.u32 %v1172, 7
      %v1174 = vsub.s32 0, %v1173
      %v1175 = vrot.slane %v1170, %v1174
      %v1177 = vadd.f32 %v1168, %v1175
      %v1178 = vadd.f32 %v1169, %v1175
      %1179 = vst.msk [vmem:[%s412] sm:$0xff] %vm1132, %v1177
      %1180 = vst.msk [vmem:[%s412 + $0x8] sm:$0xf] %vm1136, %v1178
      %p1181 = scmp.lt.s32.totalorder %s20, 1
      %s1182 = scalar_select %p1181, %s20, 1
      %s1183 = smul.addr %s1182, 2
      %s1184 = smul.addr %s1183, 8
      %s1185 = scalar_lea.vmem %s9, %s1184
      // Predicated region
      $region57: #{transformer_forward.20} parent=55 // pred_check
        %p1186 = pneg %p252
      $region58: #{transformer_forward.20} parent=55 // pred_check_branch
        %1188 = sbr.rel (%p1186) target = $region60
      $region59: #{transformer_forward.20} parent=55 // pred_region
        _
      $region60: #{transformer_forward.20} parent=55 // pred_fallthru
        _
    $region56: #{transformer_forward.20} parent=5 // pred_fallthru
      _
    %p1189 = scmp.le.s32.totalorder 2, %s15
    // Predicated region
    $region61: #{transformer_forward.20} parent=5 // pred_check
      %p1190 = pneg %p1189
    $region62: #{transformer_forward.20} parent=5 // pred_check_branch
      %1192 = sbr.rel (%p1190) target = $region64
    $region63: #{transformer_forward.20} parent=5 // pred_region
      %s1193 = ssub.s32 %s15, 2
      // Predicated region
      $region65: #{transformer_forward.20} parent=63 // pred_check
        %p1194 = pneg %p258
      $region66: #{transformer_forward.20} parent=63 // pred_check_branch
        %1196 = sbr.rel (%p1194) target = $region68
      $region67: #{transformer_forward.20} parent=63 // pred_region
        %p1197 = scmp.lt.s32.totalorder %s21, 1
        %s1198 = scalar_select %p1197, %s21, 1
        %s1199 = smul.addr %s1198, 2
        %s1200 = smul.addr %s1199, 8
        %s1201 = scalar_lea.vmem %s9, %s1200
      $region68: #{transformer_forward.20} parent=63 // pred_fallthru
        _
    $region64: #{transformer_forward.20} parent=5 // pred_fallthru
      _
  $region6: #{transformer_forward.20} parent=0 // loop_footer
    %s19 = sadd.s32 1, %s15
  $region7: #{transformer_forward.20} parent=0 // loop_footer_branch
    %14 = sbr.rel target = $region3
  $region8: #{transformer_forward.20} parent=0 // loop_exit
    _

// kernel: transformer_forward.25
$region0: #{transformer_forward.25}
  #allocation0 [shape = 'u32[]', space=smem, size = 0x4, offset = 0x4, fixed_abs, tag = 'smem constant byte address 0x4 - core index']
  #allocation1 [shape = 'u32[144,128]{1,0:T(1,128)}', space=vmem, size = 0x12000, scoped, tag = 'internal scratch']
  %s0 = inlined_call_operand.vmem [shape: f32[16,32], index: 0, kind: input, shape index: {}]
  %s1 = inlined_call_operand.vmem [shape: bf16[32,96], index: 1, kind: input, shape index: {}]
  %s2 = inlined_call_operand.vmem [shape: f32[1,96], index: 2, kind: input, shape index: {}]
  %s3 = inlined_call_operand.vmem [shape: f32[16,96], index: 3, kind: output, shape index: {}]
  %s4 = sld [smem:[#allocation0]]
  $region22: #{transformer_forward.25} parent=0
    _
  %s6 = ssub.s32 1, %s4
  %s7 = scalar_select 0, %s6, %s4
  // Predicated region
  $region2: #{transformer_forward.25} parent=0 // pred_check
    _
  $region3: #{transformer_forward.25} parent=0 // pred_check_branch
    %9 = sbr.rel (0) target = $region5
  $region4: #{transformer_forward.25} parent=0 // pred_region
    _
  $region5: #{transformer_forward.25} parent=0 // pred_fallthru
    _
  // Predicated region
  $region6: #{transformer_forward.25} parent=0 // pred_check
    _
  $region7: #{transformer_forward.25} parent=0 // pred_check_branch
    %11 = sbr.rel (0) target = $region9
  $region8: #{transformer_forward.25} parent=0 // pred_region
    _
  $region9: #{transformer_forward.25} parent=0 // pred_fallthru
    _
  // Predicated region
  $region10: #{transformer_forward.25} parent=0 // pred_check
    _
  $region11: #{transformer_forward.25} parent=0 // pred_check_branch
    %13 = sbr.rel (0) target = $region13
  $region12: #{transformer_forward.25} parent=0 // pred_region
    _
  $region13: #{transformer_forward.25} parent=0 // pred_fallthru
    _
  %v15 = vld [vmem:[%s0] sm:$0xff]
  %v16 = vld [vmem:[%s0 + $0x8] sm:$0xff]
  %v17 = vpack.c.bf16 %v16, %v15
  %v18 = vld [vmem:[%s1] sm:$0xf]
  %v19 = vld [vmem:[%s1 + $0x4] sm:$0xf]
  %v20 = vld [vmem:[%s1 + $0x8] sm:$0xf]
  %v21 = vld [vmem:[%s1 + $0xc] sm:$0xf]
  %v22 = vld [vmem:[%s2] sm:$0x1]
  %v24 = vlaneseq
  %v25 = vshrl.u32 %v24, 7
  %v26 = vsub.s32 0, %v25
  %v27 = vrot.slane %v22, %v26
  %v33 = vunpack.c.l.b16 %v18
  %v34 = vunpack.c.l.b16 %v19
  %v35 = vunpack.c.l.b16 %v20
  %v36 = vunpack.c.l.b16 %v21
  %v37 = vpack.c.b16 %v34, %v33
  %v38 = vpack.c.b16 %v36, %v35
  %vm41 = vcmask 261120
  %v43 = vsel %vm41, %v17, 0
  %45 = vmatprep.subr.bf16.mxu0 0
  %46 = vmatpush1.bf16.msra.mxu0 %v37
  %47 = vmatprep.subr.bf16.mxu0 0
  %48 = vmatpush1.bf16.msra.mxu0 %v38
  %49 = vmatprep.subr.bf16.mxu0 0
  %50 = vmatpush1.bf16.msra.mxu0 0
  %51 = vmatprep.subr.bf16.mxu0 0
  %52 = vmatpush1.bf16.msra.mxu0 0
  %53 = vmatprep.subr.bf16.mxu0 0
  %54 = vmatpush1.bf16.msra.mxu0 0
  %55 = vmatprep.subr.bf16.mxu0 0
  %56 = vmatpush1.bf16.msra.mxu0 0
  %57 = vmatprep.subr.bf16.mxu0 0
  %58 = vmatpush1.bf16.msra.mxu0 0
  %59 = vmatprep.subr.bf16.mxu0 0
  %60 = vmatpush1.bf16.msra.mxu0 0
  %61 = vmatprep.subr.bf16.mxu0 0
  %62 = vmatpush1.bf16.msra.mxu0 0
  %63 = vmatprep.subr.bf16.mxu0 0
  %64 = vmatpush1.bf16.msra.mxu0 0
  %65 = vmatprep.subr.bf16.mxu0 0
  %66 = vmatpush1.bf16.msra.mxu0 0
  %67 = vmatprep.subr.bf16.mxu0 0
  %68 = vmatpush1.bf16.msra.mxu0 0
  %69 = vmatprep.subr.bf16.mxu0 0
  %70 = vmatpush1.bf16.msra.mxu0 0
  %71 = vmatprep.subr.bf16.mxu0 0
  %72 = vmatpush1.bf16.msra.mxu0 0
  %73 = vmatprep.subr.bf16.mxu0 0
  %74 = vmatpush1.bf16.msra.mxu0 0
  %75 = vmatprep.subr.bf16.mxu0 0
  %76 = vmatpush1.bf16.msra.mxu0 0
  %77 = vmatprep.mubr.bf16.mxu0 0
  %78 = vmatmul.mubr.bf16.gmra.mrb[0].mxu0 %v43
  %v79 = vpop.f32.mrb[0].mxu0
  %v80 = vadd.f32 %v27, %v79
  %v81 = vpop.f32.mrb[0].mxu0
  %v82 = vpop.f32.mrb[0].mxu0
  %v83 = vadd.f32 %v27, %v82
  %v84 = vpop.f32.mrb[0].mxu0
  %85 = vdwg.mxu0
  %vm86 = vcmask 785408
  %87 = vst.msk [vmem:[%s3] sm:$0xff] %vm86, %v80
  %88 = vst.msk [vmem:[%s3 + $0x8] sm:$0xff] %vm86, %v83
  // Predicated region
  $region14: #{transformer_forward.25} parent=0 // pred_check
    _
  $region15: #{transformer_forward.25} parent=0 // pred_check_branch
    %90 = sbr.rel (0) target = $region17
  $region16: #{transformer_forward.25} parent=0 // pred_region
    _
  $region17: #{transformer_forward.25} parent=0 // pred_fallthru
    _
  // Predicated region
  $region18: #{transformer_forward.25} parent=0 // pred_check
    _
  $region19: #{transformer_forward.25} parent=0 // pred_check_branch
    %92 = sbr.rel (0) target = $region21
  $region20: #{transformer_forward.25} parent=0 // pred_region
    _
  $region21: #{transformer_forward.25} parent=0 // pred_fallthru
    _

// kernel: transformer_forward.27
$region0: #{transformer_forward.27}
  #allocation0 [shape = 'u32[]', space=smem, size = 0x4, offset = 0x4, fixed_abs, tag = 'smem constant byte address 0x4 - core index']
  #allocation1 [shape = 'u32[144,128]{1,0:T(1,128)}', space=vmem, size = 0x12000, scoped, tag = 'internal scratch']
  %s0 = inlined_call_operand.vmem [shape: f32[16,32], index: 0, kind: input, shape index: {}]
  %s1 = inlined_call_operand.vmem [shape: bf16[32,32], index: 1, kind: input, shape index: {}]
  %s2 = inlined_call_operand.vmem [shape: f32[1,32], index: 2, kind: input, shape index: {}]
  %s3 = inlined_call_operand.vmem [shape: f32[16,32], index: 3, kind: output, shape index: {}]
  %s4 = sld [smem:[#allocation0]]
  $region22: #{transformer_forward.27} parent=0
    _
  %s6 = ssub.s32 1, %s4
  %s7 = scalar_select 0, %s6, %s4
  // Predicated region
  $region2: #{transformer_forward.27} parent=0 // pred_check
    _
  $region3: #{transformer_forward.27} parent=0 // pred_check_branch
    %9 = sbr.rel (0) target = $region5
  $region4: #{transformer_forward.27} parent=0 // pred_region
    _
  $region5: #{transformer_forward.27} parent=0 // pred_fallthru
    _
  // Predicated region
  $region6: #{transformer_forward.27} parent=0 // pred_check
    _
  $region7: #{transformer_forward.27} parent=0 // pred_check_branch
    %11 = sbr.rel (0) target = $region9
  $region8: #{transformer_forward.27} parent=0 // pred_region
    _
  $region9: #{transformer_forward.27} parent=0 // pred_fallthru
    _
  // Predicated region
  $region10: #{transformer_forward.27} parent=0 // pred_check
    _
  $region11: #{transformer_forward.27} parent=0 // pred_check_branch
    %13 = sbr.rel (0) target = $region13
  $region12: #{transformer_forward.27} parent=0 // pred_region
    _
  $region13: #{transformer_forward.27} parent=0 // pred_fallthru
    _
  %v15 = vld [vmem:[%s0] sm:$0xff]
  %v16 = vld [vmem:[%s0 + $0x8] sm:$0xff]
  %v17 = vpack.c.bf16 %v16, %v15
  %v18 = vld [vmem:[%s1] sm:$0xf]
  %v19 = vld [vmem:[%s1 + $0x4] sm:$0xf]
  %v20 = vld [vmem:[%s1 + $0x8] sm:$0xf]
  %v21 = vld [vmem:[%s1 + $0xc] sm:$0xf]
  %v22 = vld [vmem:[%s2] sm:$0x1]
  %v24 = vlaneseq
  %v25 = vshrl.u32 %v24, 7
  %v26 = vsub.s32 0, %v25
  %v27 = vrot.slane %v22, %v26
  %v33 = vunpack.c.l.b16 %v18
  %v34 = vunpack.c.l.b16 %v19
  %v35 = vunpack.c.l.b16 %v20
  %v36 = vunpack.c.l.b16 %v21
  %v37 = vpack.c.b16 %v34, %v33
  %v38 = vpack.c.b16 %v36, %v35
  %vm41 = vcmask 261120
  %v43 = vsel %vm41, %v17, 0
  %45 = vmatprep.subr.bf16.mxu0 0
  %46 = vmatpush1.bf16.msra.mxu0 %v37
  %47 = vmatprep.subr.bf16.mxu0 0
  %48 = vmatpush1.bf16.msra.mxu0 %v38
  %49 = vmatprep.subr.bf16.mxu0 0
  %50 = vmatpush1.bf16.msra.mxu0 0
  %51 = vmatprep.subr.bf16.mxu0 0
  %52 = vmatpush1.bf16.msra.mxu0 0
  %53 = vmatprep.subr.bf16.mxu0 0
  %54 = vmatpush1.bf16.msra.mxu0 0
  %55 = vmatprep.subr.bf16.mxu0 0
  %56 = vmatpush1.bf16.msra.mxu0 0
  %57 = vmatprep.subr.bf16.mxu0 0
  %58 = vmatpush1.bf16.msra.mxu0 0
  %59 = vmatprep.subr.bf16.mxu0 0
  %60 = vmatpush1.bf16.msra.mxu0 0
  %61 = vmatprep.subr.bf16.mxu0 0
  %62 = vmatpush1.bf16.msra.mxu0 0
  %63 = vmatprep.subr.bf16.mxu0 0
  %64 = vmatpush1.bf16.msra.mxu0 0
  %65 = vmatprep.subr.bf16.mxu0 0
  %66 = vmatpush1.bf16.msra.mxu0 0
  %67 = vmatprep.subr.bf16.mxu0 0
  %68 = vmatpush1.bf16.msra.mxu0 0
  %69 = vmatprep.subr.bf16.mxu0 0
  %70 = vmatpush1.bf16.msra.mxu0 0
  %71 = vmatprep.subr.bf16.mxu0 0
  %72 = vmatpush1.bf16.msra.mxu0 0
  %73 = vmatprep.subr.bf16.mxu0 0
  %74 = vmatpush1.bf16.msra.mxu0 0
  %75 = vmatprep.subr.bf16.mxu0 0
  %76 = vmatpush1.bf16.msra.mxu0 0
  %77 = vmatprep.mubr.bf16.mxu0 0
  %78 = vmatmul.mubr.bf16.gmra.mrb[0].mxu0 %v43
  %v79 = vpop.f32.mrb[0].mxu0
  %v80 = vadd.f32 %v27, %v79
  %v81 = vpop.f32.mrb[0].mxu0
  %v82 = vpop.f32.mrb[0].mxu0
  %v83 = vadd.f32 %v27, %v82
  %v84 = vpop.f32.mrb[0].mxu0
  %85 = vdwg.mxu0
  %86 = vst.msk [vmem:[%s3] sm:$0xff] %vm41, %v80
  %87 = vst.msk [vmem:[%s3 + $0x8] sm:$0xff] %vm41, %v83
  // Predicated region
  $region14: #{transformer_forward.27} parent=0 // pred_check
    _
  $region15: #{transformer_forward.27} parent=0 // pred_check_branch
    %89 = sbr.rel (0) target = $region17
  $region16: #{transformer_forward.27} parent=0 // pred_region
    _
  $region17: #{transformer_forward.27} parent=0 // pred_fallthru
    _
  // Predicated region
  $region18: #{transformer_forward.27} parent=0 // pred_check
    _
  $region19: #{transformer_forward.27} parent=0 // pred_check_branch
    %91 = sbr.rel (0) target = $region21
  $region20: #{transformer_forward.27} parent=0 // pred_region
    _
  $region21: #{transformer_forward.27} parent=0 // pred_fallthru
    _

// kernel: transformer_forward.26
$region0: #{transformer_forward.26}
  #allocation0 [shape = 'u32[]', space=smem, size = 0x4, offset = 0x4, fixed_abs, tag = 'smem constant byte address 0x4 - core index']
  #allocation1 [shape = 'u32[144,128]{1,0:T(1,128)}', space=vmem, size = 0x12000, scoped, tag = 'internal scratch']
  %s0 = inlined_call_operand.vmem [shape: f32[2,8,32], index: 0, kind: input, shape index: {}]
  %s1 = inlined_call_operand.vmem [shape: f32[2,8,32], index: 1, kind: input, shape index: {}]
  %s2 = inlined_call_operand.vmem [shape: f32[2,8,32], index: 2, kind: input, shape index: {}]
  %s3 = inlined_call_operand.vmem [shape: f32[2,8,8], index: 3, kind: input, shape index: {}]
  %s4 = inlined_call_operand.vmem [shape: f32[2,8,32], index: 4, kind: input, shape index: {}]
  %s5 = inlined_call_operand.vmem [shape: bf16[32,32], index: 5, kind: input, shape index: {}]
  %s6 = inlined_call_operand.vmem [shape: f32[1,32], index: 6, kind: input, shape index: {}]
  %s7 = inlined_call_operand.vmem [shape: f32[1,32], index: 7, kind: input, shape index: {}]
  %s8 = inlined_call_operand.vmem [shape: f32[1,32], index: 8, kind: input, shape index: {}]
  %s9 = inlined_call_operand.vmem [shape: f32[2,8,32], index: 9, kind: output, shape index: {}]
  %s10 = sld [smem:[#allocation0]]
  $region69: #{transformer_forward.26} parent=0
    _
  %s12 = ssub.s32 1, %s10
  %s13 = scalar_select 0, %s12, %s10
  loop: start=0, step=1, limit=4
  $region2: #{transformer_forward.26} parent=0 // loop_pre_header
    _
  $region3: #{transformer_forward.26} parent=0 // loop_header
    %s15 = sphi 0, %s19
    %p16 = scmp.ge.s32.totalorder %s15, 4
    %s25 = sphi 0, %s27
    %s28 = sphi 0, %s25
    %s29 = sphi 0, %s28
    %s45 = sphi 0, %s29
    %s51 = sphi 0, %s53
    %s54 = sphi 0, %s51
    %s55 = sphi 0, %s54
    %s71 = sphi 0, %s55
    %s77 = sphi 0, %s79
    %s80 = sphi 0, %s77
    %s81 = sphi 0, %s80
    %s97 = sphi 0, %s81
    %s103 = sphi 0, %s105
    %s106 = sphi 0, %s103
    %s107 = sphi 0, %s106
    %s123 = sphi 0, %s107
    %s129 = sphi 0, %s131
    %s132 = sphi 0, %s129
    %s133 = sphi 0, %s132
    %s149 = sphi 0, %s133
    %s153 = sphi 0, %s153
    %s155 = sphi 0, %s153
    %s156 = sphi 0, %s155
    %s170 = sphi 0, %s156
    %s174 = sphi 0, %s174
    %s176 = sphi 0, %s174
    %s177 = sphi 0, %s176
    %s191 = sphi 0, %s177
    %s195 = sphi 0, %s195
    %s197 = sphi 0, %s195
    %s198 = sphi 0, %s197
    %s212 = sphi 0, %s198
    %s216 = sphi 0, %s216
    %s218 = sphi 0, %s216
    %s219 = sphi 0, %s218
    %s233 = sphi 0, %s219
    %s239 = sphi 0, %s241
    %s242 = sphi 0, %s239
    %s243 = sphi 0, %s242
    %s259 = sphi 0, %s243
  $region4: #{transformer_forward.26} parent=0 // loop_header_branch
    %18 = sbr.rel (%p16) target = $region8
  $region5: #{transformer_forward.26} parent=0 // loop_body
    %s20 = ssub.s32 %s15, 1
    %s21 = ssub.s32 %s15, 2
    %s22 = sadd.s32 %s15, 1
    %s23 = ssub.s32 %s15, %s22
    %p24 = scmp.eq.s32.totalorder %s23, 0
    %s26 = sadd.s32 %s25, 1
    %s27 = scalar_select %p24, %s25, %s26
    %p30 = pneg %p24
    %p31 = scmp.eq.s32.totalorder %s15, 1
    %p32 = por %p30, %p31
    %p33 = scmp.ne.s32.totalorder %s25, %s28
    %p34 = scmp.eq.s32.totalorder %s15, 0
    %p35 = por %p33, %p34
    %p36 = scmp.ne.s32.totalorder %s25, %s28
    %p37 = scmp.eq.s32.totalorder %s20, 1
    %p38 = por %p36, %p37
    %p39 = scmp.ne.s32.totalorder %s28, %s29
    %p40 = scmp.eq.s32.totalorder %s20, 0
    %p41 = por %p39, %p40
    %p42 = scmp.ne.s32.totalorder %s28, %s29
    %p43 = scmp.eq.s32.totalorder %s21, 1
    %p44 = por %p42, %p43
    %p46 = scmp.ne.s32.totalorder %s29, %s45
    %p47 = scmp.eq.s32.totalorder %s21, 0
    %p48 = por %p46, %p47
    %s49 = ssub.s32 %s15, %s22
    %p50 = scmp.eq.s32.totalorder %s49, 0
    %s52 = sadd.s32 %s51, 1
    %s53 = scalar_select %p50, %s51, %s52
    %p56 = pneg %p50
    %p57 = scmp.eq.s32.totalorder %s15, 1
    %p58 = por %p56, %p57
    %p59 = scmp.ne.s32.totalorder %s51, %s54
    %p60 = scmp.eq.s32.totalorder %s15, 0
    %p61 = por %p59, %p60
    %p62 = scmp.ne.s32.totalorder %s51, %s54
    %p63 = scmp.eq.s32.totalorder %s20, 1
    %p64 = por %p62, %p63
    %p65 = scmp.ne.s32.totalorder %s54, %s55
    %p66 = scmp.eq.s32.totalorder %s20, 0
    %p67 = por %p65, %p66
    %p68 = scmp.ne.s32.totalorder %s54, %s55
    %p69 = scmp.eq.s32.totalorder %s21, 1
    %p70 = por %p68, %p69
    %p72 = scmp.ne.s32.totalorder %s55, %s71
    %p73 = scmp.eq.s32.totalorder %s21, 0
    %p74 = por %p72, %p73
    %s75 = ssub.s32 %s15, %s22
    %p76 = scmp.eq.s32.totalorder %s75, 0
    %s78 = sadd.s32 %s77, 1
    %s79 = scalar_select %p76, %s77, %s78
    %p82 = pneg %p76
    %p83 = scmp.eq.s32.totalorder %s15, 1
    %p84 = por %p82, %p83
    %p85 = scmp.ne.s32.totalorder %s77, %s80
    %p86 = scmp.eq.s32.totalorder %s15, 0
    %p87 = por %p85, %p86
    %p88 = scmp.ne.s32.totalorder %s77, %s80
    %p89 = scmp.eq.s32.totalorder %s20, 1
    %p90 = por %p88, %p89
    %p91 = scmp.ne.s32.totalorder %s80, %s81
    %p92 = scmp.eq.s32.totalorder %s20, 0
    %p93 = por %p91, %p92
    %p94 = scmp.ne.s32.totalorder %s80, %s81
    %p95 = scmp.eq.s32.totalorder %s21, 1
    %p96 = por %p94, %p95
    %p98 = scmp.ne.s32.totalorder %s81, %s97
    %p99 = scmp.eq.s32.totalorder %s21, 0
    %p100 = por %p98, %p99
    %s101 = ssub.s32 %s15, %s22
    %p102 = scmp.eq.s32.totalorder %s101, 0
    %s104 = sadd.s32 %s103, 1
    %s105 = scalar_select %p102, %s103, %s104
    %p108 = pneg %p102
    %p109 = scmp.eq.s32.totalorder %s15, 1
    %p110 = por %p108, %p109
    %p111 = scmp.ne.s32.totalorder %s103, %s106
    %p112 = scmp.eq.s32.totalorder %s15, 0
    %p113 = por %p111, %p112
    %p114 = scmp.ne.s32.totalorder %s103, %s106
    %p115 = scmp.eq.s32.totalorder %s20, 1
    %p116 = por %p114, %p115
    %p117 = scmp.ne.s32.totalorder %s106, %s107
    %p118 = scmp.eq.s32.totalorder %s20, 0
    %p119 = por %p117, %p118
    %p120 = scmp.ne.s32.totalorder %s106, %s107
    %p121 = scmp.eq.s32.totalorder %s21, 1
    %p122 = por %p120, %p121
    %p124 = scmp.ne.s32.totalorder %s107, %s123
    %p125 = scmp.eq.s32.totalorder %s21, 0
    %p126 = por %p124, %p125
    %s127 = ssub.s32 %s15, %s22
    %p128 = scmp.eq.s32.totalorder %s127, 0
    %s130 = sadd.s32 %s129, 1
    %s131 = scalar_select %p128, %s129, %s130
    %p134 = pneg %p128
    %p135 = scmp.eq.s32.totalorder %s15, 1
    %p136 = por %p134, %p135
    %p137 = scmp.ne.s32.totalorder %s129, %s132
    %p138 = scmp.eq.s32.totalorder %s15, 0
    %p139 = por %p137, %p138
    %p140 = scmp.ne.s32.totalorder %s129, %s132
    %p141 = scmp.eq.s32.totalorder %s20, 1
    %p142 = por %p140, %p141
    %p143 = scmp.ne.s32.totalorder %s132, %s133
    %p144 = scmp.eq.s32.totalorder %s20, 0
    %p145 = por %p143, %p144
    %p146 = scmp.ne.s32.totalorder %s132, %s133
    %p147 = scmp.eq.s32.totalorder %s21, 1
    %p148 = por %p146, %p147
    %p150 = scmp.ne.s32.totalorder %s133, %s149
    %p151 = scmp.eq.s32.totalorder %s21, 0
    %p152 = por %p150, %p151
    %s154 = sadd.s32 %s153, 1
    %p157 = scmp.eq.s32.totalorder %s15, 1
    %p158 = scmp.ne.s32.totalorder %s153, %s155
    %p159 = scmp.eq.s32.totalorder %s15, 0
    %p160 = por %p158, %p159
    %p161 = scmp.ne.s32.totalorder %s153, %s155
    %p162 = scmp.eq.s32.totalorder %s20, 1
    %p163 = por %p161, %p162
    %p164 = scmp.ne.s32.totalorder %s155, %s156
    %p165 = scmp.eq.s32.totalorder %s20, 0
    %p166 = por %p164, %p165
    %p167 = scmp.ne.s32.totalorder %s155, %s156
    %p168 = scmp.eq.s32.totalorder %s21, 1
    %p169 = por %p167, %p168
    %p171 = scmp.ne.s32.totalorder %s156, %s170
    %p172 = scmp.eq.s32.totalorder %s21, 0
    %p173 = por %p171, %p172
    %s175 = sadd.s32 %s174, 1
    %p178 = scmp.eq.s32.totalorder %s15, 1
    %p179 = scmp.ne.s32.totalorder %s174, %s176
    %p180 = scmp.eq.s32.totalorder %s15, 0
    %p181 = por %p179, %p180
    %p182 = scmp.ne.s32.totalorder %s174, %s176
    %p183 = scmp.eq.s32.totalorder %s20, 1
    %p184 = por %p182, %p183
    %p185 = scmp.ne.s32.totalorder %s176, %s177
    %p186 = scmp.eq.s32.totalorder %s20, 0
    %p187 = por %p185, %p186
    %p188 = scmp.ne.s32.totalorder %s176, %s177
    %p189 = scmp.eq.s32.totalorder %s21, 1
    %p190 = por %p188, %p189
    %p192 = scmp.ne.s32.totalorder %s177, %s191
    %p193 = scmp.eq.s32.totalorder %s21, 0
    %p194 = por %p192, %p193
    %s196 = sadd.s32 %s195, 1
    %p199 = scmp.eq.s32.totalorder %s15, 1
    %p200 = scmp.ne.s32.totalorder %s195, %s197
    %p201 = scmp.eq.s32.totalorder %s15, 0
    %p202 = por %p200, %p201
    %p203 = scmp.ne.s32.totalorder %s195, %s197
    %p204 = scmp.eq.s32.totalorder %s20, 1
    %p205 = por %p203, %p204
    %p206 = scmp.ne.s32.totalorder %s197, %s198
    %p207 = scmp.eq.s32.totalorder %s20, 0
    %p208 = por %p206, %p207
    %p209 = scmp.ne.s32.totalorder %s197, %s198
    %p210 = scmp.eq.s32.totalorder %s21, 1
    %p211 = por %p209, %p210
    %p213 = scmp.ne.s32.totalorder %s198, %s212
    %p214 = scmp.eq.s32.totalorder %s21, 0
    %p215 = por %p213, %p214
    %s217 = sadd.s32 %s216, 1
    %p220 = scmp.eq.s32.totalorder %s15, 1
    %p221 = scmp.ne.s32.totalorder %s216, %s218
    %p222 = scmp.eq.s32.totalorder %s15, 0
    %p223 = por %p221, %p222
    %p224 = scmp.ne.s32.totalorder %s216, %s218
    %p225 = scmp.eq.s32.totalorder %s20, 1
    %p226 = por %p224, %p225
    %p227 = scmp.ne.s32.totalorder %s218, %s219
    %p228 = scmp.eq.s32.totalorder %s20, 0
    %p229 = por %p227, %p228
    %p230 = scmp.ne.s32.totalorder %s218, %s219
    %p231 = scmp.eq.s32.totalorder %s21, 1
    %p232 = por %p230, %p231
    %p234 = scmp.ne.s32.totalorder %s219, %s233
    %p235 = scmp.eq.s32.totalorder %s21, 0
    %p236 = por %p234, %p235
    %s237 = ssub.s32 %s15, %s22
    %p238 = scmp.eq.s32.totalorder %s237, 0
    %s240 = sadd.s32 %s239, 1
    %s241 = scalar_select %p238, %s239, %s240
    %p244 = pneg %p238
    %p245 = scmp.eq.s32.totalorder %s15, 1
    %p246 = por %p244, %p245
    %p247 = scmp.ne.s32.totalorder %s239, %s242
    %p248 = scmp.eq.s32.totalorder %s15, 0
    %p249 = por %p247, %p248
    %p250 = scmp.ne.s32.totalorder %s239, %s242
    %p251 = scmp.eq.s32.totalorder %s20, 1
    %p252 = por %p250, %p251
    %p253 = scmp.ne.s32.totalorder %s242, %s243
    %p254 = scmp.eq.s32.totalorder %s20, 0
    %p255 = por %p253, %p254
    %p256 = scmp.ne.s32.totalorder %s242, %s243
    %p257 = scmp.eq.s32.totalorder %s21, 1
    %p258 = por %p256, %p257
    %p260 = scmp.ne.s32.totalorder %s243, %s259
    %p261 = scmp.eq.s32.totalorder %s21, 0
    %p262 = por %p260, %p261
    %p263 = scmp.le.s32.totalorder 1, %s15
    %p264 = scmp.lt.s32.totalorder %s15, 3
    %p265 = pnand %p263, %p264
    %p266 = pneg %p265
    // Predicated region
    $region9: #{transformer_forward.26} parent=5 // pred_check
      _
    $region10: #{transformer_forward.26} parent=5 // pred_check_branch
      %268 = sbr.rel (%p265) target = $region12
    $region11: #{transformer_forward.26} parent=5 // pred_region
      %s269 = ssub.s32 %s15, 1
      // Predicated region
      $region13: #{transformer_forward.26} parent=11 // pred_check
        %p270 = pneg %p166
      $region14: #{transformer_forward.26} parent=11 // pred_check_branch
        %272 = sbr.rel (%p270) target = $region16
      $region15: #{transformer_forward.26} parent=11 // pred_region
        _
      $region16: #{transformer_forward.26} parent=11 // pred_fallthru
        _
      // Predicated region
      $region17: #{transformer_forward.26} parent=11 // pred_check
        %p273 = pneg %p187
      $region18: #{transformer_forward.26} parent=11 // pred_check_branch
        %275 = sbr.rel (%p273) target = $region20
      $region19: #{transformer_forward.26} parent=11 // pred_region
        _
      $region20: #{transformer_forward.26} parent=11 // pred_fallthru
        _
      // Predicated region
      $region21: #{transformer_forward.26} parent=11 // pred_check
        %p276 = pneg %p208
      $region22: #{transformer_forward.26} parent=11 // pred_check_branch
        %278 = sbr.rel (%p276) target = $region24
      $region23: #{transformer_forward.26} parent=11 // pred_region
        _
      $region24: #{transformer_forward.26} parent=11 // pred_fallthru
        _
      // Predicated region
      $region25: #{transformer_forward.26} parent=11 // pred_check
        %p279 = pneg %p229
      $region26: #{transformer_forward.26} parent=11 // pred_check_branch
        %281 = sbr.rel (%p279) target = $region28
      $region27: #{transformer_forward.26} parent=11 // pred_region
        _
      $region28: #{transformer_forward.26} parent=11 // pred_fallthru
        _
    $region12: #{transformer_forward.26} parent=5 // pred_fallthru
      _
    %p282 = scmp.lt.s32.totalorder %s15, 2
    // Predicated region
    $region29: #{transformer_forward.26} parent=5 // pred_check
      %p283 = pneg %p282
    $region30: #{transformer_forward.26} parent=5 // pred_check_branch
      %285 = sbr.rel (%p283) target = $region32
    $region31: #{transformer_forward.26} parent=5 // pred_region
      // Predicated region
      $region33: #{transformer_forward.26} parent=31 // pred_check
        %p286 = pneg %p35
      $region34: #{transformer_forward.26} parent=31 // pred_check_branch
        %288 = sbr.rel (%p286) target = $region36
      $region35: #{transformer_forward.26} parent=31 // pred_region
        %p289 = scmp.lt.s32.totalorder %s15, 1
        %s290 = scalar_select %p289, %s15, 1
        %s291 = smul.addr %s290, 8
        %s292 = scalar_lea.vmem %s0, %s291
      $region36: #{transformer_forward.26} parent=31 // pred_fallthru
        _
      // Predicated region
      $region37: #{transformer_forward.26} parent=31 // pred_check
        %p293 = pneg %p61
      $region38: #{transformer_forward.26} parent=31 // pred_check_branch
        %295 = sbr.rel (%p293) target = $region40
      $region39: #{transformer_forward.26} parent=31 // pred_region
        %p296 = scmp.lt.s32.totalorder %s15, 1
        %s297 = scalar_select %p296, %s15, 1
        %s298 = smul.addr %s297, 8
        %s299 = scalar_lea.vmem %s1, %s298
      $region40: #{transformer_forward.26} parent=31 // pred_fallthru
        _
      // Predicated region
      $region41: #{transformer_forward.26} parent=31 // pred_check
        %p300 = pneg %p87
      $region42: #{transformer_forward.26} parent=31 // pred_check_branch
        %302 = sbr.rel (%p300) target = $region44
      $region43: #{transformer_forward.26} parent=31 // pred_region
        %p303 = scmp.lt.s32.totalorder %s15, 1
        %s304 = scalar_select %p303, %s15, 1
        %s305 = smul.addr %s304, 8
        %s306 = scalar_lea.vmem %s2, %s305
      $region44: #{transformer_forward.26} parent=31 // pred_fallthru
        _
      // Predicated region
      $region45: #{transformer_forward.26} parent=31 // pred_check
        %p307 = pneg %p113
      $region46: #{transformer_forward.26} parent=31 // pred_check_branch
        %309 = sbr.rel (%p307) target = $region48
      $region47: #{transformer_forward.26} parent=31 // pred_region
        %p310 = scmp.lt.s32.totalorder %s15, 1
        %s311 = scalar_select %p310, %s15, 1
        %s312 = smul.addr %s311, 8
        %s313 = scalar_lea.vmem %s3, %s312
      $region48: #{transformer_forward.26} parent=31 // pred_fallthru
        _
      // Predicated region
      $region49: #{transformer_forward.26} parent=31 // pred_check
        %p314 = pneg %p139
      $region50: #{transformer_forward.26} parent=31 // pred_check_branch
        %316 = sbr.rel (%p314) target = $region52
      $region51: #{transformer_forward.26} parent=31 // pred_region
        %p317 = scmp.lt.s32.totalorder %s15, 1
        %s318 = scalar_select %p317, %s15, 1
        %s319 = smul.addr %s318, 8
        %s320 = scalar_lea.vmem %s4, %s319
      $region52: #{transformer_forward.26} parent=31 // pred_fallthru
        _
    $region32: #{transformer_forward.26} parent=5 // pred_fallthru
      _
    %p321 = scmp.le.s32.totalorder 1, %s15
    %p322 = scmp.lt.s32.totalorder %s15, 3
    %p323 = pnand %p321, %p322
    %p324 = pneg %p323
    // Predicated region
    $region53: #{transformer_forward.26} parent=5 // pred_check
      _
    $region54: #{transformer_forward.26} parent=5 // pred_check_branch
      %326 = sbr.rel (%p323) target = $region56
    $region55: #{transformer_forward.26} parent=5 // pred_region
      %s327 = ssub.s32 %s15, 1
      %p328 = scmp.lt.s32.totalorder %s20, 1
      %s329 = scalar_select %p328, %s20, 1
      %s330 = smul.addr %s329, 8
      %s331 = scalar_lea.vmem %s0, %s330
      %p332 = pneg %p41
      %p333 = pneg %p38
      %p334 = scmp.lt.s32.totalorder %s20, 1
      %s335 = scalar_select %p334, %s20, 1
      %s336 = smul.addr %s335, 8
      %s337 = scalar_lea.vmem %s1, %s336
      %p338 = pneg %p67
      %p339 = pneg %p64
      %p340 = scmp.lt.s32.totalorder %s20, 1
      %s341 = scalar_select %p340, %s20, 1
      %s342 = smul.addr %s341, 8
      %s343 = scalar_lea.vmem %s2, %s342
      %p344 = pneg %p93
      %p345 = pneg %p90
      %p346 = scmp.lt.s32.totalorder %s20, 1
      %s347 = scalar_select %p346, %s20, 1
      %s348 = smul.addr %s347, 8
      %s349 = scalar_lea.vmem %s3, %s348
      %p350 = pneg %p119
      %p351 = pneg %p116
      %p352 = scmp.lt.s32.totalorder %s20, 1
      %s353 = scalar_select %p352, %s20, 1
      %s354 = smul.addr %s353, 8
      %s355 = scalar_lea.vmem %s4, %s354
      %p356 = pneg %p145
      %p357 = pneg %p142
      %p358 = pneg %p166
      %p359 = pneg %p163
      %p360 = pneg %p187
      %p361 = pneg %p184
      %p362 = pneg %p208
      %p363 = pneg %p205
      %p364 = pneg %p229
      %p365 = pneg %p226
      %p366 = pneg %p255
      %p367 = pneg %p252
      %p368 = scmp.lt.s32.totalorder %s20, 1
      %s369 = scalar_select %p368, %s20, 1
      %s370 = smul.addr %s369, 8
      %s371 = scalar_lea.vmem %s9, %s370
      %p372 = scmp.lt.s32.totalorder %s20, 1
      %s373 = scalar_select %p372, %s20, 1
      %s374 = smul.addr %s373, 8
      %s375 = scalar_lea.vmem %s0, %s374
      %p376 = scmp.lt.s32.totalorder %s20, 1
      %s377 = scalar_select %p376, %s20, 1
      %s378 = smul.addr %s377, 8
      %s379 = scalar_lea.vmem %s1, %s378
      %p380 = scmp.lt.s32.totalorder %s20, 1
      %s381 = scalar_select %p380, %s20, 1
      %s382 = smul.addr %s381, 8
      %s383 = scalar_lea.vmem %s2, %s382
      %p384 = scmp.lt.s32.totalorder %s20, 1
      %s385 = scalar_select %p384, %s20, 1
      %s386 = smul.addr %s385, 8
      %s387 = scalar_lea.vmem %s3, %s386
      %p388 = scmp.lt.s32.totalorder %s20, 1
      %s389 = scalar_select %p388, %s20, 1
      %s390 = smul.addr %s389, 8
      %s391 = scalar_lea.vmem %s4, %s390
      %p392 = scmp.lt.s32.totalorder %s20, 1
      %s393 = scalar_select %p392, %s20, 1
      %s394 = smul.addr %s393, 8
      %s395 = scalar_lea.vmem %s9, %s394
      %v397 = vld [vmem:[%s375] sm:$0xff]
      %v398 = vld [vmem:[%s379] sm:$0xff]
      %v399 = vld [vmem:[%s383] sm:$0xff]
      %v400 = vld [vmem:[%s387] sm:$0xff]
      %v401 = vpack.c.bf16 %v397, %v397
      %v402 = vpack.c.bf16 %v398, %v398
      %v403 = vpack.c.bf16 %v399, %v399
      %vm404 = vcmask 64512
      %v406 = vsel %vm404, %v401, 0
      %v409 = vsel %vm404, %v402, 0
      %411 = vmatprep.subr.bf16.mxu0 0
      %412 = vmatpush1.bf16.xpose.msra.mxu0 %v409
      %413 = vmatprep.subr.bf16.mxu0 0
      %414 = vmatpush1.bf16.xpose.msra.mxu0 0
      %415 = vmatprep.subr.bf16.mxu0 0
      %416 = vmatpush1.bf16.xpose.msra.mxu0 0
      %417 = vmatprep.subr.bf16.mxu0 0
      %418 = vmatpush1.bf16.xpose.msra.mxu0 0
      %419 = vmatprep.subr.bf16.mxu0 0
      %420 = vmatpush1.bf16.xpose.msra.mxu0 0
      %421 = vmatprep.subr.bf16.mxu0 0
      %422 = vmatpush1.bf16.xpose.msra.mxu0 0
      %423 = vmatprep.subr.bf16.mxu0 0
      %424 = vmatpush1.bf16.xpose.msra.mxu0 0
      %425 = vmatprep.subr.bf16.mxu0 0
      %426 = vmatpush1.bf16.xpose.msra.mxu0 0
      %427 = vmatprep.subr.bf16.mxu0 0
      %428 = vmatpush1.bf16.xpose.msra.mxu0 0
      %429 = vmatprep.subr.bf16.mxu0 0
      %430 = vmatpush1.bf16.xpose.msra.mxu0 0
      %431 = vmatprep.subr.bf16.mxu0 0
      %432 = vmatpush1.bf16.xpose.msra.mxu0 0
      %433 = vmatprep.subr.bf16.mxu0 0
      %434 = vmatpush1.bf16.xpose.msra.mxu0 0
      %435 = vmatprep.subr.bf16.mxu0 0
      %436 = vmatpush1.bf16.xpose.msra.mxu0 0
      %437 = vmatprep.subr.bf16.mxu0 0
      %438 = vmatpush1.bf16.xpose.msra.mxu0 0
      %439 = vmatprep.subr.bf16.mxu0 0
      %440 = vmatpush1.bf16.xpose.msra.mxu0 0
      %441 = vmatprep.subr.bf16.mxu0 0
      %442 = vmatpush1.bf16.xpose.msra.mxu0 0
      %443 = vmatprep.mubr.bf16.mxu0 0
      %444 = vmatmul.mubr.bf16.gmra.mrb[0].mxu0 %v406
      %v445 = vpop.f32.mrb[0].mxu0
      %v446 = vadd.f32 %v400, %v445
      %v447 = vpop.f32.mrb[0].mxu0
      %v448 = vpop.f32.mrb[0].mxu0
      %v449 = vpop.f32.mrb[0].mxu0
      %450 = vdwg.mxu0
      %v451 = vsel %vm404, %v446, -inf
      %452 = vmax.xlane.f32.xlu0 %v451
      %v453 = vpop.xlane.xlu0 %452
      %v454 = vsub.f32 %v446, %v453
      %v455 = vmul.f32 %v454, 1.442695
      %v456 = vpow.pop %v455
      %v457 = vsel %vm404, %v456, 0.0
      %458 = vadd.xlane.f32.xlu0 %v457
      %v459 = vpop.xlane.xlu0 %458
      %v460 = vrcp.pop %v459
      %v461 = vmul.f32 %v456, %v460
      %v462 = vpack.c.bf16 %v461, %v461
      %v464 = vsel %vm404, %v462, 0
      %vm466 = vcmask 1043456
      %v468 = vsel %vm466, %v403, 0
      %470 = vmatprep.subr.bf16.mxu0 0
      %471 = vmatpush1.bf16.msra.mxu0 %v468
      %472 = vmatprep.subr.bf16.mxu0 0
      %473 = vmatpush1.bf16.msra.mxu0 0
      %474 = vmatprep.subr.bf16.mxu0 0
      %475 = vmatpush1.bf16.msra.mxu0 0
      %476 = vmatprep.subr.bf16.mxu0 0
      %477 = vmatpush1.bf16.msra.mxu0 0
      %478 = vmatprep.subr.bf16.mxu0 0
      %479 = vmatpush1.bf16.msra.mxu0 0
      %480 = vmatprep.subr.bf16.mxu0 0
      %481 = vmatpush1.bf16.msra.mxu0 0
      %482 = vmatprep.subr.bf16.mxu0 0
      %483 = vmatpush1.bf16.msra.mxu0 0
      %484 = vmatprep.subr.bf16.mxu0 0
      %485 = vmatpush1.bf16.msra.mxu0 0
      %486 = vmatprep.subr.bf16.mxu0 0
      %487 = vmatpush1.bf16.msra.mxu0 0
      %488 = vmatprep.subr.bf16.mxu0 0
      %489 = vmatpush1.bf16.msra.mxu0 0
      %490 = vmatprep.subr.bf16.mxu0 0
      %491 = vmatpush1.bf16.msra.mxu0 0
      %492 = vmatprep.subr.bf16.mxu0 0
      %493 = vmatpush1.bf16.msra.mxu0 0
      %494 = vmatprep.subr.bf16.mxu0 0
      %495 = vmatpush1.bf16.msra.mxu0 0
      %496 = vmatprep.subr.bf16.mxu0 0
      %497 = vmatpush1.bf16.msra.mxu0 0
      %498 = vmatprep.subr.bf16.mxu0 0
      %499 = vmatpush1.bf16.msra.mxu0 0
      %500 = vmatprep.subr.bf16.mxu0 0
      %501 = vmatpush1.bf16.msra.mxu0 0
      %502 = vmatprep.mubr.bf16.mxu0 0
      %503 = vmatmul.mubr.bf16.gmra.mrb[0].mxu0 %v464
      %v504 = vpop.f32.mrb[0].mxu0
      %v505 = vadd.f32 0.0, %v504
      %v506 = vpop.f32.mrb[0].mxu0
      %v507 = vpop.f32.mrb[0].mxu0
      %v508 = vpop.f32.mrb[0].mxu0
      %509 = vdwg.mxu0
      %v510 = vpack.c.bf16 %v505, %v505
      %v511 = vld [vmem:[%s5] sm:$0xf]
      %513 = vrot.lane.b32.xlu0 %v401, 120
      %v514 = vpop.permute.xlu0 %513
      %516 = vrot.lane.b32.xlu0 %v402, 120
      %v517 = vpop.permute.xlu0 %516
      %v519 = vsel %vm404, %v514, 0
      %v522 = vsel %vm404, %v517, 0
      %524 = vmatprep.subr.bf16.mxu0 0
      %525 = vmatpush1.bf16.xpose.msra.mxu0 %v522
      %526 = vmatprep.subr.bf16.mxu0 0
      %527 = vmatpush1.bf16.xpose.msra.mxu0 0
      %528 = vmatprep.subr.bf16.mxu0 0
      %529 = vmatpush1.bf16.xpose.msra.mxu0 0
      %530 = vmatprep.subr.bf16.mxu0 0
      %531 = vmatpush1.bf16.xpose.msra.mxu0 0
      %532 = vmatprep.subr.bf16.mxu0 0
      %533 = vmatpush1.bf16.xpose.msra.mxu0 0
      %534 = vmatprep.subr.bf16.mxu0 0
      %535 = vmatpush1.bf16.xpose.msra.mxu0 0
      %536 = vmatprep.subr.bf16.mxu0 0
      %537 = vmatpush1.bf16.xpose.msra.mxu0 0
      %538 = vmatprep.subr.bf16.mxu0 0
      %539 = vmatpush1.bf16.xpose.msra.mxu0 0
      %540 = vmatprep.subr.bf16.mxu0 0
      %541 = vmatpush1.bf16.xpose.msra.mxu0 0
      %542 = vmatprep.subr.bf16.mxu0 0
      %543 = vmatpush1.bf16.xpose.msra.mxu0 0
      %544 = vmatprep.subr.bf16.mxu0 0
      %545 = vmatpush1.bf16.xpose.msra.mxu0 0
      %546 = vmatprep.subr.bf16.mxu0 0
      %547 = vmatpush1.bf16.xpose.msra.mxu0 0
      %548 = vmatprep.subr.bf16.mxu0 0
      %549 = vmatpush1.bf16.xpose.msra.mxu0 0
      %550 = vmatprep.subr.bf16.mxu0 0
      %551 = vmatpush1.bf16.xpose.msra.mxu0 0
      %552 = vmatprep.subr.bf16.mxu0 0
      %553 = vmatpush1.bf16.xpose.msra.mxu0 0
      %554 = vmatprep.subr.bf16.mxu0 0
      %555 = vmatpush1.bf16.xpose.msra.mxu0 0
      %556 = vmatprep.mubr.bf16.mxu0 0
      %557 = vmatmul.mubr.bf16.gmra.mrb[0].mxu0 %v519
      %v558 = vpop.f32.mrb[0].mxu0
      %v559 = vadd.f32 %v400, %v558
      %v560 = vpop.f32.mrb[0].mxu0
      %v561 = vpop.f32.mrb[0].mxu0
      %v562 = vpop.f32.mrb[0].mxu0
      %563 = vdwg.mxu0
      %v564 = vsel %vm404, %v559, -inf
      %565 = vmax.xlane.f32.xlu0 %v564
      %v566 = vpop.xlane.xlu0 %565
      %v567 = vsub.f32 %v559, %v566
      %v568 = vmul.f32 %v567, 1.442695
      %v569 = vpow.pop %v568
      %v570 = vsel %vm404, %v569, 0.0
      %571 = vadd.xlane.f32.xlu0 %v570
      %v572 = vpop.xlane.xlu0 %571
      %v573 = vrcp.pop %v572
      %v574 = vmul.f32 %v569, %v573
      %v575 = vpack.c.bf16 %v574, %v574
      %577 = vrot.lane.b32.xlu0 %v403, 120
      %v578 = vpop.permute.xlu0 %577
      %v580 = vsel %vm404, %v575, 0
      %v583 = vsel %vm466, %v578, 0
      %585 = vmatprep.subr.bf16.mxu0 0
      %586 = vmatpush1.bf16.msra.mxu0 %v583
      %587 = vmatprep.subr.bf16.mxu0 0
      %588 = vmatpush1.bf16.msra.mxu0 0
      %589 = vmatprep.subr.bf16.mxu0 0
      %590 = vmatpush1.bf16.msra.mxu0 0
      %591 = vmatprep.subr.bf16.mxu0 0
      %592 = vmatpush1.bf16.msra.mxu0 0
      %593 = vmatprep.subr.bf16.mxu0 0
      %594 = vmatpush1.bf16.msra.mxu0 0
      %595 = vmatprep.subr.bf16.mxu0 0
      %596 = vmatpush1.bf16.msra.mxu0 0
      %597 = vmatprep.subr.bf16.mxu0 0
      %598 = vmatpush1.bf16.msra.mxu0 0
      %599 = vmatprep.subr.bf16.mxu0 0
      %600 = vmatpush1.bf16.msra.mxu0 0
      %601 = vmatprep.subr.bf16.mxu0 0
      %602 = vmatpush1.bf16.msra.mxu0 0
      %603 = vmatprep.subr.bf16.mxu0 0
      %604 = vmatpush1.bf16.msra.mxu0 0
      %605 = vmatprep.subr.bf16.mxu0 0
      %606 = vmatpush1.bf16.msra.mxu0 0
      %607 = vmatprep.subr.bf16.mxu0 0
      %608 = vmatpush1.bf16.msra.mxu0 0
      %609 = vmatprep.subr.bf16.mxu0 0
      %610 = vmatpush1.bf16.msra.mxu0 0
      %611 = vmatprep.subr.bf16.mxu0 0
      %612 = vmatpush1.bf16.msra.mxu0 0
      %613 = vmatprep.subr.bf16.mxu0 0
      %614 = vmatpush1.bf16.msra.mxu0 0
      %615 = vmatprep.subr.bf16.mxu0 0
      %616 = vmatpush1.bf16.msra.mxu0 0
      %617 = vmatprep.mubr.bf16.mxu0 0
      %618 = vmatmul.mubr.bf16.gmra.mrb[0].mxu0 %v580
      %v619 = vpop.f32.mrb[0].mxu0
      %v620 = vadd.f32 0.0, %v619
      %v621 = vpop.f32.mrb[0].mxu0
      %v622 = vpop.f32.mrb[0].mxu0
      %v623 = vpop.f32.mrb[0].mxu0
      %624 = vdwg.mxu0
      %v625 = vpack.c.bf16 %v620, %v620
      %v626 = vld [vmem:[%s5 + $0x4] sm:$0xf]
      %v628 = vsel %vm404, %v625, 0
      %v631 = vsel %vm466, %v626, 0
      %633 = vmatprep.subr.bf16.mxu0 0
      %634 = vmatpush1.bf16.msra.mxu0 %v631
      %635 = vmatprep.subr.bf16.mxu0 0
      %636 = vmatpush1.bf16.msra.mxu0 0
      %637 = vmatprep.subr.bf16.mxu0 0
      %638 = vmatpush1.bf16.msra.mxu0 0
      %639 = vmatprep.subr.bf16.mxu0 0
      %640 = vmatpush1.bf16.msra.mxu0 0
      %641 = vmatprep.subr.bf16.mxu0 0
      %642 = vmatpush1.bf16.msra.mxu0 0
      %643 = vmatprep.subr.bf16.mxu0 0
      %644 = vmatpush1.bf16.msra.mxu0 0
      %645 = vmatprep.subr.bf16.mxu0 0
      %646 = vmatpush1.bf16.msra.mxu0 0
      %647 = vmatprep.subr.bf16.mxu0 0
      %648 = vmatpush1.bf16.msra.mxu0 0
      %649 = vmatprep.subr.bf16.mxu0 0
      %650 = vmatpush1.bf16.msra.mxu0 0
      %651 = vmatprep.subr.bf16.mxu0 0
      %652 = vmatpush1.bf16.msra.mxu0 0
      %653 = vmatprep.subr.bf16.mxu0 0
      %654 = vmatpush1.bf16.msra.mxu0 0
      %655 = vmatprep.subr.bf16.mxu0 0
      %656 = vmatpush1.bf16.msra.mxu0 0
      %657 = vmatprep.subr.bf16.mxu0 0
      %658 = vmatpush1.bf16.msra.mxu0 0
      %659 = vmatprep.subr.bf16.mxu0 0
      %660 = vmatpush1.bf16.msra.mxu0 0
      %661 = vmatprep.subr.bf16.mxu0 0
      %662 = vmatpush1.bf16.msra.mxu0 0
      %663 = vmatprep.subr.bf16.mxu0 0
      %664 = vmatpush1.bf16.msra.mxu0 0
      %665 = vmatprep.mubr.bf16.mxu0 0
      %666 = vmatmul.mubr.bf16.gmra.mrb[0].mxu0 %v628
      %v667 = vpop.f32.mrb[0].mxu0
      %v668 = vadd.f32 0.0, %v667
      %v669 = vpop.f32.mrb[0].mxu0
      %v670 = vpop.f32.mrb[0].mxu0
      %v671 = vpop.f32.mrb[0].mxu0
      %672 = vdwg.mxu0
      %v674 = vsel %vm404, %v510, 0
      %v677 = vsel %vm466, %v511, 0
      %679 = vmatprep.subr.bf16.mxu0 0
      %680 = vmatpush1.bf16.msra.mxu0 %v677
      %681 = vmatprep.subr.bf16.mxu0 0
      %682 = vmatpush1.bf16.msra.mxu0 0
      %683 = vmatprep.subr.bf16.mxu0 0
      %684 = vmatpush1.bf16.msra.mxu0 0
      %685 = vmatprep.subr.bf16.mxu0 0
      %686 = vmatpush1.bf16.msra.mxu0 0
      %687 = vmatprep.subr.bf16.mxu0 0
      %688 = vmatpush1.bf16.msra.mxu0 0
      %689 = vmatprep.subr.bf16.mxu0 0
      %690 = vmatpush1.bf16.msra.mxu0 0
      %691 = vmatprep.subr.bf16.mxu0 0
      %692 = vmatpush1.bf16.msra.mxu0 0
      %693 = vmatprep.subr.bf16.mxu0 0
      %694 = vmatpush1.bf16.msra.mxu0 0
      %695 = vmatprep.subr.bf16.mxu0 0
      %696 = vmatpush1.bf16.msra.mxu0 0
      %697 = vmatprep.subr.bf16.mxu0 0
      %698 = vmatpush1.bf16.msra.mxu0 0
      %699 = vmatprep.subr.bf16.mxu0 0
      %700 = vmatpush1.bf16.msra.mxu0 0
      %701 = vmatprep.subr.bf16.mxu0 0
      %702 = vmatpush1.bf16.msra.mxu0 0
      %703 = vmatprep.subr.bf16.mxu0 0
      %704 = vmatpush1.bf16.msra.mxu0 0
      %705 = vmatprep.subr.bf16.mxu0 0
      %706 = vmatpush1.bf16.msra.mxu0 0
      %707 = vmatprep.subr.bf16.mxu0 0
      %708 = vmatpush1.bf16.msra.mxu0 0
      %709 = vmatprep.subr.bf16.mxu0 0
      %710 = vmatpush1.bf16.msra.mxu0 0
      %711 = vmatprep.mubr.bf16.mxu0 0
      %712 = vmatmul.mubr.bf16.gmra.mrb[0].mxu0 %v674
      %v713 = vpop.f32.mrb[0].mxu0
      %v714 = vadd.f32 %v668, %v713
      %v715 = vpop.f32.mrb[0].mxu0
      %v716 = vpop.f32.mrb[0].mxu0
      %v717 = vpop.f32.mrb[0].mxu0
      %718 = vdwg.mxu0
      %719 = vrot.lane.b32.xlu0 %v401, 112
      %v720 = vpop.permute.xlu0 %719
      %721 = vrot.lane.b32.xlu0 %v402, 112
      %v722 = vpop.permute.xlu0 %721
      %v724 = vsel %vm404, %v720, 0
      %v727 = vsel %vm404, %v722, 0
      %729 = vmatprep.subr.bf16.mxu0 0
      %730 = vmatpush1.bf16.xpose.msra.mxu0 %v727
      %731 = vmatprep.subr.bf16.mxu0 0
      %732 = vmatpush1.bf16.xpose.msra.mxu0 0
      %733 = vmatprep.subr.bf16.mxu0 0
      %734 = vmatpush1.bf16.xpose.msra.mxu0 0
      %735 = vmatprep.subr.bf16.mxu0 0
      %736 = vmatpush1.bf16.xpose.msra.mxu0 0
      %737 = vmatprep.subr.bf16.mxu0 0
      %738 = vmatpush1.bf16.xpose.msra.mxu0 0
      %739 = vmatprep.subr.bf16.mxu0 0
      %740 = vmatpush1.bf16.xpose.msra.mxu0 0
      %741 = vmatprep.subr.bf16.mxu0 0
      %742 = vmatpush1.bf16.xpose.msra.mxu0 0
      %743 = vmatprep.subr.bf16.mxu0 0
      %744 = vmatpush1.bf16.xpose.msra.mxu0 0
      %745 = vmatprep.subr.bf16.mxu0 0
      %746 = vmatpush1.bf16.xpose.msra.mxu0 0
      %747 = vmatprep.subr.bf16.mxu0 0
      %748 = vmatpush1.bf16.xpose.msra.mxu0 0
      %749 = vmatprep.subr.bf16.mxu0 0
      %750 = vmatpush1.bf16.xpose.msra.mxu0 0
      %751 = vmatprep.subr.bf16.mxu0 0
      %752 = vmatpush1.bf16.xpose.msra.mxu0 0
      %753 = vmatprep.subr.bf16.mxu0 0
      %754 = vmatpush1.bf16.xpose.msra.mxu0 0
      %755 = vmatprep.subr.bf16.mxu0 0
      %756 = vmatpush1.bf16.xpose.msra.mxu0 0
      %757 = vmatprep.subr.bf16.mxu0 0
      %758 = vmatpush1.bf16.xpose.msra.mxu0 0
      %759 = vmatprep.subr.bf16.mxu0 0
      %760 = vmatpush1.bf16.xpose.msra.mxu0 0
      %761 = vmatprep.mubr.bf16.mxu0 0
      %762 = vmatmul.mubr.bf16.gmra.mrb[0].mxu0 %v724
      %v763 = vpop.f32.mrb[0].mxu0
      %v764 = vadd.f32 %v400, %v763
      %v765 = vpop.f32.mrb[0].mxu0
      %v766 = vpop.f32.mrb[0].mxu0
      %v767 = vpop.f32.mrb[0].mxu0
      %768 = vdwg.mxu0
      %v769 = vsel %vm404, %v764, -inf
      %770 = vmax.xlane.f32.xlu0 %v769
      %v771 = vpop.xlane.xlu0 %770
      %v772 = vsub.f32 %v764, %v771
      %v773 = vmul.f32 %v772, 1.442695
      %v774 = vpow.pop %v773
      %v775 = vsel %vm404, %v774, 0.0
      %776 = vadd.xlane.f32.xlu0 %v775
      %v777 = vpop.xlane.xlu0 %776
      %v778 = vrcp.pop %v777
      %v779 = vmul.f32 %v774, %v778
      %v780 = vpack.c.bf16 %v779, %v779
      %781 = vrot.lane.b32.xlu0 %v403, 112
      %v782 = vpop.permute.xlu0 %781
      %v784 = vsel %vm404, %v780, 0
      %v787 = vsel %vm466, %v782, 0
      %789 = vmatprep.subr.bf16.mxu0 0
      %790 = vmatpush1.bf16.msra.mxu0 %v787
      %791 = vmatprep.subr.bf16.mxu0 0
      %792 = vmatpush1.bf16.msra.mxu0 0
      %793 = vmatprep.subr.bf16.mxu0 0
      %794 = vmatpush1.bf16.msra.mxu0 0
      %795 = vmatprep.subr.bf16.mxu0 0
      %796 = vmatpush1.bf16.msra.mxu0 0
      %797 = vmatprep.subr.bf16.mxu0 0
      %798 = vmatpush1.bf16.msra.mxu0 0
      %799 = vmatprep.subr.bf16.mxu0 0
      %800 = vmatpush1.bf16.msra.mxu0 0
      %801 = vmatprep.subr.bf16.mxu0 0
      %802 = vmatpush1.bf16.msra.mxu0 0
      %803 = vmatprep.subr.bf16.mxu0 0
      %804 = vmatpush1.bf16.msra.mxu0 0
      %805 = vmatprep.subr.bf16.mxu0 0
      %806 = vmatpush1.bf16.msra.mxu0 0
      %807 = vmatprep.subr.bf16.mxu0 0
      %808 = vmatpush1.bf16.msra.mxu0 0
      %809 = vmatprep.subr.bf16.mxu0 0
      %810 = vmatpush1.bf16.msra.mxu0 0
      %811 = vmatprep.subr.bf16.mxu0 0
      %812 = vmatpush1.bf16.msra.mxu0 0
      %813 = vmatprep.subr.bf16.mxu0 0
      %814 = vmatpush1.bf16.msra.mxu0 0
      %815 = vmatprep.subr.bf16.mxu0 0
      %816 = vmatpush1.bf16.msra.mxu0 0
      %817 = vmatprep.subr.bf16.mxu0 0
      %818 = vmatpush1.bf16.msra.mxu0 0
      %819 = vmatprep.subr.bf16.mxu0 0
      %820 = vmatpush1.bf16.msra.mxu0 0
      %821 = vmatprep.mubr.bf16.mxu0 0
      %822 = vmatmul.mubr.bf16.gmra.mrb[0].mxu0 %v784
      %v823 = vpop.f32.mrb[0].mxu0
      %v824 = vadd.f32 0.0, %v823
      %v825 = vpop.f32.mrb[0].mxu0
      %v826 = vpop.f32.mrb[0].mxu0
      %v827 = vpop.f32.mrb[0].mxu0
      %828 = vdwg.mxu0
      %v829 = vpack.c.bf16 %v824, %v824
      %v830 = vld [vmem:[%s5 + $0x8] sm:$0xf]
      %v832 = vsel %vm404, %v829, 0
      %v835 = vsel %vm466, %v830, 0
      %837 = vmatprep.subr.bf16.mxu0 0
      %838 = vmatpush1.bf16.msra.mxu0 %v835
      %839 = vmatprep.subr.bf16.mxu0 0
      %840 = vmatpush1.bf16.msra.mxu0 0
      %841 = vmatprep.subr.bf16.mxu0 0
      %842 = vmatpush1.bf16.msra.mxu0 0
      %843 = vmatprep.subr.bf16.mxu0 0
      %844 = vmatpush1.bf16.msra.mxu0 0
      %845 = vmatprep.subr.bf16.mxu0 0
      %846 = vmatpush1.bf16.msra.mxu0 0
      %847 = vmatprep.subr.bf16.mxu0 0
      %848 = vmatpush1.bf16.msra.mxu0 0
      %849 = vmatprep.subr.bf16.mxu0 0
      %850 = vmatpush1.bf16.msra.mxu0 0
      %851 = vmatprep.subr.bf16.mxu0 0
      %852 = vmatpush1.bf16.msra.mxu0 0
      %853 = vmatprep.subr.bf16.mxu0 0
      %854 = vmatpush1.bf16.msra.mxu0 0
      %855 = vmatprep.subr.bf16.mxu0 0
      %856 = vmatpush1.bf16.msra.mxu0 0
      %857 = vmatprep.subr.bf16.mxu0 0
      %858 = vmatpush1.bf16.msra.mxu0 0
      %859 = vmatprep.subr.bf16.mxu0 0
      %860 = vmatpush1.bf16.msra.mxu0 0
      %861 = vmatprep.subr.bf16.mxu0 0
      %862 = vmatpush1.bf16.msra.mxu0 0
      %863 = vmatprep.subr.bf16.mxu0 0
      %864 = vmatpush1.bf16.msra.mxu0 0
      %865 = vmatprep.subr.bf16.mxu0 0
      %866 = vmatpush1.bf16.msra.mxu0 0
      %867 = vmatprep.subr.bf16.mxu0 0
      %868 = vmatpush1.bf16.msra.mxu0 0
      %869 = vmatprep.mubr.bf16.mxu0 0
      %870 = vmatmul.mubr.bf16.gmra.mrb[0].mxu0 %v832
      %v871 = vpop.f32.mrb[0].mxu0
      %v872 = vadd.f32 0.0, %v871
      %v873 = vpop.f32.mrb[0].mxu0
      %v874 = vpop.f32.mrb[0].mxu0
      %v875 = vpop.f32.mrb[0].mxu0
      %876 = vdwg.mxu0
      %v877 = vadd.f32 %v714, %v872
      %878 = vrot.lane.b32.xlu0 %v401, 104
      %v879 = vpop.permute.xlu0 %878
      %880 = vrot.lane.b32.xlu0 %v402, 104
      %v881 = vpop.permute.xlu0 %880
      %v883 = vsel %vm404, %v879, 0
      %v886 = vsel %vm404, %v881, 0
      %888 = vmatprep.subr.bf16.mxu0 0
      %889 = vmatpush1.bf16.xpose.msra.mxu0 %v886
      %890 = vmatprep.subr.bf16.mxu0 0
      %891 = vmatpush1.bf16.xpose.msra.mxu0 0
      %892 = vmatprep.subr.bf16.mxu0 0
      %893 = vmatpush1.bf16.xpose.msra.mxu0 0
      %894 = vmatprep.subr.bf16.mxu0 0
      %895 = vmatpush1.bf16.xpose.msra.mxu0 0
      %896 = vmatprep.subr.bf16.mxu0 0
      %897 = vmatpush1.bf16.xpose.msra.mxu0 0
      %898 = vmatprep.subr.bf16.mxu0 0
      %899 = vmatpush1.bf16.xpose.msra.mxu0 0
      %900 = vmatprep.subr.bf16.mxu0 0
      %901 = vmatpush1.bf16.xpose.msra.mxu0 0
      %902 = vmatprep.subr.bf16.mxu0 0
      %903 = vmatpush1.bf16.xpose.msra.mxu0 0
      %904 = vmatprep.subr.bf16.mxu0 0
      %905 = vmatpush1.bf16.xpose.msra.mxu0 0
      %906 = vmatprep.subr.bf16.mxu0 0
      %907 = vmatpush1.bf16.xpose.msra.mxu0 0
      %908 = vmatprep.subr.bf16.mxu0 0
      %909 = vmatpush1.bf16.xpose.msra.mxu0 0
      %910 = vmatprep.subr.bf16.mxu0 0
      %911 = vmatpush1.bf16.xpose.msra.mxu0 0
      %912 = vmatprep.subr.bf16.mxu0 0
      %913 = vmatpush1.bf16.xpose.msra.mxu0 0
      %914 = vmatprep.subr.bf16.mxu0 0
      %915 = vmatpush1.bf16.xpose.msra.mxu0 0
      %916 = vmatprep.subr.bf16.mxu0 0
      %917 = vmatpush1.bf16.xpose.msra.mxu0 0
      %918 = vmatprep.subr.bf16.mxu0 0
      %919 = vmatpush1.bf16.xpose.msra.mxu0 0
      %920 = vmatprep.mubr.bf16.mxu0 0
      %921 = vmatmul.mubr.bf16.gmra.mrb[0].mxu0 %v883
      %v922 = vpop.f32.mrb[0].mxu0
      %v923 = vadd.f32 %v400, %v922
      %v924 = vpop.f32.mrb[0].mxu0
      %v925 = vpop.f32.mrb[0].mxu0
      %v926 = vpop.f32.mrb[0].mxu0
      %927 = vdwg.mxu0
      %v928 = vsel %vm404, %v923, -inf
      %929 = vmax.xlane.f32.xlu0 %v928
      %v930 = vpop.xlane.xlu0 %929
      %v931 = vsub.f32 %v923, %v930
      %v932 = vmul.f32 %v931, 1.442695
      %v933 = vpow.pop %v932
      %v934 = vsel %vm404, %v933, 0.0
      %935 = vadd.xlane.f32.xlu0 %v934
      %v936 = vpop.xlane.xlu0 %935
      %v937 = vrcp.pop %v936
      %v938 = vmul.f32 %v933, %v937
      %v939 = vpack.c.bf16 %v938, %v938
      %940 = vrot.lane.b32.xlu0 %v403, 104
      %v941 = vpop.permute.xlu0 %940
      %v943 = vsel %vm404, %v939, 0
      %v946 = vsel %vm466, %v941, 0
      %948 = vmatprep.subr.bf16.mxu0 0
      %949 = vmatpush1.bf16.msra.mxu0 %v946
      %950 = vmatprep.subr.bf16.mxu0 0
      %951 = vmatpush1.bf16.msra.mxu0 0
      %952 = vmatprep.subr.bf16.mxu0 0
      %953 = vmatpush1.bf16.msra.mxu0 0
      %954 = vmatprep.subr.bf16.mxu0 0
      %955 = vmatpush1.bf16.msra.mxu0 0
      %956 = vmatprep.subr.bf16.mxu0 0
      %957 = vmatpush1.bf16.msra.mxu0 0
      %958 = vmatprep.subr.bf16.mxu0 0
      %959 = vmatpush1.bf16.msra.mxu0 0
      %960 = vmatprep.subr.bf16.mxu0 0
      %961 = vmatpush1.bf16.msra.mxu0 0
      %962 = vmatprep.subr.bf16.mxu0 0
      %963 = vmatpush1.bf16.msra.mxu0 0
      %964 = vmatprep.subr.bf16.mxu0 0
      %965 = vmatpush1.bf16.msra.mxu0 0
      %966 = vmatprep.subr.bf16.mxu0 0
      %967 = vmatpush1.bf16.msra.mxu0 0
      %968 = vmatprep.subr.bf16.mxu0 0
      %969 = vmatpush1.bf16.msra.mxu0 0
      %970 = vmatprep.subr.bf16.mxu0 0
      %971 = vmatpush1.bf16.msra.mxu0 0
      %972 = vmatprep.subr.bf16.mxu0 0
      %973 = vmatpush1.bf16.msra.mxu0 0
      %974 = vmatprep.subr.bf16.mxu0 0
      %975 = vmatpush1.bf16.msra.mxu0 0
      %976 = vmatprep.subr.bf16.mxu0 0
      %977 = vmatpush1.bf16.msra.mxu0 0
      %978 = vmatprep.subr.bf16.mxu0 0
      %979 = vmatpush1.bf16.msra.mxu0 0
      %980 = vmatprep.mubr.bf16.mxu0 0
      %981 = vmatmul.mubr.bf16.gmra.mrb[0].mxu0 %v943
      %v982 = vpop.f32.mrb[0].mxu0
      %v983 = vadd.f32 0.0, %v982
      %v984 = vpop.f32.mrb[0].mxu0
      %v985 = vpop.f32.mrb[0].mxu0
      %v986 = vpop.f32.mrb[0].mxu0
      %987 = vdwg.mxu0
      %v988 = vpack.c.bf16 %v983, %v983
      %v989 = vld [vmem:[%s5 + $0xc] sm:$0xf]
      %v991 = vsel %vm404, %v988, 0
      %v994 = vsel %vm466, %v989, 0
      %996 = vmatprep.subr.bf16.mxu0 0
      %997 = vmatpush1.bf16.msra.mxu0 %v994
      %998 = vmatprep.subr.bf16.mxu0 0
      %999 = vmatpush1.bf16.msra.mxu0 0
      %1000 = vmatprep.subr.bf16.mxu0 0
      %1001 = vmatpush1.bf16.msra.mxu0 0
      %1002 = vmatprep.subr.bf16.mxu0 0
      %1003 = vmatpush1.bf16.msra.mxu0 0
      %1004 = vmatprep.subr.bf16.mxu0 0
      %1005 = vmatpush1.bf16.msra.mxu0 0
      %1006 = vmatprep.subr.bf16.mxu0 0
      %1007 = vmatpush1.bf16.msra.mxu0 0
      %1008 = vmatprep.subr.bf16.mxu0 0
      %1009 = vmatpush1.bf16.msra.mxu0 0
      %1010 = vmatprep.subr.bf16.mxu0 0
      %1011 = vmatpush1.bf16.msra.mxu0 0
      %1012 = vmatprep.subr.bf16.mxu0 0
      %1013 = vmatpush1.bf16.msra.mxu0 0
      %1014 = vmatprep.subr.bf16.mxu0 0
      %1015 = vmatpush1.bf16.msra.mxu0 0
      %1016 = vmatprep.subr.bf16.mxu0 0
      %1017 = vmatpush1.bf16.msra.mxu0 0
      %1018 = vmatprep.subr.bf16.mxu0 0
      %1019 = vmatpush1.bf16.msra.mxu0 0
      %1020 = vmatprep.subr.bf16.mxu0 0
      %1021 = vmatpush1.bf16.msra.mxu0 0
      %1022 = vmatprep.subr.bf16.mxu0 0
      %1023 = vmatpush1.bf16.msra.mxu0 0
      %1024 = vmatprep.subr.bf16.mxu0 0
      %1025 = vmatpush1.bf16.msra.mxu0 0
      %1026 = vmatprep.subr.bf16.mxu0 0
      %1027 = vmatpush1.bf16.msra.mxu0 0
      %1028 = vmatprep.mubr.bf16.mxu0 0
      %1029 = vmatmul.mubr.bf16.gmra.mrb[0].mxu0 %v991
      %v1030 = vpop.f32.mrb[0].mxu0
      %v1031 = vadd.f32 0.0, %v1030
      %v1032 = vpop.f32.mrb[0].mxu0
      %v1033 = vpop.f32.mrb[0].mxu0
      %v1034 = vpop.f32.mrb[0].mxu0
      %1035 = vdwg.mxu0
      %v1036 = vadd.f32 %v877, %v1031
      %v1037 = vld [vmem:[%s391] sm:$0xff]
      %v1038 = vadd.f32 %v1037, %v1036
      %v1039 = vld [vmem:[%s6] sm:$0x1]
      %v1041 = vlaneseq
      %v1042 = vshrl.u32 %v1041, 7
      %v1043 = vsub.s32 0, %v1042
      %v1044 = vrot.slane %v1039, %v1043
      %v1046 = vadd.f32 %v1038, %v1044
      %vm1047 = vcmask 261120
      %v1048 = vsel %vm1047, %v1046, 0.0
      %1049 = vadd.xlane.f32.xlu0 %v1048
      %v1050 = vpop.xlane.xlu0 %1049
      %v1051 = vrcp.pop 32.0
      %v1052 = vmul.f32 %v1050, %v1051
      %v1053 = vsub.f32 %v1046, %v1052
      %v1054 = vmul.f32 %v1053, %v1053
      %v1055 = vsel %vm1047, %v1054, 0.0
      %1056 = vadd.xlane.f32.xlu0 %v1055
      %v1057 = vpop.xlane.xlu0 %1056
      %v1058 = vmul.f32 %v1057, %v1051
      %v1059 = vadd.f32 %v1058, 1e-05
      %v1060 = vrsqrt.pop %v1059
      %v1061 = vmul.f32 %v1053, %v1060
      %v1062 = vld [vmem:[%s7] sm:$0x1]
      %v1064 = vlaneseq
      %v1065 = vshrl.u32 %v1064, 7
      %v1066 = vsub.s32 0, %v1065
      %v1067 = vrot.slane %v1062, %v1066
      %v1069 = vmul.f32 %v1061, %v1067
      %v1070 = vld [vmem:[%s8] sm:$0x1]
      %v1072 = vlaneseq
      %v1073 = vshrl.u32 %v1072, 7
      %v1074 = vsub.s32 0, %v1073
      %v1075 = vrot.slane %v1070, %v1074
      %v1077 = vadd.f32 %v1069, %v1075
      %1078 = vst.msk [vmem:[%s395] sm:$0xff] %vm1047, %v1077
      %p1079 = scmp.lt.s32.totalorder %s20, 1
      %s1080 = scalar_select %p1079, %s20, 1
      %s1081 = smul.addr %s1080, 8
      %s1082 = scalar_lea.vmem %s9, %s1081
      // Predicated region
      $region57: #{transformer_forward.26} parent=55 // pred_check
        %p1083 = pneg %p252
      $region58: #{transformer_forward.26} parent=55 // pred_check_branch
        %1085 = sbr.rel (%p1083) target = $region60
      $region59: #{transformer_forward.26} parent=55 // pred_region
        _
      $region60: #{transformer_forward.26} parent=55 // pred_fallthru
        _
    $region56: #{transformer_forward.26} parent=5 // pred_fallthru
      _
    %p1086 = scmp.le.s32.totalorder 2, %s15
    // Predicated region
    $region61: #{transformer_forward.26} parent=5 // pred_check
      %p1087 = pneg %p1086
    $region62: #{transformer_forward.26} parent=5 // pred_check_branch
      %1089 = sbr.rel (%p1087) target = $region64
    $region63: #{transformer_forward.26} parent=5 // pred_region
      %s1090 = ssub.s32 %s15, 2
      // Predicated region
      $region65: #{transformer_forward.26} parent=63 // pred_check
        %p1091 = pneg %p258
      $region66: #{transformer_forward.26} parent=63 // pred_check_branch
        %1093 = sbr.rel (%p1091) target = $region68
      $region67: #{transformer_forward.26} parent=63 // pred_region
        %p1094 = scmp.lt.s32.totalorder %s21, 1
        %s1095 = scalar_select %p1094, %s21, 1
        %s1096 = smul.addr %s1095, 8
        %s1097 = scalar_lea.vmem %s9, %s1096
      $region68: #{transformer_forward.26} parent=63 // pred_fallthru
        _
    $region64: #{transformer_forward.26} parent=5 // pred_fallthru
      _
  $region6: #{transformer_forward.26} parent=0 // loop_footer
    %s19 = sadd.s32 1, %s15
  $region7: #{transformer_forward.26} parent=0 // loop_footer_branch
    %14 = sbr.rel target = $region3
  $region8: #{transformer_forward.26} parent=0 // loop_exit
    _

// kernel: transformer_forward.37
$region0: #{transformer_forward.37}
  #allocation0 [shape = 'u32[]', space=smem, size = 0x4, offset = 0x4, fixed_abs, tag = 'smem constant byte address 0x4 - core index']
  #allocation1 [shape = 'u32[144,128]{1,0:T(1,128)}', space=vmem, size = 0x12000, scoped, tag = 'internal scratch']
  %s0 = inlined_call_operand.vmem [shape: f32[16,32], index: 0, kind: input, shape index: {}]
  %s1 = inlined_call_operand.vmem [shape: bf16[32,64], index: 1, kind: input, shape index: {}]
  %s2 = inlined_call_operand.vmem [shape: f32[1,64], index: 2, kind: input, shape index: {}]
  %s3 = inlined_call_operand.hbm [shape: f32[16,64], index: 3, kind: output, shape index: {}]
  %s4 = sld [smem:[#allocation0]]
  $region22: #{transformer_forward.37} parent=0
    _
  %s6 = ssub.s32 1, %s4
  %s7 = scalar_select 0, %s6, %s4
  $region1: #{transformer_forward.37} parent=0
    #allocation2 [shape = 'u8[8192]{0}', space=vmem, size = 0x2000, scoped, tag = 'output window, operand 0, single buffered']
    #allocation3 [shape = 's32[1]{0}', space=sflag, size = 0x4, scoped, tag = 'scoped memory for transformer_forward.37']
    %8 = vsyncpa [#allocation3], 0
    // Predicated region
    $region2: #{transformer_forward.37} parent=1 // pred_check
      _
    $region3: #{transformer_forward.37} parent=1 // pred_check_branch
      %10 = sbr.rel (0) target = $region5
    $region4: #{transformer_forward.37} parent=1 // pred_region
      _
    $region5: #{transformer_forward.37} parent=1 // pred_fallthru
      _
    // Predicated region
    $region6: #{transformer_forward.37} parent=1 // pred_check
      _
    $region7: #{transformer_forward.37} parent=1 // pred_check_branch
      %12 = sbr.rel (0) target = $region9
    $region8: #{transformer_forward.37} parent=1 // pred_region
      _
    $region9: #{transformer_forward.37} parent=1 // pred_fallthru
      _
    // Predicated region
    $region10: #{transformer_forward.37} parent=1 // pred_check
      _
    $region11: #{transformer_forward.37} parent=1 // pred_check_branch
      %14 = sbr.rel (0) target = $region13
    $region12: #{transformer_forward.37} parent=1 // pred_region
      _
    $region13: #{transformer_forward.37} parent=1 // pred_fallthru
      _
    %v16 = vld [vmem:[%s0] sm:$0xff]
    %v17 = vld [vmem:[%s0 + $0x8] sm:$0xff]
    %v18 = vpack.c.bf16 %v17, %v16
    %v19 = vld [vmem:[%s1] sm:$0xf]
    %v20 = vld [vmem:[%s1 + $0x4] sm:$0xf]
    %v21 = vld [vmem:[%s1 + $0x8] sm:$0xf]
    %v22 = vld [vmem:[%s1 + $0xc] sm:$0xf]
    %v23 = vld [vmem:[%s2] sm:$0x1]
    %v25 = vlaneseq
    %v26 = vshrl.u32 %v25, 7
    %v27 = vsub.s32 0, %v26
    %v28 = vrot.slane %v23, %v27
    %v34 = vunpack.c.l.b16 %v19
    %v35 = vunpack.c.l.b16 %v20
    %v36 = vunpack.c.l.b16 %v21
    %v37 = vunpack.c.l.b16 %v22
    %v38 = vpack.c.b16 %v35, %v34
    %v39 = vpack.c.b16 %v37, %v36
    %vm42 = vcmask 261120
    %v44 = vsel %vm42, %v18, 0
    %46 = vmatprep.subr.bf16.mxu0 0
    %47 = vmatpush1.bf16.msra.mxu0 %v38
    %48 = vmatprep.subr.bf16.mxu0 0
    %49 = vmatpush1.bf16.msra.mxu0 %v39
    %50 = vmatprep.subr.bf16.mxu0 0
    %51 = vmatpush1.bf16.msra.mxu0 0
    %52 = vmatprep.subr.bf16.mxu0 0
    %53 = vmatpush1.bf16.msra.mxu0 0
    %54 = vmatprep.subr.bf16.mxu0 0
    %55 = vmatpush1.bf16.msra.mxu0 0
    %56 = vmatprep.subr.bf16.mxu0 0
    %57 = vmatpush1.bf16.msra.mxu0 0
    %58 = vmatprep.subr.bf16.mxu0 0
    %59 = vmatpush1.bf16.msra.mxu0 0
    %60 = vmatprep.subr.bf16.mxu0 0
    %61 = vmatpush1.bf16.msra.mxu0 0
    %62 = vmatprep.subr.bf16.mxu0 0
    %63 = vmatpush1.bf16.msra.mxu0 0
    %64 = vmatprep.subr.bf16.mxu0 0
    %65 = vmatpush1.bf16.msra.mxu0 0
    %66 = vmatprep.subr.bf16.mxu0 0
    %67 = vmatpush1.bf16.msra.mxu0 0
    %68 = vmatprep.subr.bf16.mxu0 0
    %69 = vmatpush1.bf16.msra.mxu0 0
    %70 = vmatprep.subr.bf16.mxu0 0
    %71 = vmatpush1.bf16.msra.mxu0 0
    %72 = vmatprep.subr.bf16.mxu0 0
    %73 = vmatpush1.bf16.msra.mxu0 0
    %74 = vmatprep.subr.bf16.mxu0 0
    %75 = vmatpush1.bf16.msra.mxu0 0
    %76 = vmatprep.subr.bf16.mxu0 0
    %77 = vmatpush1.bf16.msra.mxu0 0
    %78 = vmatprep.mubr.bf16.mxu0 0
    %79 = vmatmul.mubr.bf16.gmra.mrb[0].mxu0 %v44
    %v80 = vpop.f32.mrb[0].mxu0
    %v81 = vadd.f32 %v28, %v80
    %v82 = vpop.f32.mrb[0].mxu0
    %v83 = vpop.f32.mrb[0].mxu0
    %v84 = vadd.f32 %v28, %v83
    %v85 = vpop.f32.mrb[0].mxu0
    %86 = vdwg.mxu0
    %vm87 = vcmask 523264
    %88 = vst.msk [vmem:[#allocation2] sm:$0xff] %vm87, %v81
    %89 = vst.msk [vmem:[#allocation2 + $0x8] sm:$0xff] %vm87, %v84
    // Predicated region
    $region14: #{transformer_forward.37} parent=1 // pred_check
      _
    $region15: #{transformer_forward.37} parent=1 // pred_check_branch
      %91 = sbr.rel (0) target = $region17
    $region16: #{transformer_forward.37} parent=1 // pred_region
      %s93 = ssub.s32 256, 256
      %94 = vsyncadd [#allocation3], %s93
      %s95 = sshll.u32 [#allocation2], 4
      %s96 = int_to_ptr.vmem [resolvable:$true] %s95
      %101 = dma.vmem_to_hbm [thread:$0]  %s96, 256, %s3, [#allocation3], 128, 128, 8
    $region17: #{transformer_forward.37} parent=1 // pred_fallthru
      _
    // Predicated region
    $region18: #{transformer_forward.37} parent=1 // pred_check
      _
    $region19: #{transformer_forward.37} parent=1 // pred_check_branch
      %103 = sbr.rel (0) target = $region21
    $region20: #{transformer_forward.37} parent=1 // pred_region
      %104 = dma.done [#allocation3], 256
    $region21: #{transformer_forward.37} parent=1 // pred_fallthru
      _
    %105 = vsyncpa [#allocation3], 1

// kernel: transformer_forward.30
$region0: #{transformer_forward.30}
  #allocation0 [shape = 'u32[]', space=smem, size = 0x4, offset = 0x4, fixed_abs, tag = 'smem constant byte address 0x4 - core index']
  #allocation1 [shape = 'u32[144,128]{1,0:T(1,128)}', space=vmem, size = 0x12000, scoped, tag = 'internal scratch']
  %s0 = inlined_call_operand.vmem [shape: f32[16,32], index: 0, kind: input, shape index: {}]
  %s1 = inlined_call_operand.vmem [shape: bf16[32,64], index: 1, kind: input, shape index: {}]
  %s2 = inlined_call_operand.vmem [shape: f32[1,64], index: 2, kind: input, shape index: {}]
  %s3 = inlined_call_operand.vmem [shape: bf16[64,32], index: 3, kind: input, shape index: {}]
  %s4 = inlined_call_operand.vmem [shape: f32[1,32], index: 4, kind: input, shape index: {}]
  %s5 = inlined_call_operand.vmem [shape: f32[1,32], index: 5, kind: input, shape index: {}]
  %s6 = inlined_call_operand.vmem [shape: f32[1,32], index: 6, kind: input, shape index: {}]
  %s7 = inlined_call_operand.vmem [shape: f32[16,32], index: 7, kind: output, shape index: {}]
  %s8 = sld [smem:[#allocation0]]
  $region38: #{transformer_forward.30} parent=0
    _
  %s10 = ssub.s32 1, %s8
  %s11 = scalar_select 0, %s10, %s8
  // Predicated region
  $region2: #{transformer_forward.30} parent=0 // pred_check
    _
  $region3: #{transformer_forward.30} parent=0 // pred_check_branch
    %13 = sbr.rel (0) target = $region5
  $region4: #{transformer_forward.30} parent=0 // pred_region
    _
  $region5: #{transformer_forward.30} parent=0 // pred_fallthru
    _
  // Predicated region
  $region6: #{transformer_forward.30} parent=0 // pred_check
    _
  $region7: #{transformer_forward.30} parent=0 // pred_check_branch
    %15 = sbr.rel (0) target = $region9
  $region8: #{transformer_forward.30} parent=0 // pred_region
    _
  $region9: #{transformer_forward.30} parent=0 // pred_fallthru
    _
  // Predicated region
  $region10: #{transformer_forward.30} parent=0 // pred_check
    _
  $region11: #{transformer_forward.30} parent=0 // pred_check_branch
    %17 = sbr.rel (0) target = $region13
  $region12: #{transformer_forward.30} parent=0 // pred_region
    _
  $region13: #{transformer_forward.30} parent=0 // pred_fallthru
    _
  // Predicated region
  $region14: #{transformer_forward.30} parent=0 // pred_check
    _
  $region15: #{transformer_forward.30} parent=0 // pred_check_branch
    %19 = sbr.rel (0) target = $region17
  $region16: #{transformer_forward.30} parent=0 // pred_region
    _
  $region17: #{transformer_forward.30} parent=0 // pred_fallthru
    _
  // Predicated region
  $region18: #{transformer_forward.30} parent=0 // pred_check
    _
  $region19: #{transformer_forward.30} parent=0 // pred_check_branch
    %21 = sbr.rel (0) target = $region21
  $region20: #{transformer_forward.30} parent=0 // pred_region
    _
  $region21: #{transformer_forward.30} parent=0 // pred_fallthru
    _
  // Predicated region
  $region22: #{transformer_forward.30} parent=0 // pred_check
    _
  $region23: #{transformer_forward.30} parent=0 // pred_check_branch
    %23 = sbr.rel (0) target = $region25
  $region24: #{transformer_forward.30} parent=0 // pred_region
    _
  $region25: #{transformer_forward.30} parent=0 // pred_fallthru
    _
  // Predicated region
  $region26: #{transformer_forward.30} parent=0 // pred_check
    _
  $region27: #{transformer_forward.30} parent=0 // pred_check_branch
    %25 = sbr.rel (0) target = $region29
  $region28: #{transformer_forward.30} parent=0 // pred_region
    _
  $region29: #{transformer_forward.30} parent=0 // pred_fallthru
    _
  %v27 = vld [vmem:[%s0] sm:$0xff]
  %v28 = vld [vmem:[%s0 + $0x8] sm:$0xff]
  %v29 = vpack.c.bf16 %v28, %v27
  %v30 = vld [vmem:[%s1] sm:$0xf]
  %v31 = vld [vmem:[%s1 + $0x4] sm:$0xf]
  %v32 = vld [vmem:[%s1 + $0x8] sm:$0xf]
  %v33 = vld [vmem:[%s1 + $0xc] sm:$0xf]
  %v34 = vld [vmem:[%s2] sm:$0x1]
  %v36 = vlaneseq
  %v37 = vshrl.u32 %v36, 7
  %v38 = vsub.s32 0, %v37
  %v39 = vrot.slane %v34, %v38
  %v45 = vunpack.c.l.b16 %v30
  %v46 = vunpack.c.l.b16 %v31
  %v47 = vunpack.c.l.b16 %v32
  %v48 = vunpack.c.l.b16 %v33
  %v49 = vpack.c.b16 %v46, %v45
  %v50 = vpack.c.b16 %v48, %v47
  %vm53 = vcmask 261120
  %v55 = vsel %vm53, %v29, 0
  %57 = vmatprep.subr.bf16.mxu0 0
  %58 = vmatpush1.bf16.msra.mxu0 %v49
  %59 = vmatprep.subr.bf16.mxu0 0
  %60 = vmatpush1.bf16.msra.mxu0 %v50
  %61 = vmatprep.subr.bf16.mxu0 0
  %62 = vmatpush1.bf16.msra.mxu0 0
  %63 = vmatprep.subr.bf16.mxu0 0
  %64 = vmatpush1.bf16.msra.mxu0 0
  %65 = vmatprep.subr.bf16.mxu0 0
  %66 = vmatpush1.bf16.msra.mxu0 0
  %67 = vmatprep.subr.bf16.mxu0 0
  %68 = vmatpush1.bf16.msra.mxu0 0
  %69 = vmatprep.subr.bf16.mxu0 0
  %70 = vmatpush1.bf16.msra.mxu0 0
  %71 = vmatprep.subr.bf16.mxu0 0
  %72 = vmatpush1.bf16.msra.mxu0 0
  %73 = vmatprep.subr.bf16.mxu0 0
  %74 = vmatpush1.bf16.msra.mxu0 0
  %75 = vmatprep.subr.bf16.mxu0 0
  %76 = vmatpush1.bf16.msra.mxu0 0
  %77 = vmatprep.subr.bf16.mxu0 0
  %78 = vmatpush1.bf16.msra.mxu0 0
  %79 = vmatprep.subr.bf16.mxu0 0
  %80 = vmatpush1.bf16.msra.mxu0 0
  %81 = vmatprep.subr.bf16.mxu0 0
  %82 = vmatpush1.bf16.msra.mxu0 0
  %83 = vmatprep.subr.bf16.mxu0 0
  %84 = vmatpush1.bf16.msra.mxu0 0
  %85 = vmatprep.subr.bf16.mxu0 0
  %86 = vmatpush1.bf16.msra.mxu0 0
  %87 = vmatprep.subr.bf16.mxu0 0
  %88 = vmatpush1.bf16.msra.mxu0 0
  %89 = vmatprep.mubr.bf16.mxu0 0
  %90 = vmatmul.mubr.bf16.gmra.mrb[0].mxu0 %v55
  %v91 = vpop.f32.mrb[0].mxu0
  %v92 = vadd.f32 %v39, %v91
  %v93 = vpop.f32.mrb[0].mxu0
  %v94 = vpop.f32.mrb[0].mxu0
  %v95 = vadd.f32 %v39, %v94
  %v96 = vpop.f32.mrb[0].mxu0
  %97 = vdwg.mxu0
  %v98 = vmax.f32 %v92, 0.0
  %v99 = vmax.f32 %v95, 0.0
  %v100 = vpack.c.bf16 %v99, %v98
  %v101 = vld [vmem:[%s3] sm:$0xf]
  %v102 = vld [vmem:[%s3 + $0x4] sm:$0xf]
  %v103 = vld [vmem:[%s3 + $0x8] sm:$0xf]
  %v104 = vld [vmem:[%s3 + $0xc] sm:$0xf]
  %v105 = vld [vmem:[%s3 + $0x10] sm:$0xf]
  %v106 = vld [vmem:[%s3 + $0x14] sm:$0xf]
  %v107 = vld [vmem:[%s3 + $0x18] sm:$0xf]
  %v108 = vld [vmem:[%s3 + $0x1c] sm:$0xf]
  %v109 = vld [vmem:[%s4] sm:$0x1]
  %v111 = vlaneseq
  %v112 = vshrl.u32 %v111, 7
  %v113 = vsub.s32 0, %v112
  %v114 = vrot.slane %v109, %v113
  %v124 = vunpack.c.l.b16 %v101
  %v125 = vunpack.c.l.b16 %v102
  %v126 = vunpack.c.l.b16 %v103
  %v127 = vunpack.c.l.b16 %v104
  %v128 = vunpack.c.l.b16 %v105
  %v129 = vunpack.c.l.b16 %v106
  %v130 = vunpack.c.l.b16 %v107
  %v131 = vunpack.c.l.b16 %v108
  %v132 = vpack.c.b16 %v125, %v124
  %v133 = vpack.c.b16 %v127, %v126
  %v134 = vpack.c.b16 %v129, %v128
  %v135 = vpack.c.b16 %v131, %v130
  %vm140 = vcmask 523264
  %v142 = vsel %vm140, %v100, 0
  %144 = vmatprep.subr.bf16.mxu0 0
  %145 = vmatpush1.bf16.msra.mxu0 %v132
  %146 = vmatprep.subr.bf16.mxu0 0
  %147 = vmatpush1.bf16.msra.mxu0 %v133
  %148 = vmatprep.subr.bf16.mxu0 0
  %149 = vmatpush1.bf16.msra.mxu0 %v134
  %150 = vmatprep.subr.bf16.mxu0 0
  %151 = vmatpush1.bf16.msra.mxu0 %v135
  %152 = vmatprep.subr.bf16.mxu0 0
  %153 = vmatpush1.bf16.msra.mxu0 0
  %154 = vmatprep.subr.bf16.mxu0 0
  %155 = vmatpush1.bf16.msra.mxu0 0
  %156 = vmatprep.subr.bf16.mxu0 0
  %157 = vmatpush1.bf16.msra.mxu0 0
  %158 = vmatprep.subr.bf16.mxu0 0
  %159 = vmatpush1.bf16.msra.mxu0 0
  %160 = vmatprep.subr.bf16.mxu0 0
  %161 = vmatpush1.bf16.msra.mxu0 0
  %162 = vmatprep.subr.bf16.mxu0 0
  %163 = vmatpush1.bf16.msra.mxu0 0
  %164 = vmatprep.subr.bf16.mxu0 0
  %165 = vmatpush1.bf16.msra.mxu0 0
  %166 = vmatprep.subr.bf16.mxu0 0
  %167 = vmatpush1.bf16.msra.mxu0 0
  %168 = vmatprep.subr.bf16.mxu0 0
  %169 = vmatpush1.bf16.msra.mxu0 0
  %170 = vmatprep.subr.bf16.mxu0 0
  %171 = vmatpush1.bf16.msra.mxu0 0
  %172 = vmatprep.subr.bf16.mxu0 0
  %173 = vmatpush1.bf16.msra.mxu0 0
  %174 = vmatprep.subr.bf16.mxu0 0
  %175 = vmatpush1.bf16.msra.mxu0 0
  %176 = vmatprep.mubr.bf16.mxu0 0
  %177 = vmatmul.mubr.bf16.gmra.mrb[0].mxu0 %v142
  %v178 = vpop.f32.mrb[0].mxu0
  %v179 = vadd.f32 %v114, %v178
  %v180 = vpop.f32.mrb[0].mxu0
  %v181 = vpop.f32.mrb[0].mxu0
  %v182 = vadd.f32 %v114, %v181
  %v183 = vpop.f32.mrb[0].mxu0
  %184 = vdwg.mxu0
  %v185 = vadd.f32 %v27, %v179
  %v186 = vadd.f32 %v28, %v182
  %v187 = vsel %vm53, %v185, 0.0
  %188 = vadd.xlane.f32.xlu0 %v187
  %v189 = vpop.xlane.xlu0 %188
  %v190 = vsel %vm53, %v186, 0.0
  %191 = vadd.xlane.f32.xlu0 %v190
  %v192 = vpop.xlane.xlu0 %191
  %v193 = vrcp.pop 32.0
  %v194 = vmul.f32 %v189, %v193
  %v195 = vmul.f32 %v192, %v193
  %v196 = vsub.f32 %v185, %v194
  %v197 = vsub.f32 %v186, %v195
  %v198 = vmul.f32 %v196, %v196
  %v199 = vmul.f32 %v197, %v197
  %v200 = vsel %vm53, %v198, 0.0
  %201 = vadd.xlane.f32.xlu0 %v200
  %v202 = vpop.xlane.xlu0 %201
  %v203 = vsel %vm53, %v199, 0.0
  %204 = vadd.xlane.f32.xlu0 %v203
  %v205 = vpop.xlane.xlu0 %204
  %v206 = vmul.f32 %v202, %v193
  %v207 = vmul.f32 %v205, %v193
  %v208 = vadd.f32 %v206, 1e-05
  %v209 = vadd.f32 %v207, 1e-05
  %v210 = vrsqrt.pop %v208
  %v211 = vrsqrt.pop %v209
  %v212 = vmul.f32 %v196, %v210
  %v213 = vmul.f32 %v197, %v211
  %v214 = vld [vmem:[%s5] sm:$0x1]
  %v216 = vlaneseq
  %v217 = vshrl.u32 %v216, 7
  %v218 = vsub.s32 0, %v217
  %v219 = vrot.slane %v214, %v218
  %v221 = vmul.f32 %v212, %v219
  %v222 = vmul.f32 %v213, %v219
  %v223 = vld [vmem:[%s6] sm:$0x1]
  %v225 = vlaneseq
  %v226 = vshrl.u32 %v225, 7
  %v227 = vsub.s32 0, %v226
  %v228 = vrot.slane %v223, %v227
  %v230 = vadd.f32 %v221, %v228
  %v231 = vadd.f32 %v222, %v228
  %232 = vst.msk [vmem:[%s7] sm:$0xff] %vm53, %v230
  %233 = vst.msk [vmem:[%s7 + $0x8] sm:$0xff] %vm53, %v231
  // Predicated region
  $region30: #{transformer_forward.30} parent=0 // pred_check
    _
  $region31: #{transformer_forward.30} parent=0 // pred_check_branch
    %235 = sbr.rel (0) target = $region33
  $region32: #{transformer_forward.30} parent=0 // pred_region
    _
  $region33: #{transformer_forward.30} parent=0 // pred_fallthru
    _
  // Predicated region
  $region34: #{transformer_forward.30} parent=0 // pred_check
    _
  $region35: #{transformer_forward.30} parent=0 // pred_check_branch
    %237 = sbr.rel (0) target = $region37
  $region36: #{transformer_forward.30} parent=0 // pred_region
    _
  $region37: #{transformer_forward.30} parent=0 // pred_fallthru
    _

// kernel: transformer_forward.29
$region0: #{transformer_forward.29}
  #allocation0 [shape = 'u32[]', space=smem, size = 0x4, offset = 0x4, fixed_abs, tag = 'smem constant byte address 0x4 - core index']
  #allocation1 [shape = 'u32[144,128]{1,0:T(1,128)}', space=vmem, size = 0x12000, scoped, tag = 'internal scratch']
  %s0 = inlined_call_operand.vmem [shape: f32[2,8,32], index: 0, kind: input, shape index: {}]
  %s1 = inlined_call_operand.vmem [shape: f32[2,12,32], index: 1, kind: input, shape index: {}]
  %s2 = inlined_call_operand.vmem [shape: f32[2,12,32], index: 2, kind: input, shape index: {}]
  %s3 = inlined_call_operand.vmem [shape: f32[2,8,12], index: 3, kind: input, shape index: {}]
  %s4 = inlined_call_operand.vmem [shape: f32[2,8,32], index: 4, kind: input, shape index: {}]
  %s5 = inlined_call_operand.vmem [shape: bf16[32,32], index: 5, kind: input, shape index: {}]
  %s6 = inlined_call_operand.vmem [shape: f32[1,32], index: 6, kind: input, shape index: {}]
  %s7 = inlined_call_operand.vmem [shape: f32[1,32], index: 7, kind: input, shape index: {}]
  %s8 = inlined_call_operand.vmem [shape: f32[1,32], index: 8, kind: input, shape index: {}]
  %s9 = inlined_call_operand.vmem [shape: f32[2,8,32], index: 9, kind: output, shape index: {}]
  %s10 = sld [smem:[#allocation0]]
  $region69: #{transformer_forward.29} parent=0
    _
  %s12 = ssub.s32 1, %s10
  %s13 = scalar_select 0, %s12, %s10
  loop: start=0, step=1, limit=4
  $region2: #{transformer_forward.29} parent=0 // loop_pre_header
    _
  $region3: #{transformer_forward.29} parent=0 // loop_header
    %s15 = sphi 0, %s19
    %p16 = scmp.ge.s32.totalorder %s15, 4
    %s25 = sphi 0, %s27
    %s28 = sphi 0, %s25
    %s29 = sphi 0, %s28
    %s45 = sphi 0, %s29
    %s51 = sphi 0, %s53
    %s54 = sphi 0, %s51
    %s55 = sphi 0, %s54
    %s71 = sphi 0, %s55
    %s77 = sphi 0, %s79
    %s80 = sphi 0, %s77
    %s81 = sphi 0, %s80
    %s97 = sphi 0, %s81
    %s103 = sphi 0, %s105
    %s106 = sphi 0, %s103
    %s107 = sphi 0, %s106
    %s123 = sphi 0, %s107
    %s129 = sphi 0, %s131
    %s132 = sphi 0, %s129
    %s133 = sphi 0, %s132
    %s149 = sphi 0, %s133
    %s153 = sphi 0, %s153
    %s155 = sphi 0, %s153
    %s156 = sphi 0, %s155
    %s170 = sphi 0, %s156
    %s174 = sphi 0, %s174
    %s176 = sphi 0, %s174
    %s177 = sphi 0, %s176
    %s191 = sphi 0, %s177
    %s195 = sphi 0, %s195
    %s197 = sphi 0, %s195
    %s198 = sphi 0, %s197
    %s212 = sphi 0, %s198
    %s216 = sphi 0, %s216
    %s218 = sphi 0, %s216
    %s219 = sphi 0, %s218
    %s233 = sphi 0, %s219
    %s239 = sphi 0, %s241
    %s242 = sphi 0, %s239
    %s243 = sphi 0, %s242
    %s259 = sphi 0, %s243
  $region4: #{transformer_forward.29} parent=0 // loop_header_branch
    %18 = sbr.rel (%p16) target = $region8
  $region5: #{transformer_forward.29} parent=0 // loop_body
    %s20 = ssub.s32 %s15, 1
    %s21 = ssub.s32 %s15, 2
    %s22 = sadd.s32 %s15, 1
    %s23 = ssub.s32 %s15, %s22
    %p24 = scmp.eq.s32.totalorder %s23, 0
    %s26 = sadd.s32 %s25, 1
    %s27 = scalar_select %p24, %s25, %s26
    %p30 = pneg %p24
    %p31 = scmp.eq.s32.totalorder %s15, 1
    %p32 = por %p30, %p31
    %p33 = scmp.ne.s32.totalorder %s25, %s28
    %p34 = scmp.eq.s32.totalorder %s15, 0
    %p35 = por %p33, %p34
    %p36 = scmp.ne.s32.totalorder %s25, %s28
    %p37 = scmp.eq.s32.totalorder %s20, 1
    %p38 = por %p36, %p37
    %p39 = scmp.ne.s32.totalorder %s28, %s29
    %p40 = scmp.eq.s32.totalorder %s20, 0
    %p41 = por %p39, %p40
    %p42 = scmp.ne.s32.totalorder %s28, %s29
    %p43 = scmp.eq.s32.totalorder %s21, 1
    %p44 = por %p42, %p43
    %p46 = scmp.ne.s32.totalorder %s29, %s45
    %p47 = scmp.eq.s32.totalorder %s21, 0
    %p48 = por %p46, %p47
    %s49 = ssub.s32 %s15, %s22
    %p50 = scmp.eq.s32.totalorder %s49, 0
    %s52 = sadd.s32 %s51, 1
    %s53 = scalar_select %p50, %s51, %s52
    %p56 = pneg %p50
    %p57 = scmp.eq.s32.totalorder %s15, 1
    %p58 = por %p56, %p57
    %p59 = scmp.ne.s32.totalorder %s51, %s54
    %p60 = scmp.eq.s32.totalorder %s15, 0
    %p61 = por %p59, %p60
    %p62 = scmp.ne.s32.totalorder %s51, %s54
    %p63 = scmp.eq.s32.totalorder %s20, 1
    %p64 = por %p62, %p63
    %p65 = scmp.ne.s32.totalorder %s54, %s55
    %p66 = scmp.eq.s32.totalorder %s20, 0
    %p67 = por %p65, %p66
    %p68 = scmp.ne.s32.totalorder %s54, %s55
    %p69 = scmp.eq.s32.totalorder %s21, 1
    %p70 = por %p68, %p69
    %p72 = scmp.ne.s32.totalorder %s55, %s71
    %p73 = scmp.eq.s32.totalorder %s21, 0
    %p74 = por %p72, %p73
    %s75 = ssub.s32 %s15, %s22
    %p76 = scmp.eq.s32.totalorder %s75, 0
    %s78 = sadd.s32 %s77, 1
    %s79 = scalar_select %p76, %s77, %s78
    %p82 = pneg %p76
    %p83 = scmp.eq.s32.totalorder %s15, 1
    %p84 = por %p82, %p83
    %p85 = scmp.ne.s32.totalorder %s77, %s80
    %p86 = scmp.eq.s32.totalorder %s15, 0
    %p87 = por %p85, %p86
    %p88 = scmp.ne.s32.totalorder %s77, %s80
    %p89 = scmp.eq.s32.totalorder %s20, 1
    %p90 = por %p88, %p89
    %p91 = scmp.ne.s32.totalorder %s80, %s81
    %p92 = scmp.eq.s32.totalorder %s20, 0
    %p93 = por %p91, %p92
    %p94 = scmp.ne.s32.totalorder %s80, %s81
    %p95 = scmp.eq.s32.totalorder %s21, 1
    %p96 = por %p94, %p95
    %p98 = scmp.ne.s32.totalorder %s81, %s97
    %p99 = scmp.eq.s32.totalorder %s21, 0
    %p100 = por %p98, %p99
    %s101 = ssub.s32 %s15, %s22
    %p102 = scmp.eq.s32.totalorder %s101, 0
    %s104 = sadd.s32 %s103, 1
    %s105 = scalar_select %p102, %s103, %s104
    %p108 = pneg %p102
    %p109 = scmp.eq.s32.totalorder %s15, 1
    %p110 = por %p108, %p109
    %p111 = scmp.ne.s32.totalorder %s103, %s106
    %p112 = scmp.eq.s32.totalorder %s15, 0
    %p113 = por %p111, %p112
    %p114 = scmp.ne.s32.totalorder %s103, %s106
    %p115 = scmp.eq.s32.totalorder %s20, 1
    %p116 = por %p114, %p115
    %p117 = scmp.ne.s32.totalorder %s106, %s107
    %p118 = scmp.eq.s32.totalorder %s20, 0
    %p119 = por %p117, %p118
    %p120 = scmp.ne.s32.totalorder %s106, %s107
    %p121 = scmp.eq.s32.totalorder %s21, 1
    %p122 = por %p120, %p121
    %p124 = scmp.ne.s32.totalorder %s107, %s123
    %p125 = scmp.eq.s32.totalorder %s21, 0
    %p126 = por %p124, %p125
    %s127 = ssub.s32 %s15, %s22
    %p128 = scmp.eq.s32.totalorder %s127, 0
    %s130 = sadd.s32 %s129, 1
    %s131 = scalar_select %p128, %s129, %s130
    %p134 = pneg %p128
    %p135 = scmp.eq.s32.totalorder %s15, 1
    %p136 = por %p134, %p135
    %p137 = scmp.ne.s32.totalorder %s129, %s132
    %p138 = scmp.eq.s32.totalorder %s15, 0
    %p139 = por %p137, %p138
    %p140 = scmp.ne.s32.totalorder %s129, %s132
    %p141 = scmp.eq.s32.totalorder %s20, 1
    %p142 = por %p140, %p141
    %p143 = scmp.ne.s32.totalorder %s132, %s133
    %p144 = scmp.eq.s32.totalorder %s20, 0
    %p145 = por %p143, %p144
    %p146 = scmp.ne.s32.totalorder %s132, %s133
    %p147 = scmp.eq.s32.totalorder %s21, 1
    %p148 = por %p146, %p147
    %p150 = scmp.ne.s32.totalorder %s133, %s149
    %p151 = scmp.eq.s32.totalorder %s21, 0
    %p152 = por %p150, %p151
    %s154 = sadd.s32 %s153, 1
    %p157 = scmp.eq.s32.totalorder %s15, 1
    %p158 = scmp.ne.s32.totalorder %s153, %s155
    %p159 = scmp.eq.s32.totalorder %s15, 0
    %p160 = por %p158, %p159
    %p161 = scmp.ne.s32.totalorder %s153, %s155
    %p162 = scmp.eq.s32.totalorder %s20, 1
    %p163 = por %p161, %p162
    %p164 = scmp.ne.s32.totalorder %s155, %s156
    %p165 = scmp.eq.s32.totalorder %s20, 0
    %p166 = por %p164, %p165
    %p167 = scmp.ne.s32.totalorder %s155, %s156
    %p168 = scmp.eq.s32.totalorder %s21, 1
    %p169 = por %p167, %p168
    %p171 = scmp.ne.s32.totalorder %s156, %s170
    %p172 = scmp.eq.s32.totalorder %s21, 0
    %p173 = por %p171, %p172
    %s175 = sadd.s32 %s174, 1
    %p178 = scmp.eq.s32.totalorder %s15, 1
    %p179 = scmp.ne.s32.totalorder %s174, %s176
    %p180 = scmp.eq.s32.totalorder %s15, 0
    %p181 = por %p179, %p180
    %p182 = scmp.ne.s32.totalorder %s174, %s176
    %p183 = scmp.eq.s32.totalorder %s20, 1
    %p184 = por %p182, %p183
    %p185 = scmp.ne.s32.totalorder %s176, %s177
    %p186 = scmp.eq.s32.totalorder %s20, 0
    %p187 = por %p185, %p186
    %p188 = scmp.ne.s32.totalorder %s176, %s177
    %p189 = scmp.eq.s32.totalorder %s21, 1
    %p190 = por %p188, %p189
    %p192 = scmp.ne.s32.totalorder %s177, %s191
    %p193 = scmp.eq.s32.totalorder %s21, 0
    %p194 = por %p192, %p193
    %s196 = sadd.s32 %s195, 1
    %p199 = scmp.eq.s32.totalorder %s15, 1
    %p200 = scmp.ne.s32.totalorder %s195, %s197
    %p201 = scmp.eq.s32.totalorder %s15, 0
    %p202 = por %p200, %p201
    %p203 = scmp.ne.s32.totalorder %s195, %s197
    %p204 = scmp.eq.s32.totalorder %s20, 1
    %p205 = por %p203, %p204
    %p206 = scmp.ne.s32.totalorder %s197, %s198
    %p207 = scmp.eq.s32.totalorder %s20, 0
    %p208 = por %p206, %p207
    %p209 = scmp.ne.s32.totalorder %s197, %s198
    %p210 = scmp.eq.s32.totalorder %s21, 1
    %p211 = por %p209, %p210
    %p213 = scmp.ne.s32.totalorder %s198, %s212
    %p214 = scmp.eq.s32.totalorder %s21, 0
    %p215 = por %p213, %p214
    %s217 = sadd.s32 %s216, 1
    %p220 = scmp.eq.s32.totalorder %s15, 1
    %p221 = scmp.ne.s32.totalorder %s216, %s218
    %p222 = scmp.eq.s32.totalorder %s15, 0
    %p223 = por %p221, %p222
    %p224 = scmp.ne.s32.totalorder %s216, %s218
    %p225 = scmp.eq.s32.totalorder %s20, 1
    %p226 = por %p224, %p225
    %p227 = scmp.ne.s32.totalorder %s218, %s219
    %p228 = scmp.eq.s32.totalorder %s20, 0
    %p229 = por %p227, %p228
    %p230 = scmp.ne.s32.totalorder %s218, %s219
    %p231 = scmp.eq.s32.totalorder %s21, 1
    %p232 = por %p230, %p231
    %p234 = scmp.ne.s32.totalorder %s219, %s233
    %p235 = scmp.eq.s32.totalorder %s21, 0
    %p236 = por %p234, %p235
    %s237 = ssub.s32 %s15, %s22
    %p238 = scmp.eq.s32.totalorder %s237, 0
    %s240 = sadd.s32 %s239, 1
    %s241 = scalar_select %p238, %s239, %s240
    %p244 = pneg %p238
    %p245 = scmp.eq.s32.totalorder %s15, 1
    %p246 = por %p244, %p245
    %p247 = scmp.ne.s32.totalorder %s239, %s242
    %p248 = scmp.eq.s32.totalorder %s15, 0
    %p249 = por %p247, %p248
    %p250 = scmp.ne.s32.totalorder %s239, %s242
    %p251 = scmp.eq.s32.totalorder %s20, 1
    %p252 = por %p250, %p251
    %p253 = scmp.ne.s32.totalorder %s242, %s243
    %p254 = scmp.eq.s32.totalorder %s20, 0
    %p255 = por %p253, %p254
    %p256 = scmp.ne.s32.totalorder %s242, %s243
    %p257 = scmp.eq.s32.totalorder %s21, 1
    %p258 = por %p256, %p257
    %p260 = scmp.ne.s32.totalorder %s243, %s259
    %p261 = scmp.eq.s32.totalorder %s21, 0
    %p262 = por %p260, %p261
    %p263 = scmp.le.s32.totalorder 1, %s15
    %p264 = scmp.lt.s32.totalorder %s15, 3
    %p265 = pnand %p263, %p264
    %p266 = pneg %p265
    // Predicated region
    $region9: #{transformer_forward.29} parent=5 // pred_check
      _
    $region10: #{transformer_forward.29} parent=5 // pred_check_branch
      %268 = sbr.rel (%p265) target = $region12
    $region11: #{transformer_forward.29} parent=5 // pred_region
      %s269 = ssub.s32 %s15, 1
      // Predicated region
      $region13: #{transformer_forward.29} parent=11 // pred_check
        %p270 = pneg %p166
      $region14: #{transformer_forward.29} parent=11 // pred_check_branch
        %272 = sbr.rel (%p270) target = $region16
      $region15: #{transformer_forward.29} parent=11 // pred_region
        _
      $region16: #{transformer_forward.29} parent=11 // pred_fallthru
        _
      // Predicated region
      $region17: #{transformer_forward.29} parent=11 // pred_check
        %p273 = pneg %p187
      $region18: #{transformer_forward.29} parent=11 // pred_check_branch
        %275 = sbr.rel (%p273) target = $region20
      $region19: #{transformer_forward.29} parent=11 // pred_region
        _
      $region20: #{transformer_forward.29} parent=11 // pred_fallthru
        _
      // Predicated region
      $region21: #{transformer_forward.29} parent=11 // pred_check
        %p276 = pneg %p208
      $region22: #{transformer_forward.29} parent=11 // pred_check_branch
        %278 = sbr.rel (%p276) target = $region24
      $region23: #{transformer_forward.29} parent=11 // pred_region
        _
      $region24: #{transformer_forward.29} parent=11 // pred_fallthru
        _
      // Predicated region
      $region25: #{transformer_forward.29} parent=11 // pred_check
        %p279 = pneg %p229
      $region26: #{transformer_forward.29} parent=11 // pred_check_branch
        %281 = sbr.rel (%p279) target = $region28
      $region27: #{transformer_forward.29} parent=11 // pred_region
        _
      $region28: #{transformer_forward.29} parent=11 // pred_fallthru
        _
    $region12: #{transformer_forward.29} parent=5 // pred_fallthru
      _
    %p282 = scmp.lt.s32.totalorder %s15, 2
    // Predicated region
    $region29: #{transformer_forward.29} parent=5 // pred_check
      %p283 = pneg %p282
    $region30: #{transformer_forward.29} parent=5 // pred_check_branch
      %285 = sbr.rel (%p283) target = $region32
    $region31: #{transformer_forward.29} parent=5 // pred_region
      // Predicated region
      $region33: #{transformer_forward.29} parent=31 // pred_check
        %p286 = pneg %p35
      $region34: #{transformer_forward.29} parent=31 // pred_check_branch
        %288 = sbr.rel (%p286) target = $region36
      $region35: #{transformer_forward.29} parent=31 // pred_region
        %p289 = scmp.lt.s32.totalorder %s15, 1
        %s290 = scalar_select %p289, %s15, 1
        %s291 = smul.addr %s290, 8
        %s292 = scalar_lea.vmem %s0, %s291
      $region36: #{transformer_forward.29} parent=31 // pred_fallthru
        _
      // Predicated region
      $region37: #{transformer_forward.29} parent=31 // pred_check
        %p293 = pneg %p61
      $region38: #{transformer_forward.29} parent=31 // pred_check_branch
        %295 = sbr.rel (%p293) target = $region40
      $region39: #{transformer_forward.29} parent=31 // pred_region
        %p296 = scmp.lt.s32.totalorder %s15, 1
        %s297 = scalar_select %p296, %s15, 1
        %s298 = smul.addr %s297, 2
        %s299 = smul.addr %s298, 8
        %s300 = scalar_lea.vmem %s1, %s299
      $region40: #{transformer_forward.29} parent=31 // pred_fallthru
        _
      // Predicated region
      $region41: #{transformer_forward.29} parent=31 // pred_check
        %p301 = pneg %p87
      $region42: #{transformer_forward.29} parent=31 // pred_check_branch
        %303 = sbr.rel (%p301) target = $region44
      $region43: #{transformer_forward.29} parent=31 // pred_region
        %p304 = scmp.lt.s32.totalorder %s15, 1
        %s305 = scalar_select %p304, %s15, 1
        %s306 = smul.addr %s305, 2
        %s307 = smul.addr %s306, 8
        %s308 = scalar_lea.vmem %s2, %s307
      $region44: #{transformer_forward.29} parent=31 // pred_fallthru
        _
      // Predicated region
      $region45: #{transformer_forward.29} parent=31 // pred_check
        %p309 = pneg %p113
      $region46: #{transformer_forward.29} parent=31 // pred_check_branch
        %311 = sbr.rel (%p309) target = $region48
      $region47: #{transformer_forward.29} parent=31 // pred_region
        %p312 = scmp.lt.s32.totalorder %s15, 1
        %s313 = scalar_select %p312, %s15, 1
        %s314 = smul.addr %s313, 8
        %s315 = scalar_lea.vmem %s3, %s314
      $region48: #{transformer_forward.29} parent=31 // pred_fallthru
        _
      // Predicated region
      $region49: #{transformer_forward.29} parent=31 // pred_check
        %p316 = pneg %p139
      $region50: #{transformer_forward.29} parent=31 // pred_check_branch
        %318 = sbr.rel (%p316) target = $region52
      $region51: #{transformer_forward.29} parent=31 // pred_region
        %p319 = scmp.lt.s32.totalorder %s15, 1
        %s320 = scalar_select %p319, %s15, 1
        %s321 = smul.addr %s320, 8
        %s322 = scalar_lea.vmem %s4, %s321
      $region52: #{transformer_forward.29} parent=31 // pred_fallthru
        _
    $region32: #{transformer_forward.29} parent=5 // pred_fallthru
      _
    %p323 = scmp.le.s32.totalorder 1, %s15
    %p324 = scmp.lt.s32.totalorder %s15, 3
    %p325 = pnand %p323, %p324
    %p326 = pneg %p325
    // Predicated region
    $region53: #{transformer_forward.29} parent=5 // pred_check
      _
    $region54: #{transformer_forward.29} parent=5 // pred_check_branch
      %328 = sbr.rel (%p325) target = $region56
    $region55: #{transformer_forward.29} parent=5 // pred_region
      %s329 = ssub.s32 %s15, 1
      %p330 = scmp.lt.s32.totalorder %s20, 1
      %s331 = scalar_select %p330, %s20, 1
      %s332 = smul.addr %s331, 8
      %s333 = scalar_lea.vmem %s0, %s332
      %p334 = pneg %p41
      %p335 = pneg %p38
      %p336 = scmp.lt.s32.totalorder %s20, 1
      %s337 = scalar_select %p336, %s20, 1
      %s338 = smul.addr %s337, 2
      %s339 = smul.addr %s338, 8
      %s340 = scalar_lea.vmem %s1, %s339
      %p341 = pneg %p67
      %p342 = pneg %p64
      %p343 = scmp.lt.s32.totalorder %s20, 1
      %s344 = scalar_select %p343, %s20, 1
      %s345 = smul.addr %s344, 2
      %s346 = smul.addr %s345, 8
      %s347 = scalar_lea.vmem %s2, %s346
      %p348 = pneg %p93
      %p349 = pneg %p90
      %p350 = scmp.lt.s32.totalorder %s20, 1
      %s351 = scalar_select %p350, %s20, 1
      %s352 = smul.addr %s351, 8
      %s353 = scalar_lea.vmem %s3, %s352
      %p354 = pneg %p119
      %p355 = pneg %p116
      %p356 = scmp.lt.s32.totalorder %s20, 1
      %s357 = scalar_select %p356, %s20, 1
      %s358 = smul.addr %s357, 8
      %s359 = scalar_lea.vmem %s4, %s358
      %p360 = pneg %p145
      %p361 = pneg %p142
      %p362 = pneg %p166
      %p363 = pneg %p163
      %p364 = pneg %p187
      %p365 = pneg %p184
      %p366 = pneg %p208
      %p367 = pneg %p205
      %p368 = pneg %p229
      %p369 = pneg %p226
      %p370 = pneg %p255
      %p371 = pneg %p252
      %p372 = scmp.lt.s32.totalorder %s20, 1
      %s373 = scalar_select %p372, %s20, 1
      %s374 = smul.addr %s373, 8
      %s375 = scalar_lea.vmem %s9, %s374
      %p376 = scmp.lt.s32.totalorder %s20, 1
      %s377 = scalar_select %p376, %s20, 1
      %s378 = smul.addr %s377, 8
      %s379 = scalar_lea.vmem %s0, %s378
      %p380 = scmp.lt.s32.totalorder %s20, 1
      %s381 = scalar_select %p380, %s20, 1
      %s382 = smul.addr %s381, 2
      %s383 = smul.addr %s382, 8
      %s384 = scalar_lea.vmem %s1, %s383
      %p385 = scmp.lt.s32.totalorder %s20, 1
      %s386 = scalar_select %p385, %s20, 1
      %s387 = smul.addr %s386, 2
      %s388 = smul.addr %s387, 8
      %s389 = scalar_lea.vmem %s2, %s388
      %p390 = scmp.lt.s32.totalorder %s20, 1
      %s391 = scalar_select %p390, %s20, 1
      %s392 = smul.addr %s391, 8
      %s393 = scalar_lea.vmem %s3, %s392
      %p394 = scmp.lt.s32.totalorder %s20, 1
      %s395 = scalar_select %p394, %s20, 1
      %s396 = smul.addr %s395, 8
      %s397 = scalar_lea.vmem %s4, %s396
      %p398 = scmp.lt.s32.totalorder %s20, 1
      %s399 = scalar_select %p398, %s20, 1
      %s400 = smul.addr %s399, 8
      %s401 = scalar_lea.vmem %s9, %s400
      %v403 = vld [vmem:[%s379] sm:$0xff]
      %v404 = vld [vmem:[%s384] sm:$0xff]
      %v405 = vld [vmem:[%s384 + $0x8] sm:$0xf]
      %v406 = vld [vmem:[%s389] sm:$0xff]
      %v407 = vld [vmem:[%s389 + $0x8] sm:$0xf]
      %v408 = vld [vmem:[%s393] sm:$0xff]
      %v409 = vpack.c.bf16 %v403, %v403
      %v410 = vpack.c.bf16 %v405, %v404
      %v411 = vpack.c.bf16 %v407, %v406
      %vm412 = vcmask 64512
      %v414 = vsel %vm412, %v409, 0
      %v417 = vsel %vm412, %v410, 0
      %419 = vmatprep.subr.bf16.mxu0 0
      %420 = vmatpush1.bf16.xpose.msra.mxu0 %v417
      %421 = vmatprep.subr.bf16.mxu0 0
      %422 = vmatpush1.bf16.xpose.msra.mxu0 0
      %423 = vmatprep.subr.bf16.mxu0 0
      %424 = vmatpush1.bf16.xpose.msra.mxu0 0
      %425 = vmatprep.subr.bf16.mxu0 0
      %426 = vmatpush1.bf16.xpose.msra.mxu0 0
      %427 = vmatprep.subr.bf16.mxu0 0
      %428 = vmatpush1.bf16.xpose.msra.mxu0 0
      %429 = vmatprep.subr.bf16.mxu0 0
      %430 = vmatpush1.bf16.xpose.msra.mxu0 0
      %431 = vmatprep.subr.bf16.mxu0 0
      %432 = vmatpush1.bf16.xpose.msra.mxu0 0
      %433 = vmatprep.subr.bf16.mxu0 0
      %434 = vmatpush1.bf16.xpose.msra.mxu0 0
      %435 = vmatprep.subr.bf16.mxu0 0
      %436 = vmatpush1.bf16.xpose.msra.mxu0 0
      %437 = vmatprep.subr.bf16.mxu0 0
      %438 = vmatpush1.bf16.xpose.msra.mxu0 0
      %439 = vmatprep.subr.bf16.mxu0 0
      %440 = vmatpush1.bf16.xpose.msra.mxu0 0
      %441 = vmatprep.subr.bf16.mxu0 0
      %442 = vmatpush1.bf16.xpose.msra.mxu0 0
      %443 = vmatprep.subr.bf16.mxu0 0
      %444 = vmatpush1.bf16.xpose.msra.mxu0 0
      %445 = vmatprep.subr.bf16.mxu0 0
      %446 = vmatpush1.bf16.xpose.msra.mxu0 0
      %447 = vmatprep.subr.bf16.mxu0 0
      %448 = vmatpush1.bf16.xpose.msra.mxu0 0
      %449 = vmatprep.subr.bf16.mxu0 0
      %450 = vmatpush1.bf16.xpose.msra.mxu0 0
      %451 = vmatprep.mubr.bf16.mxu0 0
      %452 = vmatmul.mubr.bf16.gmra.mrb[0].mxu0 %v414
      %v453 = vpop.f32.mrb[0].mxu0
      %v454 = vadd.f32 %v408, %v453
      %v455 = vpop.f32.mrb[0].mxu0
      %v456 = vpop.f32.mrb[0].mxu0
      %v457 = vpop.f32.mrb[0].mxu0
      %458 = vdwg.mxu0
      %vm459 = vcmask 97280
      %v460 = vsel %vm459, %v454, -inf
      %461 = vmax.xlane.f32.xlu0 %v460
      %v462 = vpop.xlane.xlu0 %461
      %v463 = vsub.f32 %v454, %v462
      %v464 = vmul.f32 %v463, 1.442695
      %v465 = vpow.pop %v464
      %v466 = vsel %vm459, %v465, 0.0
      %467 = vadd.xlane.f32.xlu0 %v466
      %v468 = vpop.xlane.xlu0 %467
      %v469 = vrcp.pop %v468
      %v470 = vmul.f32 %v465, %v469
      %v471 = vpack.c.bf16 %v470, %v470
      %v473 = vsel %vm459, %v471, 0
      %vm475 = vcmask 1045504
      %v477 = vsel %vm475, %v411, 0
      %479 = vmatprep.subr.bf16.mxu0 0
      %480 = vmatpush1.bf16.msra.mxu0 %v477
      %481 = vmatprep.subr.bf16.mxu0 0
      %482 = vmatpush1.bf16.msra.mxu0 0
      %483 = vmatprep.subr.bf16.mxu0 0
      %484 = vmatpush1.bf16.msra.mxu0 0
      %485 = vmatprep.subr.bf16.mxu0 0
      %486 = vmatpush1.bf16.msra.mxu0 0
      %487 = vmatprep.subr.bf16.mxu0 0
      %488 = vmatpush1.bf16.msra.mxu0 0
      %489 = vmatprep.subr.bf16.mxu0 0
      %490 = vmatpush1.bf16.msra.mxu0 0
      %491 = vmatprep.subr.bf16.mxu0 0
      %492 = vmatpush1.bf16.msra.mxu0 0
      %493 = vmatprep.subr.bf16.mxu0 0
      %494 = vmatpush1.bf16.msra.mxu0 0
      %495 = vmatprep.subr.bf16.mxu0 0
      %496 = vmatpush1.bf16.msra.mxu0 0
      %497 = vmatprep.subr.bf16.mxu0 0
      %498 = vmatpush1.bf16.msra.mxu0 0
      %499 = vmatprep.subr.bf16.mxu0 0
      %500 = vmatpush1.bf16.msra.mxu0 0
      %501 = vmatprep.subr.bf16.mxu0 0
      %502 = vmatpush1.bf16.msra.mxu0 0
      %503 = vmatprep.subr.bf16.mxu0 0
      %504 = vmatpush1.bf16.msra.mxu0 0
      %505 = vmatprep.subr.bf16.mxu0 0
      %506 = vmatpush1.bf16.msra.mxu0 0
      %507 = vmatprep.subr.bf16.mxu0 0
      %508 = vmatpush1.bf16.msra.mxu0 0
      %509 = vmatprep.subr.bf16.mxu0 0
      %510 = vmatpush1.bf16.msra.mxu0 0
      %511 = vmatprep.mubr.bf16.mxu0 0
      %512 = vmatmul.mubr.bf16.gmra.mrb[0].mxu0 %v473
      %v513 = vpop.f32.mrb[0].mxu0
      %v514 = vadd.f32 0.0, %v513
      %v515 = vpop.f32.mrb[0].mxu0
      %v516 = vpop.f32.mrb[0].mxu0
      %v517 = vpop.f32.mrb[0].mxu0
      %518 = vdwg.mxu0
      %v519 = vpack.c.bf16 %v514, %v514
      %v520 = vld [vmem:[%s5] sm:$0xf]
      %522 = vrot.lane.b32.xlu0 %v409, 120
      %v523 = vpop.permute.xlu0 %522
      %525 = vrot.lane.b32.xlu0 %v410, 120
      %v526 = vpop.permute.xlu0 %525
      %v528 = vsel %vm412, %v523, 0
      %v531 = vsel %vm412, %v526, 0
      %533 = vmatprep.subr.bf16.mxu0 0
      %534 = vmatpush1.bf16.xpose.msra.mxu0 %v531
      %535 = vmatprep.subr.bf16.mxu0 0
      %536 = vmatpush1.bf16.xpose.msra.mxu0 0
      %537 = vmatprep.subr.bf16.mxu0 0
      %538 = vmatpush1.bf16.xpose.msra.mxu0 0
      %539 = vmatprep.subr.bf16.mxu0 0
      %540 = vmatpush1.bf16.xpose.msra.mxu0 0
      %541 = vmatprep.subr.bf16.mxu0 0
      %542 = vmatpush1.bf16.xpose.msra.mxu0 0
      %543 = vmatprep.subr.bf16.mxu0 0
      %544 = vmatpush1.bf16.xpose.msra.mxu0 0
      %545 = vmatprep.subr.bf16.mxu0 0
      %546 = vmatpush1.bf16.xpose.msra.mxu0 0
      %547 = vmatprep.subr.bf16.mxu0 0
      %548 = vmatpush1.bf16.xpose.msra.mxu0 0
      %549 = vmatprep.subr.bf16.mxu0 0
      %550 = vmatpush1.bf16.xpose.msra.mxu0 0
      %551 = vmatprep.subr.bf16.mxu0 0
      %552 = vmatpush1.bf16.xpose.msra.mxu0 0
      %553 = vmatprep.subr.bf16.mxu0 0
      %554 = vmatpush1.bf16.xpose.msra.mxu0 0
      %555 = vmatprep.subr.bf16.mxu0 0
      %556 = vmatpush1.bf16.xpose.msra.mxu0 0
      %557 = vmatprep.subr.bf16.mxu0 0
      %558 = vmatpush1.bf16.xpose.msra.mxu0 0
      %559 = vmatprep.subr.bf16.mxu0 0
      %560 = vmatpush1.bf16.xpose.msra.mxu0 0
      %561 = vmatprep.subr.bf16.mxu0 0
      %562 = vmatpush1.bf16.xpose.msra.mxu0 0
      %563 = vmatprep.subr.bf16.mxu0 0
      %564 = vmatpush1.bf16.xpose.msra.mxu0 0
      %565 = vmatprep.mubr.bf16.mxu0 0
      %566 = vmatmul.mubr.bf16.gmra.mrb[0].mxu0 %v528
      %v567 = vpop.f32.mrb[0].mxu0
      %v568 = vadd.f32 %v408, %v567
      %v569 = vpop.f32.mrb[0].mxu0
      %v570 = vpop.f32.mrb[0].mxu0
      %v571 = vpop.f32.mrb[0].mxu0
      %572 = vdwg.mxu0
      %v573 = vsel %vm459, %v568, -inf
      %574 = vmax.xlane.f32.xlu0 %v573
      %v575 = vpop.xlane.xlu0 %574
      %v576 = vsub.f32 %v568, %v575
      %v577 = vmul.f32 %v576, 1.442695
      %v578 = vpow.pop %v577
      %v579 = vsel %vm459, %v578, 0.0
      %580 = vadd.xlane.f32.xlu0 %v579
      %v581 = vpop.xlane.xlu0 %580
      %v582 = vrcp.pop %v581
      %v583 = vmul.f32 %v578, %v582
      %v584 = vpack.c.bf16 %v583, %v583
      %586 = vrot.lane.b32.xlu0 %v411, 120
      %v587 = vpop.permute.xlu0 %586
      %v589 = vsel %vm459, %v584, 0
      %v592 = vsel %vm475, %v587, 0
      %594 = vmatprep.subr.bf16.mxu0 0
      %595 = vmatpush1.bf16.msra.mxu0 %v592
      %596 = vmatprep.subr.bf16.mxu0 0
      %597 = vmatpush1.bf16.msra.mxu0 0
      %598 = vmatprep.subr.bf16.mxu0 0
      %599 = vmatpush1.bf16.msra.mxu0 0
      %600 = vmatprep.subr.bf16.mxu0 0
      %601 = vmatpush1.bf16.msra.mxu0 0
      %602 = vmatprep.subr.bf16.mxu0 0
      %603 = vmatpush1.bf16.msra.mxu0 0
      %604 = vmatprep.subr.bf16.mxu0 0
      %605 = vmatpush1.bf16.msra.mxu0 0
      %606 = vmatprep.subr.bf16.mxu0 0
      %607 = vmatpush1.bf16.msra.mxu0 0
      %608 = vmatprep.subr.bf16.mxu0 0
      %609 = vmatpush1.bf16.msra.mxu0 0
      %610 = vmatprep.subr.bf16.mxu0 0
      %611 = vmatpush1.bf16.msra.mxu0 0
      %612 = vmatprep.subr.bf16.mxu0 0
      %613 = vmatpush1.bf16.msra.mxu0 0
      %614 = vmatprep.subr.bf16.mxu0 0
      %615 = vmatpush1.bf16.msra.mxu0 0
      %616 = vmatprep.subr.bf16.mxu0 0
      %617 = vmatpush1.bf16.msra.mxu0 0
      %618 = vmatprep.subr.bf16.mxu0 0
      %619 = vmatpush1.bf16.msra.mxu0 0
      %620 = vmatprep.subr.bf16.mxu0 0
      %621 = vmatpush1.bf16.msra.mxu0 0
      %622 = vmatprep.subr.bf16.mxu0 0
      %623 = vmatpush1.bf16.msra.mxu0 0
      %624 = vmatprep.subr.bf16.mxu0 0
      %625 = vmatpush1.bf16.msra.mxu0 0
      %626 = vmatprep.mubr.bf16.mxu0 0
      %627 = vmatmul.mubr.bf16.gmra.mrb[0].mxu0 %v589
      %v628 = vpop.f32.mrb[0].mxu0
      %v629 = vadd.f32 0.0, %v628
      %v630 = vpop.f32.mrb[0].mxu0
      %v631 = vpop.f32.mrb[0].mxu0
      %v632 = vpop.f32.mrb[0].mxu0
      %633 = vdwg.mxu0
      %v634 = vpack.c.bf16 %v629, %v629
      %v635 = vld [vmem:[%s5 + $0x4] sm:$0xf]
      %v637 = vsel %vm412, %v634, 0
      %vm639 = vcmask 1043456
      %v641 = vsel %vm639, %v635, 0
      %643 = vmatprep.subr.bf16.mxu0 0
      %644 = vmatpush1.bf16.msra.mxu0 %v641
      %645 = vmatprep.subr.bf16.mxu0 0
      %646 = vmatpush1.bf16.msra.mxu0 0
      %647 = vmatprep.subr.bf16.mxu0 0
      %648 = vmatpush1.bf16.msra.mxu0 0
      %649 = vmatprep.subr.bf16.mxu0 0
      %650 = vmatpush1.bf16.msra.mxu0 0
      %651 = vmatprep.subr.bf16.mxu0 0
      %652 = vmatpush1.bf16.msra.mxu0 0
      %653 = vmatprep.subr.bf16.mxu0 0
      %654 = vmatpush1.bf16.msra.mxu0 0
      %655 = vmatprep.subr.bf16.mxu0 0
      %656 = vmatpush1.bf16.msra.mxu0 0
      %657 = vmatprep.subr.bf16.mxu0 0
      %658 = vmatpush1.bf16.msra.mxu0 0
      %659 = vmatprep.subr.bf16.mxu0 0
      %660 = vmatpush1.bf16.msra.mxu0 0
      %661 = vmatprep.subr.bf16.mxu0 0
      %662 = vmatpush1.bf16.msra.mxu0 0
      %663 = vmatprep.subr.bf16.mxu0 0
      %664 = vmatpush1.bf16.msra.mxu0 0
      %665 = vmatprep.subr.bf16.mxu0 0
      %666 = vmatpush1.bf16.msra.mxu0 0
      %667 = vmatprep.subr.bf16.mxu0 0
      %668 = vmatpush1.bf16.msra.mxu0 0
      %669 = vmatprep.subr.bf16.mxu0 0
      %670 = vmatpush1.bf16.msra.mxu0 0
      %671 = vmatprep.subr.bf16.mxu0 0
      %672 = vmatpush1.bf16.msra.mxu0 0
      %673 = vmatprep.subr.bf16.mxu0 0
      %674 = vmatpush1.bf16.msra.mxu0 0
      %675 = vmatprep.mubr.bf16.mxu0 0
      %676 = vmatmul.mubr.bf16.gmra.mrb[0].mxu0 %v637
      %v677 = vpop.f32.mrb[0].mxu0
      %v678 = vadd.f32 0.0, %v677
      %v679 = vpop.f32.mrb[0].mxu0
      %v680 = vpop.f32.mrb[0].mxu0
      %v681 = vpop.f32.mrb[0].mxu0
      %682 = vdwg.mxu0
      %v684 = vsel %vm412, %v519, 0
      %v687 = vsel %vm639, %v520, 0
      %689 = vmatprep.subr.bf16.mxu0 0
      %690 = vmatpush1.bf16.msra.mxu0 %v687
      %691 = vmatprep.subr.bf16.mxu0 0
      %692 = vmatpush1.bf16.msra.mxu0 0
      %693 = vmatprep.subr.bf16.mxu0 0
      %694 = vmatpush1.bf16.msra.mxu0 0
      %695 = vmatprep.subr.bf16.mxu0 0
      %696 = vmatpush1.bf16.msra.mxu0 0
      %697 = vmatprep.subr.bf16.mxu0 0
      %698 = vmatpush1.bf16.msra.mxu0 0
      %699 = vmatprep.subr.bf16.mxu0 0
      %700 = vmatpush1.bf16.msra.mxu0 0
      %701 = vmatprep.subr.bf16.mxu0 0
      %702 = vmatpush1.bf16.msra.mxu0 0
      %703 = vmatprep.subr.bf16.mxu0 0
      %704 = vmatpush1.bf16.msra.mxu0 0
      %705 = vmatprep.subr.bf16.mxu0 0
      %706 = vmatpush1.bf16.msra.mxu0 0
      %707 = vmatprep.subr.bf16.mxu0 0
      %708 = vmatpush1.bf16.msra.mxu0 0
      %709 = vmatprep.subr.bf16.mxu0 0
      %710 = vmatpush1.bf16.msra.mxu0 0
      %711 = vmatprep.subr.bf16.mxu0 0
      %712 = vmatpush1.bf16.msra.mxu0 0
      %713 = vmatprep.subr.bf16.mxu0 0
      %714 = vmatpush1.bf16.msra.mxu0 0
      %715 = vmatprep.subr.bf16.mxu0 0
      %716 = vmatpush1.bf16.msra.mxu0 0
      %717 = vmatprep.subr.bf16.mxu0 0
      %718 = vmatpush1.bf16.msra.mxu0 0
      %719 = vmatprep.subr.bf16.mxu0 0
      %720 = vmatpush1.bf16.msra.mxu0 0
      %721 = vmatprep.mubr.bf16.mxu0 0
      %722 = vmatmul.mubr.bf16.gmra.mrb[0].mxu0 %v684
      %v723 = vpop.f32.mrb[0].mxu0
      %v724 = vadd.f32 %v678, %v723
      %v725 = vpop.f32.mrb[0].mxu0
      %v726 = vpop.f32.mrb[0].mxu0
      %v727 = vpop.f32.mrb[0].mxu0
      %728 = vdwg.mxu0
      %729 = vrot.lane.b32.xlu0 %v409, 112
      %v730 = vpop.permute.xlu0 %729
      %731 = vrot.lane.b32.xlu0 %v410, 112
      %v732 = vpop.permute.xlu0 %731
      %v734 = vsel %vm412, %v730, 0
      %v737 = vsel %vm412, %v732, 0
      %739 = vmatprep.subr.bf16.mxu0 0
      %740 = vmatpush1.bf16.xpose.msra.mxu0 %v737
      %741 = vmatprep.subr.bf16.mxu0 0
      %742 = vmatpush1.bf16.xpose.msra.mxu0 0
      %743 = vmatprep.subr.bf16.mxu0 0
      %744 = vmatpush1.bf16.xpose.msra.mxu0 0
      %745 = vmatprep.subr.bf16.mxu0 0
      %746 = vmatpush1.bf16.xpose.msra.mxu0 0
      %747 = vmatprep.subr.bf16.mxu0 0
      %748 = vmatpush1.bf16.xpose.msra.mxu0 0
      %749 = vmatprep.subr.bf16.mxu0 0
      %750 = vmatpush1.bf16.xpose.msra.mxu0 0
      %751 = vmatprep.subr.bf16.mxu0 0
      %752 = vmatpush1.bf16.xpose.msra.mxu0 0
      %753 = vmatprep.subr.bf16.mxu0 0
      %754 = vmatpush1.bf16.xpose.msra.mxu0 0
      %755 = vmatprep.subr.bf16.mxu0 0
      %756 = vmatpush1.bf16.xpose.msra.mxu0 0
      %757 = vmatprep.subr.bf16.mxu0 0
      %758 = vmatpush1.bf16.xpose.msra.mxu0 0
      %759 = vmatprep.subr.bf16.mxu0 0
      %760 = vmatpush1.bf16.xpose.msra.mxu0 0
      %761 = vmatprep.subr.bf16.mxu0 0
      %762 = vmatpush1.bf16.xpose.msra.mxu0 0
      %763 = vmatprep.subr.bf16.mxu0 0
      %764 = vmatpush1.bf16.xpose.msra.mxu0 0
      %765 = vmatprep.subr.bf16.mxu0 0
      %766 = vmatpush1.bf16.xpose.msra.mxu0 0
      %767 = vmatprep.subr.bf16.mxu0 0
      %768 = vmatpush1.bf16.xpose.msra.mxu0 0
      %769 = vmatprep.subr.bf16.mxu0 0
      %770 = vmatpush1.bf16.xpose.msra.mxu0 0
      %771 = vmatprep.mubr.bf16.mxu0 0
      %772 = vmatmul.mubr.bf16.gmra.mrb[0].mxu0 %v734
      %v773 = vpop.f32.mrb[0].mxu0
      %v774 = vadd.f32 %v408, %v773
      %v775 = vpop.f32.mrb[0].mxu0
      %v776 = vpop.f32.mrb[0].mxu0
      %v777 = vpop.f32.mrb[0].mxu0
      %778 = vdwg.mxu0
      %v779 = vsel %vm459, %v774, -inf
      %780 = vmax.xlane.f32.xlu0 %v779
      %v781 = vpop.xlane.xlu0 %780
      %v782 = vsub.f32 %v774, %v781
      %v783 = vmul.f32 %v782, 1.442695
      %v784 = vpow.pop %v783
      %v785 = vsel %vm459, %v784, 0.0
      %786 = vadd.xlane.f32.xlu0 %v785
      %v787 = vpop.xlane.xlu0 %786
      %v788 = vrcp.pop %v787
      %v789 = vmul.f32 %v784, %v788
      %v790 = vpack.c.bf16 %v789, %v789
      %791 = vrot.lane.b32.xlu0 %v411, 112
      %v792 = vpop.permute.xlu0 %791
      %v794 = vsel %vm459, %v790, 0
      %v797 = vsel %vm475, %v792, 0
      %799 = vmatprep.subr.bf16.mxu0 0
      %800 = vmatpush1.bf16.msra.mxu0 %v797
      %801 = vmatprep.subr.bf16.mxu0 0
      %802 = vmatpush1.bf16.msra.mxu0 0
      %803 = vmatprep.subr.bf16.mxu0 0
      %804 = vmatpush1.bf16.msra.mxu0 0
      %805 = vmatprep.subr.bf16.mxu0 0
      %806 = vmatpush1.bf16.msra.mxu0 0
      %807 = vmatprep.subr.bf16.mxu0 0
      %808 = vmatpush1.bf16.msra.mxu0 0
      %809 = vmatprep.subr.bf16.mxu0 0
      %810 = vmatpush1.bf16.msra.mxu0 0
      %811 = vmatprep.subr.bf16.mxu0 0
      %812 = vmatpush1.bf16.msra.mxu0 0
      %813 = vmatprep.subr.bf16.mxu0 0
      %814 = vmatpush1.bf16.msra.mxu0 0
      %815 = vmatprep.subr.bf16.mxu0 0
      %816 = vmatpush1.bf16.msra.mxu0 0
      %817 = vmatprep.subr.bf16.mxu0 0
      %818 = vmatpush1.bf16.msra.mxu0 0
      %819 = vmatprep.subr.bf16.mxu0 0
      %820 = vmatpush1.bf16.msra.mxu0 0
      %821 = vmatprep.subr.bf16.mxu0 0
      %822 = vmatpush1.bf16.msra.mxu0 0
      %823 = vmatprep.subr.bf16.mxu0 0
      %824 = vmatpush1.bf16.msra.mxu0 0
      %825 = vmatprep.subr.bf16.mxu0 0
      %826 = vmatpush1.bf16.msra.mxu0 0
      %827 = vmatprep.subr.bf16.mxu0 0
      %828 = vmatpush1.bf16.msra.mxu0 0
      %829 = vmatprep.subr.bf16.mxu0 0
      %830 = vmatpush1.bf16.msra.mxu0 0
      %831 = vmatprep.mubr.bf16.mxu0 0
      %832 = vmatmul.mubr.bf16.gmra.mrb[0].mxu0 %v794
      %v833 = vpop.f32.mrb[0].mxu0
      %v834 = vadd.f32 0.0, %v833
      %v835 = vpop.f32.mrb[0].mxu0
      %v836 = vpop.f32.mrb[0].mxu0
      %v837 = vpop.f32.mrb[0].mxu0
      %838 = vdwg.mxu0
      %v839 = vpack.c.bf16 %v834, %v834
      %v840 = vld [vmem:[%s5 + $0x8] sm:$0xf]
      %v842 = vsel %vm412, %v839, 0
      %v845 = vsel %vm639, %v840, 0
      %847 = vmatprep.subr.bf16.mxu0 0
      %848 = vmatpush1.bf16.msra.mxu0 %v845
      %849 = vmatprep.subr.bf16.mxu0 0
      %850 = vmatpush1.bf16.msra.mxu0 0
      %851 = vmatprep.subr.bf16.mxu0 0
      %852 = vmatpush1.bf16.msra.mxu0 0
      %853 = vmatprep.subr.bf16.mxu0 0
      %854 = vmatpush1.bf16.msra.mxu0 0
      %855 = vmatprep.subr.bf16.mxu0 0
      %856 = vmatpush1.bf16.msra.mxu0 0
      %857 = vmatprep.subr.bf16.mxu0 0
      %858 = vmatpush1.bf16.msra.mxu0 0
      %859 = vmatprep.subr.bf16.mxu0 0
      %860 = vmatpush1.bf16.msra.mxu0 0
      %861 = vmatprep.subr.bf16.mxu0 0
      %862 = vmatpush1.bf16.msra.mxu0 0
      %863 = vmatprep.subr.bf16.mxu0 0
      %864 = vmatpush1.bf16.msra.mxu0 0
      %865 = vmatprep.subr.bf16.mxu0 0
      %866 = vmatpush1.bf16.msra.mxu0 0
      %867 = vmatprep.subr.bf16.mxu0 0
      %868 = vmatpush1.bf16.msra.mxu0 0
      %869 = vmatprep.subr.bf16.mxu0 0
      %870 = vmatpush1.bf16.msra.mxu0 0
      %871 = vmatprep.subr.bf16.mxu0 0
      %872 = vmatpush1.bf16.msra.mxu0 0
      %873 = vmatprep.subr.bf16.mxu0 0
      %874 = vmatpush1.bf16.msra.mxu0 0
      %875 = vmatprep.subr.bf16.mxu0 0
      %876 = vmatpush1.bf16.msra.mxu0 0
      %877 = vmatprep.subr.bf16.mxu0 0
      %878 = vmatpush1.bf16.msra.mxu0 0
      %879 = vmatprep.mubr.bf16.mxu0 0
      %880 = vmatmul.mubr.bf16.gmra.mrb[0].mxu0 %v842
      %v881 = vpop.f32.mrb[0].mxu0
      %v882 = vadd.f32 0.0, %v881
      %v883 = vpop.f32.mrb[0].mxu0
      %v884 = vpop.f32.mrb[0].mxu0
      %v885 = vpop.f32.mrb[0].mxu0
      %886 = vdwg.mxu0
      %v887 = vadd.f32 %v724, %v882
      %888 = vrot.lane.b32.xlu0 %v409, 104
      %v889 = vpop.permute.xlu0 %888
      %890 = vrot.lane.b32.xlu0 %v410, 104
      %v891 = vpop.permute.xlu0 %890
      %v893 = vsel %vm412, %v889, 0
      %v896 = vsel %vm412, %v891, 0
      %898 = vmatprep.subr.bf16.mxu0 0
      %899 = vmatpush1.bf16.xpose.msra.mxu0 %v896
      %900 = vmatprep.subr.bf16.mxu0 0
      %901 = vmatpush1.bf16.xpose.msra.mxu0 0
      %902 = vmatprep.subr.bf16.mxu0 0
      %903 = vmatpush1.bf16.xpose.msra.mxu0 0
      %904 = vmatprep.subr.bf16.mxu0 0
      %905 = vmatpush1.bf16.xpose.msra.mxu0 0
      %906 = vmatprep.subr.bf16.mxu0 0
      %907 = vmatpush1.bf16.xpose.msra.mxu0 0
      %908 = vmatprep.subr.bf16.mxu0 0
      %909 = vmatpush1.bf16.xpose.msra.mxu0 0
      %910 = vmatprep.subr.bf16.mxu0 0
      %911 = vmatpush1.bf16.xpose.msra.mxu0 0
      %912 = vmatprep.subr.bf16.mxu0 0
      %913 = vmatpush1.bf16.xpose.msra.mxu0 0
      %914 = vmatprep.subr.bf16.mxu0 0
      %915 = vmatpush1.bf16.xpose.msra.mxu0 0
      %916 = vmatprep.subr.bf16.mxu0 0
      %917 = vmatpush1.bf16.xpose.msra.mxu0 0
      %918 = vmatprep.subr.bf16.mxu0 0
      %919 = vmatpush1.bf16.xpose.msra.mxu0 0
      %920 = vmatprep.subr.bf16.mxu0 0
      %921 = vmatpush1.bf16.xpose.msra.mxu0 0
      %922 = vmatprep.subr.bf16.mxu0 0
      %923 = vmatpush1.bf16.xpose.msra.mxu0 0
      %924 = vmatprep.subr.bf16.mxu0 0
      %925 = vmatpush1.bf16.xpose.msra.mxu0 0
      %926 = vmatprep.subr.bf16.mxu0 0
      %927 = vmatpush1.bf16.xpose.msra.mxu0 0
      %928 = vmatprep.subr.bf16.mxu0 0
      %929 = vmatpush1.bf16.xpose.msra.mxu0 0
      %930 = vmatprep.mubr.bf16.mxu0 0
      %931 = vmatmul.mubr.bf16.gmra.mrb[0].mxu0 %v893
      %v932 = vpop.f32.mrb[0].mxu0
      %v933 = vadd.f32 %v408, %v932
      %v934 = vpop.f32.mrb[0].mxu0
      %v935 = vpop.f32.mrb[0].mxu0
      %v936 = vpop.f32.mrb[0].mxu0
      %937 = vdwg.mxu0
      %v938 = vsel %vm459, %v933, -inf
      %939 = vmax.xlane.f32.xlu0 %v938
      %v940 = vpop.xlane.xlu0 %939
      %v941 = vsub.f32 %v933, %v940
      %v942 = vmul.f32 %v941, 1.442695
      %v943 = vpow.pop %v942
      %v944 = vsel %vm459, %v943, 0.0
      %945 = vadd.xlane.f32.xlu0 %v944
      %v946 = vpop.xlane.xlu0 %945
      %v947 = vrcp.pop %v946
      %v948 = vmul.f32 %v943, %v947
      %v949 = vpack.c.bf16 %v948, %v948
      %950 = vrot.lane.b32.xlu0 %v411, 104
      %v951 = vpop.permute.xlu0 %950
      %v953 = vsel %vm459, %v949, 0
      %v956 = vsel %vm475, %v951, 0
      %958 = vmatprep.subr.bf16.mxu0 0
      %959 = vmatpush1.bf16.msra.mxu0 %v956
      %960 = vmatprep.subr.bf16.mxu0 0
      %961 = vmatpush1.bf16.msra.mxu0 0
      %962 = vmatprep.subr.bf16.mxu0 0
      %963 = vmatpush1.bf16.msra.mxu0 0
      %964 = vmatprep.subr.bf16.mxu0 0
      %965 = vmatpush1.bf16.msra.mxu0 0
      %966 = vmatprep.subr.bf16.mxu0 0
      %967 = vmatpush1.bf16.msra.mxu0 0
      %968 = vmatprep.subr.bf16.mxu0 0
      %969 = vmatpush1.bf16.msra.mxu0 0
      %970 = vmatprep.subr.bf16.mxu0 0
      %971 = vmatpush1.bf16.msra.mxu0 0
      %972 = vmatprep.subr.bf16.mxu0 0
      %973 = vmatpush1.bf16.msra.mxu0 0
      %974 = vmatprep.subr.bf16.mxu0 0
      %975 = vmatpush1.bf16.msra.mxu0 0
      %976 = vmatprep.subr.bf16.mxu0 0
      %977 = vmatpush1.bf16.msra.mxu0 0
      %978 = vmatprep.subr.bf16.mxu0 0
      %979 = vmatpush1.bf16.msra.mxu0 0
      %980 = vmatprep.subr.bf16.mxu0 0
      %981 = vmatpush1.bf16.msra.mxu0 0
      %982 = vmatprep.subr.bf16.mxu0 0
      %983 = vmatpush1.bf16.msra.mxu0 0
      %984 = vmatprep.subr.bf16.mxu0 0
      %985 = vmatpush1.bf16.msra.mxu0 0
      %986 = vmatprep.subr.bf16.mxu0 0
      %987 = vmatpush1.bf16.msra.mxu0 0
      %988 = vmatprep.subr.bf16.mxu0 0
      %989 = vmatpush1.bf16.msra.mxu0 0
      %990 = vmatprep.mubr.bf16.mxu0 0
      %991 = vmatmul.mubr.bf16.gmra.mrb[0].mxu0 %v953
      %v992 = vpop.f32.mrb[0].mxu0
      %v993 = vadd.f32 0.0, %v992
      %v994 = vpop.f32.mrb[0].mxu0
      %v995 = vpop.f32.mrb[0].mxu0
      %v996 = vpop.f32.mrb[0].mxu0
      %997 = vdwg.mxu0
      %v998 = vpack.c.bf16 %v993, %v993
      %v999 = vld [vmem:[%s5 + $0xc] sm:$0xf]
      %v1001 = vsel %vm412, %v998, 0
      %v1004 = vsel %vm639, %v999, 0
      %1006 = vmatprep.subr.bf16.mxu0 0
      %1007 = vmatpush1.bf16.msra.mxu0 %v1004
      %1008 = vmatprep.subr.bf16.mxu0 0
      %1009 = vmatpush1.bf16.msra.mxu0 0
      %1010 = vmatprep.subr.bf16.mxu0 0
      %1011 = vmatpush1.bf16.msra.mxu0 0
      %1012 = vmatprep.subr.bf16.mxu0 0
      %1013 = vmatpush1.bf16.msra.mxu0 0
      %1014 = vmatprep.subr.bf16.mxu0 0
      %1015 = vmatpush1.bf16.msra.mxu0 0
      %1016 = vmatprep.subr.bf16.mxu0 0
      %1017 = vmatpush1.bf16.msra.mxu0 0
      %1018 = vmatprep.subr.bf16.mxu0 0
      %1019 = vmatpush1.bf16.msra.mxu0 0
      %1020 = vmatprep.subr.bf16.mxu0 0
      %1021 = vmatpush1.bf16.msra.mxu0 0
      %1022 = vmatprep.subr.bf16.mxu0 0
      %1023 = vmatpush1.bf16.msra.mxu0 0
      %1024 = vmatprep.subr.bf16.mxu0 0
      %1025 = vmatpush1.bf16.msra.mxu0 0
      %1026 = vmatprep.subr.bf16.mxu0 0
      %1027 = vmatpush1.bf16.msra.mxu0 0
      %1028 = vmatprep.subr.bf16.mxu0 0
      %1029 = vmatpush1.bf16.msra.mxu0 0
      %1030 = vmatprep.subr.bf16.mxu0 0
      %1031 = vmatpush1.bf16.msra.mxu0 0
      %1032 = vmatprep.subr.bf16.mxu0 0
      %1033 = vmatpush1.bf16.msra.mxu0 0
      %1034 = vmatprep.subr.bf16.mxu0 0
      %1035 = vmatpush1.bf16.msra.mxu0 0
      %1036 = vmatprep.subr.bf16.mxu0 0
      %1037 = vmatpush1.bf16.msra.mxu0 0
      %1038 = vmatprep.mubr.bf16.mxu0 0
      %1039 = vmatmul.mubr.bf16.gmra.mrb[0].mxu0 %v1001
      %v1040 = vpop.f32.mrb[0].mxu0
      %v1041 = vadd.f32 0.0, %v1040
      %v1042 = vpop.f32.mrb[0].mxu0
      %v1043 = vpop.f32.mrb[0].mxu0
      %v1044 = vpop.f32.mrb[0].mxu0
      %1045 = vdwg.mxu0
      %v1046 = vadd.f32 %v887, %v1041
      %v1047 = vld [vmem:[%s397] sm:$0xff]
      %v1048 = vadd.f32 %v1047, %v1046
      %v1049 = vld [vmem:[%s6] sm:$0x1]
      %v1051 = vlaneseq
      %v1052 = vshrl.u32 %v1051, 7
      %v1053 = vsub.s32 0, %v1052
      %v1054 = vrot.slane %v1049, %v1053
      %v1056 = vadd.f32 %v1048, %v1054
      %vm1057 = vcmask 261120
      %v1058 = vsel %vm1057, %v1056, 0.0
      %1059 = vadd.xlane.f32.xlu0 %v1058
      %v1060 = vpop.xlane.xlu0 %1059
      %v1061 = vrcp.pop 32.0
      %v1062 = vmul.f32 %v1060, %v1061
      %v1063 = vsub.f32 %v1056, %v1062
      %v1064 = vmul.f32 %v1063, %v1063
      %v1065 = vsel %vm1057, %v1064, 0.0
      %1066 = vadd.xlane.f32.xlu0 %v1065
      %v1067 = vpop.xlane.xlu0 %1066
      %v1068 = vmul.f32 %v1067, %v1061
      %v1069 = vadd.f32 %v1068, 1e-05
      %v1070 = vrsqrt.pop %v1069
      %v1071 = vmul.f32 %v1063, %v1070
      %v1072 = vld [vmem:[%s7] sm:$0x1]
      %v1074 = vlaneseq
      %v1075 = vshrl.u32 %v1074, 7
      %v1076 = vsub.s32 0, %v1075
      %v1077 = vrot.slane %v1072, %v1076
      %v1079 = vmul.f32 %v1071, %v1077
      %v1080 = vld [vmem:[%s8] sm:$0x1]
      %v1082 = vlaneseq
      %v1083 = vshrl.u32 %v1082, 7
      %v1084 = vsub.s32 0, %v1083
      %v1085 = vrot.slane %v1080, %v1084
      %v1087 = vadd.f32 %v1079, %v1085
      %1088 = vst.msk [vmem:[%s401] sm:$0xff] %vm1057, %v1087
      %p1089 = scmp.lt.s32.totalorder %s20, 1
      %s1090 = scalar_select %p1089, %s20, 1
      %s1091 = smul.addr %s1090, 8
      %s1092 = scalar_lea.vmem %s9, %s1091
      // Predicated region
      $region57: #{transformer_forward.29} parent=55 // pred_check
        %p1093 = pneg %p252
      $region58: #{transformer_forward.29} parent=55 // pred_check_branch
        %1095 = sbr.rel (%p1093) target = $region60
      $region59: #{transformer_forward.29} parent=55 // pred_region
        _
      $region60: #{transformer_forward.29} parent=55 // pred_fallthru
        _
    $region56: #{transformer_forward.29} parent=5 // pred_fallthru
      _
    %p1096 = scmp.le.s32.totalorder 2, %s15
    // Predicated region
    $region61: #{transformer_forward.29} parent=5 // pred_check
      %p1097 = pneg %p1096
    $region62: #{transformer_forward.29} parent=5 // pred_check_branch
      %1099 = sbr.rel (%p1097) target = $region64
    $region63: #{transformer_forward.29} parent=5 // pred_region
      %s1100 = ssub.s32 %s15, 2
      // Predicated region
      $region65: #{transformer_forward.29} parent=63 // pred_check
        %p1101 = pneg %p258
      $region66: #{transformer_forward.29} parent=63 // pred_check_branch
        %1103 = sbr.rel (%p1101) target = $region68
      $region67: #{transformer_forward.29} parent=63 // pred_region
        %p1104 = scmp.lt.s32.totalorder %s21, 1
        %s1105 = scalar_select %p1104, %s21, 1
        %s1106 = smul.addr %s1105, 8
        %s1107 = scalar_lea.vmem %s9, %s1106
      $region68: #{transformer_forward.29} parent=63 // pred_fallthru
        _
    $region64: #{transformer_forward.29} parent=5 // pred_fallthru
      _
  $region6: #{transformer_forward.29} parent=0 // loop_footer
    %s19 = sadd.s32 1, %s15
  $region7: #{transformer_forward.29} parent=0 // loop_footer_branch
    %14 = sbr.rel target = $region3
  $region8: #{transformer_forward.29} parent=0 // loop_exit
    _

</llo_original>
